<compile_context>
chip_gen: v6e
topology: v6e:2x2x1
jax: 0.10.0
libtpu: 0.0.40
codegen_flags: <defaults>
</compile_context>

<pallas_src>
import functools
import math

import numpy as np
import jax
import jax.numpy as jnp
from jax.experimental import pallas as pl
from jax.experimental.pallas import tpu as pltpu

# Hyper-parameters mirroring the PyTorch module defaults.
D_MODEL = 64
N_HEADS = 4
HEAD_DIM = D_MODEL // N_HEADS
FF_DIM = 2048          # nn.TransformerEncoderLayer default dim_feedforward
N_LAYERS = 2
CLS_HIDDEN = 32
LN_EPS = 1e-5
LANE = 128

ENC_PARAMS = [
    "emb_w", "emb_b",
    "qkv_w", "qkv_b", "o_w", "o_b",
    "ln1_w", "ln1_b", "ln2_w", "ln2_b",
    "ff1_w", "ff1_b", "ff2_w", "ff2_b",
]


def _layernorm(x, w, b):
    mu = jnp.mean(x, axis=-1, keepdims=True)
    xc = x - mu
    var = jnp.mean(xc * xc, axis=-1, keepdims=True)
    return xc * jax.lax.rsqrt(var + LN_EPS) * w + b


def encoder_kernel(x_ref,
                   emb_w_ref, emb_b_ref,
                   qkvw_ref, qkvb_ref, ow_ref, ob_ref,
                   ln1w_ref, ln1b_ref, ln2w_ref, ln2b_ref,
                   ff1w_ref, ff1b_ref, ff2w_ref, ff2b_ref,
                   pool_ref,
                   *, seq, bpg, inner_steps, batch, padded, cdtype):
    """One grid step = `bpg` batch elements (bpg*seq rows) through the encoder."""
    f32 = jnp.float32
    cd = cdtype
    rows = bpg * seq

    # ---- embedding: Linear(input_dim -> 64), f32 accumulation ----
    h = (jnp.dot(x_ref[...], emb_w_ref[...], preferred_element_type=f32)
         + emb_b_ref[...])

    for l in range(N_LAYERS):
        # ---- self attention (post-norm encoder layer) ----
        hc = h.astype(cd)
        # Fused QKV projection; 1/sqrt(head_dim) already folded into Q cols.
        qkv = (jnp.dot(hc, qkvw_ref[l], preferred_element_type=f32)
               + qkvb_ref[l])                                   # (rows, 192)

        def heads(t):
            # (rows, 64) -> (H*bpg, seq, HEAD_DIM): head-major batched layout
            # built from lane slices + leading-axis concat (no minor reshape).
            return jnp.concatenate(
                [t[:, hh * HEAD_DIM:(hh + 1) * HEAD_DIM] for hh in range(N_HEADS)],
                axis=0).reshape(N_HEADS * bpg, seq, HEAD_DIM)

        qh = heads(qkv[:, 0:D_MODEL]).astype(cd)
        kh = heads(qkv[:, D_MODEL:2 * D_MODEL]).astype(cd)
        vh = heads(qkv[:, 2 * D_MODEL:3 * D_MODEL]).astype(cd)

        # One scores einsum / one softmax / one PV einsum over all heads.
        s = jnp.einsum("bqd,bkd->bqk", qh, kh, preferred_element_type=f32)
        s = s - jnp.max(s, axis=-1, keepdims=True)
        p = jnp.exp(s)
        p = p / jnp.sum(p, axis=-1, keepdims=True)              # exact softmax
        ah = jnp.einsum("bqk,bkd->bqd", p.astype(cd), vh,
                        preferred_element_type=f32)             # (H*bpg, seq, 16)

        # Fold heads back along lanes (column order h*16+d, PyTorch concat
        # order) and do a single full-width output projection.
        ahf = ah.reshape(N_HEADS, rows, HEAD_DIM)
        attn2d = jnp.concatenate([ahf[hh] for hh in range(N_HEADS)], axis=-1)
        attn = (jnp.dot(attn2d.astype(cd), ow_ref[l], preferred_element_type=f32)
                + ob_ref[l])

        h = _layernorm(h + attn, ln1w_ref[l], ln1b_ref[l])

        # ---- feed forward (FLOP-dominant 64x2048 / 2048x64 matmuls) ----
        # Fused epilogue: bias + relu + cast in one expression so the f32
        # (rows, 2048) slab and its compute-dtype copy are never both live.
        ff_act = jnp.maximum(
            jnp.dot(h.astype(cd), ff1w_ref[l], preferred_element_type=f32)
            + ff1b_ref[l], 0.0).astype(cd)
        ff = (jnp.dot(ff_act, ff2w_ref[l], preferred_element_type=f32)
              + ff2b_ref[l])
        h = _layernorm(h + ff, ln2w_ref[l], ln2b_ref[l])

    # ---- partial mean-over-B pool, accumulated into this core's output ----
    h3 = h.reshape(bpg, seq, D_MODEL)
    if padded:
        # Mask out zero-padded batch elements (only present when B was padded
        # up to a whole number of aligned tiles).
        gstep = pl.program_id(0) * inner_steps + pl.program_id(1)
        bidx = jax.lax.broadcasted_iota(jnp.int32, (bpg, 1, 1), 0) + gstep * bpg
        h3 = jnp.where(bidx < batch, h3, 0.0)
    blk = jnp.sum(h3, axis=0, keepdims=True)                     # (1, seq, 64)

    @pl.when(pl.program_id(1) == 0)
    def _():
        pool_ref[...] = jnp.zeros_like(pool_ref)

    pool_ref[...] += blk


def classifier_kernel(pool_ref, c1w_ref, c1b_ref, c2w_ref, c2b_ref, o_ref,
                      *, batch, cdtype):
    """Reduce per-core partial pools, apply mean and the 2-layer classifier."""
    f32 = jnp.float32
    pooled = jnp.sum(pool_ref[...], axis=0) * (1.0 / batch)       # (S, 64)
    z = jnp.maximum(
        jnp.dot(pooled.astype(cdtype), c1w_ref[...], preferred_element_type=f32)
        + c1b_ref[...], 0.0)
    o_ref[...] = (jnp.dot(z.astype(cdtype), c2w_ref[...],
                          preferred_element_type=f32) + c2b_ref[...])


def _default_rows_target():
    # ~512 rows/step keeps the fused FF working set well inside v7x's 64 MiB;
    # on 128-MiB-VMEM parts (v5e/v6e) stream a longer M per step.
    try:
        if pltpu.get_tpu_info().vmem_capacity_bytes >= (100 << 20):
            return 1024
    except Exception:
        pass
    return 512


def eeg_transformer_forward(x, params, *, rows_per_step=None,
                            compute_dtype=jnp.bfloat16):
    """x: (S, B, input_dim) float32 -> (S, num_classes) float32."""
    S, B, din = x.shape
    num_classes = params["c2_w"].shape[-1]
    cd = compute_dtype
    cd_bytes = jnp.dtype(cd).itemsize
    cpad = ((num_classes + LANE - 1) // LANE) * LANE

    # ---- batch tiling: aligned tiles + zero padding (no whole-batch fallback)
    if rows_per_step is None:
        rows_per_step = _default_rows_target()
    bpg = max(1, rows_per_step // max(S, 1))
    bpg = min(bpg, B)
    align = 8 // math.gcd(S, 8)                 # keeps bpg*S % 8 == 0
    bpg = ((bpg + align - 1) // align) * align
    nsteps = -(-B // bpg)
    if nsteps > 1 and nsteps % 2:
        nsteps += 1                             # even #steps -> 2-way core split
    b_pad = nsteps * bpg
    padded = b_pad != B
    ncores = 2 if nsteps >= 2 else 1            # v7x megacore; harmless on 1-TC chips
    inner = nsteps // ncores
    rows = bpg * S

    # ---- parameter prep (fused QKV, scale folding, compute-dtype weights) ----
    scale = 1.0 / math.sqrt(HEAD_DIM)
    qkv_w = jnp.concatenate(
        [params["q_w"] * scale, params["k_w"], params["v_w"]], axis=-1)
    qkv_b = jnp.concatenate(
        [params["q_b"] * scale, params["k_b"], params["v_b"]], axis=-1)
    prep = {
        "emb_w": params["emb_w"].astype(cd),
        "emb_b": params["emb_b"],
        "qkv_w": qkv_w.astype(cd),
        "qkv_b": qkv_b,
        "o_w": params["o_w"].astype(cd),
        "o_b": params["o_b"],
        "ln1_w": params["ln1_w"], "ln1_b": params["ln1_b"],
        "ln2_w": params["ln2_w"], "ln2_b": params["ln2_b"],
        "ff1_w": params["ff1_w"].astype(cd), "ff1_b": params["ff1_b"],
        "ff2_w": params["ff2_w"].astype(cd), "ff2_b": params["ff2_b"],
    }

    # b-major rows (row = b*S + s), cast to compute dtype, pad batch with zeros.
    x2 = jnp.transpose(x, (1, 0, 2)).reshape(B * S, din).astype(cd)
    if padded:
        x2 = jnp.pad(x2, ((0, (b_pad - B) * S), (0, 0)))

    # VMEM budget from the actual working set (cap at v7x physical 64 MiB).
    weight_bytes = sum(int(a.size) * a.dtype.itemsize for a in prep.values())
    est = (2 * weight_bytes
           + rows * FF_DIM * (4 + cd_bytes)     # fused FF1 act (f32) + cd copy
           + rows * D_MODEL * 4 * 16            # h/qkv/attn/head slabs (generous)
           + 4 * rows * din * cd_bytes          # double-buffered x tile
           + (2 << 20))
    vmem_limit = int(min(64 << 20, max(32 << 20, est + est // 2)))

    def full_spec(a):
        # Resident weights (constant block index -> DMA'd once).
        # TODO(synk): pipeline_mode=pl.Buffered(1) here would drop the unused
        # second buffer (~1 MiB) once single-buffering is universally supported.
        if a.ndim == 2:
            return pl.BlockSpec(a.shape, lambda c, i: (0, 0))
        return pl.BlockSpec(a.shape, lambda c, i: (0, 0, 0))

    enc = functools.partial(encoder_kernel, seq=S, bpg=bpg, inner_steps=inner,
                            batch=B, padded=padded, cdtype=cd)

    pools = pl.pallas_call(
        enc,
        out_shape=jax.ShapeDtypeStruct((ncores, S, D_MODEL), jnp.float32),
        grid=(ncores, inner),
        in_specs=[pl.BlockSpec((rows, din), lambda c, i: (c * inner + i, 0))]
                 + [full_spec(prep[name]) for name in ENC_PARAMS],
        out_specs=pl.BlockSpec((1, S, D_MODEL), lambda c, i: (c, 0, 0)),
        compiler_params=pltpu.CompilerParams(
            # Outer axis: independent per-core partial pools (megacore on v7x,
            # plain sequential on v5e/v6e).  Inner axis carries the B reduction.
            dimension_semantics=("parallel", "arbitrary"),
            vmem_limit_bytes=vmem_limit),
    )(x2, *[prep[name] for name in ENC_PARAMS])

    # Tiny second kernel: reduce partial pools, mean, classifier (lane-dense out).
    c2_w = jnp.pad(params["c2_w"], ((0, 0), (0, cpad - num_classes))).astype(cd)
    c2_b = jnp.pad(params["c2_b"], ((0, 0), (0, cpad - num_classes)))
    out = pl.pallas_call(
        functools.partial(classifier_kernel, batch=B, cdtype=cd),
        out_shape=jax.ShapeDtypeStruct((S, cpad), jnp.float32),
    )(pools, params["c1_w"].astype(cd), params["c1_b"], c2_w, c2_b)
    return out[:, :num_classes]


def init_params(key, input_dim, num_classes):
    """Deterministic synthetic parameters (weights stored as (in, out))."""
    ks = iter(jax.random.split(key, 48))

    def rnd(shape, s=0.05):
        return jax.random.normal(next(ks), shape, jnp.float32) * s

    return {
        "emb_w": rnd((input_dim, D_MODEL)),
        "emb_b": rnd((1, D_MODEL)),
        "q_w": rnd((N_LAYERS, D_MODEL, D_MODEL)),
        "q_b": rnd((N_LAYERS, 1, D_MODEL)),
        "k_w": rnd((N_LAYERS, D_MODEL, D_MODEL)),
        "k_b": rnd((N_LAYERS, 1, D_MODEL)),
        "v_w": rnd((N_LAYERS, D_MODEL, D_MODEL)),
        "v_b": rnd((N_LAYERS, 1, D_MODEL)),
        "o_w": rnd((N_LAYERS, D_MODEL, D_MODEL)),
        "o_b": rnd((N_LAYERS, 1, D_MODEL)),
        "ln1_w": jnp.ones((N_LAYERS, 1, D_MODEL), jnp.float32),
        "ln1_b": jnp.zeros((N_LAYERS, 1, D_MODEL), jnp.float32),
        "ln2_w": jnp.ones((N_LAYERS, 1, D_MODEL), jnp.float32),
        "ln2_b": jnp.zeros((N_LAYERS, 1, D_MODEL), jnp.float32),
        "ff1_w": rnd((N_LAYERS, D_MODEL, FF_DIM)),
        "ff1_b": rnd((N_LAYERS, 1, FF_DIM)),
        "ff2_w": rnd((N_LAYERS, FF_DIM, D_MODEL)),
        "ff2_b": rnd((N_LAYERS, 1, D_MODEL)),
        "c1_w": rnd((D_MODEL, CLS_HIDDEN)),
        "c1_b": rnd((1, CLS_HIDDEN)),
        "c2_w": rnd((CLS_HIDDEN, num_classes)),
        "c2_b": rnd((1, num_classes)),
    }


def reference_forward(x, p):
    """Pure-JAX reference of the PyTorch forward (eval mode, post-norm)."""
    S, B, _ = x.shape
    h = jnp.einsum("sbd,de->sbe", x, p["emb_w"]) + p["emb_b"][0]
    for l in range(N_LAYERS):
        q = jnp.einsum("sbe,ef->sbf", h, p["q_w"][l]) + p["q_b"][l, 0]
        k = jnp.einsum("sbe,ef->sbf", h, p["k_w"][l]) + p["k_b"][l, 0]
        v = jnp.einsum("sbe,ef->sbf", h, p["v_w"][l]) + p["v_b"][l, 0]
        q = q.reshape(S, B, N_HEADS, HEAD_DIM)
        k = k.reshape(S, B, N_HEADS, HEAD_DIM)
        v = v.reshape(S, B, N_HEADS, HEAD_DIM)
        scores = jnp.einsum("sbhd,tbhd->bhst", q, k) / math.sqrt(HEAD_DIM)
        pr = jax.nn.softmax(scores, axis=-1)
        a = jnp.einsum("bhst,tbhd->sbhd", pr, v).reshape(S, B, D_MODEL)
        a = jnp.einsum("sbe,ef->sbf", a, p["o_w"][l]) + p["o_b"][l, 0]
        h = _layernorm(h + a, p["ln1_w"][l, 0], p["ln1_b"][l, 0])
        ff = jax.nn.relu(jnp.einsum("sbe,ef->sbf", h, p["ff1_w"][l]) + p["ff1_b"][l, 0])
        ff = jnp.einsum("sbf,fe->sbe", ff, p["ff2_w"][l]) + p["ff2_b"][l, 0]
        h = _layernorm(h + ff, p["ln2_w"][l, 0], p["ln2_b"][l, 0])
    pooled = h.mean(axis=1)
    z = jax.nn.relu(pooled @ p["c1_w"] + p["c1_b"][0])
    return z @ p["c2_w"] + p["c2_b"][0]


if __name__ == "__main__":
    key = jax.random.PRNGKey(0)
    kx, kp, kx3 = jax.random.split(key, 3)

    S, B, INPUT_DIM, NUM_CLASSES = 8, 2, 16, 4   # small shapes
    x = jax.random.normal(kx, (S, B, INPUT_DIM), jnp.float32)
    params = init_params(kp, INPUT_DIM, NUM_CLASSES)
    ref = reference_forward(x, params)

    # f32 compute, tiny tiles: exercises the 2-axis grid (two partial pools),
    # the pipelined x stream and the second-stage reduce+classifier.
    out_f32 = jax.block_until_ready(
        eeg_transformer_forward(x, params, rows_per_step=8,
                                compute_dtype=jnp.float32))
    assert out_f32.shape == (S, NUM_CLASSES)
    np.testing.assert_allclose(np.asarray(out_f32), np.asarray(ref),
                               atol=2e-3, rtol=2e-2)

    # bf16 matmul path with the default (large-tile) grouping.
    out_bf16 = jax.block_until_ready(
        eeg_transformer_forward(x, params, compute_dtype=jnp.bfloat16))
    assert out_bf16.shape == (S, NUM_CLASSES)
    np.testing.assert_allclose(np.asarray(out_bf16), np.asarray(ref),
                               atol=5e-2, rtol=5e-2)

    # Padded-batch path (B not divisible by the tile): masked pool must match.
    B3 = 3
    x3 = jax.random.normal(kx3, (S, B3, INPUT_DIM), jnp.float32)
    ref3 = reference_forward(x3, params)
    out3 = jax.block_until_ready(
        eeg_transformer_forward(x3, params, rows_per_step=8,
                                compute_dtype=jnp.float32))
    assert out3.shape == (S, NUM_CLASSES)
    np.testing.assert_allclose(np.asarray(out3), np.asarray(ref3),
                               atol=2e-3, rtol=2e-2)

    print("KERNEL_OK")
</pallas_src>

<mosaic_0001>
module attributes {stable_mosaic.version = 11 : i64} {
  func.func @encoder_kernel(%arg0: i32, %arg1: i32, %arg2: memref<8x16xf32, #tpu.memory_space<vmem>>, %arg3: memref<16x64xf32, #tpu.memory_space<vmem>>, %arg4: memref<1x64xf32, #tpu.memory_space<vmem>>, %arg5: memref<2x64x192xf32, #tpu.memory_space<vmem>>, %arg6: memref<2x1x192xf32, #tpu.memory_space<vmem>>, %arg7: memref<2x64x64xf32, #tpu.memory_space<vmem>>, %arg8: memref<2x1x64xf32, #tpu.memory_space<vmem>>, %arg9: memref<2x1x64xf32, #tpu.memory_space<vmem>>, %arg10: memref<2x1x64xf32, #tpu.memory_space<vmem>>, %arg11: memref<2x1x64xf32, #tpu.memory_space<vmem>>, %arg12: memref<2x1x64xf32, #tpu.memory_space<vmem>>, %arg13: memref<2x64x2048xf32, #tpu.memory_space<vmem>>, %arg14: memref<2x1x2048xf32, #tpu.memory_space<vmem>>, %arg15: memref<2x2048x64xf32, #tpu.memory_space<vmem>>, %arg16: memref<2x1x64xf32, #tpu.memory_space<vmem>>, %arg17: memref<1x8x64xf32, #tpu.memory_space<vmem>>) attributes {dimension_semantics = [#tpu.dimension_semantics<parallel>, #tpu.dimension_semantics<arbitrary>], iteration_bounds = array<i64: 2, 1>, scalar_prefetch = 0 : i64, scratch_operands = 0 : i64, tpu.core_type = #tpu.core_type<tc>, window_params = [{transform_indices = @transform_0, window_bounds = array<i64: 8, 16>}, {pipeline_mode = #tpu.pipeline_mode<synchronous>, transform_indices = @transform_1, window_bounds = array<i64: 16, 64>}, {pipeline_mode = #tpu.pipeline_mode<synchronous>, transform_indices = @transform_2, window_bounds = array<i64: 1, 64>}, {pipeline_mode = #tpu.pipeline_mode<synchronous>, transform_indices = @transform_3, window_bounds = array<i64: 2, 64, 192>}, {pipeline_mode = #tpu.pipeline_mode<synchronous>, transform_indices = @transform_4, window_bounds = array<i64: 2, 1, 192>}, {pipeline_mode = #tpu.pipeline_mode<synchronous>, transform_indices = @transform_5, window_bounds = array<i64: 2, 64, 64>}, {pipeline_mode = #tpu.pipeline_mode<synchronous>, transform_indices = @transform_6, window_bounds = array<i64: 2, 1, 64>}, {pipeline_mode = #tpu.pipeline_mode<synchronous>, transform_indices = @transform_7, window_bounds = array<i64: 2, 1, 64>}, {pipeline_mode = #tpu.pipeline_mode<synchronous>, transform_indices = @transform_8, window_bounds = array<i64: 2, 1, 64>}, {pipeline_mode = #tpu.pipeline_mode<synchronous>, transform_indices = @transform_9, window_bounds = array<i64: 2, 1, 64>}, {pipeline_mode = #tpu.pipeline_mode<synchronous>, transform_indices = @transform_10, window_bounds = array<i64: 2, 1, 64>}, {pipeline_mode = #tpu.pipeline_mode<synchronous>, transform_indices = @transform_11, window_bounds = array<i64: 2, 64, 2048>}, {pipeline_mode = #tpu.pipeline_mode<synchronous>, transform_indices = @transform_12, window_bounds = array<i64: 2, 1, 2048>}, {pipeline_mode = #tpu.pipeline_mode<synchronous>, transform_indices = @transform_13, window_bounds = array<i64: 2, 2048, 64>}, {pipeline_mode = #tpu.pipeline_mode<synchronous>, transform_indices = @transform_14, window_bounds = array<i64: 2, 1, 64>}, {transform_indices = @transform_15, window_bounds = array<i64: 1, 8, 64>}]} {
    %c0 = arith.constant 0 : index
    %c0_0 = arith.constant 0 : index
    %0 = vector.load %arg2[%c0, %c0_0] : memref<8x16xf32, #tpu.memory_space<vmem>>, vector<8x16xf32>
    %c0_1 = arith.constant 0 : index
    %c0_2 = arith.constant 0 : index
    %1 = vector.load %arg3[%c0_1, %c0_2] : memref<16x64xf32, #tpu.memory_space<vmem>>, vector<16x64xf32>
    %cst = arith.constant dense<0.000000e+00> : vector<8x64xf32>
    %2 = tpu.matmul %0, %1, %cst {dimension_numbers = #tpu.dot_dimension_numbers<[1], [0], [0], [1], [0, 0, 1, 1], [], []>} : vector<8x16xf32>, vector<16x64xf32>, vector<8x64xf32> -> vector<8x64xf32>
    %c0_3 = arith.constant 0 : index
    %c0_4 = arith.constant 0 : index
    %3 = vector.load %arg4[%c0_3, %c0_4] : memref<1x64xf32, #tpu.memory_space<vmem>>, vector<1x64xf32>
    %4 = vector.broadcast %3 : vector<1x64xf32> to vector<8x64xf32>
    %5 = arith.addf %2, %4 : vector<8x64xf32>
    %c0_5 = arith.constant 0 : index
    %c0_6 = arith.constant 0 : index
    %c0_7 = arith.constant 0 : index
    %6 = vector.load %arg5[%c0_5, %c0_6, %c0_7] : memref<2x64x192xf32, #tpu.memory_space<vmem>>, vector<1x64x192xf32>
    %7 = vector.shape_cast %6 : vector<1x64x192xf32> to vector<64x192xf32>
    %cst_8 = arith.constant dense<0.000000e+00> : vector<8x192xf32>
    %8 = tpu.matmul %5, %7, %cst_8 {dimension_numbers = #tpu.dot_dimension_numbers<[1], [0], [0], [1], [0, 0, 1, 1], [], []>} : vector<8x64xf32>, vector<64x192xf32>, vector<8x192xf32> -> vector<8x192xf32>
    %c0_9 = arith.constant 0 : index
    %c0_10 = arith.constant 0 : index
    %c0_11 = arith.constant 0 : index
    %9 = vector.load %arg6[%c0_9, %c0_10, %c0_11] : memref<2x1x192xf32, #tpu.memory_space<vmem>>, vector<1x1x192xf32>
    %10 = vector.shape_cast %9 : vector<1x1x192xf32> to vector<1x192xf32>
    %11 = vector.broadcast %10 : vector<1x192xf32> to vector<8x192xf32>
    %12 = arith.addf %8, %11 : vector<8x192xf32>
    %13 = vector.extract_strided_slice %12 {offsets = [0, 0], sizes = [8, 64], strides = [1, 1]} : vector<8x192xf32> to vector<8x64xf32>
    %14 = vector.extract_strided_slice %13 {offsets = [0, 0], sizes = [8, 16], strides = [1, 1]} : vector<8x64xf32> to vector<8x16xf32>
    %15 = vector.extract_strided_slice %13 {offsets = [0, 16], sizes = [8, 16], strides = [1, 1]} : vector<8x64xf32> to vector<8x16xf32>
    %16 = vector.extract_strided_slice %13 {offsets = [0, 32], sizes = [8, 16], strides = [1, 1]} : vector<8x64xf32> to vector<8x16xf32>
    %17 = vector.extract_strided_slice %13 {offsets = [0, 48], sizes = [8, 16], strides = [1, 1]} : vector<8x64xf32> to vector<8x16xf32>
    %18 = tpu.concatenate %14, %15, %16, %17 in 0 : vector<8x16xf32>, vector<8x16xf32>, vector<8x16xf32>, vector<8x16xf32> -> vector<32x16xf32>
    %19 = vector.shape_cast %18 : vector<32x16xf32> to vector<4x8x16xf32>
    %20 = vector.extract_strided_slice %12 {offsets = [0, 64], sizes = [8, 64], strides = [1, 1]} : vector<8x192xf32> to vector<8x64xf32>
    %21 = vector.extract_strided_slice %20 {offsets = [0, 0], sizes = [8, 16], strides = [1, 1]} : vector<8x64xf32> to vector<8x16xf32>
    %22 = vector.extract_strided_slice %20 {offsets = [0, 16], sizes = [8, 16], strides = [1, 1]} : vector<8x64xf32> to vector<8x16xf32>
    %23 = vector.extract_strided_slice %20 {offsets = [0, 32], sizes = [8, 16], strides = [1, 1]} : vector<8x64xf32> to vector<8x16xf32>
    %24 = vector.extract_strided_slice %20 {offsets = [0, 48], sizes = [8, 16], strides = [1, 1]} : vector<8x64xf32> to vector<8x16xf32>
    %25 = tpu.concatenate %21, %22, %23, %24 in 0 : vector<8x16xf32>, vector<8x16xf32>, vector<8x16xf32>, vector<8x16xf32> -> vector<32x16xf32>
    %26 = vector.shape_cast %25 : vector<32x16xf32> to vector<4x8x16xf32>
    %27 = vector.extract_strided_slice %12 {offsets = [0, 128], sizes = [8, 64], strides = [1, 1]} : vector<8x192xf32> to vector<8x64xf32>
    %28 = vector.extract_strided_slice %27 {offsets = [0, 0], sizes = [8, 16], strides = [1, 1]} : vector<8x64xf32> to vector<8x16xf32>
    %29 = vector.extract_strided_slice %27 {offsets = [0, 16], sizes = [8, 16], strides = [1, 1]} : vector<8x64xf32> to vector<8x16xf32>
    %30 = vector.extract_strided_slice %27 {offsets = [0, 32], sizes = [8, 16], strides = [1, 1]} : vector<8x64xf32> to vector<8x16xf32>
    %31 = vector.extract_strided_slice %27 {offsets = [0, 48], sizes = [8, 16], strides = [1, 1]} : vector<8x64xf32> to vector<8x16xf32>
    %32 = tpu.concatenate %28, %29, %30, %31 in 0 : vector<8x16xf32>, vector<8x16xf32>, vector<8x16xf32>, vector<8x16xf32> -> vector<32x16xf32>
    %33 = vector.shape_cast %32 : vector<32x16xf32> to vector<4x8x16xf32>
    "tpu.trace_start"() <{level = 10 : i32, message = "bqd,bkd->bqk"}> : () -> ()
    %cst_12 = arith.constant dense<0.000000e+00> : vector<4x8x8xf32>
    %34 = tpu.matmul %19, %26, %cst_12 {dimension_numbers = #tpu.dot_dimension_numbers<[2], [2], [1], [1], [0, 0, 0, 1, 1, 1], [0], [0]>} : vector<4x8x16xf32>, vector<4x8x16xf32>, vector<4x8x8xf32> -> vector<4x8x8xf32>
    "tpu.trace_stop"() : () -> ()
    %cst_13 = arith.constant dense<0xFF800000> : vector<4x8xf32>
    %35 = vector.multi_reduction <maximumf>, %34, %cst_13 [2] : vector<4x8x8xf32> to vector<4x8xf32>
    %36 = vector.shape_cast %35 : vector<4x8xf32> to vector<4x8x1xf32>
    %37 = vector.broadcast %36 : vector<4x8x1xf32> to vector<4x8x8xf32>
    %38 = arith.subf %34, %37 : vector<4x8x8xf32>
    %39 = math.exp %38 : vector<4x8x8xf32>
    %cst_14 = arith.constant dense<0.000000e+00> : vector<4x8xf32>
    %40 = vector.multi_reduction <add>, %39, %cst_14 [2] : vector<4x8x8xf32> to vector<4x8xf32>
    %41 = vector.shape_cast %40 : vector<4x8xf32> to vector<4x8x1xf32>
    %42 = vector.broadcast %41 : vector<4x8x1xf32> to vector<4x8x8xf32>
    %43 = arith.divf %39, %42 : vector<4x8x8xf32>
    "tpu.trace_start"() <{level = 10 : i32, message = "bqk,bkd->bqd"}> : () -> ()
    %cst_15 = arith.constant dense<0.000000e+00> : vector<4x8x16xf32>
    %44 = tpu.matmul %43, %33, %cst_15 {dimension_numbers = #tpu.dot_dimension_numbers<[2], [1], [1], [2], [0, 0, 0, 1, 1, 2], [0], [0]>} : vector<4x8x8xf32>, vector<4x8x16xf32>, vector<4x8x16xf32> -> vector<4x8x16xf32>
    "tpu.trace_stop"() : () -> ()
    %45 = vector.extract_strided_slice %44 {offsets = [0, 0, 0], sizes = [1, 8, 16], strides = [1, 1, 1]} : vector<4x8x16xf32> to vector<1x8x16xf32>
    %46 = vector.shape_cast %45 : vector<1x8x16xf32> to vector<8x16xf32>
    %47 = vector.extract_strided_slice %44 {offsets = [1, 0, 0], sizes = [1, 8, 16], strides = [1, 1, 1]} : vector<4x8x16xf32> to vector<1x8x16xf32>
    %48 = vector.shape_cast %47 : vector<1x8x16xf32> to vector<8x16xf32>
    %49 = vector.extract_strided_slice %44 {offsets = [2, 0, 0], sizes = [1, 8, 16], strides = [1, 1, 1]} : vector<4x8x16xf32> to vector<1x8x16xf32>
    %50 = vector.shape_cast %49 : vector<1x8x16xf32> to vector<8x16xf32>
    %51 = vector.extract_strided_slice %44 {offsets = [3, 0, 0], sizes = [1, 8, 16], strides = [1, 1, 1]} : vector<4x8x16xf32> to vector<1x8x16xf32>
    %52 = vector.shape_cast %51 : vector<1x8x16xf32> to vector<8x16xf32>
    %53 = tpu.concatenate %46, %48, %50, %52 in 1 : vector<8x16xf32>, vector<8x16xf32>, vector<8x16xf32>, vector<8x16xf32> -> vector<8x64xf32>
    %c0_16 = arith.constant 0 : index
    %c0_17 = arith.constant 0 : index
    %c0_18 = arith.constant 0 : index
    %54 = vector.load %arg7[%c0_16, %c0_17, %c0_18] : memref<2x64x64xf32, #tpu.memory_space<vmem>>, vector<1x64x64xf32>
    %55 = vector.shape_cast %54 : vector<1x64x64xf32> to vector<64x64xf32>
    %cst_19 = arith.constant dense<0.000000e+00> : vector<8x64xf32>
    %56 = tpu.matmul %53, %55, %cst_19 {dimension_numbers = #tpu.dot_dimension_numbers<[1], [0], [0], [1], [0, 0, 1, 1], [], []>} : vector<8x64xf32>, vector<64x64xf32>, vector<8x64xf32> -> vector<8x64xf32>
    %c0_20 = arith.constant 0 : index
    %c0_21 = arith.constant 0 : index
    %c0_22 = arith.constant 0 : index
    %57 = vector.load %arg8[%c0_20, %c0_21, %c0_22] : memref<2x1x64xf32, #tpu.memory_space<vmem>>, vector<1x1x64xf32>
    %58 = vector.shape_cast %57 : vector<1x1x64xf32> to vector<1x64xf32>
    %59 = vector.broadcast %58 : vector<1x64xf32> to vector<8x64xf32>
    %60 = arith.addf %56, %59 : vector<8x64xf32>
    %61 = arith.addf %5, %60 : vector<8x64xf32>
    %c0_23 = arith.constant 0 : index
    %c0_24 = arith.constant 0 : index
    %c0_25 = arith.constant 0 : index
    %62 = vector.load %arg9[%c0_23, %c0_24, %c0_25] : memref<2x1x64xf32, #tpu.memory_space<vmem>>, vector<1x1x64xf32>
    %63 = vector.shape_cast %62 : vector<1x1x64xf32> to vector<1x64xf32>
    %c0_26 = arith.constant 0 : index
    %c0_27 = arith.constant 0 : index
    %c0_28 = arith.constant 0 : index
    %64 = vector.load %arg10[%c0_26, %c0_27, %c0_28] : memref<2x1x64xf32, #tpu.memory_space<vmem>>, vector<1x1x64xf32>
    %65 = vector.shape_cast %64 : vector<1x1x64xf32> to vector<1x64xf32>
    %cst_29 = arith.constant dense<0.000000e+00> : vector<8xf32>
    %66 = vector.multi_reduction <add>, %61, %cst_29 [1] : vector<8x64xf32> to vector<8xf32>
    %67 = vector.shape_cast %66 : vector<8xf32> to vector<8x1xf32>
    %cst_30 = arith.constant 6.400000e+01 : f32
    %68 = vector.broadcast %cst_30 : f32 to vector<8x1xf32>
    %69 = arith.divf %67, %68 : vector<8x1xf32>
    %70 = vector.broadcast %69 : vector<8x1xf32> to vector<8x64xf32>
    %71 = arith.subf %61, %70 : vector<8x64xf32>
    %72 = arith.mulf %71, %71 : vector<8x64xf32>
    %cst_31 = arith.constant dense<0.000000e+00> : vector<8xf32>
    %73 = vector.multi_reduction <add>, %72, %cst_31 [1] : vector<8x64xf32> to vector<8xf32>
    %74 = vector.shape_cast %73 : vector<8xf32> to vector<8x1xf32>
    %cst_32 = arith.constant 6.400000e+01 : f32
    %75 = vector.broadcast %cst_32 : f32 to vector<8x1xf32>
    %76 = arith.divf %74, %75 : vector<8x1xf32>
    %cst_33 = arith.constant 9.99999974E-6 : f32
    %77 = vector.broadcast %cst_33 : f32 to vector<8x1xf32>
    %78 = arith.addf %76, %77 : vector<8x1xf32>
    %79 = math.rsqrt %78 : vector<8x1xf32>
    %80 = vector.broadcast %79 : vector<8x1xf32> to vector<8x64xf32>
    %81 = arith.mulf %71, %80 : vector<8x64xf32>
    %82 = vector.broadcast %63 : vector<1x64xf32> to vector<8x64xf32>
    %83 = arith.mulf %81, %82 : vector<8x64xf32>
    %84 = vector.broadcast %65 : vector<1x64xf32> to vector<8x64xf32>
    %85 = arith.addf %83, %84 : vector<8x64xf32>
    %c0_34 = arith.constant 0 : index
    %c0_35 = arith.constant 0 : index
    %c0_36 = arith.constant 0 : index
    %86 = vector.load %arg13[%c0_34, %c0_35, %c0_36] : memref<2x64x2048xf32, #tpu.memory_space<vmem>>, vector<1x64x2048xf32>
    %87 = vector.shape_cast %86 : vector<1x64x2048xf32> to vector<64x2048xf32>
    %cst_37 = arith.constant dense<0.000000e+00> : vector<8x2048xf32>
    %88 = tpu.matmul %85, %87, %cst_37 {dimension_numbers = #tpu.dot_dimension_numbers<[1], [0], [0], [1], [0, 0, 1, 1], [], []>} : vector<8x64xf32>, vector<64x2048xf32>, vector<8x2048xf32> -> vector<8x2048xf32>
    %c0_38 = arith.constant 0 : index
    %c0_39 = arith.constant 0 : index
    %c0_40 = arith.constant 0 : index
    %89 = vector.load %arg14[%c0_38, %c0_39, %c0_40] : memref<2x1x2048xf32, #tpu.memory_space<vmem>>, vector<1x1x2048xf32>
    %90 = vector.shape_cast %89 : vector<1x1x2048xf32> to vector<1x2048xf32>
    %91 = vector.broadcast %90 : vector<1x2048xf32> to vector<8x2048xf32>
    %92 = arith.addf %88, %91 : vector<8x2048xf32>
    %cst_41 = arith.constant 0.000000e+00 : f32
    %93 = vector.broadcast %cst_41 : f32 to vector<8x2048xf32>
    %94 = arith.maximumf %92, %93 : vector<8x2048xf32>
    %c0_42 = arith.constant 0 : index
    %c0_43 = arith.constant 0 : index
    %c0_44 = arith.constant 0 : index
    %95 = vector.load %arg15[%c0_42, %c0_43, %c0_44] : memref<2x2048x64xf32, #tpu.memory_space<vmem>>, vector<1x2048x64xf32>
    %96 = vector.shape_cast %95 : vector<1x2048x64xf32> to vector<2048x64xf32>
    %cst_45 = arith.constant dense<0.000000e+00> : vector<8x64xf32>
    %97 = tpu.matmul %94, %96, %cst_45 {dimension_numbers = #tpu.dot_dimension_numbers<[1], [0], [0], [1], [0, 0, 1, 1], [], []>} : vector<8x2048xf32>, vector<2048x64xf32>, vector<8x64xf32> -> vector<8x64xf32>
    %c0_46 = arith.constant 0 : index
    %c0_47 = arith.constant 0 : index
    %c0_48 = arith.constant 0 : index
    %98 = vector.load %arg16[%c0_46, %c0_47, %c0_48] : memref<2x1x64xf32, #tpu.memory_space<vmem>>, vector<1x1x64xf32>
    %99 = vector.shape_cast %98 : vector<1x1x64xf32> to vector<1x64xf32>
    %100 = vector.broadcast %99 : vector<1x64xf32> to vector<8x64xf32>
    %101 = arith.addf %97, %100 : vector<8x64xf32>
    %102 = arith.addf %85, %101 : vector<8x64xf32>
    %c0_49 = arith.constant 0 : index
    %c0_50 = arith.constant 0 : index
    %c0_51 = arith.constant 0 : index
    %103 = vector.load %arg11[%c0_49, %c0_50, %c0_51] : memref<2x1x64xf32, #tpu.memory_space<vmem>>, vector<1x1x64xf32>
    %104 = vector.shape_cast %103 : vector<1x1x64xf32> to vector<1x64xf32>
    %c0_52 = arith.constant 0 : index
    %c0_53 = arith.constant 0 : index
    %c0_54 = arith.constant 0 : index
    %105 = vector.load %arg12[%c0_52, %c0_53, %c0_54] : memref<2x1x64xf32, #tpu.memory_space<vmem>>, vector<1x1x64xf32>
    %106 = vector.shape_cast %105 : vector<1x1x64xf32> to vector<1x64xf32>
    %cst_55 = arith.constant dense<0.000000e+00> : vector<8xf32>
    %107 = vector.multi_reduction <add>, %102, %cst_55 [1] : vector<8x64xf32> to vector<8xf32>
    %108 = vector.shape_cast %107 : vector<8xf32> to vector<8x1xf32>
    %cst_56 = arith.constant 6.400000e+01 : f32
    %109 = vector.broadcast %cst_56 : f32 to vector<8x1xf32>
    %110 = arith.divf %108, %109 : vector<8x1xf32>
    %111 = vector.broadcast %110 : vector<8x1xf32> to vector<8x64xf32>
    %112 = arith.subf %102, %111 : vector<8x64xf32>
    %113 = arith.mulf %112, %112 : vector<8x64xf32>
    %cst_57 = arith.constant dense<0.000000e+00> : vector<8xf32>
    %114 = vector.multi_reduction <add>, %113, %cst_57 [1] : vector<8x64xf32> to vector<8xf32>
    %115 = vector.shape_cast %114 : vector<8xf32> to vector<8x1xf32>
    %cst_58 = arith.constant 6.400000e+01 : f32
    %116 = vector.broadcast %cst_58 : f32 to vector<8x1xf32>
    %117 = arith.divf %115, %116 : vector<8x1xf32>
    %cst_59 = arith.constant 9.99999974E-6 : f32
    %118 = vector.broadcast %cst_59 : f32 to vector<8x1xf32>
    %119 = arith.addf %117, %118 : vector<8x1xf32>
    %120 = math.rsqrt %119 : vector<8x1xf32>
    %121 = vector.broadcast %120 : vector<8x1xf32> to vector<8x64xf32>
    %122 = arith.mulf %112, %121 : vector<8x64xf32>
    %123 = vector.broadcast %104 : vector<1x64xf32> to vector<8x64xf32>
    %124 = arith.mulf %122, %123 : vector<8x64xf32>
    %125 = vector.broadcast %106 : vector<1x64xf32> to vector<8x64xf32>
    %126 = arith.addf %124, %125 : vector<8x64xf32>
    %c1 = arith.constant 1 : index
    %c0_60 = arith.constant 0 : index
    %c0_61 = arith.constant 0 : index
    %127 = vector.load %arg5[%c1, %c0_60, %c0_61] : memref<2x64x192xf32, #tpu.memory_space<vmem>>, vector<1x64x192xf32>
    %128 = vector.shape_cast %127 : vector<1x64x192xf32> to vector<64x192xf32>
    %cst_62 = arith.constant dense<0.000000e+00> : vector<8x192xf32>
    %129 = tpu.matmul %126, %128, %cst_62 {dimension_numbers = #tpu.dot_dimension_numbers<[1], [0], [0], [1], [0, 0, 1, 1], [], []>} : vector<8x64xf32>, vector<64x192xf32>, vector<8x192xf32> -> vector<8x192xf32>
    %c1_63 = arith.constant 1 : index
    %c0_64 = arith.constant 0 : index
    %c0_65 = arith.constant 0 : index
    %130 = vector.load %arg6[%c1_63, %c0_64, %c0_65] : memref<2x1x192xf32, #tpu.memory_space<vmem>>, vector<1x1x192xf32>
    %131 = vector.shape_cast %130 : vector<1x1x192xf32> to vector<1x192xf32>
    %132 = vector.broadcast %131 : vector<1x192xf32> to vector<8x192xf32>
    %133 = arith.addf %129, %132 : vector<8x192xf32>
    %134 = vector.extract_strided_slice %133 {offsets = [0, 0], sizes = [8, 64], strides = [1, 1]} : vector<8x192xf32> to vector<8x64xf32>
    %135 = vector.extract_strided_slice %134 {offsets = [0, 0], sizes = [8, 16], strides = [1, 1]} : vector<8x64xf32> to vector<8x16xf32>
    %136 = vector.extract_strided_slice %134 {offsets = [0, 16], sizes = [8, 16], strides = [1, 1]} : vector<8x64xf32> to vector<8x16xf32>
    %137 = vector.extract_strided_slice %134 {offsets = [0, 32], sizes = [8, 16], strides = [1, 1]} : vector<8x64xf32> to vector<8x16xf32>
    %138 = vector.extract_strided_slice %134 {offsets = [0, 48], sizes = [8, 16], strides = [1, 1]} : vector<8x64xf32> to vector<8x16xf32>
    %139 = tpu.concatenate %135, %136, %137, %138 in 0 : vector<8x16xf32>, vector<8x16xf32>, vector<8x16xf32>, vector<8x16xf32> -> vector<32x16xf32>
    %140 = vector.shape_cast %139 : vector<32x16xf32> to vector<4x8x16xf32>
    %141 = vector.extract_strided_slice %133 {offsets = [0, 64], sizes = [8, 64], strides = [1, 1]} : vector<8x192xf32> to vector<8x64xf32>
    %142 = vector.extract_strided_slice %141 {offsets = [0, 0], sizes = [8, 16], strides = [1, 1]} : vector<8x64xf32> to vector<8x16xf32>
    %143 = vector.extract_strided_slice %141 {offsets = [0, 16], sizes = [8, 16], strides = [1, 1]} : vector<8x64xf32> to vector<8x16xf32>
    %144 = vector.extract_strided_slice %141 {offsets = [0, 32], sizes = [8, 16], strides = [1, 1]} : vector<8x64xf32> to vector<8x16xf32>
    %145 = vector.extract_strided_slice %141 {offsets = [0, 48], sizes = [8, 16], strides = [1, 1]} : vector<8x64xf32> to vector<8x16xf32>
    %146 = tpu.concatenate %142, %143, %144, %145 in 0 : vector<8x16xf32>, vector<8x16xf32>, vector<8x16xf32>, vector<8x16xf32> -> vector<32x16xf32>
    %147 = vector.shape_cast %146 : vector<32x16xf32> to vector<4x8x16xf32>
    %148 = vector.extract_strided_slice %133 {offsets = [0, 128], sizes = [8, 64], strides = [1, 1]} : vector<8x192xf32> to vector<8x64xf32>
    %149 = vector.extract_strided_slice %148 {offsets = [0, 0], sizes = [8, 16], strides = [1, 1]} : vector<8x64xf32> to vector<8x16xf32>
    %150 = vector.extract_strided_slice %148 {offsets = [0, 16], sizes = [8, 16], strides = [1, 1]} : vector<8x64xf32> to vector<8x16xf32>
    %151 = vector.extract_strided_slice %148 {offsets = [0, 32], sizes = [8, 16], strides = [1, 1]} : vector<8x64xf32> to vector<8x16xf32>
    %152 = vector.extract_strided_slice %148 {offsets = [0, 48], sizes = [8, 16], strides = [1, 1]} : vector<8x64xf32> to vector<8x16xf32>
    %153 = tpu.concatenate %149, %150, %151, %152 in 0 : vector<8x16xf32>, vector<8x16xf32>, vector<8x16xf32>, vector<8x16xf32> -> vector<32x16xf32>
    %154 = vector.shape_cast %153 : vector<32x16xf32> to vector<4x8x16xf32>
    "tpu.trace_start"() <{level = 10 : i32, message = "bqd,bkd->bqk"}> : () -> ()
    %cst_66 = arith.constant dense<0.000000e+00> : vector<4x8x8xf32>
    %155 = tpu.matmul %140, %147, %cst_66 {dimension_numbers = #tpu.dot_dimension_numbers<[2], [2], [1], [1], [0, 0, 0, 1, 1, 1], [0], [0]>} : vector<4x8x16xf32>, vector<4x8x16xf32>, vector<4x8x8xf32> -> vector<4x8x8xf32>
    "tpu.trace_stop"() : () -> ()
    %cst_67 = arith.constant dense<0xFF800000> : vector<4x8xf32>
    %156 = vector.multi_reduction <maximumf>, %155, %cst_67 [2] : vector<4x8x8xf32> to vector<4x8xf32>
    %157 = vector.shape_cast %156 : vector<4x8xf32> to vector<4x8x1xf32>
    %158 = vector.broadcast %157 : vector<4x8x1xf32> to vector<4x8x8xf32>
    %159 = arith.subf %155, %158 : vector<4x8x8xf32>
    %160 = math.exp %159 : vector<4x8x8xf32>
    %cst_68 = arith.constant dense<0.000000e+00> : vector<4x8xf32>
    %161 = vector.multi_reduction <add>, %160, %cst_68 [2] : vector<4x8x8xf32> to vector<4x8xf32>
    %162 = vector.shape_cast %161 : vector<4x8xf32> to vector<4x8x1xf32>
    %163 = vector.broadcast %162 : vector<4x8x1xf32> to vector<4x8x8xf32>
    %164 = arith.divf %160, %163 : vector<4x8x8xf32>
    "tpu.trace_start"() <{level = 10 : i32, message = "bqk,bkd->bqd"}> : () -> ()
    %cst_69 = arith.constant dense<0.000000e+00> : vector<4x8x16xf32>
    %165 = tpu.matmul %164, %154, %cst_69 {dimension_numbers = #tpu.dot_dimension_numbers<[2], [1], [1], [2], [0, 0, 0, 1, 1, 2], [0], [0]>} : vector<4x8x8xf32>, vector<4x8x16xf32>, vector<4x8x16xf32> -> vector<4x8x16xf32>
    "tpu.trace_stop"() : () -> ()
    %166 = vector.extract_strided_slice %165 {offsets = [0, 0, 0], sizes = [1, 8, 16], strides = [1, 1, 1]} : vector<4x8x16xf32> to vector<1x8x16xf32>
    %167 = vector.shape_cast %166 : vector<1x8x16xf32> to vector<8x16xf32>
    %168 = vector.extract_strided_slice %165 {offsets = [1, 0, 0], sizes = [1, 8, 16], strides = [1, 1, 1]} : vector<4x8x16xf32> to vector<1x8x16xf32>
    %169 = vector.shape_cast %168 : vector<1x8x16xf32> to vector<8x16xf32>
    %170 = vector.extract_strided_slice %165 {offsets = [2, 0, 0], sizes = [1, 8, 16], strides = [1, 1, 1]} : vector<4x8x16xf32> to vector<1x8x16xf32>
    %171 = vector.shape_cast %170 : vector<1x8x16xf32> to vector<8x16xf32>
    %172 = vector.extract_strided_slice %165 {offsets = [3, 0, 0], sizes = [1, 8, 16], strides = [1, 1, 1]} : vector<4x8x16xf32> to vector<1x8x16xf32>
    %173 = vector.shape_cast %172 : vector<1x8x16xf32> to vector<8x16xf32>
    %174 = tpu.concatenate %167, %169, %171, %173 in 1 : vector<8x16xf32>, vector<8x16xf32>, vector<8x16xf32>, vector<8x16xf32> -> vector<8x64xf32>
    %c1_70 = arith.constant 1 : index
    %c0_71 = arith.constant 0 : index
    %c0_72 = arith.constant 0 : index
    %175 = vector.load %arg7[%c1_70, %c0_71, %c0_72] : memref<2x64x64xf32, #tpu.memory_space<vmem>>, vector<1x64x64xf32>
    %176 = vector.shape_cast %175 : vector<1x64x64xf32> to vector<64x64xf32>
    %cst_73 = arith.constant dense<0.000000e+00> : vector<8x64xf32>
    %177 = tpu.matmul %174, %176, %cst_73 {dimension_numbers = #tpu.dot_dimension_numbers<[1], [0], [0], [1], [0, 0, 1, 1], [], []>} : vector<8x64xf32>, vector<64x64xf32>, vector<8x64xf32> -> vector<8x64xf32>
    %c1_74 = arith.constant 1 : index
    %c0_75 = arith.constant 0 : index
    %c0_76 = arith.constant 0 : index
    %178 = vector.load %arg8[%c1_74, %c0_75, %c0_76] : memref<2x1x64xf32, #tpu.memory_space<vmem>>, vector<1x1x64xf32>
    %179 = vector.shape_cast %178 : vector<1x1x64xf32> to vector<1x64xf32>
    %180 = vector.broadcast %179 : vector<1x64xf32> to vector<8x64xf32>
    %181 = arith.addf %177, %180 : vector<8x64xf32>
    %182 = arith.addf %126, %181 : vector<8x64xf32>
    %c1_77 = arith.constant 1 : index
    %c0_78 = arith.constant 0 : index
    %c0_79 = arith.constant 0 : index
    %183 = vector.load %arg9[%c1_77, %c0_78, %c0_79] : memref<2x1x64xf32, #tpu.memory_space<vmem>>, vector<1x1x64xf32>
    %184 = vector.shape_cast %183 : vector<1x1x64xf32> to vector<1x64xf32>
    %c1_80 = arith.constant 1 : index
    %c0_81 = arith.constant 0 : index
    %c0_82 = arith.constant 0 : index
    %185 = vector.load %arg10[%c1_80, %c0_81, %c0_82] : memref<2x1x64xf32, #tpu.memory_space<vmem>>, vector<1x1x64xf32>
    %186 = vector.shape_cast %185 : vector<1x1x64xf32> to vector<1x64xf32>
    %cst_83 = arith.constant dense<0.000000e+00> : vector<8xf32>
    %187 = vector.multi_reduction <add>, %182, %cst_83 [1] : vector<8x64xf32> to vector<8xf32>
    %188 = vector.shape_cast %187 : vector<8xf32> to vector<8x1xf32>
    %cst_84 = arith.constant 6.400000e+01 : f32
    %189 = vector.broadcast %cst_84 : f32 to vector<8x1xf32>
    %190 = arith.divf %188, %189 : vector<8x1xf32>
    %191 = vector.broadcast %190 : vector<8x1xf32> to vector<8x64xf32>
    %192 = arith.subf %182, %191 : vector<8x64xf32>
    %193 = arith.mulf %192, %192 : vector<8x64xf32>
    %cst_85 = arith.constant dense<0.000000e+00> : vector<8xf32>
    %194 = vector.multi_reduction <add>, %193, %cst_85 [1] : vector<8x64xf32> to vector<8xf32>
    %195 = vector.shape_cast %194 : vector<8xf32> to vector<8x1xf32>
    %cst_86 = arith.constant 6.400000e+01 : f32
    %196 = vector.broadcast %cst_86 : f32 to vector<8x1xf32>
    %197 = arith.divf %195, %196 : vector<8x1xf32>
    %cst_87 = arith.constant 9.99999974E-6 : f32
    %198 = vector.broadcast %cst_87 : f32 to vector<8x1xf32>
    %199 = arith.addf %197, %198 : vector<8x1xf32>
    %200 = math.rsqrt %199 : vector<8x1xf32>
    %201 = vector.broadcast %200 : vector<8x1xf32> to vector<8x64xf32>
    %202 = arith.mulf %192, %201 : vector<8x64xf32>
    %203 = vector.broadcast %184 : vector<1x64xf32> to vector<8x64xf32>
    %204 = arith.mulf %202, %203 : vector<8x64xf32>
    %205 = vector.broadcast %186 : vector<1x64xf32> to vector<8x64xf32>
    %206 = arith.addf %204, %205 : vector<8x64xf32>
    %c1_88 = arith.constant 1 : index
    %c0_89 = arith.constant 0 : index
    %c0_90 = arith.constant 0 : index
    %207 = vector.load %arg13[%c1_88, %c0_89, %c0_90] : memref<2x64x2048xf32, #tpu.memory_space<vmem>>, vector<1x64x2048xf32>
    %208 = vector.shape_cast %207 : vector<1x64x2048xf32> to vector<64x2048xf32>
    %cst_91 = arith.constant dense<0.000000e+00> : vector<8x2048xf32>
    %209 = tpu.matmul %206, %208, %cst_91 {dimension_numbers = #tpu.dot_dimension_numbers<[1], [0], [0], [1], [0, 0, 1, 1], [], []>} : vector<8x64xf32>, vector<64x2048xf32>, vector<8x2048xf32> -> vector<8x2048xf32>
    %c1_92 = arith.constant 1 : index
    %c0_93 = arith.constant 0 : index
    %c0_94 = arith.constant 0 : index
    %210 = vector.load %arg14[%c1_92, %c0_93, %c0_94] : memref<2x1x2048xf32, #tpu.memory_space<vmem>>, vector<1x1x2048xf32>
    %211 = vector.shape_cast %210 : vector<1x1x2048xf32> to vector<1x2048xf32>
    %212 = vector.broadcast %211 : vector<1x2048xf32> to vector<8x2048xf32>
    %213 = arith.addf %209, %212 : vector<8x2048xf32>
    %cst_95 = arith.constant 0.000000e+00 : f32
    %214 = vector.broadcast %cst_95 : f32 to vector<8x2048xf32>
    %215 = arith.maximumf %213, %214 : vector<8x2048xf32>
    %c1_96 = arith.constant 1 : index
    %c0_97 = arith.constant 0 : index
    %c0_98 = arith.constant 0 : index
    %216 = vector.load %arg15[%c1_96, %c0_97, %c0_98] : memref<2x2048x64xf32, #tpu.memory_space<vmem>>, vector<1x2048x64xf32>
    %217 = vector.shape_cast %216 : vector<1x2048x64xf32> to vector<2048x64xf32>
    %cst_99 = arith.constant dense<0.000000e+00> : vector<8x64xf32>
    %218 = tpu.matmul %215, %217, %cst_99 {dimension_numbers = #tpu.dot_dimension_numbers<[1], [0], [0], [1], [0, 0, 1, 1], [], []>} : vector<8x2048xf32>, vector<2048x64xf32>, vector<8x64xf32> -> vector<8x64xf32>
    %c1_100 = arith.constant 1 : index
    %c0_101 = arith.constant 0 : index
    %c0_102 = arith.constant 0 : index
    %219 = vector.load %arg16[%c1_100, %c0_101, %c0_102] : memref<2x1x64xf32, #tpu.memory_space<vmem>>, vector<1x1x64xf32>
    %220 = vector.shape_cast %219 : vector<1x1x64xf32> to vector<1x64xf32>
    %221 = vector.broadcast %220 : vector<1x64xf32> to vector<8x64xf32>
    %222 = arith.addf %218, %221 : vector<8x64xf32>
    %223 = arith.addf %206, %222 : vector<8x64xf32>
    %c1_103 = arith.constant 1 : index
    %c0_104 = arith.constant 0 : index
    %c0_105 = arith.constant 0 : index
    %224 = vector.load %arg11[%c1_103, %c0_104, %c0_105] : memref<2x1x64xf32, #tpu.memory_space<vmem>>, vector<1x1x64xf32>
    %225 = vector.shape_cast %224 : vector<1x1x64xf32> to vector<1x64xf32>
    %c1_106 = arith.constant 1 : index
    %c0_107 = arith.constant 0 : index
    %c0_108 = arith.constant 0 : index
    %226 = vector.load %arg12[%c1_106, %c0_107, %c0_108] : memref<2x1x64xf32, #tpu.memory_space<vmem>>, vector<1x1x64xf32>
    %227 = vector.shape_cast %226 : vector<1x1x64xf32> to vector<1x64xf32>
    %cst_109 = arith.constant dense<0.000000e+00> : vector<8xf32>
    %228 = vector.multi_reduction <add>, %223, %cst_109 [1] : vector<8x64xf32> to vector<8xf32>
    %229 = vector.shape_cast %228 : vector<8xf32> to vector<8x1xf32>
    %cst_110 = arith.constant 6.400000e+01 : f32
    %230 = vector.broadcast %cst_110 : f32 to vector<8x1xf32>
    %231 = arith.divf %229, %230 : vector<8x1xf32>
    %232 = vector.broadcast %231 : vector<8x1xf32> to vector<8x64xf32>
    %233 = arith.subf %223, %232 : vector<8x64xf32>
    %234 = arith.mulf %233, %233 : vector<8x64xf32>
    %cst_111 = arith.constant dense<0.000000e+00> : vector<8xf32>
    %235 = vector.multi_reduction <add>, %234, %cst_111 [1] : vector<8x64xf32> to vector<8xf32>
    %236 = vector.shape_cast %235 : vector<8xf32> to vector<8x1xf32>
    %cst_112 = arith.constant 6.400000e+01 : f32
    %237 = vector.broadcast %cst_112 : f32 to vector<8x1xf32>
    %238 = arith.divf %236, %237 : vector<8x1xf32>
    %cst_113 = arith.constant 9.99999974E-6 : f32
    %239 = vector.broadcast %cst_113 : f32 to vector<8x1xf32>
    %240 = arith.addf %238, %239 : vector<8x1xf32>
    %241 = math.rsqrt %240 : vector<8x1xf32>
    %242 = vector.broadcast %241 : vector<8x1xf32> to vector<8x64xf32>
    %243 = arith.mulf %233, %242 : vector<8x64xf32>
    %244 = vector.broadcast %225 : vector<1x64xf32> to vector<8x64xf32>
    %245 = arith.mulf %243, %244 : vector<8x64xf32>
    %246 = vector.broadcast %227 : vector<1x64xf32> to vector<8x64xf32>
    %247 = arith.addf %245, %246 : vector<8x64xf32>
    %248 = vector.shape_cast %247 : vector<8x64xf32> to vector<1x8x64xf32>
    %cst_114 = arith.constant dense<0.000000e+00> : vector<8x64xf32>
    %249 = vector.multi_reduction <add>, %248, %cst_114 [0] : vector<1x8x64xf32> to vector<8x64xf32>
    %250 = vector.shape_cast %249 : vector<8x64xf32> to vector<1x8x64xf32>
    %c0_i32 = arith.constant 0 : i32
    %251 = arith.cmpi eq, %arg1, %c0_i32 : i32
    %252 = arith.extui %251 : i1 to i32
    %c0_i32_115 = arith.constant 0 : i32
    %253 = arith.cmpi ne, %252, %c0_i32_115 : i32
    scf.if %253 {
      %cst_122 = arith.constant 0.000000e+00 : f32
      %257 = vector.broadcast %cst_122 : f32 to vector<1x8x64xf32>
      %c0_123 = arith.constant 0 : index
      %c0_124 = arith.constant 0 : index
      %c0_125 = arith.constant 0 : index
      %258 = vector.load %arg17[%c0_123, %c0_124, %c0_125] : memref<1x8x64xf32, #tpu.memory_space<vmem>>, vector<1x8x64xf32>
      tpu.vector_store %arg17[%c0_123, %c0_124, %c0_125], %257 {strides = array<i32>} : memref<1x8x64xf32, #tpu.memory_space<vmem>>, vector<1x8x64xf32>,
    } else {
    }
    %c0_116 = arith.constant 0 : index
    %c0_117 = arith.constant 0 : index
    %c0_118 = arith.constant 0 : index
    %254 = vector.load %arg17[%c0_116, %c0_117, %c0_118] : memref<1x8x64xf32, #tpu.memory_space<vmem>>, vector<1x8x64xf32>
    %255 = arith.addf %254, %250 : vector<1x8x64xf32>
    %c0_119 = arith.constant 0 : index
    %c0_120 = arith.constant 0 : index
    %c0_121 = arith.constant 0 : index
    %256 = vector.load %arg17[%c0_119, %c0_120, %c0_121] : memref<1x8x64xf32, #tpu.memory_space<vmem>>, vector<1x8x64xf32>
    tpu.vector_store %arg17[%c0_119, %c0_120, %c0_121], %255 {strides = array<i32>} : memref<1x8x64xf32, #tpu.memory_space<vmem>>, vector<1x8x64xf32>,
    return
  }
  func.func @transform_0(%arg0: i32, %arg1: i32) -> (i32, i32) {
    %c1_i32 = arith.constant 1 : i32
    %0 = arith.muli %arg0, %c1_i32 : i32
    %1 = arith.addi %0, %arg1 : i32
    %c0_i32 = arith.constant 0 : i32
    %c0_i32_0 = arith.constant 0 : i32
    return %1, %c0_i32 : i32, i32
  }
  func.func @transform_1(%arg0: i32, %arg1: i32) -> (i32, i32) {
    %c0_i32 = arith.constant 0 : i32
    %c0_i32_0 = arith.constant 0 : i32
    %c0_i32_1 = arith.constant 0 : i32
    return %c0_i32, %c0_i32_0 : i32, i32
  }
  func.func @transform_2(%arg0: i32, %arg1: i32) -> (i32, i32) {
    %c0_i32 = arith.constant 0 : i32
    %c0_i32_0 = arith.constant 0 : i32
    %c0_i32_1 = arith.constant 0 : i32
    return %c0_i32, %c0_i32_0 : i32, i32
  }
  func.func @transform_3(%arg0: i32, %arg1: i32) -> (i32, i32, i32) {
    %c0_i32 = arith.constant 0 : i32
    %c0_i32_0 = arith.constant 0 : i32
    %c0_i32_1 = arith.constant 0 : i32
    %c0_i32_2 = arith.constant 0 : i32
    return %c0_i32, %c0_i32_0, %c0_i32_1 : i32, i32, i32
  }
  func.func @transform_4(%arg0: i32, %arg1: i32) -> (i32, i32, i32) {
    %c0_i32 = arith.constant 0 : i32
    %c0_i32_0 = arith.constant 0 : i32
    %c0_i32_1 = arith.constant 0 : i32
    %c0_i32_2 = arith.constant 0 : i32
    return %c0_i32, %c0_i32_0, %c0_i32_1 : i32, i32, i32
  }
  func.func @transform_5(%arg0: i32, %arg1: i32) -> (i32, i32, i32) {
    %c0_i32 = arith.constant 0 : i32
    %c0_i32_0 = arith.constant 0 : i32
    %c0_i32_1 = arith.constant 0 : i32
    %c0_i32_2 = arith.constant 0 : i32
    return %c0_i32, %c0_i32_0, %c0_i32_1 : i32, i32, i32
  }
  func.func @transform_6(%arg0: i32, %arg1: i32) -> (i32, i32, i32) {
    %c0_i32 = arith.constant 0 : i32
    %c0_i32_0 = arith.constant 0 : i32
    %c0_i32_1 = arith.constant 0 : i32
    %c0_i32_2 = arith.constant 0 : i32
    return %c0_i32, %c0_i32_0, %c0_i32_1 : i32, i32, i32
  }
  func.func @transform_7(%arg0: i32, %arg1: i32) -> (i32, i32, i32) {
    %c0_i32 = arith.constant 0 : i32
    %c0_i32_0 = arith.constant 0 : i32
    %c0_i32_1 = arith.constant 0 : i32
    %c0_i32_2 = arith.constant 0 : i32
    return %c0_i32, %c0_i32_0, %c0_i32_1 : i32, i32, i32
  }
  func.func @transform_8(%arg0: i32, %arg1: i32) -> (i32, i32, i32) {
    %c0_i32 = arith.constant 0 : i32
    %c0_i32_0 = arith.constant 0 : i32
    %c0_i32_1 = arith.constant 0 : i32
    %c0_i32_2 = arith.constant 0 : i32
    return %c0_i32, %c0_i32_0, %c0_i32_1 : i32, i32, i32
  }
  func.func @transform_9(%arg0: i32, %arg1: i32) -> (i32, i32, i32) {
    %c0_i32 = arith.constant 0 : i32
    %c0_i32_0 = arith.constant 0 : i32
    %c0_i32_1 = arith.constant 0 : i32
    %c0_i32_2 = arith.constant 0 : i32
    return %c0_i32, %c0_i32_0, %c0_i32_1 : i32, i32, i32
  }
  func.func @transform_10(%arg0: i32, %arg1: i32) -> (i32, i32, i32) {
    %c0_i32 = arith.constant 0 : i32
    %c0_i32_0 = arith.constant 0 : i32
    %c0_i32_1 = arith.constant 0 : i32
    %c0_i32_2 = arith.constant 0 : i32
    return %c0_i32, %c0_i32_0, %c0_i32_1 : i32, i32, i32
  }
  func.func @transform_11(%arg0: i32, %arg1: i32) -> (i32, i32, i32) {
    %c0_i32 = arith.constant 0 : i32
    %c0_i32_0 = arith.constant 0 : i32
    %c0_i32_1 = arith.constant 0 : i32
    %c0_i32_2 = arith.constant 0 : i32
    return %c0_i32, %c0_i32_0, %c0_i32_1 : i32, i32, i32
  }
  func.func @transform_12(%arg0: i32, %arg1: i32) -> (i32, i32, i32) {
    %c0_i32 = arith.constant 0 : i32
    %c0_i32_0 = arith.constant 0 : i32
    %c0_i32_1 = arith.constant 0 : i32
    %c0_i32_2 = arith.constant 0 : i32
    return %c0_i32, %c0_i32_0, %c0_i32_1 : i32, i32, i32
  }
  func.func @transform_13(%arg0: i32, %arg1: i32) -> (i32, i32, i32) {
    %c0_i32 = arith.constant 0 : i32
    %c0_i32_0 = arith.constant 0 : i32
    %c0_i32_1 = arith.constant 0 : i32
    %c0_i32_2 = arith.constant 0 : i32
    return %c0_i32, %c0_i32_0, %c0_i32_1 : i32, i32, i32
  }
  func.func @transform_14(%arg0: i32, %arg1: i32) -> (i32, i32, i32) {
    %c0_i32 = arith.constant 0 : i32
    %c0_i32_0 = arith.constant 0 : i32
    %c0_i32_1 = arith.constant 0 : i32
    %c0_i32_2 = arith.constant 0 : i32
    return %c0_i32, %c0_i32_0, %c0_i32_1 : i32, i32, i32
  }
  func.func @transform_15(%arg0: i32, %arg1: i32) -> (i32, i32, i32) {
    %c0_i32 = arith.constant 0 : i32
    %c0_i32_0 = arith.constant 0 : i32
    %c0_i32_1 = arith.constant 0 : i32
    return %arg0, %c0_i32, %c0_i32_0 : i32, i32, i32
  }
}

</mosaic_0001>

<llo_original>
// kernel: tpu_custom_call.1
$region0: #{tpu_custom_call.1}
  #allocation0 [shape = 'u32[]', space=smem, size = 0x4, offset = 0x4, fixed_abs, tag = 'smem constant byte address 0x4 - core index']
  #allocation1 [shape = 'u32[144,128]{1,0:T(1,128)}', space=vmem, size = 0x12000, scoped, tag = 'internal scratch']
  %s0 = inlined_call_operand.vmem [shape: f32[16,16], index: 0, kind: input, shape index: {}]
  %s1 = inlined_call_operand.vmem [shape: f32[16,64], index: 1, kind: input, shape index: {}]
  %s2 = inlined_call_operand.vmem [shape: f32[1,64], index: 2, kind: input, shape index: {}]
  %s3 = inlined_call_operand.vmem [shape: f32[2,64,192], index: 3, kind: input, shape index: {}]
  %s4 = inlined_call_operand.vmem [shape: f32[2,1,192], index: 4, kind: input, shape index: {}]
  %s5 = inlined_call_operand.vmem [shape: f32[2,64,64], index: 5, kind: input, shape index: {}]
  %s6 = inlined_call_operand.vmem [shape: f32[2,1,64], index: 6, kind: input, shape index: {}]
  %s7 = inlined_call_operand.vmem [shape: f32[2,1,64], index: 7, kind: input, shape index: {}]
  %s8 = inlined_call_operand.vmem [shape: f32[2,1,64], index: 8, kind: input, shape index: {}]
  %s9 = inlined_call_operand.vmem [shape: f32[2,1,64], index: 9, kind: input, shape index: {}]
  %s10 = inlined_call_operand.vmem [shape: f32[2,1,64], index: 10, kind: input, shape index: {}]
  %s11 = inlined_call_operand.vmem [shape: f32[2,64,2048], index: 11, kind: input, shape index: {}]
  %s12 = inlined_call_operand.vmem [shape: f32[2,1,2048], index: 12, kind: input, shape index: {}]
  %s13 = inlined_call_operand.vmem [shape: f32[2,2048,64], index: 13, kind: input, shape index: {}]
  %s14 = inlined_call_operand.vmem [shape: f32[2,1,64], index: 14, kind: input, shape index: {}]
  %s15 = inlined_call_operand.hbm [shape: f32[2,8,64], index: 15, kind: output, shape index: {}]
  %s16 = sld [smem:[#allocation0]]
  $region97: #{tpu_custom_call.1} parent=0
    _
  %s18 = ssub.s32 1, %s16
  %s19 = scalar_select 0, %s18, %s16
  $region1: #{tpu_custom_call.1} parent=0
    #allocation2 [shape = 'u8[8192]{0}', space=vmem, size = 0x2000, scoped, tag = 'output window, operand 0']
    #allocation3 [shape = 's32[2]{0}', space=sflag, size = 0x8, scoped, tag = 'scoped memory for tpu_custom_call.1']
    %20 = vsyncpa [#allocation3], 0
    %s21 = scalar_lea.sflag [#allocation3], 1
    %22 = vsyncpa %s21, 0
    loop: start=0, step=1, limit=4
    $region2: #{tpu_custom_call.1} parent=1 // loop_pre_header
      _
    $region3: #{tpu_custom_call.1} parent=1 // loop_header
      %s24 = sphi 0, %s28
      %p25 = scmp.ge.s32.totalorder %s24, 4
      %s31 = sphi 0, %s43
      %s32 = sphi 0, %s39
      %s33 = sphi 0, %s31
      %s34 = sphi 0, %s32
      %s35 = sphi 0, %s33
      %s36 = sphi 0, %s34
      %s48 = sphi 0, %s50
      %s51 = sphi 0, %s48
      %s52 = sphi 0, %s51
      %s68 = sphi 0, %s52
      %s72 = sphi 0, %s72
      %s74 = sphi 0, %s72
      %s75 = sphi 0, %s74
      %s89 = sphi 0, %s75
      %s93 = sphi 0, %s93
      %s95 = sphi 0, %s93
      %s96 = sphi 0, %s95
      %s110 = sphi 0, %s96
      %s114 = sphi 0, %s114
      %s116 = sphi 0, %s114
      %s117 = sphi 0, %s116
      %s131 = sphi 0, %s117
      %s135 = sphi 0, %s135
      %s137 = sphi 0, %s135
      %s138 = sphi 0, %s137
      %s152 = sphi 0, %s138
      %s156 = sphi 0, %s156
      %s158 = sphi 0, %s156
      %s159 = sphi 0, %s158
      %s173 = sphi 0, %s159
      %s177 = sphi 0, %s177
      %s179 = sphi 0, %s177
      %s180 = sphi 0, %s179
      %s194 = sphi 0, %s180
      %s198 = sphi 0, %s198
      %s200 = sphi 0, %s198
      %s201 = sphi 0, %s200
      %s215 = sphi 0, %s201
      %s219 = sphi 0, %s219
      %s221 = sphi 0, %s219
      %s222 = sphi 0, %s221
      %s236 = sphi 0, %s222
      %s240 = sphi 0, %s240
      %s242 = sphi 0, %s240
      %s243 = sphi 0, %s242
      %s257 = sphi 0, %s243
      %s261 = sphi 0, %s261
      %s263 = sphi 0, %s261
      %s264 = sphi 0, %s263
      %s278 = sphi 0, %s264
      %s282 = sphi 0, %s282
      %s284 = sphi 0, %s282
      %s285 = sphi 0, %s284
      %s299 = sphi 0, %s285
      %s303 = sphi 0, %s303
      %s305 = sphi 0, %s303
      %s306 = sphi 0, %s305
      %s320 = sphi 0, %s306
      %s324 = sphi 0, %s324
      %s326 = sphi 0, %s324
      %s327 = sphi 0, %s326
      %s341 = sphi 0, %s327
      %s345 = sphi 0, %s345
      %s347 = sphi 0, %s345
      %s348 = sphi 0, %s347
      %s362 = sphi 0, %s348
      %s368 = sphi 0, %s370
      %s371 = sphi 0, %s368
      %s372 = sphi 0, %s371
      %s388 = sphi 0, %s372
    $region4: #{tpu_custom_call.1} parent=1 // loop_header_branch
      %27 = sbr.rel (%p25) target = $region8
    $region5: #{tpu_custom_call.1} parent=1 // loop_body
      %s29 = ssub.s32 %s24, 1
      %s30 = ssub.s32 %s24, 2
      %s37 = sadd.s32 1, %s32
      %p38 = scmp.ge.s32.totalorder %s37, 1
      %s39 = scalar_select %p38, 0, %s37
      %s40 = sadd.s32 1, %s31
      %s41 = scalar_select %p38, %s40, %s31
      %p42 = scmp.ge.s32.totalorder %s41, 2
      %s43 = scalar_select %p42, 0, %s41
      %s44 = sadd.s32 %s31, %s32
      %s45 = sadd.s32 %s43, %s39
      %s46 = ssub.s32 %s44, %s45
      %p47 = scmp.eq.s32.totalorder %s46, 0
      %s49 = sadd.s32 %s48, 1
      %s50 = scalar_select %p47, %s48, %s49
      %p53 = pneg %p47
      %p54 = scmp.eq.s32.totalorder %s24, 1
      %p55 = por %p53, %p54
      %p56 = scmp.ne.s32.totalorder %s48, %s51
      %p57 = scmp.eq.s32.totalorder %s24, 0
      %p58 = por %p56, %p57
      %p59 = scmp.ne.s32.totalorder %s48, %s51
      %p60 = scmp.eq.s32.totalorder %s29, 1
      %p61 = por %p59, %p60
      %p62 = scmp.ne.s32.totalorder %s51, %s52
      %p63 = scmp.eq.s32.totalorder %s29, 0
      %p64 = por %p62, %p63
      %p65 = scmp.ne.s32.totalorder %s51, %s52
      %p66 = scmp.eq.s32.totalorder %s30, 1
      %p67 = por %p65, %p66
      %p69 = scmp.ne.s32.totalorder %s52, %s68
      %p70 = scmp.eq.s32.totalorder %s30, 0
      %p71 = por %p69, %p70
      %s73 = sadd.s32 %s72, 1
      %p76 = scmp.eq.s32.totalorder %s24, 1
      %p77 = scmp.ne.s32.totalorder %s72, %s74
      %p78 = scmp.eq.s32.totalorder %s24, 0
      %p79 = por %p77, %p78
      %p80 = scmp.ne.s32.totalorder %s72, %s74
      %p81 = scmp.eq.s32.totalorder %s29, 1
      %p82 = por %p80, %p81
      %p83 = scmp.ne.s32.totalorder %s74, %s75
      %p84 = scmp.eq.s32.totalorder %s29, 0
      %p85 = por %p83, %p84
      %p86 = scmp.ne.s32.totalorder %s74, %s75
      %p87 = scmp.eq.s32.totalorder %s30, 1
      %p88 = por %p86, %p87
      %p90 = scmp.ne.s32.totalorder %s75, %s89
      %p91 = scmp.eq.s32.totalorder %s30, 0
      %p92 = por %p90, %p91
      %s94 = sadd.s32 %s93, 1
      %p97 = scmp.eq.s32.totalorder %s24, 1
      %p98 = scmp.ne.s32.totalorder %s93, %s95
      %p99 = scmp.eq.s32.totalorder %s24, 0
      %p100 = por %p98, %p99
      %p101 = scmp.ne.s32.totalorder %s93, %s95
      %p102 = scmp.eq.s32.totalorder %s29, 1
      %p103 = por %p101, %p102
      %p104 = scmp.ne.s32.totalorder %s95, %s96
      %p105 = scmp.eq.s32.totalorder %s29, 0
      %p106 = por %p104, %p105
      %p107 = scmp.ne.s32.totalorder %s95, %s96
      %p108 = scmp.eq.s32.totalorder %s30, 1
      %p109 = por %p107, %p108
      %p111 = scmp.ne.s32.totalorder %s96, %s110
      %p112 = scmp.eq.s32.totalorder %s30, 0
      %p113 = por %p111, %p112
      %s115 = sadd.s32 %s114, 1
      %p118 = scmp.eq.s32.totalorder %s24, 1
      %p119 = scmp.ne.s32.totalorder %s114, %s116
      %p120 = scmp.eq.s32.totalorder %s24, 0
      %p121 = por %p119, %p120
      %p122 = scmp.ne.s32.totalorder %s114, %s116
      %p123 = scmp.eq.s32.totalorder %s29, 1
      %p124 = por %p122, %p123
      %p125 = scmp.ne.s32.totalorder %s116, %s117
      %p126 = scmp.eq.s32.totalorder %s29, 0
      %p127 = por %p125, %p126
      %p128 = scmp.ne.s32.totalorder %s116, %s117
      %p129 = scmp.eq.s32.totalorder %s30, 1
      %p130 = por %p128, %p129
      %p132 = scmp.ne.s32.totalorder %s117, %s131
      %p133 = scmp.eq.s32.totalorder %s30, 0
      %p134 = por %p132, %p133
      %s136 = sadd.s32 %s135, 1
      %p139 = scmp.eq.s32.totalorder %s24, 1
      %p140 = scmp.ne.s32.totalorder %s135, %s137
      %p141 = scmp.eq.s32.totalorder %s24, 0
      %p142 = por %p140, %p141
      %p143 = scmp.ne.s32.totalorder %s135, %s137
      %p144 = scmp.eq.s32.totalorder %s29, 1
      %p145 = por %p143, %p144
      %p146 = scmp.ne.s32.totalorder %s137, %s138
      %p147 = scmp.eq.s32.totalorder %s29, 0
      %p148 = por %p146, %p147
      %p149 = scmp.ne.s32.totalorder %s137, %s138
      %p150 = scmp.eq.s32.totalorder %s30, 1
      %p151 = por %p149, %p150
      %p153 = scmp.ne.s32.totalorder %s138, %s152
      %p154 = scmp.eq.s32.totalorder %s30, 0
      %p155 = por %p153, %p154
      %s157 = sadd.s32 %s156, 1
      %p160 = scmp.eq.s32.totalorder %s24, 1
      %p161 = scmp.ne.s32.totalorder %s156, %s158
      %p162 = scmp.eq.s32.totalorder %s24, 0
      %p163 = por %p161, %p162
      %p164 = scmp.ne.s32.totalorder %s156, %s158
      %p165 = scmp.eq.s32.totalorder %s29, 1
      %p166 = por %p164, %p165
      %p167 = scmp.ne.s32.totalorder %s158, %s159
      %p168 = scmp.eq.s32.totalorder %s29, 0
      %p169 = por %p167, %p168
      %p170 = scmp.ne.s32.totalorder %s158, %s159
      %p171 = scmp.eq.s32.totalorder %s30, 1
      %p172 = por %p170, %p171
      %p174 = scmp.ne.s32.totalorder %s159, %s173
      %p175 = scmp.eq.s32.totalorder %s30, 0
      %p176 = por %p174, %p175
      %s178 = sadd.s32 %s177, 1
      %p181 = scmp.eq.s32.totalorder %s24, 1
      %p182 = scmp.ne.s32.totalorder %s177, %s179
      %p183 = scmp.eq.s32.totalorder %s24, 0
      %p184 = por %p182, %p183
      %p185 = scmp.ne.s32.totalorder %s177, %s179
      %p186 = scmp.eq.s32.totalorder %s29, 1
      %p187 = por %p185, %p186
      %p188 = scmp.ne.s32.totalorder %s179, %s180
      %p189 = scmp.eq.s32.totalorder %s29, 0
      %p190 = por %p188, %p189
      %p191 = scmp.ne.s32.totalorder %s179, %s180
      %p192 = scmp.eq.s32.totalorder %s30, 1
      %p193 = por %p191, %p192
      %p195 = scmp.ne.s32.totalorder %s180, %s194
      %p196 = scmp.eq.s32.totalorder %s30, 0
      %p197 = por %p195, %p196
      %s199 = sadd.s32 %s198, 1
      %p202 = scmp.eq.s32.totalorder %s24, 1
      %p203 = scmp.ne.s32.totalorder %s198, %s200
      %p204 = scmp.eq.s32.totalorder %s24, 0
      %p205 = por %p203, %p204
      %p206 = scmp.ne.s32.totalorder %s198, %s200
      %p207 = scmp.eq.s32.totalorder %s29, 1
      %p208 = por %p206, %p207
      %p209 = scmp.ne.s32.totalorder %s200, %s201
      %p210 = scmp.eq.s32.totalorder %s29, 0
      %p211 = por %p209, %p210
      %p212 = scmp.ne.s32.totalorder %s200, %s201
      %p213 = scmp.eq.s32.totalorder %s30, 1
      %p214 = por %p212, %p213
      %p216 = scmp.ne.s32.totalorder %s201, %s215
      %p217 = scmp.eq.s32.totalorder %s30, 0
      %p218 = por %p216, %p217
      %s220 = sadd.s32 %s219, 1
      %p223 = scmp.eq.s32.totalorder %s24, 1
      %p224 = scmp.ne.s32.totalorder %s219, %s221
      %p225 = scmp.eq.s32.totalorder %s24, 0
      %p226 = por %p224, %p225
      %p227 = scmp.ne.s32.totalorder %s219, %s221
      %p228 = scmp.eq.s32.totalorder %s29, 1
      %p229 = por %p227, %p228
      %p230 = scmp.ne.s32.totalorder %s221, %s222
      %p231 = scmp.eq.s32.totalorder %s29, 0
      %p232 = por %p230, %p231
      %p233 = scmp.ne.s32.totalorder %s221, %s222
      %p234 = scmp.eq.s32.totalorder %s30, 1
      %p235 = por %p233, %p234
      %p237 = scmp.ne.s32.totalorder %s222, %s236
      %p238 = scmp.eq.s32.totalorder %s30, 0
      %p239 = por %p237, %p238
      %s241 = sadd.s32 %s240, 1
      %p244 = scmp.eq.s32.totalorder %s24, 1
      %p245 = scmp.ne.s32.totalorder %s240, %s242
      %p246 = scmp.eq.s32.totalorder %s24, 0
      %p247 = por %p245, %p246
      %p248 = scmp.ne.s32.totalorder %s240, %s242
      %p249 = scmp.eq.s32.totalorder %s29, 1
      %p250 = por %p248, %p249
      %p251 = scmp.ne.s32.totalorder %s242, %s243
      %p252 = scmp.eq.s32.totalorder %s29, 0
      %p253 = por %p251, %p252
      %p254 = scmp.ne.s32.totalorder %s242, %s243
      %p255 = scmp.eq.s32.totalorder %s30, 1
      %p256 = por %p254, %p255
      %p258 = scmp.ne.s32.totalorder %s243, %s257
      %p259 = scmp.eq.s32.totalorder %s30, 0
      %p260 = por %p258, %p259
      %s262 = sadd.s32 %s261, 1
      %p265 = scmp.eq.s32.totalorder %s24, 1
      %p266 = scmp.ne.s32.totalorder %s261, %s263
      %p267 = scmp.eq.s32.totalorder %s24, 0
      %p268 = por %p266, %p267
      %p269 = scmp.ne.s32.totalorder %s261, %s263
      %p270 = scmp.eq.s32.totalorder %s29, 1
      %p271 = por %p269, %p270
      %p272 = scmp.ne.s32.totalorder %s263, %s264
      %p273 = scmp.eq.s32.totalorder %s29, 0
      %p274 = por %p272, %p273
      %p275 = scmp.ne.s32.totalorder %s263, %s264
      %p276 = scmp.eq.s32.totalorder %s30, 1
      %p277 = por %p275, %p276
      %p279 = scmp.ne.s32.totalorder %s264, %s278
      %p280 = scmp.eq.s32.totalorder %s30, 0
      %p281 = por %p279, %p280
      %s283 = sadd.s32 %s282, 1
      %p286 = scmp.eq.s32.totalorder %s24, 1
      %p287 = scmp.ne.s32.totalorder %s282, %s284
      %p288 = scmp.eq.s32.totalorder %s24, 0
      %p289 = por %p287, %p288
      %p290 = scmp.ne.s32.totalorder %s282, %s284
      %p291 = scmp.eq.s32.totalorder %s29, 1
      %p292 = por %p290, %p291
      %p293 = scmp.ne.s32.totalorder %s284, %s285
      %p294 = scmp.eq.s32.totalorder %s29, 0
      %p295 = por %p293, %p294
      %p296 = scmp.ne.s32.totalorder %s284, %s285
      %p297 = scmp.eq.s32.totalorder %s30, 1
      %p298 = por %p296, %p297
      %p300 = scmp.ne.s32.totalorder %s285, %s299
      %p301 = scmp.eq.s32.totalorder %s30, 0
      %p302 = por %p300, %p301
      %s304 = sadd.s32 %s303, 1
      %p307 = scmp.eq.s32.totalorder %s24, 1
      %p308 = scmp.ne.s32.totalorder %s303, %s305
      %p309 = scmp.eq.s32.totalorder %s24, 0
      %p310 = por %p308, %p309
      %p311 = scmp.ne.s32.totalorder %s303, %s305
      %p312 = scmp.eq.s32.totalorder %s29, 1
      %p313 = por %p311, %p312
      %p314 = scmp.ne.s32.totalorder %s305, %s306
      %p315 = scmp.eq.s32.totalorder %s29, 0
      %p316 = por %p314, %p315
      %p317 = scmp.ne.s32.totalorder %s305, %s306
      %p318 = scmp.eq.s32.totalorder %s30, 1
      %p319 = por %p317, %p318
      %p321 = scmp.ne.s32.totalorder %s306, %s320
      %p322 = scmp.eq.s32.totalorder %s30, 0
      %p323 = por %p321, %p322
      %s325 = sadd.s32 %s324, 1
      %p328 = scmp.eq.s32.totalorder %s24, 1
      %p329 = scmp.ne.s32.totalorder %s324, %s326
      %p330 = scmp.eq.s32.totalorder %s24, 0
      %p331 = por %p329, %p330
      %p332 = scmp.ne.s32.totalorder %s324, %s326
      %p333 = scmp.eq.s32.totalorder %s29, 1
      %p334 = por %p332, %p333
      %p335 = scmp.ne.s32.totalorder %s326, %s327
      %p336 = scmp.eq.s32.totalorder %s29, 0
      %p337 = por %p335, %p336
      %p338 = scmp.ne.s32.totalorder %s326, %s327
      %p339 = scmp.eq.s32.totalorder %s30, 1
      %p340 = por %p338, %p339
      %p342 = scmp.ne.s32.totalorder %s327, %s341
      %p343 = scmp.eq.s32.totalorder %s30, 0
      %p344 = por %p342, %p343
      %s346 = sadd.s32 %s345, 1
      %p349 = scmp.eq.s32.totalorder %s24, 1
      %p350 = scmp.ne.s32.totalorder %s345, %s347
      %p351 = scmp.eq.s32.totalorder %s24, 0
      %p352 = por %p350, %p351
      %p353 = scmp.ne.s32.totalorder %s345, %s347
      %p354 = scmp.eq.s32.totalorder %s29, 1
      %p355 = por %p353, %p354
      %p356 = scmp.ne.s32.totalorder %s347, %s348
      %p357 = scmp.eq.s32.totalorder %s29, 0
      %p358 = por %p356, %p357
      %p359 = scmp.ne.s32.totalorder %s347, %s348
      %p360 = scmp.eq.s32.totalorder %s30, 1
      %p361 = por %p359, %p360
      %p363 = scmp.ne.s32.totalorder %s348, %s362
      %p364 = scmp.eq.s32.totalorder %s30, 0
      %p365 = por %p363, %p364
      %s366 = ssub.s32 %s31, %s43
      %p367 = scmp.eq.s32.totalorder %s366, 0
      %s369 = sadd.s32 %s368, 1
      %s370 = scalar_select %p367, %s368, %s369
      %p373 = pneg %p367
      %p374 = scmp.eq.s32.totalorder %s24, 1
      %p375 = por %p373, %p374
      %p376 = scmp.ne.s32.totalorder %s368, %s371
      %p377 = scmp.eq.s32.totalorder %s24, 0
      %p378 = por %p376, %p377
      %p379 = scmp.ne.s32.totalorder %s368, %s371
      %p380 = scmp.eq.s32.totalorder %s29, 1
      %p381 = por %p379, %p380
      %p382 = scmp.ne.s32.totalorder %s371, %s372
      %p383 = scmp.eq.s32.totalorder %s29, 0
      %p384 = por %p382, %p383
      %p385 = scmp.ne.s32.totalorder %s371, %s372
      %p386 = scmp.eq.s32.totalorder %s30, 1
      %p387 = por %p385, %p386
      %p389 = scmp.ne.s32.totalorder %s372, %s388
      %p390 = scmp.eq.s32.totalorder %s30, 0
      %p391 = por %p389, %p390
      %p392 = scmp.le.s32.totalorder 1, %s24
      %p393 = scmp.lt.s32.totalorder %s24, 3
      %p394 = pnand %p392, %p393
      %p395 = pneg %p394
      // Predicated region
      $region9: #{tpu_custom_call.1} parent=5 // pred_check
        _
      $region10: #{tpu_custom_call.1} parent=5 // pred_check_branch
        %397 = sbr.rel (%p394) target = $region12
      $region11: #{tpu_custom_call.1} parent=5 // pred_region
        %s398 = ssub.s32 %s24, 1
        // Predicated region
        $region13: #{tpu_custom_call.1} parent=11 // pred_check
          %p399 = pneg %p85
        $region14: #{tpu_custom_call.1} parent=11 // pred_check_branch
          %401 = sbr.rel (%p399) target = $region16
        $region15: #{tpu_custom_call.1} parent=11 // pred_region
          _
        $region16: #{tpu_custom_call.1} parent=11 // pred_fallthru
          _
        // Predicated region
        $region17: #{tpu_custom_call.1} parent=11 // pred_check
          %p402 = pneg %p106
        $region18: #{tpu_custom_call.1} parent=11 // pred_check_branch
          %404 = sbr.rel (%p402) target = $region20
        $region19: #{tpu_custom_call.1} parent=11 // pred_region
          _
        $region20: #{tpu_custom_call.1} parent=11 // pred_fallthru
          _
        // Predicated region
        $region21: #{tpu_custom_call.1} parent=11 // pred_check
          %p405 = pneg %p127
        $region22: #{tpu_custom_call.1} parent=11 // pred_check_branch
          %407 = sbr.rel (%p405) target = $region24
        $region23: #{tpu_custom_call.1} parent=11 // pred_region
          _
        $region24: #{tpu_custom_call.1} parent=11 // pred_fallthru
          _
        // Predicated region
        $region25: #{tpu_custom_call.1} parent=11 // pred_check
          %p408 = pneg %p148
        $region26: #{tpu_custom_call.1} parent=11 // pred_check_branch
          %410 = sbr.rel (%p408) target = $region28
        $region27: #{tpu_custom_call.1} parent=11 // pred_region
          _
        $region28: #{tpu_custom_call.1} parent=11 // pred_fallthru
          _
        // Predicated region
        $region29: #{tpu_custom_call.1} parent=11 // pred_check
          %p411 = pneg %p169
        $region30: #{tpu_custom_call.1} parent=11 // pred_check_branch
          %413 = sbr.rel (%p411) target = $region32
        $region31: #{tpu_custom_call.1} parent=11 // pred_region
          _
        $region32: #{tpu_custom_call.1} parent=11 // pred_fallthru
          _
        // Predicated region
        $region33: #{tpu_custom_call.1} parent=11 // pred_check
          %p414 = pneg %p190
        $region34: #{tpu_custom_call.1} parent=11 // pred_check_branch
          %416 = sbr.rel (%p414) target = $region36
        $region35: #{tpu_custom_call.1} parent=11 // pred_region
          _
        $region36: #{tpu_custom_call.1} parent=11 // pred_fallthru
          _
        // Predicated region
        $region37: #{tpu_custom_call.1} parent=11 // pred_check
          %p417 = pneg %p211
        $region38: #{tpu_custom_call.1} parent=11 // pred_check_branch
          %419 = sbr.rel (%p417) target = $region40
        $region39: #{tpu_custom_call.1} parent=11 // pred_region
          _
        $region40: #{tpu_custom_call.1} parent=11 // pred_fallthru
          _
        // Predicated region
        $region41: #{tpu_custom_call.1} parent=11 // pred_check
          %p420 = pneg %p232
        $region42: #{tpu_custom_call.1} parent=11 // pred_check_branch
          %422 = sbr.rel (%p420) target = $region44
        $region43: #{tpu_custom_call.1} parent=11 // pred_region
          _
        $region44: #{tpu_custom_call.1} parent=11 // pred_fallthru
          _
        // Predicated region
        $region45: #{tpu_custom_call.1} parent=11 // pred_check
          %p423 = pneg %p253
        $region46: #{tpu_custom_call.1} parent=11 // pred_check_branch
          %425 = sbr.rel (%p423) target = $region48
        $region47: #{tpu_custom_call.1} parent=11 // pred_region
          _
        $region48: #{tpu_custom_call.1} parent=11 // pred_fallthru
          _
        // Predicated region
        $region49: #{tpu_custom_call.1} parent=11 // pred_check
          %p426 = pneg %p274
        $region50: #{tpu_custom_call.1} parent=11 // pred_check_branch
          %428 = sbr.rel (%p426) target = $region52
        $region51: #{tpu_custom_call.1} parent=11 // pred_region
          _
        $region52: #{tpu_custom_call.1} parent=11 // pred_fallthru
          _
        // Predicated region
        $region53: #{tpu_custom_call.1} parent=11 // pred_check
          %p429 = pneg %p295
        $region54: #{tpu_custom_call.1} parent=11 // pred_check_branch
          %431 = sbr.rel (%p429) target = $region56
        $region55: #{tpu_custom_call.1} parent=11 // pred_region
          _
        $region56: #{tpu_custom_call.1} parent=11 // pred_fallthru
          _
        // Predicated region
        $region57: #{tpu_custom_call.1} parent=11 // pred_check
          %p432 = pneg %p316
        $region58: #{tpu_custom_call.1} parent=11 // pred_check_branch
          %434 = sbr.rel (%p432) target = $region60
        $region59: #{tpu_custom_call.1} parent=11 // pred_region
          _
        $region60: #{tpu_custom_call.1} parent=11 // pred_fallthru
          _
        // Predicated region
        $region61: #{tpu_custom_call.1} parent=11 // pred_check
          %p435 = pneg %p337
        $region62: #{tpu_custom_call.1} parent=11 // pred_check_branch
          %437 = sbr.rel (%p435) target = $region64
        $region63: #{tpu_custom_call.1} parent=11 // pred_region
          _
        $region64: #{tpu_custom_call.1} parent=11 // pred_fallthru
          _
        // Predicated region
        $region65: #{tpu_custom_call.1} parent=11 // pred_check
          %p438 = pneg %p358
        $region66: #{tpu_custom_call.1} parent=11 // pred_check_branch
          %440 = sbr.rel (%p438) target = $region68
        $region67: #{tpu_custom_call.1} parent=11 // pred_region
          _
        $region68: #{tpu_custom_call.1} parent=11 // pred_fallthru
          _
      $region12: #{tpu_custom_call.1} parent=5 // pred_fallthru
        _
      %p441 = scmp.lt.s32.totalorder %s24, 2
      // Predicated region
      $region69: #{tpu_custom_call.1} parent=5 // pred_check
        %p442 = pneg %p441
      $region70: #{tpu_custom_call.1} parent=5 // pred_check_branch
        %444 = sbr.rel (%p442) target = $region72
      $region71: #{tpu_custom_call.1} parent=5 // pred_region
        // Predicated region
        $region73: #{tpu_custom_call.1} parent=71 // pred_check
          %p445 = pneg %p58
        $region74: #{tpu_custom_call.1} parent=71 // pred_check_branch
          %447 = sbr.rel (%p445) target = $region76
        $region75: #{tpu_custom_call.1} parent=71 // pred_region
          %s448 = sadd.s32 %s31, %s32
          %p449 = scmp.lt.s32.totalorder %s448, 1
          %s450 = scalar_select %p449, %s448, 1
          %s451 = smul.addr %s450, 8
          %s452 = scalar_lea.vmem %s0, %s451
          %s453 = sadd.s32 %s31, %s32
        $region76: #{tpu_custom_call.1} parent=71 // pred_fallthru
          _
      $region72: #{tpu_custom_call.1} parent=5 // pred_fallthru
        _
      %p454 = scmp.le.s32.totalorder 1, %s24
      %p455 = scmp.lt.s32.totalorder %s24, 3
      %p456 = pnand %p454, %p455
      %p457 = pneg %p456
      // Predicated region
      $region77: #{tpu_custom_call.1} parent=5 // pred_check
        _
      $region78: #{tpu_custom_call.1} parent=5 // pred_check_branch
        %459 = sbr.rel (%p456) target = $region80
      $region79: #{tpu_custom_call.1} parent=5 // pred_region
        %s460 = ssub.s32 %s24, 1
        %s461 = sadd.s32 %s33, %s34
        %p462 = scmp.lt.s32.totalorder %s461, 1
        %s463 = scalar_select %p462, %s461, 1
        %s464 = smul.addr %s463, 8
        %s465 = scalar_lea.vmem %s0, %s464
        %p466 = pneg %p64
        %p467 = pneg %p61
        %p468 = pneg %p85
        %p469 = pneg %p82
        %p470 = pneg %p106
        %p471 = pneg %p103
        %p472 = pneg %p127
        %p473 = pneg %p124
        %p474 = pneg %p148
        %p475 = pneg %p145
        %p476 = pneg %p169
        %p477 = pneg %p166
        %p478 = pneg %p190
        %p479 = pneg %p187
        %p480 = pneg %p211
        %p481 = pneg %p208
        %p482 = pneg %p232
        %p483 = pneg %p229
        %p484 = pneg %p253
        %p485 = pneg %p250
        %p486 = pneg %p274
        %p487 = pneg %p271
        %p488 = pneg %p295
        %p489 = pneg %p292
        %p490 = pneg %p316
        %p491 = pneg %p313
        %p492 = pneg %p337
        %p493 = pneg %p334
        %p494 = pneg %p358
        %p495 = pneg %p355
        %p496 = pneg %p384
        %p497 = pneg %p381
        %s498 = sand.u32 %s371, 1
        %s499 = scalar_lea.sflag [#allocation3], %s498
        %s500 = sand.u32 %s371, 1
        %s501 = smul.addr %s500, 8
        %s502 = scalar_lea.vmem [#allocation2], %s501
        %s503 = sadd.s32 %s33, %s34
        %p504 = scmp.lt.s32.totalorder %s503, 1
        %s505 = scalar_select %p504, %s503, 1
        %s506 = smul.addr %s505, 8
        %s507 = scalar_lea.vmem %s0, %s506
        %s508 = sadd.s32 %s33, %s34
        %v509 = vld [vmem:[%s507] sm:$0xff]
        %v510 = vld [vmem:[%s1] sm:$0xff]
        %v511 = vld [vmem:[%s1 + $0x8] sm:$0xff]
        %v512 = vld [vmem:[%s2] sm:$0x1]
        %v514 = vlaneseq
        %v515 = vshrl.u32 %v514, 7
        %v516 = vsub.s32 0, %v515
        %v517 = vrot.slane %v512, %v516
        %vm519 = vcmask 130048
        %v521 = vsel %vm519, %v509, 0
        %523 = vmatprep.subr.mxu0 0.0
        %524 = vmatpush1.msra.mxu0 0.0
        %525 = vmatprep.subr.mxu0 0.0
        %526 = vmatpush1.msra.mxu0 0.0
        %527 = vmatprep.subr.mxu0 0.0
        %528 = vmatpush1.msra.mxu0 0.0
        %529 = vmatprep.subr.mxu0 0.0
        %530 = vmatpush1.msra.mxu0 0.0
        %531 = vmatprep.subr.mxu0 0.0
        %532 = vmatpush1.msra.mxu0 0.0
        %533 = vmatprep.subr.mxu0 0.0
        %534 = vmatpush1.msra.mxu0 0.0
        %535 = vmatprep.subr.mxu0 0.0
        %536 = vmatpush1.msra.mxu0 0.0
        %537 = vmatprep.subr.mxu0 0.0
        %538 = vmatpush1.msra.mxu0 0.0
        %539 = vmatprep.subr.mxu0 0.0
        %540 = vmatpush1.msra.mxu0 0.0
        %541 = vmatprep.subr.mxu0 0.0
        %542 = vmatpush1.msra.mxu0 0.0
        %543 = vmatprep.subr.mxu0 0.0
        %544 = vmatpush1.msra.mxu0 0.0
        %545 = vmatprep.subr.mxu0 0.0
        %546 = vmatpush1.msra.mxu0 0.0
        %547 = vmatprep.subr.mxu0 0.0
        %548 = vmatpush1.msra.mxu0 0.0
        %549 = vmatprep.subr.mxu0 0.0
        %550 = vmatpush1.msra.mxu0 0.0
        %551 = vmatprep.subr.mxu0 0.0
        %552 = vmatpush1.msra.mxu0 %v511
        %553 = vmatprep.subr.mxu0 0.0
        %554 = vmatpush1.msra.mxu0 %v510
        %555 = vmatprep.subr.mxu0 0.0
        %556 = vmatpush2.msra.mxu0 0.0
        %557 = vmatprep.subr.mxu0 0.0
        %558 = vmatpush2.msra.mxu0 0.0
        %559 = vmatprep.subr.mxu0 0.0
        %560 = vmatpush2.msra.mxu0 0.0
        %561 = vmatprep.subr.mxu0 0.0
        %562 = vmatpush2.msra.mxu0 0.0
        %563 = vmatprep.subr.mxu0 0.0
        %564 = vmatpush2.msra.mxu0 0.0
        %565 = vmatprep.subr.mxu0 0.0
        %566 = vmatpush2.msra.mxu0 0.0
        %567 = vmatprep.subr.mxu0 0.0
        %568 = vmatpush2.msra.mxu0 0.0
        %569 = vmatprep.subr.mxu0 0.0
        %570 = vmatpush2.msra.mxu0 0.0
        %571 = vmatprep.subr.mxu0 0.0
        %572 = vmatpush2.msra.mxu0 0.0
        %573 = vmatprep.subr.mxu0 0.0
        %574 = vmatpush2.msra.mxu0 0.0
        %575 = vmatprep.subr.mxu0 0.0
        %576 = vmatpush2.msra.mxu0 0.0
        %577 = vmatprep.subr.mxu0 0.0
        %578 = vmatpush2.msra.mxu0 0.0
        %579 = vmatprep.subr.mxu0 0.0
        %580 = vmatpush2.msra.mxu0 0.0
        %581 = vmatprep.subr.mxu0 0.0
        %582 = vmatpush2.msra.mxu0 0.0
        %583 = vmatprep.subr.mxu0 0.0
        %584 = vmatpush2.msra.mxu0 0.0
        %585 = vmatprep.subr.mxu0 0.0
        %586 = vmatpush2.msra.mxu0 0.0
        %587 = vmatprep.mubr.f32.mxu0 0.0
        %588 = vmatmul.mubr.f32.gmra.mxu0 %v521
        %v589 = vpop.f32.mrf.mxu0
        %v590 = vadd.f32 %v517, %v589
        %v591 = vpop.f32.mrf.mxu0
        %592 = vdwg.mxu0
        %v593 = vld [vmem:[%s3] sm:$0xff]
        %v594 = vld [vmem:[%s3 + $0x8] sm:$0xff]
        %v595 = vld [vmem:[%s3 + $0x10] sm:$0xff]
        %v596 = vld [vmem:[%s3 + $0x18] sm:$0xff]
        %v597 = vld [vmem:[%s3 + $0x20] sm:$0xff]
        %v598 = vld [vmem:[%s3 + $0x28] sm:$0xff]
        %v599 = vld [vmem:[%s3 + $0x30] sm:$0xff]
        %v600 = vld [vmem:[%s3 + $0x38] sm:$0xff]
        %v601 = vld [vmem:[%s3 + $0x40] sm:$0xff]
        %v602 = vld [vmem:[%s3 + $0x48] sm:$0xff]
        %v603 = vld [vmem:[%s3 + $0x50] sm:$0xff]
        %v604 = vld [vmem:[%s3 + $0x58] sm:$0xff]
        %v605 = vld [vmem:[%s3 + $0x60] sm:$0xff]
        %v606 = vld [vmem:[%s3 + $0x68] sm:$0xff]
        %v607 = vld [vmem:[%s3 + $0x70] sm:$0xff]
        %v608 = vld [vmem:[%s3 + $0x78] sm:$0xff]
        %v609 = vld [vmem:[%s4] sm:$0x3]
        %v611 = vlaneseq
        %v612 = vshrl.u32 %v611, 7
        %v613 = vsub.s32 0, %v612
        %v614 = vrot.slane %v609, %v613
        %v615 = vlaneseq
        %v616 = vshrl.u32 %v615, 7
        %v617 = vsub.s32 1, %v616
        %v618 = vrot.slane %v609, %v617
        %vm621 = vcmask 523264
        %v623 = vsel %vm621, %v590, 0
        %625 = vmatprep.subr.mxu0 0.0
        %626 = vmatpush1.msra.mxu0 0.0
        %627 = vmatprep.subr.mxu0 0.0
        %628 = vmatpush1.msra.mxu0 0.0
        %629 = vmatprep.subr.mxu0 0.0
        %630 = vmatpush1.msra.mxu0 0.0
        %631 = vmatprep.subr.mxu0 0.0
        %632 = vmatpush1.msra.mxu0 0.0
        %633 = vmatprep.subr.mxu0 0.0
        %634 = vmatpush1.msra.mxu0 0.0
        %635 = vmatprep.subr.mxu0 0.0
        %636 = vmatpush1.msra.mxu0 0.0
        %637 = vmatprep.subr.mxu0 0.0
        %638 = vmatpush1.msra.mxu0 0.0
        %639 = vmatprep.subr.mxu0 0.0
        %640 = vmatpush1.msra.mxu0 0.0
        %641 = vmatprep.subr.mxu0 %v608
        %642 = vmatpush1.msra.mxu0 %v607
        %643 = vmatprep.subr.mxu0 %v606
        %644 = vmatpush1.msra.mxu0 %v605
        %645 = vmatprep.subr.mxu0 %v604
        %646 = vmatpush1.msra.mxu0 %v603
        %647 = vmatprep.subr.mxu0 %v602
        %648 = vmatpush1.msra.mxu0 %v601
        %649 = vmatprep.subr.mxu0 %v600
        %650 = vmatpush1.msra.mxu0 %v599
        %651 = vmatprep.subr.mxu0 %v598
        %652 = vmatpush1.msra.mxu0 %v597
        %653 = vmatprep.subr.mxu0 %v596
        %654 = vmatpush1.msra.mxu0 %v595
        %655 = vmatprep.subr.mxu0 %v594
        %656 = vmatpush1.msra.mxu0 %v593
        %657 = vmatprep.subr.mxu0 0.0
        %658 = vmatpush2.msra.mxu0 0.0
        %659 = vmatprep.subr.mxu0 0.0
        %660 = vmatpush2.msra.mxu0 0.0
        %661 = vmatprep.subr.mxu0 0.0
        %662 = vmatpush2.msra.mxu0 0.0
        %663 = vmatprep.subr.mxu0 0.0
        %664 = vmatpush2.msra.mxu0 0.0
        %665 = vmatprep.subr.mxu0 0.0
        %666 = vmatpush2.msra.mxu0 0.0
        %667 = vmatprep.subr.mxu0 0.0
        %668 = vmatpush2.msra.mxu0 0.0
        %669 = vmatprep.subr.mxu0 0.0
        %670 = vmatpush2.msra.mxu0 0.0
        %671 = vmatprep.subr.mxu0 0.0
        %672 = vmatpush2.msra.mxu0 0.0
        %673 = vmatprep.subr.mxu0 0.0
        %674 = vmatpush2.msra.mxu0 0.0
        %675 = vmatprep.subr.mxu0 0.0
        %676 = vmatpush2.msra.mxu0 0.0
        %677 = vmatprep.subr.mxu0 0.0
        %678 = vmatpush2.msra.mxu0 0.0
        %679 = vmatprep.subr.mxu0 0.0
        %680 = vmatpush2.msra.mxu0 0.0
        %681 = vmatprep.subr.mxu0 0.0
        %682 = vmatpush2.msra.mxu0 0.0
        %683 = vmatprep.subr.mxu0 0.0
        %684 = vmatpush2.msra.mxu0 0.0
        %685 = vmatprep.subr.mxu0 0.0
        %686 = vmatpush2.msra.mxu0 0.0
        %687 = vmatprep.subr.mxu0 0.0
        %688 = vmatpush2.msra.mxu0 0.0
        %689 = vmatprep.mubr.f32.mxu0 0.0
        %690 = vmatmul.mubr.f32.gmra.mxu0 %v623
        %v691 = vpop.f32.mrf.mxu0
        %v692 = vadd.f32 %v614, %v691
        %v693 = vpop.f32.mrf.mxu0
        %v694 = vadd.f32 %v618, %v693
        %695 = vdwg.mxu0
        %697 = vrot.lane.b32.xlu0 %v692, 112
        %v698 = vpop.permute.xlu0 %697
        %699 = vrot.lane.b32.xlu0 %v692, 96
        %v700 = vpop.permute.xlu0 %699
        %701 = vrot.lane.b32.xlu0 %v692, 80
        %v702 = vpop.permute.xlu0 %701
        %704 = vrot.lane.b32.xlu0 %v694, 112
        %v705 = vpop.permute.xlu0 %704
        %707 = vrot.lane.b32.xlu0 %v694, 96
        %v708 = vpop.permute.xlu0 %707
        %710 = vrot.lane.b32.xlu0 %v694, 80
        %v711 = vpop.permute.xlu0 %710
        %713 = vrot.lane.b32.xlu0 %v692, 64
        %v714 = vpop.permute.xlu0 %713
        %v715 = vsel %vm519, %v692, 0
        %v717 = vsel %vm519, %v714, 0
        %719 = vmatprep.subr.mxu0 0.0
        %720 = vmatpush1.xpose.msra.mxu0 0.0
        %721 = vmatprep.subr.mxu0 0.0
        %722 = vmatpush1.xpose.msra.mxu0 0.0
        %723 = vmatprep.subr.mxu0 0.0
        %724 = vmatpush1.xpose.msra.mxu0 0.0
        %725 = vmatprep.subr.mxu0 0.0
        %726 = vmatpush1.xpose.msra.mxu0 0.0
        %727 = vmatprep.subr.mxu0 0.0
        %728 = vmatpush1.xpose.msra.mxu0 0.0
        %729 = vmatprep.subr.mxu0 0.0
        %730 = vmatpush1.xpose.msra.mxu0 0.0
        %731 = vmatprep.subr.mxu0 0.0
        %732 = vmatpush1.xpose.msra.mxu0 0.0
        %733 = vmatprep.subr.mxu0 0.0
        %734 = vmatpush1.xpose.msra.mxu0 0.0
        %735 = vmatprep.subr.mxu0 0.0
        %736 = vmatpush1.xpose.msra.mxu0 0.0
        %737 = vmatprep.subr.mxu0 0.0
        %738 = vmatpush1.xpose.msra.mxu0 0.0
        %739 = vmatprep.subr.mxu0 0.0
        %740 = vmatpush1.xpose.msra.mxu0 0.0
        %741 = vmatprep.subr.mxu0 0.0
        %742 = vmatpush1.xpose.msra.mxu0 0.0
        %743 = vmatprep.subr.mxu0 0.0
        %744 = vmatpush1.xpose.msra.mxu0 0.0
        %745 = vmatprep.subr.mxu0 0.0
        %746 = vmatpush1.xpose.msra.mxu0 0.0
        %747 = vmatprep.subr.mxu0 0.0
        %748 = vmatpush1.xpose.msra.mxu0 0.0
        %749 = vmatprep.subr.mxu0 0.0
        %750 = vmatpush1.xpose.msra.mxu0 %v717
        %751 = vmatprep.subr.mxu0 0.0
        %752 = vmatpush2.xpose.msra.mxu0 0.0
        %753 = vmatprep.subr.mxu0 0.0
        %754 = vmatpush2.xpose.msra.mxu0 0.0
        %755 = vmatprep.subr.mxu0 0.0
        %756 = vmatpush2.xpose.msra.mxu0 0.0
        %757 = vmatprep.subr.mxu0 0.0
        %758 = vmatpush2.xpose.msra.mxu0 0.0
        %759 = vmatprep.subr.mxu0 0.0
        %760 = vmatpush2.xpose.msra.mxu0 0.0
        %761 = vmatprep.subr.mxu0 0.0
        %762 = vmatpush2.xpose.msra.mxu0 0.0
        %763 = vmatprep.subr.mxu0 0.0
        %764 = vmatpush2.xpose.msra.mxu0 0.0
        %765 = vmatprep.subr.mxu0 0.0
        %766 = vmatpush2.xpose.msra.mxu0 0.0
        %767 = vmatprep.subr.mxu0 0.0
        %768 = vmatpush2.xpose.msra.mxu0 0.0
        %769 = vmatprep.subr.mxu0 0.0
        %770 = vmatpush2.xpose.msra.mxu0 0.0
        %771 = vmatprep.subr.mxu0 0.0
        %772 = vmatpush2.xpose.msra.mxu0 0.0
        %773 = vmatprep.subr.mxu0 0.0
        %774 = vmatpush2.xpose.msra.mxu0 0.0
        %775 = vmatprep.subr.mxu0 0.0
        %776 = vmatpush2.xpose.msra.mxu0 0.0
        %777 = vmatprep.subr.mxu0 0.0
        %778 = vmatpush2.xpose.msra.mxu0 0.0
        %779 = vmatprep.subr.mxu0 0.0
        %780 = vmatpush2.xpose.msra.mxu0 0.0
        %781 = vmatprep.subr.mxu0 0.0
        %782 = vmatpush2.xpose.msra.mxu0 0.0
        %783 = vmatprep.mubr.f32.mxu0 0.0
        %784 = vmatmul.mubr.f32.gmra.mxu0 %v715
        %v785 = vpop.f32.mrf.mxu0
        %v786 = vadd.f32 0.0, %v785
        %v787 = vpop.f32.mrf.mxu0
        %788 = vdwg.mxu0
        %789 = vrot.lane.b32.xlu0 %v698, 64
        %v790 = vpop.permute.xlu0 %789
        %v791 = vsel %vm519, %v698, 0
        %v793 = vsel %vm519, %v790, 0
        %795 = vmatprep.subr.mxu0 0.0
        %796 = vmatpush1.xpose.msra.mxu0 0.0
        %797 = vmatprep.subr.mxu0 0.0
        %798 = vmatpush1.xpose.msra.mxu0 0.0
        %799 = vmatprep.subr.mxu0 0.0
        %800 = vmatpush1.xpose.msra.mxu0 0.0
        %801 = vmatprep.subr.mxu0 0.0
        %802 = vmatpush1.xpose.msra.mxu0 0.0
        %803 = vmatprep.subr.mxu0 0.0
        %804 = vmatpush1.xpose.msra.mxu0 0.0
        %805 = vmatprep.subr.mxu0 0.0
        %806 = vmatpush1.xpose.msra.mxu0 0.0
        %807 = vmatprep.subr.mxu0 0.0
        %808 = vmatpush1.xpose.msra.mxu0 0.0
        %809 = vmatprep.subr.mxu0 0.0
        %810 = vmatpush1.xpose.msra.mxu0 0.0
        %811 = vmatprep.subr.mxu0 0.0
        %812 = vmatpush1.xpose.msra.mxu0 0.0
        %813 = vmatprep.subr.mxu0 0.0
        %814 = vmatpush1.xpose.msra.mxu0 0.0
        %815 = vmatprep.subr.mxu0 0.0
        %816 = vmatpush1.xpose.msra.mxu0 0.0
        %817 = vmatprep.subr.mxu0 0.0
        %818 = vmatpush1.xpose.msra.mxu0 0.0
        %819 = vmatprep.subr.mxu0 0.0
        %820 = vmatpush1.xpose.msra.mxu0 0.0
        %821 = vmatprep.subr.mxu0 0.0
        %822 = vmatpush1.xpose.msra.mxu0 0.0
        %823 = vmatprep.subr.mxu0 0.0
        %824 = vmatpush1.xpose.msra.mxu0 0.0
        %825 = vmatprep.subr.mxu0 0.0
        %826 = vmatpush1.xpose.msra.mxu0 %v793
        %827 = vmatprep.subr.mxu0 0.0
        %828 = vmatpush2.xpose.msra.mxu0 0.0
        %829 = vmatprep.subr.mxu0 0.0
        %830 = vmatpush2.xpose.msra.mxu0 0.0
        %831 = vmatprep.subr.mxu0 0.0
        %832 = vmatpush2.xpose.msra.mxu0 0.0
        %833 = vmatprep.subr.mxu0 0.0
        %834 = vmatpush2.xpose.msra.mxu0 0.0
        %835 = vmatprep.subr.mxu0 0.0
        %836 = vmatpush2.xpose.msra.mxu0 0.0
        %837 = vmatprep.subr.mxu0 0.0
        %838 = vmatpush2.xpose.msra.mxu0 0.0
        %839 = vmatprep.subr.mxu0 0.0
        %840 = vmatpush2.xpose.msra.mxu0 0.0
        %841 = vmatprep.subr.mxu0 0.0
        %842 = vmatpush2.xpose.msra.mxu0 0.0
        %843 = vmatprep.subr.mxu0 0.0
        %844 = vmatpush2.xpose.msra.mxu0 0.0
        %845 = vmatprep.subr.mxu0 0.0
        %846 = vmatpush2.xpose.msra.mxu0 0.0
        %847 = vmatprep.subr.mxu0 0.0
        %848 = vmatpush2.xpose.msra.mxu0 0.0
        %849 = vmatprep.subr.mxu0 0.0
        %850 = vmatpush2.xpose.msra.mxu0 0.0
        %851 = vmatprep.subr.mxu0 0.0
        %852 = vmatpush2.xpose.msra.mxu0 0.0
        %853 = vmatprep.subr.mxu0 0.0
        %854 = vmatpush2.xpose.msra.mxu0 0.0
        %855 = vmatprep.subr.mxu0 0.0
        %856 = vmatpush2.xpose.msra.mxu0 0.0
        %857 = vmatprep.subr.mxu0 0.0
        %858 = vmatpush2.xpose.msra.mxu0 0.0
        %859 = vmatprep.mubr.f32.mxu0 0.0
        %860 = vmatmul.mubr.f32.gmra.mxu0 %v791
        %v861 = vpop.f32.mrf.mxu0
        %v862 = vadd.f32 0.0, %v861
        %v863 = vpop.f32.mrf.mxu0
        %864 = vdwg.mxu0
        %865 = vrot.lane.b32.xlu0 %v700, 64
        %v866 = vpop.permute.xlu0 %865
        %v867 = vsel %vm519, %v700, 0
        %v869 = vsel %vm519, %v866, 0
        %871 = vmatprep.subr.mxu0 0.0
        %872 = vmatpush1.xpose.msra.mxu0 0.0
        %873 = vmatprep.subr.mxu0 0.0
        %874 = vmatpush1.xpose.msra.mxu0 0.0
        %875 = vmatprep.subr.mxu0 0.0
        %876 = vmatpush1.xpose.msra.mxu0 0.0
        %877 = vmatprep.subr.mxu0 0.0
        %878 = vmatpush1.xpose.msra.mxu0 0.0
        %879 = vmatprep.subr.mxu0 0.0
        %880 = vmatpush1.xpose.msra.mxu0 0.0
        %881 = vmatprep.subr.mxu0 0.0
        %882 = vmatpush1.xpose.msra.mxu0 0.0
        %883 = vmatprep.subr.mxu0 0.0
        %884 = vmatpush1.xpose.msra.mxu0 0.0
        %885 = vmatprep.subr.mxu0 0.0
        %886 = vmatpush1.xpose.msra.mxu0 0.0
        %887 = vmatprep.subr.mxu0 0.0
        %888 = vmatpush1.xpose.msra.mxu0 0.0
        %889 = vmatprep.subr.mxu0 0.0
        %890 = vmatpush1.xpose.msra.mxu0 0.0
        %891 = vmatprep.subr.mxu0 0.0
        %892 = vmatpush1.xpose.msra.mxu0 0.0
        %893 = vmatprep.subr.mxu0 0.0
        %894 = vmatpush1.xpose.msra.mxu0 0.0
        %895 = vmatprep.subr.mxu0 0.0
        %896 = vmatpush1.xpose.msra.mxu0 0.0
        %897 = vmatprep.subr.mxu0 0.0
        %898 = vmatpush1.xpose.msra.mxu0 0.0
        %899 = vmatprep.subr.mxu0 0.0
        %900 = vmatpush1.xpose.msra.mxu0 0.0
        %901 = vmatprep.subr.mxu0 0.0
        %902 = vmatpush1.xpose.msra.mxu0 %v869
        %903 = vmatprep.subr.mxu0 0.0
        %904 = vmatpush2.xpose.msra.mxu0 0.0
        %905 = vmatprep.subr.mxu0 0.0
        %906 = vmatpush2.xpose.msra.mxu0 0.0
        %907 = vmatprep.subr.mxu0 0.0
        %908 = vmatpush2.xpose.msra.mxu0 0.0
        %909 = vmatprep.subr.mxu0 0.0
        %910 = vmatpush2.xpose.msra.mxu0 0.0
        %911 = vmatprep.subr.mxu0 0.0
        %912 = vmatpush2.xpose.msra.mxu0 0.0
        %913 = vmatprep.subr.mxu0 0.0
        %914 = vmatpush2.xpose.msra.mxu0 0.0
        %915 = vmatprep.subr.mxu0 0.0
        %916 = vmatpush2.xpose.msra.mxu0 0.0
        %917 = vmatprep.subr.mxu0 0.0
        %918 = vmatpush2.xpose.msra.mxu0 0.0
        %919 = vmatprep.subr.mxu0 0.0
        %920 = vmatpush2.xpose.msra.mxu0 0.0
        %921 = vmatprep.subr.mxu0 0.0
        %922 = vmatpush2.xpose.msra.mxu0 0.0
        %923 = vmatprep.subr.mxu0 0.0
        %924 = vmatpush2.xpose.msra.mxu0 0.0
        %925 = vmatprep.subr.mxu0 0.0
        %926 = vmatpush2.xpose.msra.mxu0 0.0
        %927 = vmatprep.subr.mxu0 0.0
        %928 = vmatpush2.xpose.msra.mxu0 0.0
        %929 = vmatprep.subr.mxu0 0.0
        %930 = vmatpush2.xpose.msra.mxu0 0.0
        %931 = vmatprep.subr.mxu0 0.0
        %932 = vmatpush2.xpose.msra.mxu0 0.0
        %933 = vmatprep.subr.mxu0 0.0
        %934 = vmatpush2.xpose.msra.mxu0 0.0
        %935 = vmatprep.mubr.f32.mxu0 0.0
        %936 = vmatmul.mubr.f32.gmra.mxu0 %v867
        %v937 = vpop.f32.mrf.mxu0
        %v938 = vadd.f32 0.0, %v937
        %v939 = vpop.f32.mrf.mxu0
        %940 = vdwg.mxu0
        %941 = vrot.lane.b32.xlu0 %v702, 64
        %v942 = vpop.permute.xlu0 %941
        %v943 = vsel %vm519, %v702, 0
        %v945 = vsel %vm519, %v942, 0
        %947 = vmatprep.subr.mxu0 0.0
        %948 = vmatpush1.xpose.msra.mxu0 0.0
        %949 = vmatprep.subr.mxu0 0.0
        %950 = vmatpush1.xpose.msra.mxu0 0.0
        %951 = vmatprep.subr.mxu0 0.0
        %952 = vmatpush1.xpose.msra.mxu0 0.0
        %953 = vmatprep.subr.mxu0 0.0
        %954 = vmatpush1.xpose.msra.mxu0 0.0
        %955 = vmatprep.subr.mxu0 0.0
        %956 = vmatpush1.xpose.msra.mxu0 0.0
        %957 = vmatprep.subr.mxu0 0.0
        %958 = vmatpush1.xpose.msra.mxu0 0.0
        %959 = vmatprep.subr.mxu0 0.0
        %960 = vmatpush1.xpose.msra.mxu0 0.0
        %961 = vmatprep.subr.mxu0 0.0
        %962 = vmatpush1.xpose.msra.mxu0 0.0
        %963 = vmatprep.subr.mxu0 0.0
        %964 = vmatpush1.xpose.msra.mxu0 0.0
        %965 = vmatprep.subr.mxu0 0.0
        %966 = vmatpush1.xpose.msra.mxu0 0.0
        %967 = vmatprep.subr.mxu0 0.0
        %968 = vmatpush1.xpose.msra.mxu0 0.0
        %969 = vmatprep.subr.mxu0 0.0
        %970 = vmatpush1.xpose.msra.mxu0 0.0
        %971 = vmatprep.subr.mxu0 0.0
        %972 = vmatpush1.xpose.msra.mxu0 0.0
        %973 = vmatprep.subr.mxu0 0.0
        %974 = vmatpush1.xpose.msra.mxu0 0.0
        %975 = vmatprep.subr.mxu0 0.0
        %976 = vmatpush1.xpose.msra.mxu0 0.0
        %977 = vmatprep.subr.mxu0 0.0
        %978 = vmatpush1.xpose.msra.mxu0 %v945
        %979 = vmatprep.subr.mxu0 0.0
        %980 = vmatpush2.xpose.msra.mxu0 0.0
        %981 = vmatprep.subr.mxu0 0.0
        %982 = vmatpush2.xpose.msra.mxu0 0.0
        %983 = vmatprep.subr.mxu0 0.0
        %984 = vmatpush2.xpose.msra.mxu0 0.0
        %985 = vmatprep.subr.mxu0 0.0
        %986 = vmatpush2.xpose.msra.mxu0 0.0
        %987 = vmatprep.subr.mxu0 0.0
        %988 = vmatpush2.xpose.msra.mxu0 0.0
        %989 = vmatprep.subr.mxu0 0.0
        %990 = vmatpush2.xpose.msra.mxu0 0.0
        %991 = vmatprep.subr.mxu0 0.0
        %992 = vmatpush2.xpose.msra.mxu0 0.0
        %993 = vmatprep.subr.mxu0 0.0
        %994 = vmatpush2.xpose.msra.mxu0 0.0
        %995 = vmatprep.subr.mxu0 0.0
        %996 = vmatpush2.xpose.msra.mxu0 0.0
        %997 = vmatprep.subr.mxu0 0.0
        %998 = vmatpush2.xpose.msra.mxu0 0.0
        %999 = vmatprep.subr.mxu0 0.0
        %1000 = vmatpush2.xpose.msra.mxu0 0.0
        %1001 = vmatprep.subr.mxu0 0.0
        %1002 = vmatpush2.xpose.msra.mxu0 0.0
        %1003 = vmatprep.subr.mxu0 0.0
        %1004 = vmatpush2.xpose.msra.mxu0 0.0
        %1005 = vmatprep.subr.mxu0 0.0
        %1006 = vmatpush2.xpose.msra.mxu0 0.0
        %1007 = vmatprep.subr.mxu0 0.0
        %1008 = vmatpush2.xpose.msra.mxu0 0.0
        %1009 = vmatprep.subr.mxu0 0.0
        %1010 = vmatpush2.xpose.msra.mxu0 0.0
        %1011 = vmatprep.mubr.f32.mxu0 0.0
        %1012 = vmatmul.mubr.f32.gmra.mxu0 %v943
        %v1013 = vpop.f32.mrf.mxu0
        %v1014 = vadd.f32 0.0, %v1013
        %v1015 = vpop.f32.mrf.mxu0
        %1016 = vdwg.mxu0
        %vm1017 = vcmask 64512
        %v1018 = vsel %vm1017, %v786, -inf
        %1019 = vmax.xlane.f32.xlu0 %v1018
        %v1020 = vpop.xlane.xlu0 %1019
        %v1021 = vsel %vm1017, %v862, -inf
        %1022 = vmax.xlane.f32.xlu0 %v1021
        %v1023 = vpop.xlane.xlu0 %1022
        %v1024 = vsel %vm1017, %v938, -inf
        %1025 = vmax.xlane.f32.xlu0 %v1024
        %v1026 = vpop.xlane.xlu0 %1025
        %v1027 = vsel %vm1017, %v1014, -inf
        %1028 = vmax.xlane.f32.xlu0 %v1027
        %v1029 = vpop.xlane.xlu0 %1028
        %v1030 = vsub.f32 %v786, %v1020
        %v1031 = vsub.f32 %v862, %v1023
        %v1032 = vsub.f32 %v938, %v1026
        %v1033 = vsub.f32 %v1014, %v1029
        %v1034 = vmul.f32 %v1030, 1.442695
        %v1035 = vpow.pop %v1034
        %v1036 = vmul.f32 %v1031, 1.442695
        %v1037 = vpow.pop %v1036
        %v1038 = vmul.f32 %v1032, 1.442695
        %v1039 = vpow.pop %v1038
        %v1040 = vmul.f32 %v1033, 1.442695
        %v1041 = vpow.pop %v1040
        %v1042 = vsel %vm1017, %v1035, 0.0
        %1043 = vadd.xlane.f32.xlu0 %v1042
        %v1044 = vpop.xlane.xlu0 %1043
        %v1045 = vsel %vm1017, %v1037, 0.0
        %1046 = vadd.xlane.f32.xlu0 %v1045
        %v1047 = vpop.xlane.xlu0 %1046
        %v1048 = vsel %vm1017, %v1039, 0.0
        %1049 = vadd.xlane.f32.xlu0 %v1048
        %v1050 = vpop.xlane.xlu0 %1049
        %v1051 = vsel %vm1017, %v1041, 0.0
        %1052 = vadd.xlane.f32.xlu0 %v1051
        %v1053 = vpop.xlane.xlu0 %1052
        %v1054 = vrcp.pop %v1044
        %v1055 = vmul.f32 %v1035, %v1054
        %v1056 = vrcp.pop %v1047
        %v1057 = vmul.f32 %v1037, %v1056
        %v1058 = vrcp.pop %v1050
        %v1059 = vmul.f32 %v1039, %v1058
        %v1060 = vrcp.pop %v1053
        %v1061 = vmul.f32 %v1041, %v1060
        %v1063 = vsel %vm1017, %v1055, 0
        %1065 = vmatprep.subr.mxu0 0.0
        %1066 = vmatpush1.msra.mxu0 0.0
        %1067 = vmatprep.subr.mxu0 0.0
        %1068 = vmatpush1.msra.mxu0 0.0
        %1069 = vmatprep.subr.mxu0 0.0
        %1070 = vmatpush1.msra.mxu0 0.0
        %1071 = vmatprep.subr.mxu0 0.0
        %1072 = vmatpush1.msra.mxu0 0.0
        %1073 = vmatprep.subr.mxu0 0.0
        %1074 = vmatpush1.msra.mxu0 0.0
        %1075 = vmatprep.subr.mxu0 0.0
        %1076 = vmatpush1.msra.mxu0 0.0
        %1077 = vmatprep.subr.mxu0 0.0
        %1078 = vmatpush1.msra.mxu0 0.0
        %1079 = vmatprep.subr.mxu0 0.0
        %1080 = vmatpush1.msra.mxu0 0.0
        %1081 = vmatprep.subr.mxu0 0.0
        %1082 = vmatpush1.msra.mxu0 0.0
        %1083 = vmatprep.subr.mxu0 0.0
        %1084 = vmatpush1.msra.mxu0 0.0
        %1085 = vmatprep.subr.mxu0 0.0
        %1086 = vmatpush1.msra.mxu0 0.0
        %1087 = vmatprep.subr.mxu0 0.0
        %1088 = vmatpush1.msra.mxu0 0.0
        %1089 = vmatprep.subr.mxu0 0.0
        %1090 = vmatpush1.msra.mxu0 0.0
        %1091 = vmatprep.subr.mxu0 0.0
        %1092 = vmatpush1.msra.mxu0 0.0
        %1093 = vmatprep.subr.mxu0 0.0
        %1094 = vmatpush1.msra.mxu0 0.0
        %1095 = vmatprep.subr.mxu0 0.0
        %1096 = vmatpush1.msra.mxu0 %v694
        %1097 = vmatprep.subr.mxu0 0.0
        %1098 = vmatpush2.msra.mxu0 0.0
        %1099 = vmatprep.subr.mxu0 0.0
        %1100 = vmatpush2.msra.mxu0 0.0
        %1101 = vmatprep.subr.mxu0 0.0
        %1102 = vmatpush2.msra.mxu0 0.0
        %1103 = vmatprep.subr.mxu0 0.0
        %1104 = vmatpush2.msra.mxu0 0.0
        %1105 = vmatprep.subr.mxu0 0.0
        %1106 = vmatpush2.msra.mxu0 0.0
        %1107 = vmatprep.subr.mxu0 0.0
        %1108 = vmatpush2.msra.mxu0 0.0
        %1109 = vmatprep.subr.mxu0 0.0
        %1110 = vmatpush2.msra.mxu0 0.0
        %1111 = vmatprep.subr.mxu0 0.0
        %1112 = vmatpush2.msra.mxu0 0.0
        %1113 = vmatprep.subr.mxu0 0.0
        %1114 = vmatpush2.msra.mxu0 0.0
        %1115 = vmatprep.subr.mxu0 0.0
        %1116 = vmatpush2.msra.mxu0 0.0
        %1117 = vmatprep.subr.mxu0 0.0
        %1118 = vmatpush2.msra.mxu0 0.0
        %1119 = vmatprep.subr.mxu0 0.0
        %1120 = vmatpush2.msra.mxu0 0.0
        %1121 = vmatprep.subr.mxu0 0.0
        %1122 = vmatpush2.msra.mxu0 0.0
        %1123 = vmatprep.subr.mxu0 0.0
        %1124 = vmatpush2.msra.mxu0 0.0
        %1125 = vmatprep.subr.mxu0 0.0
        %1126 = vmatpush2.msra.mxu0 0.0
        %1127 = vmatprep.subr.mxu0 0.0
        %1128 = vmatpush2.msra.mxu0 0.0
        %1129 = vmatprep.mubr.f32.mxu0 0.0
        %1130 = vmatmul.mubr.f32.gmra.mxu0 %v1063
        %v1131 = vpop.f32.mrf.mxu0
        %v1132 = vadd.f32 0.0, %v1131
        %v1133 = vpop.f32.mrf.mxu0
        %1134 = vdwg.mxu0
        %v1136 = vsel %vm1017, %v1057, 0
        %1138 = vmatprep.subr.mxu0 0.0
        %1139 = vmatpush1.msra.mxu0 0.0
        %1140 = vmatprep.subr.mxu0 0.0
        %1141 = vmatpush1.msra.mxu0 0.0
        %1142 = vmatprep.subr.mxu0 0.0
        %1143 = vmatpush1.msra.mxu0 0.0
        %1144 = vmatprep.subr.mxu0 0.0
        %1145 = vmatpush1.msra.mxu0 0.0
        %1146 = vmatprep.subr.mxu0 0.0
        %1147 = vmatpush1.msra.mxu0 0.0
        %1148 = vmatprep.subr.mxu0 0.0
        %1149 = vmatpush1.msra.mxu0 0.0
        %1150 = vmatprep.subr.mxu0 0.0
        %1151 = vmatpush1.msra.mxu0 0.0
        %1152 = vmatprep.subr.mxu0 0.0
        %1153 = vmatpush1.msra.mxu0 0.0
        %1154 = vmatprep.subr.mxu0 0.0
        %1155 = vmatpush1.msra.mxu0 0.0
        %1156 = vmatprep.subr.mxu0 0.0
        %1157 = vmatpush1.msra.mxu0 0.0
        %1158 = vmatprep.subr.mxu0 0.0
        %1159 = vmatpush1.msra.mxu0 0.0
        %1160 = vmatprep.subr.mxu0 0.0
        %1161 = vmatpush1.msra.mxu0 0.0
        %1162 = vmatprep.subr.mxu0 0.0
        %1163 = vmatpush1.msra.mxu0 0.0
        %1164 = vmatprep.subr.mxu0 0.0
        %1165 = vmatpush1.msra.mxu0 0.0
        %1166 = vmatprep.subr.mxu0 0.0
        %1167 = vmatpush1.msra.mxu0 0.0
        %1168 = vmatprep.subr.mxu0 0.0
        %1169 = vmatpush1.msra.mxu0 %v705
        %1170 = vmatprep.subr.mxu0 0.0
        %1171 = vmatpush2.msra.mxu0 0.0
        %1172 = vmatprep.subr.mxu0 0.0
        %1173 = vmatpush2.msra.mxu0 0.0
        %1174 = vmatprep.subr.mxu0 0.0
        %1175 = vmatpush2.msra.mxu0 0.0
        %1176 = vmatprep.subr.mxu0 0.0
        %1177 = vmatpush2.msra.mxu0 0.0
        %1178 = vmatprep.subr.mxu0 0.0
        %1179 = vmatpush2.msra.mxu0 0.0
        %1180 = vmatprep.subr.mxu0 0.0
        %1181 = vmatpush2.msra.mxu0 0.0
        %1182 = vmatprep.subr.mxu0 0.0
        %1183 = vmatpush2.msra.mxu0 0.0
        %1184 = vmatprep.subr.mxu0 0.0
        %1185 = vmatpush2.msra.mxu0 0.0
        %1186 = vmatprep.subr.mxu0 0.0
        %1187 = vmatpush2.msra.mxu0 0.0
        %1188 = vmatprep.subr.mxu0 0.0
        %1189 = vmatpush2.msra.mxu0 0.0
        %1190 = vmatprep.subr.mxu0 0.0
        %1191 = vmatpush2.msra.mxu0 0.0
        %1192 = vmatprep.subr.mxu0 0.0
        %1193 = vmatpush2.msra.mxu0 0.0
        %1194 = vmatprep.subr.mxu0 0.0
        %1195 = vmatpush2.msra.mxu0 0.0
        %1196 = vmatprep.subr.mxu0 0.0
        %1197 = vmatpush2.msra.mxu0 0.0
        %1198 = vmatprep.subr.mxu0 0.0
        %1199 = vmatpush2.msra.mxu0 0.0
        %1200 = vmatprep.subr.mxu0 0.0
        %1201 = vmatpush2.msra.mxu0 0.0
        %1202 = vmatprep.mubr.f32.mxu0 0.0
        %1203 = vmatmul.mubr.f32.gmra.mxu0 %v1136
        %v1204 = vpop.f32.mrf.mxu0
        %v1205 = vadd.f32 0.0, %v1204
        %v1206 = vpop.f32.mrf.mxu0
        %1207 = vdwg.mxu0
        %v1209 = vsel %vm1017, %v1059, 0
        %1211 = vmatprep.subr.mxu0 0.0
        %1212 = vmatpush1.msra.mxu0 0.0
        %1213 = vmatprep.subr.mxu0 0.0
        %1214 = vmatpush1.msra.mxu0 0.0
        %1215 = vmatprep.subr.mxu0 0.0
        %1216 = vmatpush1.msra.mxu0 0.0
        %1217 = vmatprep.subr.mxu0 0.0
        %1218 = vmatpush1.msra.mxu0 0.0
        %1219 = vmatprep.subr.mxu0 0.0
        %1220 = vmatpush1.msra.mxu0 0.0
        %1221 = vmatprep.subr.mxu0 0.0
        %1222 = vmatpush1.msra.mxu0 0.0
        %1223 = vmatprep.subr.mxu0 0.0
        %1224 = vmatpush1.msra.mxu0 0.0
        %1225 = vmatprep.subr.mxu0 0.0
        %1226 = vmatpush1.msra.mxu0 0.0
        %1227 = vmatprep.subr.mxu0 0.0
        %1228 = vmatpush1.msra.mxu0 0.0
        %1229 = vmatprep.subr.mxu0 0.0
        %1230 = vmatpush1.msra.mxu0 0.0
        %1231 = vmatprep.subr.mxu0 0.0
        %1232 = vmatpush1.msra.mxu0 0.0
        %1233 = vmatprep.subr.mxu0 0.0
        %1234 = vmatpush1.msra.mxu0 0.0
        %1235 = vmatprep.subr.mxu0 0.0
        %1236 = vmatpush1.msra.mxu0 0.0
        %1237 = vmatprep.subr.mxu0 0.0
        %1238 = vmatpush1.msra.mxu0 0.0
        %1239 = vmatprep.subr.mxu0 0.0
        %1240 = vmatpush1.msra.mxu0 0.0
        %1241 = vmatprep.subr.mxu0 0.0
        %1242 = vmatpush1.msra.mxu0 %v708
        %1243 = vmatprep.subr.mxu0 0.0
        %1244 = vmatpush2.msra.mxu0 0.0
        %1245 = vmatprep.subr.mxu0 0.0
        %1246 = vmatpush2.msra.mxu0 0.0
        %1247 = vmatprep.subr.mxu0 0.0
        %1248 = vmatpush2.msra.mxu0 0.0
        %1249 = vmatprep.subr.mxu0 0.0
        %1250 = vmatpush2.msra.mxu0 0.0
        %1251 = vmatprep.subr.mxu0 0.0
        %1252 = vmatpush2.msra.mxu0 0.0
        %1253 = vmatprep.subr.mxu0 0.0
        %1254 = vmatpush2.msra.mxu0 0.0
        %1255 = vmatprep.subr.mxu0 0.0
        %1256 = vmatpush2.msra.mxu0 0.0
        %1257 = vmatprep.subr.mxu0 0.0
        %1258 = vmatpush2.msra.mxu0 0.0
        %1259 = vmatprep.subr.mxu0 0.0
        %1260 = vmatpush2.msra.mxu0 0.0
        %1261 = vmatprep.subr.mxu0 0.0
        %1262 = vmatpush2.msra.mxu0 0.0
        %1263 = vmatprep.subr.mxu0 0.0
        %1264 = vmatpush2.msra.mxu0 0.0
        %1265 = vmatprep.subr.mxu0 0.0
        %1266 = vmatpush2.msra.mxu0 0.0
        %1267 = vmatprep.subr.mxu0 0.0
        %1268 = vmatpush2.msra.mxu0 0.0
        %1269 = vmatprep.subr.mxu0 0.0
        %1270 = vmatpush2.msra.mxu0 0.0
        %1271 = vmatprep.subr.mxu0 0.0
        %1272 = vmatpush2.msra.mxu0 0.0
        %1273 = vmatprep.subr.mxu0 0.0
        %1274 = vmatpush2.msra.mxu0 0.0
        %1275 = vmatprep.mubr.f32.mxu0 0.0
        %1276 = vmatmul.mubr.f32.gmra.mxu0 %v1209
        %v1277 = vpop.f32.mrf.mxu0
        %v1278 = vadd.f32 0.0, %v1277
        %v1279 = vpop.f32.mrf.mxu0
        %1280 = vdwg.mxu0
        %v1282 = vsel %vm1017, %v1061, 0
        %1284 = vmatprep.subr.mxu0 0.0
        %1285 = vmatpush1.msra.mxu0 0.0
        %1286 = vmatprep.subr.mxu0 0.0
        %1287 = vmatpush1.msra.mxu0 0.0
        %1288 = vmatprep.subr.mxu0 0.0
        %1289 = vmatpush1.msra.mxu0 0.0
        %1290 = vmatprep.subr.mxu0 0.0
        %1291 = vmatpush1.msra.mxu0 0.0
        %1292 = vmatprep.subr.mxu0 0.0
        %1293 = vmatpush1.msra.mxu0 0.0
        %1294 = vmatprep.subr.mxu0 0.0
        %1295 = vmatpush1.msra.mxu0 0.0
        %1296 = vmatprep.subr.mxu0 0.0
        %1297 = vmatpush1.msra.mxu0 0.0
        %1298 = vmatprep.subr.mxu0 0.0
        %1299 = vmatpush1.msra.mxu0 0.0
        %1300 = vmatprep.subr.mxu0 0.0
        %1301 = vmatpush1.msra.mxu0 0.0
        %1302 = vmatprep.subr.mxu0 0.0
        %1303 = vmatpush1.msra.mxu0 0.0
        %1304 = vmatprep.subr.mxu0 0.0
        %1305 = vmatpush1.msra.mxu0 0.0
        %1306 = vmatprep.subr.mxu0 0.0
        %1307 = vmatpush1.msra.mxu0 0.0
        %1308 = vmatprep.subr.mxu0 0.0
        %1309 = vmatpush1.msra.mxu0 0.0
        %1310 = vmatprep.subr.mxu0 0.0
        %1311 = vmatpush1.msra.mxu0 0.0
        %1312 = vmatprep.subr.mxu0 0.0
        %1313 = vmatpush1.msra.mxu0 0.0
        %1314 = vmatprep.subr.mxu0 0.0
        %1315 = vmatpush1.msra.mxu0 %v711
        %1316 = vmatprep.subr.mxu0 0.0
        %1317 = vmatpush2.msra.mxu0 0.0
        %1318 = vmatprep.subr.mxu0 0.0
        %1319 = vmatpush2.msra.mxu0 0.0
        %1320 = vmatprep.subr.mxu0 0.0
        %1321 = vmatpush2.msra.mxu0 0.0
        %1322 = vmatprep.subr.mxu0 0.0
        %1323 = vmatpush2.msra.mxu0 0.0
        %1324 = vmatprep.subr.mxu0 0.0
        %1325 = vmatpush2.msra.mxu0 0.0
        %1326 = vmatprep.subr.mxu0 0.0
        %1327 = vmatpush2.msra.mxu0 0.0
        %1328 = vmatprep.subr.mxu0 0.0
        %1329 = vmatpush2.msra.mxu0 0.0
        %1330 = vmatprep.subr.mxu0 0.0
        %1331 = vmatpush2.msra.mxu0 0.0
        %1332 = vmatprep.subr.mxu0 0.0
        %1333 = vmatpush2.msra.mxu0 0.0
        %1334 = vmatprep.subr.mxu0 0.0
        %1335 = vmatpush2.msra.mxu0 0.0
        %1336 = vmatprep.subr.mxu0 0.0
        %1337 = vmatpush2.msra.mxu0 0.0
        %1338 = vmatprep.subr.mxu0 0.0
        %1339 = vmatpush2.msra.mxu0 0.0
        %1340 = vmatprep.subr.mxu0 0.0
        %1341 = vmatpush2.msra.mxu0 0.0
        %1342 = vmatprep.subr.mxu0 0.0
        %1343 = vmatpush2.msra.mxu0 0.0
        %1344 = vmatprep.subr.mxu0 0.0
        %1345 = vmatpush2.msra.mxu0 0.0
        %1346 = vmatprep.subr.mxu0 0.0
        %1347 = vmatpush2.msra.mxu0 0.0
        %1348 = vmatprep.mubr.f32.mxu0 0.0
        %1349 = vmatmul.mubr.f32.gmra.mxu0 %v1282
        %v1350 = vpop.f32.mrf.mxu0
        %v1351 = vadd.f32 0.0, %v1350
        %v1352 = vpop.f32.mrf.mxu0
        %1353 = vdwg.mxu0
        %1355 = vrot.lane.b32.xlu0 %v1205, 16
        %v1356 = vpop.permute.xlu0 %1355
        %1359 = vrot.lane.b32.xlu0 %v1278, 32
        %v1360 = vpop.permute.xlu0 %1359
        %1363 = vrot.lane.b32.xlu0 %v1351, 48
        %v1364 = vpop.permute.xlu0 %1363
        %v1366 = vsel %vm519, %v1132, %v1356
        %vm1367 = vcmask 261120
        %v1368 = vsel %vm1367, %v1366, %v1360
        %vm1369 = vcmask 392192
        %v1370 = vsel %vm1369, %v1368, %v1364
        %v1371 = vld [vmem:[%s5] sm:$0xff]
        %v1372 = vld [vmem:[%s5 + $0x8] sm:$0xff]
        %v1373 = vld [vmem:[%s5 + $0x10] sm:$0xff]
        %v1374 = vld [vmem:[%s5 + $0x18] sm:$0xff]
        %v1375 = vld [vmem:[%s5 + $0x20] sm:$0xff]
        %v1376 = vld [vmem:[%s5 + $0x28] sm:$0xff]
        %v1377 = vld [vmem:[%s5 + $0x30] sm:$0xff]
        %v1378 = vld [vmem:[%s5 + $0x38] sm:$0xff]
        %v1379 = vld [vmem:[%s6] sm:$0x1]
        %v1381 = vlaneseq
        %v1382 = vshrl.u32 %v1381, 7
        %v1383 = vsub.s32 0, %v1382
        %v1384 = vrot.slane %v1379, %v1383
        %v1387 = vsel %vm621, %v1370, 0
        %1389 = vmatprep.subr.mxu0 0.0
        %1390 = vmatpush1.msra.mxu0 0.0
        %1391 = vmatprep.subr.mxu0 0.0
        %1392 = vmatpush1.msra.mxu0 0.0
        %1393 = vmatprep.subr.mxu0 0.0
        %1394 = vmatpush1.msra.mxu0 0.0
        %1395 = vmatprep.subr.mxu0 0.0
        %1396 = vmatpush1.msra.mxu0 0.0
        %1397 = vmatprep.subr.mxu0 0.0
        %1398 = vmatpush1.msra.mxu0 0.0
        %1399 = vmatprep.subr.mxu0 0.0
        %1400 = vmatpush1.msra.mxu0 0.0
        %1401 = vmatprep.subr.mxu0 0.0
        %1402 = vmatpush1.msra.mxu0 0.0
        %1403 = vmatprep.subr.mxu0 0.0
        %1404 = vmatpush1.msra.mxu0 0.0
        %1405 = vmatprep.subr.mxu0 0.0
        %1406 = vmatpush1.msra.mxu0 %v1378
        %1407 = vmatprep.subr.mxu0 0.0
        %1408 = vmatpush1.msra.mxu0 %v1377
        %1409 = vmatprep.subr.mxu0 0.0
        %1410 = vmatpush1.msra.mxu0 %v1376
        %1411 = vmatprep.subr.mxu0 0.0
        %1412 = vmatpush1.msra.mxu0 %v1375
        %1413 = vmatprep.subr.mxu0 0.0
        %1414 = vmatpush1.msra.mxu0 %v1374
        %1415 = vmatprep.subr.mxu0 0.0
        %1416 = vmatpush1.msra.mxu0 %v1373
        %1417 = vmatprep.subr.mxu0 0.0
        %1418 = vmatpush1.msra.mxu0 %v1372
        %1419 = vmatprep.subr.mxu0 0.0
        %1420 = vmatpush1.msra.mxu0 %v1371
        %1421 = vmatprep.subr.mxu0 0.0
        %1422 = vmatpush2.msra.mxu0 0.0
        %1423 = vmatprep.subr.mxu0 0.0
        %1424 = vmatpush2.msra.mxu0 0.0
        %1425 = vmatprep.subr.mxu0 0.0
        %1426 = vmatpush2.msra.mxu0 0.0
        %1427 = vmatprep.subr.mxu0 0.0
        %1428 = vmatpush2.msra.mxu0 0.0
        %1429 = vmatprep.subr.mxu0 0.0
        %1430 = vmatpush2.msra.mxu0 0.0
        %1431 = vmatprep.subr.mxu0 0.0
        %1432 = vmatpush2.msra.mxu0 0.0
        %1433 = vmatprep.subr.mxu0 0.0
        %1434 = vmatpush2.msra.mxu0 0.0
        %1435 = vmatprep.subr.mxu0 0.0
        %1436 = vmatpush2.msra.mxu0 0.0
        %1437 = vmatprep.subr.mxu0 0.0
        %1438 = vmatpush2.msra.mxu0 0.0
        %1439 = vmatprep.subr.mxu0 0.0
        %1440 = vmatpush2.msra.mxu0 0.0
        %1441 = vmatprep.subr.mxu0 0.0
        %1442 = vmatpush2.msra.mxu0 0.0
        %1443 = vmatprep.subr.mxu0 0.0
        %1444 = vmatpush2.msra.mxu0 0.0
        %1445 = vmatprep.subr.mxu0 0.0
        %1446 = vmatpush2.msra.mxu0 0.0
        %1447 = vmatprep.subr.mxu0 0.0
        %1448 = vmatpush2.msra.mxu0 0.0
        %1449 = vmatprep.subr.mxu0 0.0
        %1450 = vmatpush2.msra.mxu0 0.0
        %1451 = vmatprep.subr.mxu0 0.0
        %1452 = vmatpush2.msra.mxu0 0.0
        %1453 = vmatprep.mubr.f32.mxu0 0.0
        %1454 = vmatmul.mubr.f32.gmra.mxu0 %v1387
        %v1455 = vpop.f32.mrf.mxu0
        %v1456 = vadd.f32 %v1384, %v1455
        %v1457 = vpop.f32.mrf.mxu0
        %1458 = vdwg.mxu0
        %v1459 = vadd.f32 %v590, %v1456
        %v1460 = vld [vmem:[%s7] sm:$0x1]
        %v1461 = vld [vmem:[%s8] sm:$0x1]
        %v1462 = vsel %vm621, %v1459, 0.0
        %1463 = vadd.xlane.f32.xlu0 %v1462
        %v1464 = vpop.xlane.xlu0 %1463
        %v1465 = vrcp.pop 64.0
        %v1466 = vmul.f32 %v1464, %v1465
        %v1467 = vsub.f32 %v1459, %v1466
        %v1468 = vmul.f32 %v1467, %v1467
        %v1469 = vsel %vm621, %v1468, 0.0
        %1470 = vadd.xlane.f32.xlu0 %v1469
        %v1471 = vpop.xlane.xlu0 %1470
        %v1472 = vmul.f32 %v1471, %v1465
        %v1473 = vadd.f32 %v1472, 1e-05
        %v1474 = vrsqrt.pop %v1473
        %v1475 = vmul.f32 %v1467, %v1474
        %v1477 = vlaneseq
        %v1478 = vshrl.u32 %v1477, 7
        %v1479 = vsub.s32 0, %v1478
        %v1480 = vrot.slane %v1460, %v1479
        %v1482 = vmul.f32 %v1475, %v1480
        %v1484 = vlaneseq
        %v1485 = vshrl.u32 %v1484, 7
        %v1486 = vsub.s32 0, %v1485
        %v1487 = vrot.slane %v1461, %v1486
        %v1489 = vadd.f32 %v1482, %v1487
        %v1490 = vld [vmem:[%s11] sm:$0xff]
        %v1491 = vld [vmem:[%s11 + $0x8] sm:$0xff]
        %v1492 = vld [vmem:[%s11 + $0x10] sm:$0xff]
        %v1493 = vld [vmem:[%s11 + $0x18] sm:$0xff]
        %v1494 = vld [vmem:[%s11 + $0x20] sm:$0xff]
        %v1495 = vld [vmem:[%s11 + $0x28] sm:$0xff]
        %v1496 = vld [vmem:[%s11 + $0x30] sm:$0xff]
        %v1497 = vld [vmem:[%s11 + $0x38] sm:$0xff]
        %v1498 = vld [vmem:[%s11 + $0x40] sm:$0xff]
        %v1499 = vld [vmem:[%s11 + $0x48] sm:$0xff]
        %v1500 = vld [vmem:[%s11 + $0x50] sm:$0xff]
        %v1501 = vld [vmem:[%s11 + $0x58] sm:$0xff]
        %v1502 = vld [vmem:[%s11 + $0x60] sm:$0xff]
        %v1503 = vld [vmem:[%s11 + $0x68] sm:$0xff]
        %v1504 = vld [vmem:[%s11 + $0x70] sm:$0xff]
        %v1505 = vld [vmem:[%s11 + $0x78] sm:$0xff]
        %v1506 = vld [vmem:[%s11 + $0x80] sm:$0xff]
        %v1507 = vld [vmem:[%s11 + $0x88] sm:$0xff]
        %v1508 = vld [vmem:[%s11 + $0x90] sm:$0xff]
        %v1509 = vld [vmem:[%s11 + $0x98] sm:$0xff]
        %v1510 = vld [vmem:[%s11 + $0xa0] sm:$0xff]
        %v1511 = vld [vmem:[%s11 + $0xa8] sm:$0xff]
        %v1512 = vld [vmem:[%s11 + $0xb0] sm:$0xff]
        %v1513 = vld [vmem:[%s11 + $0xb8] sm:$0xff]
        %v1514 = vld [vmem:[%s11 + $0xc0] sm:$0xff]
        %v1515 = vld [vmem:[%s11 + $0xc8] sm:$0xff]
        %v1516 = vld [vmem:[%s11 + $0xd0] sm:$0xff]
        %v1517 = vld [vmem:[%s11 + $0xd8] sm:$0xff]
        %v1518 = vld [vmem:[%s11 + $0xe0] sm:$0xff]
        %v1519 = vld [vmem:[%s11 + $0xe8] sm:$0xff]
        %v1520 = vld [vmem:[%s11 + $0xf0] sm:$0xff]
        %v1521 = vld [vmem:[%s11 + $0xf8] sm:$0xff]
        %v1522 = vld [vmem:[%s11 + $0x100] sm:$0xff]
        %v1523 = vld [vmem:[%s11 + $0x108] sm:$0xff]
        %v1524 = vld [vmem:[%s11 + $0x110] sm:$0xff]
        %v1525 = vld [vmem:[%s11 + $0x118] sm:$0xff]
        %v1526 = vld [vmem:[%s11 + $0x120] sm:$0xff]
        %v1527 = vld [vmem:[%s11 + $0x128] sm:$0xff]
        %v1528 = vld [vmem:[%s11 + $0x130] sm:$0xff]
        %v1529 = vld [vmem:[%s11 + $0x138] sm:$0xff]
        %v1530 = vld [vmem:[%s11 + $0x140] sm:$0xff]
        %v1531 = vld [vmem:[%s11 + $0x148] sm:$0xff]
        %v1532 = vld [vmem:[%s11 + $0x150] sm:$0xff]
        %v1533 = vld [vmem:[%s11 + $0x158] sm:$0xff]
        %v1534 = vld [vmem:[%s11 + $0x160] sm:$0xff]
        %v1535 = vld [vmem:[%s11 + $0x168] sm:$0xff]
        %v1536 = vld [vmem:[%s11 + $0x170] sm:$0xff]
        %v1537 = vld [vmem:[%s11 + $0x178] sm:$0xff]
        %v1538 = vld [vmem:[%s11 + $0x180] sm:$0xff]
        %v1539 = vld [vmem:[%s11 + $0x188] sm:$0xff]
        %v1540 = vld [vmem:[%s11 + $0x190] sm:$0xff]
        %v1541 = vld [vmem:[%s11 + $0x198] sm:$0xff]
        %v1542 = vld [vmem:[%s11 + $0x1a0] sm:$0xff]
        %v1543 = vld [vmem:[%s11 + $0x1a8] sm:$0xff]
        %v1544 = vld [vmem:[%s11 + $0x1b0] sm:$0xff]
        %v1545 = vld [vmem:[%s11 + $0x1b8] sm:$0xff]
        %v1546 = vld [vmem:[%s11 + $0x1c0] sm:$0xff]
        %v1547 = vld [vmem:[%s11 + $0x1c8] sm:$0xff]
        %v1548 = vld [vmem:[%s11 + $0x1d0] sm:$0xff]
        %v1549 = vld [vmem:[%s11 + $0x1d8] sm:$0xff]
        %v1550 = vld [vmem:[%s11 + $0x1e0] sm:$0xff]
        %v1551 = vld [vmem:[%s11 + $0x1e8] sm:$0xff]
        %v1552 = vld [vmem:[%s11 + $0x1f0] sm:$0xff]
        %v1553 = vld [vmem:[%s11 + $0x1f8] sm:$0xff]
        %v1554 = vld [vmem:[%s11 + $0x200] sm:$0xff]
        %v1555 = vld [vmem:[%s11 + $0x208] sm:$0xff]
        %v1556 = vld [vmem:[%s11 + $0x210] sm:$0xff]
        %v1557 = vld [vmem:[%s11 + $0x218] sm:$0xff]
        %v1558 = vld [vmem:[%s11 + $0x220] sm:$0xff]
        %v1559 = vld [vmem:[%s11 + $0x228] sm:$0xff]
        %v1560 = vld [vmem:[%s11 + $0x230] sm:$0xff]
        %v1561 = vld [vmem:[%s11 + $0x238] sm:$0xff]
        %v1562 = vld [vmem:[%s11 + $0x240] sm:$0xff]
        %v1563 = vld [vmem:[%s11 + $0x248] sm:$0xff]
        %v1564 = vld [vmem:[%s11 + $0x250] sm:$0xff]
        %v1565 = vld [vmem:[%s11 + $0x258] sm:$0xff]
        %v1566 = vld [vmem:[%s11 + $0x260] sm:$0xff]
        %v1567 = vld [vmem:[%s11 + $0x268] sm:$0xff]
        %v1568 = vld [vmem:[%s11 + $0x270] sm:$0xff]
        %v1569 = vld [vmem:[%s11 + $0x278] sm:$0xff]
        %v1570 = vld [vmem:[%s11 + $0x280] sm:$0xff]
        %v1571 = vld [vmem:[%s11 + $0x288] sm:$0xff]
        %v1572 = vld [vmem:[%s11 + $0x290] sm:$0xff]
        %v1573 = vld [vmem:[%s11 + $0x298] sm:$0xff]
        %v1574 = vld [vmem:[%s11 + $0x2a0] sm:$0xff]
        %v1575 = vld [vmem:[%s11 + $0x2a8] sm:$0xff]
        %v1576 = vld [vmem:[%s11 + $0x2b0] sm:$0xff]
        %v1577 = vld [vmem:[%s11 + $0x2b8] sm:$0xff]
        %v1578 = vld [vmem:[%s11 + $0x2c0] sm:$0xff]
        %v1579 = vld [vmem:[%s11 + $0x2c8] sm:$0xff]
        %v1580 = vld [vmem:[%s11 + $0x2d0] sm:$0xff]
        %v1581 = vld [vmem:[%s11 + $0x2d8] sm:$0xff]
        %v1582 = vld [vmem:[%s11 + $0x2e0] sm:$0xff]
        %v1583 = vld [vmem:[%s11 + $0x2e8] sm:$0xff]
        %v1584 = vld [vmem:[%s11 + $0x2f0] sm:$0xff]
        %v1585 = vld [vmem:[%s11 + $0x2f8] sm:$0xff]
        %v1586 = vld [vmem:[%s11 + $0x300] sm:$0xff]
        %v1587 = vld [vmem:[%s11 + $0x308] sm:$0xff]
        %v1588 = vld [vmem:[%s11 + $0x310] sm:$0xff]
        %v1589 = vld [vmem:[%s11 + $0x318] sm:$0xff]
        %v1590 = vld [vmem:[%s11 + $0x320] sm:$0xff]
        %v1591 = vld [vmem:[%s11 + $0x328] sm:$0xff]
        %v1592 = vld [vmem:[%s11 + $0x330] sm:$0xff]
        %v1593 = vld [vmem:[%s11 + $0x338] sm:$0xff]
        %v1594 = vld [vmem:[%s11 + $0x340] sm:$0xff]
        %v1595 = vld [vmem:[%s11 + $0x348] sm:$0xff]
        %v1596 = vld [vmem:[%s11 + $0x350] sm:$0xff]
        %v1597 = vld [vmem:[%s11 + $0x358] sm:$0xff]
        %v1598 = vld [vmem:[%s11 + $0x360] sm:$0xff]
        %v1599 = vld [vmem:[%s11 + $0x368] sm:$0xff]
        %v1600 = vld [vmem:[%s11 + $0x370] sm:$0xff]
        %v1601 = vld [vmem:[%s11 + $0x378] sm:$0xff]
        %v1602 = vld [vmem:[%s11 + $0x380] sm:$0xff]
        %v1603 = vld [vmem:[%s11 + $0x388] sm:$0xff]
        %v1604 = vld [vmem:[%s11 + $0x390] sm:$0xff]
        %v1605 = vld [vmem:[%s11 + $0x398] sm:$0xff]
        %v1606 = vld [vmem:[%s11 + $0x3a0] sm:$0xff]
        %v1607 = vld [vmem:[%s11 + $0x3a8] sm:$0xff]
        %v1608 = vld [vmem:[%s11 + $0x3b0] sm:$0xff]
        %v1609 = vld [vmem:[%s11 + $0x3b8] sm:$0xff]
        %v1610 = vld [vmem:[%s11 + $0x3c0] sm:$0xff]
        %v1611 = vld [vmem:[%s11 + $0x3c8] sm:$0xff]
        %v1612 = vld [vmem:[%s11 + $0x3d0] sm:$0xff]
        %v1613 = vld [vmem:[%s11 + $0x3d8] sm:$0xff]
        %v1614 = vld [vmem:[%s11 + $0x3e0] sm:$0xff]
        %v1615 = vld [vmem:[%s11 + $0x3e8] sm:$0xff]
        %v1616 = vld [vmem:[%s11 + $0x3f0] sm:$0xff]
        %v1617 = vld [vmem:[%s11 + $0x3f8] sm:$0xff]
        %v1618 = vld [vmem:[%s12] sm:$0xff]
        %v1619 = vld [vmem:[%s12 + $0x8] sm:$0xff]
        %v1622 = vlaneseq
        %v1623 = vshrl.u32 %v1622, 7
        %v1624 = vsub.s32 0, %v1623
        %v1625 = vrot.slane %v1618, %v1624
        %v1626 = vlaneseq
        %v1627 = vshrl.u32 %v1626, 7
        %v1628 = vsub.s32 1, %v1627
        %v1629 = vrot.slane %v1618, %v1628
        %v1630 = vlaneseq
        %v1631 = vshrl.u32 %v1630, 7
        %v1632 = vsub.s32 2, %v1631
        %v1633 = vrot.slane %v1618, %v1632
        %v1634 = vlaneseq
        %v1635 = vshrl.u32 %v1634, 7
        %v1636 = vsub.s32 3, %v1635
        %v1637 = vrot.slane %v1618, %v1636
        %v1638 = vlaneseq
        %v1639 = vshrl.u32 %v1638, 7
        %v1640 = vsub.s32 4, %v1639
        %v1641 = vrot.slane %v1618, %v1640
        %v1642 = vlaneseq
        %v1643 = vshrl.u32 %v1642, 7
        %v1644 = vsub.s32 5, %v1643
        %v1645 = vrot.slane %v1618, %v1644
        %v1646 = vlaneseq
        %v1647 = vshrl.u32 %v1646, 7
        %v1648 = vsub.s32 6, %v1647
        %v1649 = vrot.slane %v1618, %v1648
        %v1650 = vlaneseq
        %v1651 = vshrl.u32 %v1650, 7
        %v1652 = vsub.s32 7, %v1651
        %v1653 = vrot.slane %v1618, %v1652
        %v1654 = vlaneseq
        %v1655 = vshrl.u32 %v1654, 7
        %v1656 = vsub.s32 0, %v1655
        %v1657 = vrot.slane %v1619, %v1656
        %v1658 = vlaneseq
        %v1659 = vshrl.u32 %v1658, 7
        %v1660 = vsub.s32 1, %v1659
        %v1661 = vrot.slane %v1619, %v1660
        %v1662 = vlaneseq
        %v1663 = vshrl.u32 %v1662, 7
        %v1664 = vsub.s32 2, %v1663
        %v1665 = vrot.slane %v1619, %v1664
        %v1666 = vlaneseq
        %v1667 = vshrl.u32 %v1666, 7
        %v1668 = vsub.s32 3, %v1667
        %v1669 = vrot.slane %v1619, %v1668
        %v1670 = vlaneseq
        %v1671 = vshrl.u32 %v1670, 7
        %v1672 = vsub.s32 4, %v1671
        %v1673 = vrot.slane %v1619, %v1672
        %v1674 = vlaneseq
        %v1675 = vshrl.u32 %v1674, 7
        %v1676 = vsub.s32 5, %v1675
        %v1677 = vrot.slane %v1619, %v1676
        %v1678 = vlaneseq
        %v1679 = vshrl.u32 %v1678, 7
        %v1680 = vsub.s32 6, %v1679
        %v1681 = vrot.slane %v1619, %v1680
        %v1682 = vlaneseq
        %v1683 = vshrl.u32 %v1682, 7
        %v1684 = vsub.s32 7, %v1683
        %v1685 = vrot.slane %v1619, %v1684
        %v1703 = vsel %vm621, %v1489, 0
        %1705 = vmatprep.subr.mxu0 0.0
        %1706 = vmatpush1.msra.mxu0 0.0
        %1707 = vmatprep.subr.mxu0 0.0
        %1708 = vmatpush1.msra.mxu0 0.0
        %1709 = vmatprep.subr.mxu0 0.0
        %1710 = vmatpush1.msra.mxu0 0.0
        %1711 = vmatprep.subr.mxu0 0.0
        %1712 = vmatpush1.msra.mxu0 0.0
        %1713 = vmatprep.subr.mxu0 0.0
        %1714 = vmatpush1.msra.mxu0 0.0
        %1715 = vmatprep.subr.mxu0 0.0
        %1716 = vmatpush1.msra.mxu0 0.0
        %1717 = vmatprep.subr.mxu0 0.0
        %1718 = vmatpush1.msra.mxu0 0.0
        %1719 = vmatprep.subr.mxu0 0.0
        %1720 = vmatpush1.msra.mxu0 0.0
        %1721 = vmatprep.subr.mxu0 %v1603
        %1722 = vmatpush1.msra.mxu0 %v1602
        %1723 = vmatprep.subr.mxu0 %v1587
        %1724 = vmatpush1.msra.mxu0 %v1586
        %1725 = vmatprep.subr.mxu0 %v1571
        %1726 = vmatpush1.msra.mxu0 %v1570
        %1727 = vmatprep.subr.mxu0 %v1555
        %1728 = vmatpush1.msra.mxu0 %v1554
        %1729 = vmatprep.subr.mxu0 %v1539
        %1730 = vmatpush1.msra.mxu0 %v1538
        %1731 = vmatprep.subr.mxu0 %v1523
        %1732 = vmatpush1.msra.mxu0 %v1522
        %1733 = vmatprep.subr.mxu0 %v1507
        %1734 = vmatpush1.msra.mxu0 %v1506
        %1735 = vmatprep.subr.mxu0 %v1491
        %1736 = vmatpush1.msra.mxu0 %v1490
        %1737 = vmatprep.subr.mxu0 0.0
        %1738 = vmatpush2.msra.mxu0 0.0
        %1739 = vmatprep.subr.mxu0 0.0
        %1740 = vmatpush2.msra.mxu0 0.0
        %1741 = vmatprep.subr.mxu0 0.0
        %1742 = vmatpush2.msra.mxu0 0.0
        %1743 = vmatprep.subr.mxu0 0.0
        %1744 = vmatpush2.msra.mxu0 0.0
        %1745 = vmatprep.subr.mxu0 0.0
        %1746 = vmatpush2.msra.mxu0 0.0
        %1747 = vmatprep.subr.mxu0 0.0
        %1748 = vmatpush2.msra.mxu0 0.0
        %1749 = vmatprep.subr.mxu0 0.0
        %1750 = vmatpush2.msra.mxu0 0.0
        %1751 = vmatprep.subr.mxu0 0.0
        %1752 = vmatpush2.msra.mxu0 0.0
        %1753 = vmatprep.subr.mxu0 0.0
        %1754 = vmatpush2.msra.mxu0 0.0
        %1755 = vmatprep.subr.mxu0 0.0
        %1756 = vmatpush2.msra.mxu0 0.0
        %1757 = vmatprep.subr.mxu0 0.0
        %1758 = vmatpush2.msra.mxu0 0.0
        %1759 = vmatprep.subr.mxu0 0.0
        %1760 = vmatpush2.msra.mxu0 0.0
        %1761 = vmatprep.subr.mxu0 0.0
        %1762 = vmatpush2.msra.mxu0 0.0
        %1763 = vmatprep.subr.mxu0 0.0
        %1764 = vmatpush2.msra.mxu0 0.0
        %1765 = vmatprep.subr.mxu0 0.0
        %1766 = vmatpush2.msra.mxu0 0.0
        %1767 = vmatprep.subr.mxu0 0.0
        %1768 = vmatpush2.msra.mxu0 0.0
        %1769 = vmatprep.mubr.f32.mxu0 0.0
        %1770 = vmatmul.mubr.f32.gmra.mxu0 %v1703
        %v1771 = vpop.f32.mrf.mxu0
        %v1772 = vadd.f32 %v1625, %v1771
        %v1773 = vpop.f32.mrf.mxu0
        %v1774 = vadd.f32 %v1629, %v1773
        %1775 = vdwg.mxu0
        %1776 = vmatprep.subr.mxu0 0.0
        %1777 = vmatpush1.msra.mxu0 0.0
        %1778 = vmatprep.subr.mxu0 0.0
        %1779 = vmatpush1.msra.mxu0 0.0
        %1780 = vmatprep.subr.mxu0 0.0
        %1781 = vmatpush1.msra.mxu0 0.0
        %1782 = vmatprep.subr.mxu0 0.0
        %1783 = vmatpush1.msra.mxu0 0.0
        %1784 = vmatprep.subr.mxu0 0.0
        %1785 = vmatpush1.msra.mxu0 0.0
        %1786 = vmatprep.subr.mxu0 0.0
        %1787 = vmatpush1.msra.mxu0 0.0
        %1788 = vmatprep.subr.mxu0 0.0
        %1789 = vmatpush1.msra.mxu0 0.0
        %1790 = vmatprep.subr.mxu0 0.0
        %1791 = vmatpush1.msra.mxu0 0.0
        %1792 = vmatprep.subr.mxu0 %v1605
        %1793 = vmatpush1.msra.mxu0 %v1604
        %1794 = vmatprep.subr.mxu0 %v1589
        %1795 = vmatpush1.msra.mxu0 %v1588
        %1796 = vmatprep.subr.mxu0 %v1573
        %1797 = vmatpush1.msra.mxu0 %v1572
        %1798 = vmatprep.subr.mxu0 %v1557
        %1799 = vmatpush1.msra.mxu0 %v1556
        %1800 = vmatprep.subr.mxu0 %v1541
        %1801 = vmatpush1.msra.mxu0 %v1540
        %1802 = vmatprep.subr.mxu0 %v1525
        %1803 = vmatpush1.msra.mxu0 %v1524
        %1804 = vmatprep.subr.mxu0 %v1509
        %1805 = vmatpush1.msra.mxu0 %v1508
        %1806 = vmatprep.subr.mxu0 %v1493
        %1807 = vmatpush1.msra.mxu0 %v1492
        %1808 = vmatprep.subr.mxu0 0.0
        %1809 = vmatpush2.msra.mxu0 0.0
        %1810 = vmatprep.subr.mxu0 0.0
        %1811 = vmatpush2.msra.mxu0 0.0
        %1812 = vmatprep.subr.mxu0 0.0
        %1813 = vmatpush2.msra.mxu0 0.0
        %1814 = vmatprep.subr.mxu0 0.0
        %1815 = vmatpush2.msra.mxu0 0.0
        %1816 = vmatprep.subr.mxu0 0.0
        %1817 = vmatpush2.msra.mxu0 0.0
        %1818 = vmatprep.subr.mxu0 0.0
        %1819 = vmatpush2.msra.mxu0 0.0
        %1820 = vmatprep.subr.mxu0 0.0
        %1821 = vmatpush2.msra.mxu0 0.0
        %1822 = vmatprep.subr.mxu0 0.0
        %1823 = vmatpush2.msra.mxu0 0.0
        %1824 = vmatprep.subr.mxu0 0.0
        %1825 = vmatpush2.msra.mxu0 0.0
        %1826 = vmatprep.subr.mxu0 0.0
        %1827 = vmatpush2.msra.mxu0 0.0
        %1828 = vmatprep.subr.mxu0 0.0
        %1829 = vmatpush2.msra.mxu0 0.0
        %1830 = vmatprep.subr.mxu0 0.0
        %1831 = vmatpush2.msra.mxu0 0.0
        %1832 = vmatprep.subr.mxu0 0.0
        %1833 = vmatpush2.msra.mxu0 0.0
        %1834 = vmatprep.subr.mxu0 0.0
        %1835 = vmatpush2.msra.mxu0 0.0
        %1836 = vmatprep.subr.mxu0 0.0
        %1837 = vmatpush2.msra.mxu0 0.0
        %1838 = vmatprep.subr.mxu0 0.0
        %1839 = vmatpush2.msra.mxu0 0.0
        %1840 = vmatprep.mubr.f32.mxu0 0.0
        %1841 = vmatmul.mubr.f32.gmra.mxu0 %v1703
        %v1842 = vpop.f32.mrf.mxu0
        %v1843 = vadd.f32 %v1633, %v1842
        %v1844 = vpop.f32.mrf.mxu0
        %v1845 = vadd.f32 %v1637, %v1844
        %1846 = vdwg.mxu0
        %1847 = vmatprep.subr.mxu0 0.0
        %1848 = vmatpush1.msra.mxu0 0.0
        %1849 = vmatprep.subr.mxu0 0.0
        %1850 = vmatpush1.msra.mxu0 0.0
        %1851 = vmatprep.subr.mxu0 0.0
        %1852 = vmatpush1.msra.mxu0 0.0
        %1853 = vmatprep.subr.mxu0 0.0
        %1854 = vmatpush1.msra.mxu0 0.0
        %1855 = vmatprep.subr.mxu0 0.0
        %1856 = vmatpush1.msra.mxu0 0.0
        %1857 = vmatprep.subr.mxu0 0.0
        %1858 = vmatpush1.msra.mxu0 0.0
        %1859 = vmatprep.subr.mxu0 0.0
        %1860 = vmatpush1.msra.mxu0 0.0
        %1861 = vmatprep.subr.mxu0 0.0
        %1862 = vmatpush1.msra.mxu0 0.0
        %1863 = vmatprep.subr.mxu0 %v1607
        %1864 = vmatpush1.msra.mxu0 %v1606
        %1865 = vmatprep.subr.mxu0 %v1591
        %1866 = vmatpush1.msra.mxu0 %v1590
        %1867 = vmatprep.subr.mxu0 %v1575
        %1868 = vmatpush1.msra.mxu0 %v1574
        %1869 = vmatprep.subr.mxu0 %v1559
        %1870 = vmatpush1.msra.mxu0 %v1558
        %1871 = vmatprep.subr.mxu0 %v1543
        %1872 = vmatpush1.msra.mxu0 %v1542
        %1873 = vmatprep.subr.mxu0 %v1527
        %1874 = vmatpush1.msra.mxu0 %v1526
        %1875 = vmatprep.subr.mxu0 %v1511
        %1876 = vmatpush1.msra.mxu0 %v1510
        %1877 = vmatprep.subr.mxu0 %v1495
        %1878 = vmatpush1.msra.mxu0 %v1494
        %1879 = vmatprep.subr.mxu0 0.0
        %1880 = vmatpush2.msra.mxu0 0.0
        %1881 = vmatprep.subr.mxu0 0.0
        %1882 = vmatpush2.msra.mxu0 0.0
        %1883 = vmatprep.subr.mxu0 0.0
        %1884 = vmatpush2.msra.mxu0 0.0
        %1885 = vmatprep.subr.mxu0 0.0
        %1886 = vmatpush2.msra.mxu0 0.0
        %1887 = vmatprep.subr.mxu0 0.0
        %1888 = vmatpush2.msra.mxu0 0.0
        %1889 = vmatprep.subr.mxu0 0.0
        %1890 = vmatpush2.msra.mxu0 0.0
        %1891 = vmatprep.subr.mxu0 0.0
        %1892 = vmatpush2.msra.mxu0 0.0
        %1893 = vmatprep.subr.mxu0 0.0
        %1894 = vmatpush2.msra.mxu0 0.0
        %1895 = vmatprep.subr.mxu0 0.0
        %1896 = vmatpush2.msra.mxu0 0.0
        %1897 = vmatprep.subr.mxu0 0.0
        %1898 = vmatpush2.msra.mxu0 0.0
        %1899 = vmatprep.subr.mxu0 0.0
        %1900 = vmatpush2.msra.mxu0 0.0
        %1901 = vmatprep.subr.mxu0 0.0
        %1902 = vmatpush2.msra.mxu0 0.0
        %1903 = vmatprep.subr.mxu0 0.0
        %1904 = vmatpush2.msra.mxu0 0.0
        %1905 = vmatprep.subr.mxu0 0.0
        %1906 = vmatpush2.msra.mxu0 0.0
        %1907 = vmatprep.subr.mxu0 0.0
        %1908 = vmatpush2.msra.mxu0 0.0
        %1909 = vmatprep.subr.mxu0 0.0
        %1910 = vmatpush2.msra.mxu0 0.0
        %1911 = vmatprep.mubr.f32.mxu0 0.0
        %1912 = vmatmul.mubr.f32.gmra.mxu0 %v1703
        %v1913 = vpop.f32.mrf.mxu0
        %v1914 = vadd.f32 %v1641, %v1913
        %v1915 = vpop.f32.mrf.mxu0
        %v1916 = vadd.f32 %v1645, %v1915
        %1917 = vdwg.mxu0
        %1918 = vmatprep.subr.mxu0 0.0
        %1919 = vmatpush1.msra.mxu0 0.0
        %1920 = vmatprep.subr.mxu0 0.0
        %1921 = vmatpush1.msra.mxu0 0.0
        %1922 = vmatprep.subr.mxu0 0.0
        %1923 = vmatpush1.msra.mxu0 0.0
        %1924 = vmatprep.subr.mxu0 0.0
        %1925 = vmatpush1.msra.mxu0 0.0
        %1926 = vmatprep.subr.mxu0 0.0
        %1927 = vmatpush1.msra.mxu0 0.0
        %1928 = vmatprep.subr.mxu0 0.0
        %1929 = vmatpush1.msra.mxu0 0.0
        %1930 = vmatprep.subr.mxu0 0.0
        %1931 = vmatpush1.msra.mxu0 0.0
        %1932 = vmatprep.subr.mxu0 0.0
        %1933 = vmatpush1.msra.mxu0 0.0
        %1934 = vmatprep.subr.mxu0 %v1609
        %1935 = vmatpush1.msra.mxu0 %v1608
        %1936 = vmatprep.subr.mxu0 %v1593
        %1937 = vmatpush1.msra.mxu0 %v1592
        %1938 = vmatprep.subr.mxu0 %v1577
        %1939 = vmatpush1.msra.mxu0 %v1576
        %1940 = vmatprep.subr.mxu0 %v1561
        %1941 = vmatpush1.msra.mxu0 %v1560
        %1942 = vmatprep.subr.mxu0 %v1545
        %1943 = vmatpush1.msra.mxu0 %v1544
        %1944 = vmatprep.subr.mxu0 %v1529
        %1945 = vmatpush1.msra.mxu0 %v1528
        %1946 = vmatprep.subr.mxu0 %v1513
        %1947 = vmatpush1.msra.mxu0 %v1512
        %1948 = vmatprep.subr.mxu0 %v1497
        %1949 = vmatpush1.msra.mxu0 %v1496
        %1950 = vmatprep.subr.mxu0 0.0
        %1951 = vmatpush2.msra.mxu0 0.0
        %1952 = vmatprep.subr.mxu0 0.0
        %1953 = vmatpush2.msra.mxu0 0.0
        %1954 = vmatprep.subr.mxu0 0.0
        %1955 = vmatpush2.msra.mxu0 0.0
        %1956 = vmatprep.subr.mxu0 0.0
        %1957 = vmatpush2.msra.mxu0 0.0
        %1958 = vmatprep.subr.mxu0 0.0
        %1959 = vmatpush2.msra.mxu0 0.0
        %1960 = vmatprep.subr.mxu0 0.0
        %1961 = vmatpush2.msra.mxu0 0.0
        %1962 = vmatprep.subr.mxu0 0.0
        %1963 = vmatpush2.msra.mxu0 0.0
        %1964 = vmatprep.subr.mxu0 0.0
        %1965 = vmatpush2.msra.mxu0 0.0
        %1966 = vmatprep.subr.mxu0 0.0
        %1967 = vmatpush2.msra.mxu0 0.0
        %1968 = vmatprep.subr.mxu0 0.0
        %1969 = vmatpush2.msra.mxu0 0.0
        %1970 = vmatprep.subr.mxu0 0.0
        %1971 = vmatpush2.msra.mxu0 0.0
        %1972 = vmatprep.subr.mxu0 0.0
        %1973 = vmatpush2.msra.mxu0 0.0
        %1974 = vmatprep.subr.mxu0 0.0
        %1975 = vmatpush2.msra.mxu0 0.0
        %1976 = vmatprep.subr.mxu0 0.0
        %1977 = vmatpush2.msra.mxu0 0.0
        %1978 = vmatprep.subr.mxu0 0.0
        %1979 = vmatpush2.msra.mxu0 0.0
        %1980 = vmatprep.subr.mxu0 0.0
        %1981 = vmatpush2.msra.mxu0 0.0
        %1982 = vmatprep.mubr.f32.mxu0 0.0
        %1983 = vmatmul.mubr.f32.gmra.mxu0 %v1703
        %v1984 = vpop.f32.mrf.mxu0
        %v1985 = vadd.f32 %v1649, %v1984
        %v1986 = vpop.f32.mrf.mxu0
        %v1987 = vadd.f32 %v1653, %v1986
        %1988 = vdwg.mxu0
        %1989 = vmatprep.subr.mxu0 0.0
        %1990 = vmatpush1.msra.mxu0 0.0
        %1991 = vmatprep.subr.mxu0 0.0
        %1992 = vmatpush1.msra.mxu0 0.0
        %1993 = vmatprep.subr.mxu0 0.0
        %1994 = vmatpush1.msra.mxu0 0.0
        %1995 = vmatprep.subr.mxu0 0.0
        %1996 = vmatpush1.msra.mxu0 0.0
        %1997 = vmatprep.subr.mxu0 0.0
        %1998 = vmatpush1.msra.mxu0 0.0
        %1999 = vmatprep.subr.mxu0 0.0
        %2000 = vmatpush1.msra.mxu0 0.0
        %2001 = vmatprep.subr.mxu0 0.0
        %2002 = vmatpush1.msra.mxu0 0.0
        %2003 = vmatprep.subr.mxu0 0.0
        %2004 = vmatpush1.msra.mxu0 0.0
        %2005 = vmatprep.subr.mxu0 %v1611
        %2006 = vmatpush1.msra.mxu0 %v1610
        %2007 = vmatprep.subr.mxu0 %v1595
        %2008 = vmatpush1.msra.mxu0 %v1594
        %2009 = vmatprep.subr.mxu0 %v1579
        %2010 = vmatpush1.msra.mxu0 %v1578
        %2011 = vmatprep.subr.mxu0 %v1563
        %2012 = vmatpush1.msra.mxu0 %v1562
        %2013 = vmatprep.subr.mxu0 %v1547
        %2014 = vmatpush1.msra.mxu0 %v1546
        %2015 = vmatprep.subr.mxu0 %v1531
        %2016 = vmatpush1.msra.mxu0 %v1530
        %2017 = vmatprep.subr.mxu0 %v1515
        %2018 = vmatpush1.msra.mxu0 %v1514
        %2019 = vmatprep.subr.mxu0 %v1499
        %2020 = vmatpush1.msra.mxu0 %v1498
        %2021 = vmatprep.subr.mxu0 0.0
        %2022 = vmatpush2.msra.mxu0 0.0
        %2023 = vmatprep.subr.mxu0 0.0
        %2024 = vmatpush2.msra.mxu0 0.0
        %2025 = vmatprep.subr.mxu0 0.0
        %2026 = vmatpush2.msra.mxu0 0.0
        %2027 = vmatprep.subr.mxu0 0.0
        %2028 = vmatpush2.msra.mxu0 0.0
        %2029 = vmatprep.subr.mxu0 0.0
        %2030 = vmatpush2.msra.mxu0 0.0
        %2031 = vmatprep.subr.mxu0 0.0
        %2032 = vmatpush2.msra.mxu0 0.0
        %2033 = vmatprep.subr.mxu0 0.0
        %2034 = vmatpush2.msra.mxu0 0.0
        %2035 = vmatprep.subr.mxu0 0.0
        %2036 = vmatpush2.msra.mxu0 0.0
        %2037 = vmatprep.subr.mxu0 0.0
        %2038 = vmatpush2.msra.mxu0 0.0
        %2039 = vmatprep.subr.mxu0 0.0
        %2040 = vmatpush2.msra.mxu0 0.0
        %2041 = vmatprep.subr.mxu0 0.0
        %2042 = vmatpush2.msra.mxu0 0.0
        %2043 = vmatprep.subr.mxu0 0.0
        %2044 = vmatpush2.msra.mxu0 0.0
        %2045 = vmatprep.subr.mxu0 0.0
        %2046 = vmatpush2.msra.mxu0 0.0
        %2047 = vmatprep.subr.mxu0 0.0
        %2048 = vmatpush2.msra.mxu0 0.0
        %2049 = vmatprep.subr.mxu0 0.0
        %2050 = vmatpush2.msra.mxu0 0.0
        %2051 = vmatprep.subr.mxu0 0.0
        %2052 = vmatpush2.msra.mxu0 0.0
        %2053 = vmatprep.mubr.f32.mxu0 0.0
        %2054 = vmatmul.mubr.f32.gmra.mxu0 %v1703
        %v2055 = vpop.f32.mrf.mxu0
        %v2056 = vadd.f32 %v1657, %v2055
        %v2057 = vpop.f32.mrf.mxu0
        %v2058 = vadd.f32 %v1661, %v2057
        %2059 = vdwg.mxu0
        %2060 = vmatprep.subr.mxu0 0.0
        %2061 = vmatpush1.msra.mxu0 0.0
        %2062 = vmatprep.subr.mxu0 0.0
        %2063 = vmatpush1.msra.mxu0 0.0
        %2064 = vmatprep.subr.mxu0 0.0
        %2065 = vmatpush1.msra.mxu0 0.0
        %2066 = vmatprep.subr.mxu0 0.0
        %2067 = vmatpush1.msra.mxu0 0.0
        %2068 = vmatprep.subr.mxu0 0.0
        %2069 = vmatpush1.msra.mxu0 0.0
        %2070 = vmatprep.subr.mxu0 0.0
        %2071 = vmatpush1.msra.mxu0 0.0
        %2072 = vmatprep.subr.mxu0 0.0
        %2073 = vmatpush1.msra.mxu0 0.0
        %2074 = vmatprep.subr.mxu0 0.0
        %2075 = vmatpush1.msra.mxu0 0.0
        %2076 = vmatprep.subr.mxu0 %v1613
        %2077 = vmatpush1.msra.mxu0 %v1612
        %2078 = vmatprep.subr.mxu0 %v1597
        %2079 = vmatpush1.msra.mxu0 %v1596
        %2080 = vmatprep.subr.mxu0 %v1581
        %2081 = vmatpush1.msra.mxu0 %v1580
        %2082 = vmatprep.subr.mxu0 %v1565
        %2083 = vmatpush1.msra.mxu0 %v1564
        %2084 = vmatprep.subr.mxu0 %v1549
        %2085 = vmatpush1.msra.mxu0 %v1548
        %2086 = vmatprep.subr.mxu0 %v1533
        %2087 = vmatpush1.msra.mxu0 %v1532
        %2088 = vmatprep.subr.mxu0 %v1517
        %2089 = vmatpush1.msra.mxu0 %v1516
        %2090 = vmatprep.subr.mxu0 %v1501
        %2091 = vmatpush1.msra.mxu0 %v1500
        %2092 = vmatprep.subr.mxu0 0.0
        %2093 = vmatpush2.msra.mxu0 0.0
        %2094 = vmatprep.subr.mxu0 0.0
        %2095 = vmatpush2.msra.mxu0 0.0
        %2096 = vmatprep.subr.mxu0 0.0
        %2097 = vmatpush2.msra.mxu0 0.0
        %2098 = vmatprep.subr.mxu0 0.0
        %2099 = vmatpush2.msra.mxu0 0.0
        %2100 = vmatprep.subr.mxu0 0.0
        %2101 = vmatpush2.msra.mxu0 0.0
        %2102 = vmatprep.subr.mxu0 0.0
        %2103 = vmatpush2.msra.mxu0 0.0
        %2104 = vmatprep.subr.mxu0 0.0
        %2105 = vmatpush2.msra.mxu0 0.0
        %2106 = vmatprep.subr.mxu0 0.0
        %2107 = vmatpush2.msra.mxu0 0.0
        %2108 = vmatprep.subr.mxu0 0.0
        %2109 = vmatpush2.msra.mxu0 0.0
        %2110 = vmatprep.subr.mxu0 0.0
        %2111 = vmatpush2.msra.mxu0 0.0
        %2112 = vmatprep.subr.mxu0 0.0
        %2113 = vmatpush2.msra.mxu0 0.0
        %2114 = vmatprep.subr.mxu0 0.0
        %2115 = vmatpush2.msra.mxu0 0.0
        %2116 = vmatprep.subr.mxu0 0.0
        %2117 = vmatpush2.msra.mxu0 0.0
        %2118 = vmatprep.subr.mxu0 0.0
        %2119 = vmatpush2.msra.mxu0 0.0
        %2120 = vmatprep.subr.mxu0 0.0
        %2121 = vmatpush2.msra.mxu0 0.0
        %2122 = vmatprep.subr.mxu0 0.0
        %2123 = vmatpush2.msra.mxu0 0.0
        %2124 = vmatprep.mubr.f32.mxu0 0.0
        %2125 = vmatmul.mubr.f32.gmra.mxu0 %v1703
        %v2126 = vpop.f32.mrf.mxu0
        %v2127 = vadd.f32 %v1665, %v2126
        %v2128 = vpop.f32.mrf.mxu0
        %v2129 = vadd.f32 %v1669, %v2128
        %2130 = vdwg.mxu0
        %2131 = vmatprep.subr.mxu0 0.0
        %2132 = vmatpush1.msra.mxu0 0.0
        %2133 = vmatprep.subr.mxu0 0.0
        %2134 = vmatpush1.msra.mxu0 0.0
        %2135 = vmatprep.subr.mxu0 0.0
        %2136 = vmatpush1.msra.mxu0 0.0
        %2137 = vmatprep.subr.mxu0 0.0
        %2138 = vmatpush1.msra.mxu0 0.0
        %2139 = vmatprep.subr.mxu0 0.0
        %2140 = vmatpush1.msra.mxu0 0.0
        %2141 = vmatprep.subr.mxu0 0.0
        %2142 = vmatpush1.msra.mxu0 0.0
        %2143 = vmatprep.subr.mxu0 0.0
        %2144 = vmatpush1.msra.mxu0 0.0
        %2145 = vmatprep.subr.mxu0 0.0
        %2146 = vmatpush1.msra.mxu0 0.0
        %2147 = vmatprep.subr.mxu0 %v1615
        %2148 = vmatpush1.msra.mxu0 %v1614
        %2149 = vmatprep.subr.mxu0 %v1599
        %2150 = vmatpush1.msra.mxu0 %v1598
        %2151 = vmatprep.subr.mxu0 %v1583
        %2152 = vmatpush1.msra.mxu0 %v1582
        %2153 = vmatprep.subr.mxu0 %v1567
        %2154 = vmatpush1.msra.mxu0 %v1566
        %2155 = vmatprep.subr.mxu0 %v1551
        %2156 = vmatpush1.msra.mxu0 %v1550
        %2157 = vmatprep.subr.mxu0 %v1535
        %2158 = vmatpush1.msra.mxu0 %v1534
        %2159 = vmatprep.subr.mxu0 %v1519
        %2160 = vmatpush1.msra.mxu0 %v1518
        %2161 = vmatprep.subr.mxu0 %v1503
        %2162 = vmatpush1.msra.mxu0 %v1502
        %2163 = vmatprep.subr.mxu0 0.0
        %2164 = vmatpush2.msra.mxu0 0.0
        %2165 = vmatprep.subr.mxu0 0.0
        %2166 = vmatpush2.msra.mxu0 0.0
        %2167 = vmatprep.subr.mxu0 0.0
        %2168 = vmatpush2.msra.mxu0 0.0
        %2169 = vmatprep.subr.mxu0 0.0
        %2170 = vmatpush2.msra.mxu0 0.0
        %2171 = vmatprep.subr.mxu0 0.0
        %2172 = vmatpush2.msra.mxu0 0.0
        %2173 = vmatprep.subr.mxu0 0.0
        %2174 = vmatpush2.msra.mxu0 0.0
        %2175 = vmatprep.subr.mxu0 0.0
        %2176 = vmatpush2.msra.mxu0 0.0
        %2177 = vmatprep.subr.mxu0 0.0
        %2178 = vmatpush2.msra.mxu0 0.0
        %2179 = vmatprep.subr.mxu0 0.0
        %2180 = vmatpush2.msra.mxu0 0.0
        %2181 = vmatprep.subr.mxu0 0.0
        %2182 = vmatpush2.msra.mxu0 0.0
        %2183 = vmatprep.subr.mxu0 0.0
        %2184 = vmatpush2.msra.mxu0 0.0
        %2185 = vmatprep.subr.mxu0 0.0
        %2186 = vmatpush2.msra.mxu0 0.0
        %2187 = vmatprep.subr.mxu0 0.0
        %2188 = vmatpush2.msra.mxu0 0.0
        %2189 = vmatprep.subr.mxu0 0.0
        %2190 = vmatpush2.msra.mxu0 0.0
        %2191 = vmatprep.subr.mxu0 0.0
        %2192 = vmatpush2.msra.mxu0 0.0
        %2193 = vmatprep.subr.mxu0 0.0
        %2194 = vmatpush2.msra.mxu0 0.0
        %2195 = vmatprep.mubr.f32.mxu0 0.0
        %2196 = vmatmul.mubr.f32.gmra.mxu0 %v1703
        %v2197 = vpop.f32.mrf.mxu0
        %v2198 = vadd.f32 %v1673, %v2197
        %v2199 = vpop.f32.mrf.mxu0
        %v2200 = vadd.f32 %v1677, %v2199
        %2201 = vdwg.mxu0
        %2202 = vmatprep.subr.mxu0 0.0
        %2203 = vmatpush1.msra.mxu0 0.0
        %2204 = vmatprep.subr.mxu0 0.0
        %2205 = vmatpush1.msra.mxu0 0.0
        %2206 = vmatprep.subr.mxu0 0.0
        %2207 = vmatpush1.msra.mxu0 0.0
        %2208 = vmatprep.subr.mxu0 0.0
        %2209 = vmatpush1.msra.mxu0 0.0
        %2210 = vmatprep.subr.mxu0 0.0
        %2211 = vmatpush1.msra.mxu0 0.0
        %2212 = vmatprep.subr.mxu0 0.0
        %2213 = vmatpush1.msra.mxu0 0.0
        %2214 = vmatprep.subr.mxu0 0.0
        %2215 = vmatpush1.msra.mxu0 0.0
        %2216 = vmatprep.subr.mxu0 0.0
        %2217 = vmatpush1.msra.mxu0 0.0
        %2218 = vmatprep.subr.mxu0 %v1617
        %2219 = vmatpush1.msra.mxu0 %v1616
        %2220 = vmatprep.subr.mxu0 %v1601
        %2221 = vmatpush1.msra.mxu0 %v1600
        %2222 = vmatprep.subr.mxu0 %v1585
        %2223 = vmatpush1.msra.mxu0 %v1584
        %2224 = vmatprep.subr.mxu0 %v1569
        %2225 = vmatpush1.msra.mxu0 %v1568
        %2226 = vmatprep.subr.mxu0 %v1553
        %2227 = vmatpush1.msra.mxu0 %v1552
        %2228 = vmatprep.subr.mxu0 %v1537
        %2229 = vmatpush1.msra.mxu0 %v1536
        %2230 = vmatprep.subr.mxu0 %v1521
        %2231 = vmatpush1.msra.mxu0 %v1520
        %2232 = vmatprep.subr.mxu0 %v1505
        %2233 = vmatpush1.msra.mxu0 %v1504
        %2234 = vmatprep.subr.mxu0 0.0
        %2235 = vmatpush2.msra.mxu0 0.0
        %2236 = vmatprep.subr.mxu0 0.0
        %2237 = vmatpush2.msra.mxu0 0.0
        %2238 = vmatprep.subr.mxu0 0.0
        %2239 = vmatpush2.msra.mxu0 0.0
        %2240 = vmatprep.subr.mxu0 0.0
        %2241 = vmatpush2.msra.mxu0 0.0
        %2242 = vmatprep.subr.mxu0 0.0
        %2243 = vmatpush2.msra.mxu0 0.0
        %2244 = vmatprep.subr.mxu0 0.0
        %2245 = vmatpush2.msra.mxu0 0.0
        %2246 = vmatprep.subr.mxu0 0.0
        %2247 = vmatpush2.msra.mxu0 0.0
        %2248 = vmatprep.subr.mxu0 0.0
        %2249 = vmatpush2.msra.mxu0 0.0
        %2250 = vmatprep.subr.mxu0 0.0
        %2251 = vmatpush2.msra.mxu0 0.0
        %2252 = vmatprep.subr.mxu0 0.0
        %2253 = vmatpush2.msra.mxu0 0.0
        %2254 = vmatprep.subr.mxu0 0.0
        %2255 = vmatpush2.msra.mxu0 0.0
        %2256 = vmatprep.subr.mxu0 0.0
        %2257 = vmatpush2.msra.mxu0 0.0
        %2258 = vmatprep.subr.mxu0 0.0
        %2259 = vmatpush2.msra.mxu0 0.0
        %2260 = vmatprep.subr.mxu0 0.0
        %2261 = vmatpush2.msra.mxu0 0.0
        %2262 = vmatprep.subr.mxu0 0.0
        %2263 = vmatpush2.msra.mxu0 0.0
        %2264 = vmatprep.subr.mxu0 0.0
        %2265 = vmatpush2.msra.mxu0 0.0
        %2266 = vmatprep.mubr.f32.mxu0 0.0
        %2267 = vmatmul.mubr.f32.gmra.mxu0 %v1703
        %v2268 = vpop.f32.mrf.mxu0
        %v2269 = vadd.f32 %v1681, %v2268
        %v2270 = vpop.f32.mrf.mxu0
        %v2271 = vadd.f32 %v1685, %v2270
        %2272 = vdwg.mxu0
        %v2273 = vmax.f32 %v1772, 0.0
        %v2274 = vmax.f32 %v1774, 0.0
        %v2275 = vmax.f32 %v1843, 0.0
        %v2276 = vmax.f32 %v1845, 0.0
        %v2277 = vmax.f32 %v1914, 0.0
        %v2278 = vmax.f32 %v1916, 0.0
        %v2279 = vmax.f32 %v1985, 0.0
        %v2280 = vmax.f32 %v1987, 0.0
        %v2281 = vmax.f32 %v2056, 0.0
        %v2282 = vmax.f32 %v2058, 0.0
        %v2283 = vmax.f32 %v2127, 0.0
        %v2284 = vmax.f32 %v2129, 0.0
        %v2285 = vmax.f32 %v2198, 0.0
        %v2286 = vmax.f32 %v2200, 0.0
        %v2287 = vmax.f32 %v2269, 0.0
        %v2288 = vmax.f32 %v2271, 0.0
        %v2289 = vld [vmem:[%s13] sm:$0xff]
        %v2290 = vld [vmem:[%s13 + $0x8] sm:$0xff]
        %v2291 = vld [vmem:[%s13 + $0x10] sm:$0xff]
        %v2292 = vld [vmem:[%s13 + $0x18] sm:$0xff]
        %v2293 = vld [vmem:[%s13 + $0x20] sm:$0xff]
        %v2294 = vld [vmem:[%s13 + $0x28] sm:$0xff]
        %v2295 = vld [vmem:[%s13 + $0x30] sm:$0xff]
        %v2296 = vld [vmem:[%s13 + $0x38] sm:$0xff]
        %v2297 = vld [vmem:[%s13 + $0x40] sm:$0xff]
        %v2298 = vld [vmem:[%s13 + $0x48] sm:$0xff]
        %v2299 = vld [vmem:[%s13 + $0x50] sm:$0xff]
        %v2300 = vld [vmem:[%s13 + $0x58] sm:$0xff]
        %v2301 = vld [vmem:[%s13 + $0x60] sm:$0xff]
        %v2302 = vld [vmem:[%s13 + $0x68] sm:$0xff]
        %v2303 = vld [vmem:[%s13 + $0x70] sm:$0xff]
        %v2304 = vld [vmem:[%s13 + $0x78] sm:$0xff]
        %v2305 = vld [vmem:[%s13 + $0x80] sm:$0xff]
        %v2306 = vld [vmem:[%s13 + $0x88] sm:$0xff]
        %v2307 = vld [vmem:[%s13 + $0x90] sm:$0xff]
        %v2308 = vld [vmem:[%s13 + $0x98] sm:$0xff]
        %v2309 = vld [vmem:[%s13 + $0xa0] sm:$0xff]
        %v2310 = vld [vmem:[%s13 + $0xa8] sm:$0xff]
        %v2311 = vld [vmem:[%s13 + $0xb0] sm:$0xff]
        %v2312 = vld [vmem:[%s13 + $0xb8] sm:$0xff]
        %v2313 = vld [vmem:[%s13 + $0xc0] sm:$0xff]
        %v2314 = vld [vmem:[%s13 + $0xc8] sm:$0xff]
        %v2315 = vld [vmem:[%s13 + $0xd0] sm:$0xff]
        %v2316 = vld [vmem:[%s13 + $0xd8] sm:$0xff]
        %v2317 = vld [vmem:[%s13 + $0xe0] sm:$0xff]
        %v2318 = vld [vmem:[%s13 + $0xe8] sm:$0xff]
        %v2319 = vld [vmem:[%s13 + $0xf0] sm:$0xff]
        %v2320 = vld [vmem:[%s13 + $0xf8] sm:$0xff]
        %v2321 = vld [vmem:[%s13 + $0x100] sm:$0xff]
        %v2322 = vld [vmem:[%s13 + $0x108] sm:$0xff]
        %v2323 = vld [vmem:[%s13 + $0x110] sm:$0xff]
        %v2324 = vld [vmem:[%s13 + $0x118] sm:$0xff]
        %v2325 = vld [vmem:[%s13 + $0x120] sm:$0xff]
        %v2326 = vld [vmem:[%s13 + $0x128] sm:$0xff]
        %v2327 = vld [vmem:[%s13 + $0x130] sm:$0xff]
        %v2328 = vld [vmem:[%s13 + $0x138] sm:$0xff]
        %v2329 = vld [vmem:[%s13 + $0x140] sm:$0xff]
        %v2330 = vld [vmem:[%s13 + $0x148] sm:$0xff]
        %v2331 = vld [vmem:[%s13 + $0x150] sm:$0xff]
        %v2332 = vld [vmem:[%s13 + $0x158] sm:$0xff]
        %v2333 = vld [vmem:[%s13 + $0x160] sm:$0xff]
        %v2334 = vld [vmem:[%s13 + $0x168] sm:$0xff]
        %v2335 = vld [vmem:[%s13 + $0x170] sm:$0xff]
        %v2336 = vld [vmem:[%s13 + $0x178] sm:$0xff]
        %v2337 = vld [vmem:[%s13 + $0x180] sm:$0xff]
        %v2338 = vld [vmem:[%s13 + $0x188] sm:$0xff]
        %v2339 = vld [vmem:[%s13 + $0x190] sm:$0xff]
        %v2340 = vld [vmem:[%s13 + $0x198] sm:$0xff]
        %v2341 = vld [vmem:[%s13 + $0x1a0] sm:$0xff]
        %v2342 = vld [vmem:[%s13 + $0x1a8] sm:$0xff]
        %v2343 = vld [vmem:[%s13 + $0x1b0] sm:$0xff]
        %v2344 = vld [vmem:[%s13 + $0x1b8] sm:$0xff]
        %v2345 = vld [vmem:[%s13 + $0x1c0] sm:$0xff]
        %v2346 = vld [vmem:[%s13 + $0x1c8] sm:$0xff]
        %v2347 = vld [vmem:[%s13 + $0x1d0] sm:$0xff]
        %v2348 = vld [vmem:[%s13 + $0x1d8] sm:$0xff]
        %v2349 = vld [vmem:[%s13 + $0x1e0] sm:$0xff]
        %v2350 = vld [vmem:[%s13 + $0x1e8] sm:$0xff]
        %v2351 = vld [vmem:[%s13 + $0x1f0] sm:$0xff]
        %v2352 = vld [vmem:[%s13 + $0x1f8] sm:$0xff]
        %v2353 = vld [vmem:[%s13 + $0x200] sm:$0xff]
        %v2354 = vld [vmem:[%s13 + $0x208] sm:$0xff]
        %v2355 = vld [vmem:[%s13 + $0x210] sm:$0xff]
        %v2356 = vld [vmem:[%s13 + $0x218] sm:$0xff]
        %v2357 = vld [vmem:[%s13 + $0x220] sm:$0xff]
        %v2358 = vld [vmem:[%s13 + $0x228] sm:$0xff]
        %v2359 = vld [vmem:[%s13 + $0x230] sm:$0xff]
        %v2360 = vld [vmem:[%s13 + $0x238] sm:$0xff]
        %v2361 = vld [vmem:[%s13 + $0x240] sm:$0xff]
        %v2362 = vld [vmem:[%s13 + $0x248] sm:$0xff]
        %v2363 = vld [vmem:[%s13 + $0x250] sm:$0xff]
        %v2364 = vld [vmem:[%s13 + $0x258] sm:$0xff]
        %v2365 = vld [vmem:[%s13 + $0x260] sm:$0xff]
        %v2366 = vld [vmem:[%s13 + $0x268] sm:$0xff]
        %v2367 = vld [vmem:[%s13 + $0x270] sm:$0xff]
        %v2368 = vld [vmem:[%s13 + $0x278] sm:$0xff]
        %v2369 = vld [vmem:[%s13 + $0x280] sm:$0xff]
        %v2370 = vld [vmem:[%s13 + $0x288] sm:$0xff]
        %v2371 = vld [vmem:[%s13 + $0x290] sm:$0xff]
        %v2372 = vld [vmem:[%s13 + $0x298] sm:$0xff]
        %v2373 = vld [vmem:[%s13 + $0x2a0] sm:$0xff]
        %v2374 = vld [vmem:[%s13 + $0x2a8] sm:$0xff]
        %v2375 = vld [vmem:[%s13 + $0x2b0] sm:$0xff]
        %v2376 = vld [vmem:[%s13 + $0x2b8] sm:$0xff]
        %v2377 = vld [vmem:[%s13 + $0x2c0] sm:$0xff]
        %v2378 = vld [vmem:[%s13 + $0x2c8] sm:$0xff]
        %v2379 = vld [vmem:[%s13 + $0x2d0] sm:$0xff]
        %v2380 = vld [vmem:[%s13 + $0x2d8] sm:$0xff]
        %v2381 = vld [vmem:[%s13 + $0x2e0] sm:$0xff]
        %v2382 = vld [vmem:[%s13 + $0x2e8] sm:$0xff]
        %v2383 = vld [vmem:[%s13 + $0x2f0] sm:$0xff]
        %v2384 = vld [vmem:[%s13 + $0x2f8] sm:$0xff]
        %v2385 = vld [vmem:[%s13 + $0x300] sm:$0xff]
        %v2386 = vld [vmem:[%s13 + $0x308] sm:$0xff]
        %v2387 = vld [vmem:[%s13 + $0x310] sm:$0xff]
        %v2388 = vld [vmem:[%s13 + $0x318] sm:$0xff]
        %v2389 = vld [vmem:[%s13 + $0x320] sm:$0xff]
        %v2390 = vld [vmem:[%s13 + $0x328] sm:$0xff]
        %v2391 = vld [vmem:[%s13 + $0x330] sm:$0xff]
        %v2392 = vld [vmem:[%s13 + $0x338] sm:$0xff]
        %v2393 = vld [vmem:[%s13 + $0x340] sm:$0xff]
        %v2394 = vld [vmem:[%s13 + $0x348] sm:$0xff]
        %v2395 = vld [vmem:[%s13 + $0x350] sm:$0xff]
        %v2396 = vld [vmem:[%s13 + $0x358] sm:$0xff]
        %v2397 = vld [vmem:[%s13 + $0x360] sm:$0xff]
        %v2398 = vld [vmem:[%s13 + $0x368] sm:$0xff]
        %v2399 = vld [vmem:[%s13 + $0x370] sm:$0xff]
        %v2400 = vld [vmem:[%s13 + $0x378] sm:$0xff]
        %v2401 = vld [vmem:[%s13 + $0x380] sm:$0xff]
        %v2402 = vld [vmem:[%s13 + $0x388] sm:$0xff]
        %v2403 = vld [vmem:[%s13 + $0x390] sm:$0xff]
        %v2404 = vld [vmem:[%s13 + $0x398] sm:$0xff]
        %v2405 = vld [vmem:[%s13 + $0x3a0] sm:$0xff]
        %v2406 = vld [vmem:[%s13 + $0x3a8] sm:$0xff]
        %v2407 = vld [vmem:[%s13 + $0x3b0] sm:$0xff]
        %v2408 = vld [vmem:[%s13 + $0x3b8] sm:$0xff]
        %v2409 = vld [vmem:[%s13 + $0x3c0] sm:$0xff]
        %v2410 = vld [vmem:[%s13 + $0x3c8] sm:$0xff]
        %v2411 = vld [vmem:[%s13 + $0x3d0] sm:$0xff]
        %v2412 = vld [vmem:[%s13 + $0x3d8] sm:$0xff]
        %v2413 = vld [vmem:[%s13 + $0x3e0] sm:$0xff]
        %v2414 = vld [vmem:[%s13 + $0x3e8] sm:$0xff]
        %v2415 = vld [vmem:[%s13 + $0x3f0] sm:$0xff]
        %v2416 = vld [vmem:[%s13 + $0x3f8] sm:$0xff]
        %v2417 = vld [vmem:[%s13 + $0x400] sm:$0xff]
        %v2418 = vld [vmem:[%s13 + $0x408] sm:$0xff]
        %v2419 = vld [vmem:[%s13 + $0x410] sm:$0xff]
        %v2420 = vld [vmem:[%s13 + $0x418] sm:$0xff]
        %v2421 = vld [vmem:[%s13 + $0x420] sm:$0xff]
        %v2422 = vld [vmem:[%s13 + $0x428] sm:$0xff]
        %v2423 = vld [vmem:[%s13 + $0x430] sm:$0xff]
        %v2424 = vld [vmem:[%s13 + $0x438] sm:$0xff]
        %v2425 = vld [vmem:[%s13 + $0x440] sm:$0xff]
        %v2426 = vld [vmem:[%s13 + $0x448] sm:$0xff]
        %v2427 = vld [vmem:[%s13 + $0x450] sm:$0xff]
        %v2428 = vld [vmem:[%s13 + $0x458] sm:$0xff]
        %v2429 = vld [vmem:[%s13 + $0x460] sm:$0xff]
        %v2430 = vld [vmem:[%s13 + $0x468] sm:$0xff]
        %v2431 = vld [vmem:[%s13 + $0x470] sm:$0xff]
        %v2432 = vld [vmem:[%s13 + $0x478] sm:$0xff]
        %v2433 = vld [vmem:[%s13 + $0x480] sm:$0xff]
        %v2434 = vld [vmem:[%s13 + $0x488] sm:$0xff]
        %v2435 = vld [vmem:[%s13 + $0x490] sm:$0xff]
        %v2436 = vld [vmem:[%s13 + $0x498] sm:$0xff]
        %v2437 = vld [vmem:[%s13 + $0x4a0] sm:$0xff]
        %v2438 = vld [vmem:[%s13 + $0x4a8] sm:$0xff]
        %v2439 = vld [vmem:[%s13 + $0x4b0] sm:$0xff]
        %v2440 = vld [vmem:[%s13 + $0x4b8] sm:$0xff]
        %v2441 = vld [vmem:[%s13 + $0x4c0] sm:$0xff]
        %v2442 = vld [vmem:[%s13 + $0x4c8] sm:$0xff]
        %v2443 = vld [vmem:[%s13 + $0x4d0] sm:$0xff]
        %v2444 = vld [vmem:[%s13 + $0x4d8] sm:$0xff]
        %v2445 = vld [vmem:[%s13 + $0x4e0] sm:$0xff]
        %v2446 = vld [vmem:[%s13 + $0x4e8] sm:$0xff]
        %v2447 = vld [vmem:[%s13 + $0x4f0] sm:$0xff]
        %v2448 = vld [vmem:[%s13 + $0x4f8] sm:$0xff]
        %v2449 = vld [vmem:[%s13 + $0x500] sm:$0xff]
        %v2450 = vld [vmem:[%s13 + $0x508] sm:$0xff]
        %v2451 = vld [vmem:[%s13 + $0x510] sm:$0xff]
        %v2452 = vld [vmem:[%s13 + $0x518] sm:$0xff]
        %v2453 = vld [vmem:[%s13 + $0x520] sm:$0xff]
        %v2454 = vld [vmem:[%s13 + $0x528] sm:$0xff]
        %v2455 = vld [vmem:[%s13 + $0x530] sm:$0xff]
        %v2456 = vld [vmem:[%s13 + $0x538] sm:$0xff]
        %v2457 = vld [vmem:[%s13 + $0x540] sm:$0xff]
        %v2458 = vld [vmem:[%s13 + $0x548] sm:$0xff]
        %v2459 = vld [vmem:[%s13 + $0x550] sm:$0xff]
        %v2460 = vld [vmem:[%s13 + $0x558] sm:$0xff]
        %v2461 = vld [vmem:[%s13 + $0x560] sm:$0xff]
        %v2462 = vld [vmem:[%s13 + $0x568] sm:$0xff]
        %v2463 = vld [vmem:[%s13 + $0x570] sm:$0xff]
        %v2464 = vld [vmem:[%s13 + $0x578] sm:$0xff]
        %v2465 = vld [vmem:[%s13 + $0x580] sm:$0xff]
        %v2466 = vld [vmem:[%s13 + $0x588] sm:$0xff]
        %v2467 = vld [vmem:[%s13 + $0x590] sm:$0xff]
        %v2468 = vld [vmem:[%s13 + $0x598] sm:$0xff]
        %v2469 = vld [vmem:[%s13 + $0x5a0] sm:$0xff]
        %v2470 = vld [vmem:[%s13 + $0x5a8] sm:$0xff]
        %v2471 = vld [vmem:[%s13 + $0x5b0] sm:$0xff]
        %v2472 = vld [vmem:[%s13 + $0x5b8] sm:$0xff]
        %v2473 = vld [vmem:[%s13 + $0x5c0] sm:$0xff]
        %v2474 = vld [vmem:[%s13 + $0x5c8] sm:$0xff]
        %v2475 = vld [vmem:[%s13 + $0x5d0] sm:$0xff]
        %v2476 = vld [vmem:[%s13 + $0x5d8] sm:$0xff]
        %v2477 = vld [vmem:[%s13 + $0x5e0] sm:$0xff]
        %v2478 = vld [vmem:[%s13 + $0x5e8] sm:$0xff]
        %v2479 = vld [vmem:[%s13 + $0x5f0] sm:$0xff]
        %v2480 = vld [vmem:[%s13 + $0x5f8] sm:$0xff]
        %v2481 = vld [vmem:[%s13 + $0x600] sm:$0xff]
        %v2482 = vld [vmem:[%s13 + $0x608] sm:$0xff]
        %v2483 = vld [vmem:[%s13 + $0x610] sm:$0xff]
        %v2484 = vld [vmem:[%s13 + $0x618] sm:$0xff]
        %v2485 = vld [vmem:[%s13 + $0x620] sm:$0xff]
        %v2486 = vld [vmem:[%s13 + $0x628] sm:$0xff]
        %v2487 = vld [vmem:[%s13 + $0x630] sm:$0xff]
        %v2488 = vld [vmem:[%s13 + $0x638] sm:$0xff]
        %v2489 = vld [vmem:[%s13 + $0x640] sm:$0xff]
        %v2490 = vld [vmem:[%s13 + $0x648] sm:$0xff]
        %v2491 = vld [vmem:[%s13 + $0x650] sm:$0xff]
        %v2492 = vld [vmem:[%s13 + $0x658] sm:$0xff]
        %v2493 = vld [vmem:[%s13 + $0x660] sm:$0xff]
        %v2494 = vld [vmem:[%s13 + $0x668] sm:$0xff]
        %v2495 = vld [vmem:[%s13 + $0x670] sm:$0xff]
        %v2496 = vld [vmem:[%s13 + $0x678] sm:$0xff]
        %v2497 = vld [vmem:[%s13 + $0x680] sm:$0xff]
        %v2498 = vld [vmem:[%s13 + $0x688] sm:$0xff]
        %v2499 = vld [vmem:[%s13 + $0x690] sm:$0xff]
        %v2500 = vld [vmem:[%s13 + $0x698] sm:$0xff]
        %v2501 = vld [vmem:[%s13 + $0x6a0] sm:$0xff]
        %v2502 = vld [vmem:[%s13 + $0x6a8] sm:$0xff]
        %v2503 = vld [vmem:[%s13 + $0x6b0] sm:$0xff]
        %v2504 = vld [vmem:[%s13 + $0x6b8] sm:$0xff]
        %v2505 = vld [vmem:[%s13 + $0x6c0] sm:$0xff]
        %v2506 = vld [vmem:[%s13 + $0x6c8] sm:$0xff]
        %v2507 = vld [vmem:[%s13 + $0x6d0] sm:$0xff]
        %v2508 = vld [vmem:[%s13 + $0x6d8] sm:$0xff]
        %v2509 = vld [vmem:[%s13 + $0x6e0] sm:$0xff]
        %v2510 = vld [vmem:[%s13 + $0x6e8] sm:$0xff]
        %v2511 = vld [vmem:[%s13 + $0x6f0] sm:$0xff]
        %v2512 = vld [vmem:[%s13 + $0x6f8] sm:$0xff]
        %v2513 = vld [vmem:[%s13 + $0x700] sm:$0xff]
        %v2514 = vld [vmem:[%s13 + $0x708] sm:$0xff]
        %v2515 = vld [vmem:[%s13 + $0x710] sm:$0xff]
        %v2516 = vld [vmem:[%s13 + $0x718] sm:$0xff]
        %v2517 = vld [vmem:[%s13 + $0x720] sm:$0xff]
        %v2518 = vld [vmem:[%s13 + $0x728] sm:$0xff]
        %v2519 = vld [vmem:[%s13 + $0x730] sm:$0xff]
        %v2520 = vld [vmem:[%s13 + $0x738] sm:$0xff]
        %v2521 = vld [vmem:[%s13 + $0x740] sm:$0xff]
        %v2522 = vld [vmem:[%s13 + $0x748] sm:$0xff]
        %v2523 = vld [vmem:[%s13 + $0x750] sm:$0xff]
        %v2524 = vld [vmem:[%s13 + $0x758] sm:$0xff]
        %v2525 = vld [vmem:[%s13 + $0x760] sm:$0xff]
        %v2526 = vld [vmem:[%s13 + $0x768] sm:$0xff]
        %v2527 = vld [vmem:[%s13 + $0x770] sm:$0xff]
        %v2528 = vld [vmem:[%s13 + $0x778] sm:$0xff]
        %v2529 = vld [vmem:[%s13 + $0x780] sm:$0xff]
        %v2530 = vld [vmem:[%s13 + $0x788] sm:$0xff]
        %v2531 = vld [vmem:[%s13 + $0x790] sm:$0xff]
        %v2532 = vld [vmem:[%s13 + $0x798] sm:$0xff]
        %v2533 = vld [vmem:[%s13 + $0x7a0] sm:$0xff]
        %v2534 = vld [vmem:[%s13 + $0x7a8] sm:$0xff]
        %v2535 = vld [vmem:[%s13 + $0x7b0] sm:$0xff]
        %v2536 = vld [vmem:[%s13 + $0x7b8] sm:$0xff]
        %v2537 = vld [vmem:[%s13 + $0x7c0] sm:$0xff]
        %v2538 = vld [vmem:[%s13 + $0x7c8] sm:$0xff]
        %v2539 = vld [vmem:[%s13 + $0x7d0] sm:$0xff]
        %v2540 = vld [vmem:[%s13 + $0x7d8] sm:$0xff]
        %v2541 = vld [vmem:[%s13 + $0x7e0] sm:$0xff]
        %v2542 = vld [vmem:[%s13 + $0x7e8] sm:$0xff]
        %v2543 = vld [vmem:[%s13 + $0x7f0] sm:$0xff]
        %v2544 = vld [vmem:[%s13 + $0x7f8] sm:$0xff]
        %v2545 = vld [vmem:[%s14] sm:$0x1]
        %v2547 = vlaneseq
        %v2548 = vshrl.u32 %v2547, 7
        %v2549 = vsub.s32 0, %v2548
        %v2550 = vrot.slane %v2545, %v2549
        %2552 = vmatprep.subr.mxu0 0.0
        %2553 = vmatpush1.msra.mxu0 %v2304
        %2554 = vmatprep.subr.mxu0 0.0
        %2555 = vmatpush1.msra.mxu0 %v2303
        %2556 = vmatprep.subr.mxu0 0.0
        %2557 = vmatpush1.msra.mxu0 %v2302
        %2558 = vmatprep.subr.mxu0 0.0
        %2559 = vmatpush1.msra.mxu0 %v2301
        %2560 = vmatprep.subr.mxu0 0.0
        %2561 = vmatpush1.msra.mxu0 %v2300
        %2562 = vmatprep.subr.mxu0 0.0
        %2563 = vmatpush1.msra.mxu0 %v2299
        %2564 = vmatprep.subr.mxu0 0.0
        %2565 = vmatpush1.msra.mxu0 %v2298
        %2566 = vmatprep.subr.mxu0 0.0
        %2567 = vmatpush1.msra.mxu0 %v2297
        %2568 = vmatprep.subr.mxu0 0.0
        %2569 = vmatpush1.msra.mxu0 %v2296
        %2570 = vmatprep.subr.mxu0 0.0
        %2571 = vmatpush1.msra.mxu0 %v2295
        %2572 = vmatprep.subr.mxu0 0.0
        %2573 = vmatpush1.msra.mxu0 %v2294
        %2574 = vmatprep.subr.mxu0 0.0
        %2575 = vmatpush1.msra.mxu0 %v2293
        %2576 = vmatprep.subr.mxu0 0.0
        %2577 = vmatpush1.msra.mxu0 %v2292
        %2578 = vmatprep.subr.mxu0 0.0
        %2579 = vmatpush1.msra.mxu0 %v2291
        %2580 = vmatprep.subr.mxu0 0.0
        %2581 = vmatpush1.msra.mxu0 %v2290
        %2582 = vmatprep.subr.mxu0 0.0
        %2583 = vmatpush1.msra.mxu0 %v2289
        %2584 = vmatprep.subr.mxu0 0.0
        %2585 = vmatpush2.msra.mxu0 %v2320
        %2586 = vmatprep.subr.mxu0 0.0
        %2587 = vmatpush2.msra.mxu0 %v2319
        %2588 = vmatprep.subr.mxu0 0.0
        %2589 = vmatpush2.msra.mxu0 %v2318
        %2590 = vmatprep.subr.mxu0 0.0
        %2591 = vmatpush2.msra.mxu0 %v2317
        %2592 = vmatprep.subr.mxu0 0.0
        %2593 = vmatpush2.msra.mxu0 %v2316
        %2594 = vmatprep.subr.mxu0 0.0
        %2595 = vmatpush2.msra.mxu0 %v2315
        %2596 = vmatprep.subr.mxu0 0.0
        %2597 = vmatpush2.msra.mxu0 %v2314
        %2598 = vmatprep.subr.mxu0 0.0
        %2599 = vmatpush2.msra.mxu0 %v2313
        %2600 = vmatprep.subr.mxu0 0.0
        %2601 = vmatpush2.msra.mxu0 %v2312
        %2602 = vmatprep.subr.mxu0 0.0
        %2603 = vmatpush2.msra.mxu0 %v2311
        %2604 = vmatprep.subr.mxu0 0.0
        %2605 = vmatpush2.msra.mxu0 %v2310
        %2606 = vmatprep.subr.mxu0 0.0
        %2607 = vmatpush2.msra.mxu0 %v2309
        %2608 = vmatprep.subr.mxu0 0.0
        %2609 = vmatpush2.msra.mxu0 %v2308
        %2610 = vmatprep.subr.mxu0 0.0
        %2611 = vmatpush2.msra.mxu0 %v2307
        %2612 = vmatprep.subr.mxu0 0.0
        %2613 = vmatpush2.msra.mxu0 %v2306
        %2614 = vmatprep.subr.mxu0 0.0
        %2615 = vmatpush2.msra.mxu0 %v2305
        %2616 = vmatprep.mubr.f32.mxu0 %v2274
        %2617 = vmatmul.mubr.f32.gmra.mxu0 %v2273
        %v2618 = vpop.f32.mrf.mxu0
        %v2619 = vadd.f32 %v2550, %v2618
        %v2620 = vpop.f32.mrf.mxu0
        %2621 = vdwg.mxu0
        %2622 = vmatprep.subr.mxu0 0.0
        %2623 = vmatpush1.msra.mxu0 %v2336
        %2624 = vmatprep.subr.mxu0 0.0
        %2625 = vmatpush1.msra.mxu0 %v2335
        %2626 = vmatprep.subr.mxu0 0.0
        %2627 = vmatpush1.msra.mxu0 %v2334
        %2628 = vmatprep.subr.mxu0 0.0
        %2629 = vmatpush1.msra.mxu0 %v2333
        %2630 = vmatprep.subr.mxu0 0.0
        %2631 = vmatpush1.msra.mxu0 %v2332
        %2632 = vmatprep.subr.mxu0 0.0
        %2633 = vmatpush1.msra.mxu0 %v2331
        %2634 = vmatprep.subr.mxu0 0.0
        %2635 = vmatpush1.msra.mxu0 %v2330
        %2636 = vmatprep.subr.mxu0 0.0
        %2637 = vmatpush1.msra.mxu0 %v2329
        %2638 = vmatprep.subr.mxu0 0.0
        %2639 = vmatpush1.msra.mxu0 %v2328
        %2640 = vmatprep.subr.mxu0 0.0
        %2641 = vmatpush1.msra.mxu0 %v2327
        %2642 = vmatprep.subr.mxu0 0.0
        %2643 = vmatpush1.msra.mxu0 %v2326
        %2644 = vmatprep.subr.mxu0 0.0
        %2645 = vmatpush1.msra.mxu0 %v2325
        %2646 = vmatprep.subr.mxu0 0.0
        %2647 = vmatpush1.msra.mxu0 %v2324
        %2648 = vmatprep.subr.mxu0 0.0
        %2649 = vmatpush1.msra.mxu0 %v2323
        %2650 = vmatprep.subr.mxu0 0.0
        %2651 = vmatpush1.msra.mxu0 %v2322
        %2652 = vmatprep.subr.mxu0 0.0
        %2653 = vmatpush1.msra.mxu0 %v2321
        %2654 = vmatprep.subr.mxu0 0.0
        %2655 = vmatpush2.msra.mxu0 %v2352
        %2656 = vmatprep.subr.mxu0 0.0
        %2657 = vmatpush2.msra.mxu0 %v2351
        %2658 = vmatprep.subr.mxu0 0.0
        %2659 = vmatpush2.msra.mxu0 %v2350
        %2660 = vmatprep.subr.mxu0 0.0
        %2661 = vmatpush2.msra.mxu0 %v2349
        %2662 = vmatprep.subr.mxu0 0.0
        %2663 = vmatpush2.msra.mxu0 %v2348
        %2664 = vmatprep.subr.mxu0 0.0
        %2665 = vmatpush2.msra.mxu0 %v2347
        %2666 = vmatprep.subr.mxu0 0.0
        %2667 = vmatpush2.msra.mxu0 %v2346
        %2668 = vmatprep.subr.mxu0 0.0
        %2669 = vmatpush2.msra.mxu0 %v2345
        %2670 = vmatprep.subr.mxu0 0.0
        %2671 = vmatpush2.msra.mxu0 %v2344
        %2672 = vmatprep.subr.mxu0 0.0
        %2673 = vmatpush2.msra.mxu0 %v2343
        %2674 = vmatprep.subr.mxu0 0.0
        %2675 = vmatpush2.msra.mxu0 %v2342
        %2676 = vmatprep.subr.mxu0 0.0
        %2677 = vmatpush2.msra.mxu0 %v2341
        %2678 = vmatprep.subr.mxu0 0.0
        %2679 = vmatpush2.msra.mxu0 %v2340
        %2680 = vmatprep.subr.mxu0 0.0
        %2681 = vmatpush2.msra.mxu0 %v2339
        %2682 = vmatprep.subr.mxu0 0.0
        %2683 = vmatpush2.msra.mxu0 %v2338
        %2684 = vmatprep.subr.mxu0 0.0
        %2685 = vmatpush2.msra.mxu0 %v2337
        %2686 = vmatprep.mubr.f32.mxu0 %v2276
        %2687 = vmatmul.mubr.f32.gmra.mxu0 %v2275
        %v2688 = vpop.f32.mrf.mxu0
        %v2689 = vadd.f32 %v2619, %v2688
        %v2690 = vpop.f32.mrf.mxu0
        %2691 = vdwg.mxu0
        %2692 = vmatprep.subr.mxu0 0.0
        %2693 = vmatpush1.msra.mxu0 %v2368
        %2694 = vmatprep.subr.mxu0 0.0
        %2695 = vmatpush1.msra.mxu0 %v2367
        %2696 = vmatprep.subr.mxu0 0.0
        %2697 = vmatpush1.msra.mxu0 %v2366
        %2698 = vmatprep.subr.mxu0 0.0
        %2699 = vmatpush1.msra.mxu0 %v2365
        %2700 = vmatprep.subr.mxu0 0.0
        %2701 = vmatpush1.msra.mxu0 %v2364
        %2702 = vmatprep.subr.mxu0 0.0
        %2703 = vmatpush1.msra.mxu0 %v2363
        %2704 = vmatprep.subr.mxu0 0.0
        %2705 = vmatpush1.msra.mxu0 %v2362
        %2706 = vmatprep.subr.mxu0 0.0
        %2707 = vmatpush1.msra.mxu0 %v2361
        %2708 = vmatprep.subr.mxu0 0.0
        %2709 = vmatpush1.msra.mxu0 %v2360
        %2710 = vmatprep.subr.mxu0 0.0
        %2711 = vmatpush1.msra.mxu0 %v2359
        %2712 = vmatprep.subr.mxu0 0.0
        %2713 = vmatpush1.msra.mxu0 %v2358
        %2714 = vmatprep.subr.mxu0 0.0
        %2715 = vmatpush1.msra.mxu0 %v2357
        %2716 = vmatprep.subr.mxu0 0.0
        %2717 = vmatpush1.msra.mxu0 %v2356
        %2718 = vmatprep.subr.mxu0 0.0
        %2719 = vmatpush1.msra.mxu0 %v2355
        %2720 = vmatprep.subr.mxu0 0.0
        %2721 = vmatpush1.msra.mxu0 %v2354
        %2722 = vmatprep.subr.mxu0 0.0
        %2723 = vmatpush1.msra.mxu0 %v2353
        %2724 = vmatprep.subr.mxu0 0.0
        %2725 = vmatpush2.msra.mxu0 %v2384
        %2726 = vmatprep.subr.mxu0 0.0
        %2727 = vmatpush2.msra.mxu0 %v2383
        %2728 = vmatprep.subr.mxu0 0.0
        %2729 = vmatpush2.msra.mxu0 %v2382
        %2730 = vmatprep.subr.mxu0 0.0
        %2731 = vmatpush2.msra.mxu0 %v2381
        %2732 = vmatprep.subr.mxu0 0.0
        %2733 = vmatpush2.msra.mxu0 %v2380
        %2734 = vmatprep.subr.mxu0 0.0
        %2735 = vmatpush2.msra.mxu0 %v2379
        %2736 = vmatprep.subr.mxu0 0.0
        %2737 = vmatpush2.msra.mxu0 %v2378
        %2738 = vmatprep.subr.mxu0 0.0
        %2739 = vmatpush2.msra.mxu0 %v2377
        %2740 = vmatprep.subr.mxu0 0.0
        %2741 = vmatpush2.msra.mxu0 %v2376
        %2742 = vmatprep.subr.mxu0 0.0
        %2743 = vmatpush2.msra.mxu0 %v2375
        %2744 = vmatprep.subr.mxu0 0.0
        %2745 = vmatpush2.msra.mxu0 %v2374
        %2746 = vmatprep.subr.mxu0 0.0
        %2747 = vmatpush2.msra.mxu0 %v2373
        %2748 = vmatprep.subr.mxu0 0.0
        %2749 = vmatpush2.msra.mxu0 %v2372
        %2750 = vmatprep.subr.mxu0 0.0
        %2751 = vmatpush2.msra.mxu0 %v2371
        %2752 = vmatprep.subr.mxu0 0.0
        %2753 = vmatpush2.msra.mxu0 %v2370
        %2754 = vmatprep.subr.mxu0 0.0
        %2755 = vmatpush2.msra.mxu0 %v2369
        %2756 = vmatprep.mubr.f32.mxu0 %v2278
        %2757 = vmatmul.mubr.f32.gmra.mxu0 %v2277
        %v2758 = vpop.f32.mrf.mxu0
        %v2759 = vadd.f32 %v2689, %v2758
        %v2760 = vpop.f32.mrf.mxu0
        %2761 = vdwg.mxu0
        %2762 = vmatprep.subr.mxu0 0.0
        %2763 = vmatpush1.msra.mxu0 %v2400
        %2764 = vmatprep.subr.mxu0 0.0
        %2765 = vmatpush1.msra.mxu0 %v2399
        %2766 = vmatprep.subr.mxu0 0.0
        %2767 = vmatpush1.msra.mxu0 %v2398
        %2768 = vmatprep.subr.mxu0 0.0
        %2769 = vmatpush1.msra.mxu0 %v2397
        %2770 = vmatprep.subr.mxu0 0.0
        %2771 = vmatpush1.msra.mxu0 %v2396
        %2772 = vmatprep.subr.mxu0 0.0
        %2773 = vmatpush1.msra.mxu0 %v2395
        %2774 = vmatprep.subr.mxu0 0.0
        %2775 = vmatpush1.msra.mxu0 %v2394
        %2776 = vmatprep.subr.mxu0 0.0
        %2777 = vmatpush1.msra.mxu0 %v2393
        %2778 = vmatprep.subr.mxu0 0.0
        %2779 = vmatpush1.msra.mxu0 %v2392
        %2780 = vmatprep.subr.mxu0 0.0
        %2781 = vmatpush1.msra.mxu0 %v2391
        %2782 = vmatprep.subr.mxu0 0.0
        %2783 = vmatpush1.msra.mxu0 %v2390
        %2784 = vmatprep.subr.mxu0 0.0
        %2785 = vmatpush1.msra.mxu0 %v2389
        %2786 = vmatprep.subr.mxu0 0.0
        %2787 = vmatpush1.msra.mxu0 %v2388
        %2788 = vmatprep.subr.mxu0 0.0
        %2789 = vmatpush1.msra.mxu0 %v2387
        %2790 = vmatprep.subr.mxu0 0.0
        %2791 = vmatpush1.msra.mxu0 %v2386
        %2792 = vmatprep.subr.mxu0 0.0
        %2793 = vmatpush1.msra.mxu0 %v2385
        %2794 = vmatprep.subr.mxu0 0.0
        %2795 = vmatpush2.msra.mxu0 %v2416
        %2796 = vmatprep.subr.mxu0 0.0
        %2797 = vmatpush2.msra.mxu0 %v2415
        %2798 = vmatprep.subr.mxu0 0.0
        %2799 = vmatpush2.msra.mxu0 %v2414
        %2800 = vmatprep.subr.mxu0 0.0
        %2801 = vmatpush2.msra.mxu0 %v2413
        %2802 = vmatprep.subr.mxu0 0.0
        %2803 = vmatpush2.msra.mxu0 %v2412
        %2804 = vmatprep.subr.mxu0 0.0
        %2805 = vmatpush2.msra.mxu0 %v2411
        %2806 = vmatprep.subr.mxu0 0.0
        %2807 = vmatpush2.msra.mxu0 %v2410
        %2808 = vmatprep.subr.mxu0 0.0
        %2809 = vmatpush2.msra.mxu0 %v2409
        %2810 = vmatprep.subr.mxu0 0.0
        %2811 = vmatpush2.msra.mxu0 %v2408
        %2812 = vmatprep.subr.mxu0 0.0
        %2813 = vmatpush2.msra.mxu0 %v2407
        %2814 = vmatprep.subr.mxu0 0.0
        %2815 = vmatpush2.msra.mxu0 %v2406
        %2816 = vmatprep.subr.mxu0 0.0
        %2817 = vmatpush2.msra.mxu0 %v2405
        %2818 = vmatprep.subr.mxu0 0.0
        %2819 = vmatpush2.msra.mxu0 %v2404
        %2820 = vmatprep.subr.mxu0 0.0
        %2821 = vmatpush2.msra.mxu0 %v2403
        %2822 = vmatprep.subr.mxu0 0.0
        %2823 = vmatpush2.msra.mxu0 %v2402
        %2824 = vmatprep.subr.mxu0 0.0
        %2825 = vmatpush2.msra.mxu0 %v2401
        %2826 = vmatprep.mubr.f32.mxu0 %v2280
        %2827 = vmatmul.mubr.f32.gmra.mxu0 %v2279
        %v2828 = vpop.f32.mrf.mxu0
        %v2829 = vadd.f32 %v2759, %v2828
        %v2830 = vpop.f32.mrf.mxu0
        %2831 = vdwg.mxu0
        %2832 = vmatprep.subr.mxu0 0.0
        %2833 = vmatpush1.msra.mxu0 %v2432
        %2834 = vmatprep.subr.mxu0 0.0
        %2835 = vmatpush1.msra.mxu0 %v2431
        %2836 = vmatprep.subr.mxu0 0.0
        %2837 = vmatpush1.msra.mxu0 %v2430
        %2838 = vmatprep.subr.mxu0 0.0
        %2839 = vmatpush1.msra.mxu0 %v2429
        %2840 = vmatprep.subr.mxu0 0.0
        %2841 = vmatpush1.msra.mxu0 %v2428
        %2842 = vmatprep.subr.mxu0 0.0
        %2843 = vmatpush1.msra.mxu0 %v2427
        %2844 = vmatprep.subr.mxu0 0.0
        %2845 = vmatpush1.msra.mxu0 %v2426
        %2846 = vmatprep.subr.mxu0 0.0
        %2847 = vmatpush1.msra.mxu0 %v2425
        %2848 = vmatprep.subr.mxu0 0.0
        %2849 = vmatpush1.msra.mxu0 %v2424
        %2850 = vmatprep.subr.mxu0 0.0
        %2851 = vmatpush1.msra.mxu0 %v2423
        %2852 = vmatprep.subr.mxu0 0.0
        %2853 = vmatpush1.msra.mxu0 %v2422
        %2854 = vmatprep.subr.mxu0 0.0
        %2855 = vmatpush1.msra.mxu0 %v2421
        %2856 = vmatprep.subr.mxu0 0.0
        %2857 = vmatpush1.msra.mxu0 %v2420
        %2858 = vmatprep.subr.mxu0 0.0
        %2859 = vmatpush1.msra.mxu0 %v2419
        %2860 = vmatprep.subr.mxu0 0.0
        %2861 = vmatpush1.msra.mxu0 %v2418
        %2862 = vmatprep.subr.mxu0 0.0
        %2863 = vmatpush1.msra.mxu0 %v2417
        %2864 = vmatprep.subr.mxu0 0.0
        %2865 = vmatpush2.msra.mxu0 %v2448
        %2866 = vmatprep.subr.mxu0 0.0
        %2867 = vmatpush2.msra.mxu0 %v2447
        %2868 = vmatprep.subr.mxu0 0.0
        %2869 = vmatpush2.msra.mxu0 %v2446
        %2870 = vmatprep.subr.mxu0 0.0
        %2871 = vmatpush2.msra.mxu0 %v2445
        %2872 = vmatprep.subr.mxu0 0.0
        %2873 = vmatpush2.msra.mxu0 %v2444
        %2874 = vmatprep.subr.mxu0 0.0
        %2875 = vmatpush2.msra.mxu0 %v2443
        %2876 = vmatprep.subr.mxu0 0.0
        %2877 = vmatpush2.msra.mxu0 %v2442
        %2878 = vmatprep.subr.mxu0 0.0
        %2879 = vmatpush2.msra.mxu0 %v2441
        %2880 = vmatprep.subr.mxu0 0.0
        %2881 = vmatpush2.msra.mxu0 %v2440
        %2882 = vmatprep.subr.mxu0 0.0
        %2883 = vmatpush2.msra.mxu0 %v2439
        %2884 = vmatprep.subr.mxu0 0.0
        %2885 = vmatpush2.msra.mxu0 %v2438
        %2886 = vmatprep.subr.mxu0 0.0
        %2887 = vmatpush2.msra.mxu0 %v2437
        %2888 = vmatprep.subr.mxu0 0.0
        %2889 = vmatpush2.msra.mxu0 %v2436
        %2890 = vmatprep.subr.mxu0 0.0
        %2891 = vmatpush2.msra.mxu0 %v2435
        %2892 = vmatprep.subr.mxu0 0.0
        %2893 = vmatpush2.msra.mxu0 %v2434
        %2894 = vmatprep.subr.mxu0 0.0
        %2895 = vmatpush2.msra.mxu0 %v2433
        %2896 = vmatprep.mubr.f32.mxu0 %v2282
        %2897 = vmatmul.mubr.f32.gmra.mxu0 %v2281
        %v2898 = vpop.f32.mrf.mxu0
        %v2899 = vadd.f32 %v2829, %v2898
        %v2900 = vpop.f32.mrf.mxu0
        %2901 = vdwg.mxu0
        %2902 = vmatprep.subr.mxu0 0.0
        %2903 = vmatpush1.msra.mxu0 %v2464
        %2904 = vmatprep.subr.mxu0 0.0
        %2905 = vmatpush1.msra.mxu0 %v2463
        %2906 = vmatprep.subr.mxu0 0.0
        %2907 = vmatpush1.msra.mxu0 %v2462
        %2908 = vmatprep.subr.mxu0 0.0
        %2909 = vmatpush1.msra.mxu0 %v2461
        %2910 = vmatprep.subr.mxu0 0.0
        %2911 = vmatpush1.msra.mxu0 %v2460
        %2912 = vmatprep.subr.mxu0 0.0
        %2913 = vmatpush1.msra.mxu0 %v2459
        %2914 = vmatprep.subr.mxu0 0.0
        %2915 = vmatpush1.msra.mxu0 %v2458
        %2916 = vmatprep.subr.mxu0 0.0
        %2917 = vmatpush1.msra.mxu0 %v2457
        %2918 = vmatprep.subr.mxu0 0.0
        %2919 = vmatpush1.msra.mxu0 %v2456
        %2920 = vmatprep.subr.mxu0 0.0
        %2921 = vmatpush1.msra.mxu0 %v2455
        %2922 = vmatprep.subr.mxu0 0.0
        %2923 = vmatpush1.msra.mxu0 %v2454
        %2924 = vmatprep.subr.mxu0 0.0
        %2925 = vmatpush1.msra.mxu0 %v2453
        %2926 = vmatprep.subr.mxu0 0.0
        %2927 = vmatpush1.msra.mxu0 %v2452
        %2928 = vmatprep.subr.mxu0 0.0
        %2929 = vmatpush1.msra.mxu0 %v2451
        %2930 = vmatprep.subr.mxu0 0.0
        %2931 = vmatpush1.msra.mxu0 %v2450
        %2932 = vmatprep.subr.mxu0 0.0
        %2933 = vmatpush1.msra.mxu0 %v2449
        %2934 = vmatprep.subr.mxu0 0.0
        %2935 = vmatpush2.msra.mxu0 %v2480
        %2936 = vmatprep.subr.mxu0 0.0
        %2937 = vmatpush2.msra.mxu0 %v2479
        %2938 = vmatprep.subr.mxu0 0.0
        %2939 = vmatpush2.msra.mxu0 %v2478
        %2940 = vmatprep.subr.mxu0 0.0
        %2941 = vmatpush2.msra.mxu0 %v2477
        %2942 = vmatprep.subr.mxu0 0.0
        %2943 = vmatpush2.msra.mxu0 %v2476
        %2944 = vmatprep.subr.mxu0 0.0
        %2945 = vmatpush2.msra.mxu0 %v2475
        %2946 = vmatprep.subr.mxu0 0.0
        %2947 = vmatpush2.msra.mxu0 %v2474
        %2948 = vmatprep.subr.mxu0 0.0
        %2949 = vmatpush2.msra.mxu0 %v2473
        %2950 = vmatprep.subr.mxu0 0.0
        %2951 = vmatpush2.msra.mxu0 %v2472
        %2952 = vmatprep.subr.mxu0 0.0
        %2953 = vmatpush2.msra.mxu0 %v2471
        %2954 = vmatprep.subr.mxu0 0.0
        %2955 = vmatpush2.msra.mxu0 %v2470
        %2956 = vmatprep.subr.mxu0 0.0
        %2957 = vmatpush2.msra.mxu0 %v2469
        %2958 = vmatprep.subr.mxu0 0.0
        %2959 = vmatpush2.msra.mxu0 %v2468
        %2960 = vmatprep.subr.mxu0 0.0
        %2961 = vmatpush2.msra.mxu0 %v2467
        %2962 = vmatprep.subr.mxu0 0.0
        %2963 = vmatpush2.msra.mxu0 %v2466
        %2964 = vmatprep.subr.mxu0 0.0
        %2965 = vmatpush2.msra.mxu0 %v2465
        %2966 = vmatprep.mubr.f32.mxu0 %v2284
        %2967 = vmatmul.mubr.f32.gmra.mxu0 %v2283
        %v2968 = vpop.f32.mrf.mxu0
        %v2969 = vadd.f32 %v2899, %v2968
        %v2970 = vpop.f32.mrf.mxu0
        %2971 = vdwg.mxu0
        %2972 = vmatprep.subr.mxu0 0.0
        %2973 = vmatpush1.msra.mxu0 %v2496
        %2974 = vmatprep.subr.mxu0 0.0
        %2975 = vmatpush1.msra.mxu0 %v2495
        %2976 = vmatprep.subr.mxu0 0.0
        %2977 = vmatpush1.msra.mxu0 %v2494
        %2978 = vmatprep.subr.mxu0 0.0
        %2979 = vmatpush1.msra.mxu0 %v2493
        %2980 = vmatprep.subr.mxu0 0.0
        %2981 = vmatpush1.msra.mxu0 %v2492
        %2982 = vmatprep.subr.mxu0 0.0
        %2983 = vmatpush1.msra.mxu0 %v2491
        %2984 = vmatprep.subr.mxu0 0.0
        %2985 = vmatpush1.msra.mxu0 %v2490
        %2986 = vmatprep.subr.mxu0 0.0
        %2987 = vmatpush1.msra.mxu0 %v2489
        %2988 = vmatprep.subr.mxu0 0.0
        %2989 = vmatpush1.msra.mxu0 %v2488
        %2990 = vmatprep.subr.mxu0 0.0
        %2991 = vmatpush1.msra.mxu0 %v2487
        %2992 = vmatprep.subr.mxu0 0.0
        %2993 = vmatpush1.msra.mxu0 %v2486
        %2994 = vmatprep.subr.mxu0 0.0
        %2995 = vmatpush1.msra.mxu0 %v2485
        %2996 = vmatprep.subr.mxu0 0.0
        %2997 = vmatpush1.msra.mxu0 %v2484
        %2998 = vmatprep.subr.mxu0 0.0
        %2999 = vmatpush1.msra.mxu0 %v2483
        %3000 = vmatprep.subr.mxu0 0.0
        %3001 = vmatpush1.msra.mxu0 %v2482
        %3002 = vmatprep.subr.mxu0 0.0
        %3003 = vmatpush1.msra.mxu0 %v2481
        %3004 = vmatprep.subr.mxu0 0.0
        %3005 = vmatpush2.msra.mxu0 %v2512
        %3006 = vmatprep.subr.mxu0 0.0
        %3007 = vmatpush2.msra.mxu0 %v2511
        %3008 = vmatprep.subr.mxu0 0.0
        %3009 = vmatpush2.msra.mxu0 %v2510
        %3010 = vmatprep.subr.mxu0 0.0
        %3011 = vmatpush2.msra.mxu0 %v2509
        %3012 = vmatprep.subr.mxu0 0.0
        %3013 = vmatpush2.msra.mxu0 %v2508
        %3014 = vmatprep.subr.mxu0 0.0
        %3015 = vmatpush2.msra.mxu0 %v2507
        %3016 = vmatprep.subr.mxu0 0.0
        %3017 = vmatpush2.msra.mxu0 %v2506
        %3018 = vmatprep.subr.mxu0 0.0
        %3019 = vmatpush2.msra.mxu0 %v2505
        %3020 = vmatprep.subr.mxu0 0.0
        %3021 = vmatpush2.msra.mxu0 %v2504
        %3022 = vmatprep.subr.mxu0 0.0
        %3023 = vmatpush2.msra.mxu0 %v2503
        %3024 = vmatprep.subr.mxu0 0.0
        %3025 = vmatpush2.msra.mxu0 %v2502
        %3026 = vmatprep.subr.mxu0 0.0
        %3027 = vmatpush2.msra.mxu0 %v2501
        %3028 = vmatprep.subr.mxu0 0.0
        %3029 = vmatpush2.msra.mxu0 %v2500
        %3030 = vmatprep.subr.mxu0 0.0
        %3031 = vmatpush2.msra.mxu0 %v2499
        %3032 = vmatprep.subr.mxu0 0.0
        %3033 = vmatpush2.msra.mxu0 %v2498
        %3034 = vmatprep.subr.mxu0 0.0
        %3035 = vmatpush2.msra.mxu0 %v2497
        %3036 = vmatprep.mubr.f32.mxu0 %v2286
        %3037 = vmatmul.mubr.f32.gmra.mxu0 %v2285
        %v3038 = vpop.f32.mrf.mxu0
        %v3039 = vadd.f32 %v2969, %v3038
        %v3040 = vpop.f32.mrf.mxu0
        %3041 = vdwg.mxu0
        %3042 = vmatprep.subr.mxu0 0.0
        %3043 = vmatpush1.msra.mxu0 %v2528
        %3044 = vmatprep.subr.mxu0 0.0
        %3045 = vmatpush1.msra.mxu0 %v2527
        %3046 = vmatprep.subr.mxu0 0.0
        %3047 = vmatpush1.msra.mxu0 %v2526
        %3048 = vmatprep.subr.mxu0 0.0
        %3049 = vmatpush1.msra.mxu0 %v2525
        %3050 = vmatprep.subr.mxu0 0.0
        %3051 = vmatpush1.msra.mxu0 %v2524
        %3052 = vmatprep.subr.mxu0 0.0
        %3053 = vmatpush1.msra.mxu0 %v2523
        %3054 = vmatprep.subr.mxu0 0.0
        %3055 = vmatpush1.msra.mxu0 %v2522
        %3056 = vmatprep.subr.mxu0 0.0
        %3057 = vmatpush1.msra.mxu0 %v2521
        %3058 = vmatprep.subr.mxu0 0.0
        %3059 = vmatpush1.msra.mxu0 %v2520
        %3060 = vmatprep.subr.mxu0 0.0
        %3061 = vmatpush1.msra.mxu0 %v2519
        %3062 = vmatprep.subr.mxu0 0.0
        %3063 = vmatpush1.msra.mxu0 %v2518
        %3064 = vmatprep.subr.mxu0 0.0
        %3065 = vmatpush1.msra.mxu0 %v2517
        %3066 = vmatprep.subr.mxu0 0.0
        %3067 = vmatpush1.msra.mxu0 %v2516
        %3068 = vmatprep.subr.mxu0 0.0
        %3069 = vmatpush1.msra.mxu0 %v2515
        %3070 = vmatprep.subr.mxu0 0.0
        %3071 = vmatpush1.msra.mxu0 %v2514
        %3072 = vmatprep.subr.mxu0 0.0
        %3073 = vmatpush1.msra.mxu0 %v2513
        %3074 = vmatprep.subr.mxu0 0.0
        %3075 = vmatpush2.msra.mxu0 %v2544
        %3076 = vmatprep.subr.mxu0 0.0
        %3077 = vmatpush2.msra.mxu0 %v2543
        %3078 = vmatprep.subr.mxu0 0.0
        %3079 = vmatpush2.msra.mxu0 %v2542
        %3080 = vmatprep.subr.mxu0 0.0
        %3081 = vmatpush2.msra.mxu0 %v2541
        %3082 = vmatprep.subr.mxu0 0.0
        %3083 = vmatpush2.msra.mxu0 %v2540
        %3084 = vmatprep.subr.mxu0 0.0
        %3085 = vmatpush2.msra.mxu0 %v2539
        %3086 = vmatprep.subr.mxu0 0.0
        %3087 = vmatpush2.msra.mxu0 %v2538
        %3088 = vmatprep.subr.mxu0 0.0
        %3089 = vmatpush2.msra.mxu0 %v2537
        %3090 = vmatprep.subr.mxu0 0.0
        %3091 = vmatpush2.msra.mxu0 %v2536
        %3092 = vmatprep.subr.mxu0 0.0
        %3093 = vmatpush2.msra.mxu0 %v2535
        %3094 = vmatprep.subr.mxu0 0.0
        %3095 = vmatpush2.msra.mxu0 %v2534
        %3096 = vmatprep.subr.mxu0 0.0
        %3097 = vmatpush2.msra.mxu0 %v2533
        %3098 = vmatprep.subr.mxu0 0.0
        %3099 = vmatpush2.msra.mxu0 %v2532
        %3100 = vmatprep.subr.mxu0 0.0
        %3101 = vmatpush2.msra.mxu0 %v2531
        %3102 = vmatprep.subr.mxu0 0.0
        %3103 = vmatpush2.msra.mxu0 %v2530
        %3104 = vmatprep.subr.mxu0 0.0
        %3105 = vmatpush2.msra.mxu0 %v2529
        %3106 = vmatprep.mubr.f32.mxu0 %v2288
        %3107 = vmatmul.mubr.f32.gmra.mxu0 %v2287
        %v3108 = vpop.f32.mrf.mxu0
        %v3109 = vadd.f32 %v3039, %v3108
        %v3110 = vpop.f32.mrf.mxu0
        %3111 = vdwg.mxu0
        %v3112 = vadd.f32 %v1489, %v3109
        %v3113 = vld [vmem:[%s9] sm:$0x1]
        %v3114 = vld [vmem:[%s10] sm:$0x1]
        %v3115 = vsel %vm621, %v3112, 0.0
        %3116 = vadd.xlane.f32.xlu0 %v3115
        %v3117 = vpop.xlane.xlu0 %3116
        %v3118 = vmul.f32 %v3117, %v1465
        %v3119 = vsub.f32 %v3112, %v3118
        %v3120 = vmul.f32 %v3119, %v3119
        %v3121 = vsel %vm621, %v3120, 0.0
        %3122 = vadd.xlane.f32.xlu0 %v3121
        %v3123 = vpop.xlane.xlu0 %3122
        %v3124 = vmul.f32 %v3123, %v1465
        %v3125 = vadd.f32 %v3124, 1e-05
        %v3126 = vrsqrt.pop %v3125
        %v3127 = vmul.f32 %v3119, %v3126
        %v3129 = vlaneseq
        %v3130 = vshrl.u32 %v3129, 7
        %v3131 = vsub.s32 0, %v3130
        %v3132 = vrot.slane %v3113, %v3131
        %v3134 = vmul.f32 %v3127, %v3132
        %v3136 = vlaneseq
        %v3137 = vshrl.u32 %v3136, 7
        %v3138 = vsub.s32 0, %v3137
        %v3139 = vrot.slane %v3114, %v3138
        %v3141 = vadd.f32 %v3134, %v3139
        %s3142 = scalar_lea.vmem %s3, 128
        %v3143 = vld [vmem:[%s3142] sm:$0xff]
        %v3144 = vld [vmem:[%s3142 + $0x8] sm:$0xff]
        %v3145 = vld [vmem:[%s3142 + $0x10] sm:$0xff]
        %v3146 = vld [vmem:[%s3142 + $0x18] sm:$0xff]
        %v3147 = vld [vmem:[%s3142 + $0x20] sm:$0xff]
        %v3148 = vld [vmem:[%s3142 + $0x28] sm:$0xff]
        %v3149 = vld [vmem:[%s3142 + $0x30] sm:$0xff]
        %v3150 = vld [vmem:[%s3142 + $0x38] sm:$0xff]
        %v3151 = vld [vmem:[%s3142 + $0x40] sm:$0xff]
        %v3152 = vld [vmem:[%s3142 + $0x48] sm:$0xff]
        %v3153 = vld [vmem:[%s3142 + $0x50] sm:$0xff]
        %v3154 = vld [vmem:[%s3142 + $0x58] sm:$0xff]
        %v3155 = vld [vmem:[%s3142 + $0x60] sm:$0xff]
        %v3156 = vld [vmem:[%s3142 + $0x68] sm:$0xff]
        %v3157 = vld [vmem:[%s3142 + $0x70] sm:$0xff]
        %v3158 = vld [vmem:[%s3142 + $0x78] sm:$0xff]
        %s3159 = scalar_lea.vmem %s4, 2
        %v3160 = vld [vmem:[%s3159] sm:$0x3]
        %v3162 = vlaneseq
        %v3163 = vshrl.u32 %v3162, 7
        %v3164 = vsub.s32 0, %v3163
        %v3165 = vrot.slane %v3160, %v3164
        %v3166 = vlaneseq
        %v3167 = vshrl.u32 %v3166, 7
        %v3168 = vsub.s32 1, %v3167
        %v3169 = vrot.slane %v3160, %v3168
        %v3173 = vsel %vm621, %v3141, 0
        %3175 = vmatprep.subr.mxu0 0.0
        %3176 = vmatpush1.msra.mxu0 0.0
        %3177 = vmatprep.subr.mxu0 0.0
        %3178 = vmatpush1.msra.mxu0 0.0
        %3179 = vmatprep.subr.mxu0 0.0
        %3180 = vmatpush1.msra.mxu0 0.0
        %3181 = vmatprep.subr.mxu0 0.0
        %3182 = vmatpush1.msra.mxu0 0.0
        %3183 = vmatprep.subr.mxu0 0.0
        %3184 = vmatpush1.msra.mxu0 0.0
        %3185 = vmatprep.subr.mxu0 0.0
        %3186 = vmatpush1.msra.mxu0 0.0
        %3187 = vmatprep.subr.mxu0 0.0
        %3188 = vmatpush1.msra.mxu0 0.0
        %3189 = vmatprep.subr.mxu0 0.0
        %3190 = vmatpush1.msra.mxu0 0.0
        %3191 = vmatprep.subr.mxu0 %v3158
        %3192 = vmatpush1.msra.mxu0 %v3157
        %3193 = vmatprep.subr.mxu0 %v3156
        %3194 = vmatpush1.msra.mxu0 %v3155
        %3195 = vmatprep.subr.mxu0 %v3154
        %3196 = vmatpush1.msra.mxu0 %v3153
        %3197 = vmatprep.subr.mxu0 %v3152
        %3198 = vmatpush1.msra.mxu0 %v3151
        %3199 = vmatprep.subr.mxu0 %v3150
        %3200 = vmatpush1.msra.mxu0 %v3149
        %3201 = vmatprep.subr.mxu0 %v3148
        %3202 = vmatpush1.msra.mxu0 %v3147
        %3203 = vmatprep.subr.mxu0 %v3146
        %3204 = vmatpush1.msra.mxu0 %v3145
        %3205 = vmatprep.subr.mxu0 %v3144
        %3206 = vmatpush1.msra.mxu0 %v3143
        %3207 = vmatprep.subr.mxu0 0.0
        %3208 = vmatpush2.msra.mxu0 0.0
        %3209 = vmatprep.subr.mxu0 0.0
        %3210 = vmatpush2.msra.mxu0 0.0
        %3211 = vmatprep.subr.mxu0 0.0
        %3212 = vmatpush2.msra.mxu0 0.0
        %3213 = vmatprep.subr.mxu0 0.0
        %3214 = vmatpush2.msra.mxu0 0.0
        %3215 = vmatprep.subr.mxu0 0.0
        %3216 = vmatpush2.msra.mxu0 0.0
        %3217 = vmatprep.subr.mxu0 0.0
        %3218 = vmatpush2.msra.mxu0 0.0
        %3219 = vmatprep.subr.mxu0 0.0
        %3220 = vmatpush2.msra.mxu0 0.0
        %3221 = vmatprep.subr.mxu0 0.0
        %3222 = vmatpush2.msra.mxu0 0.0
        %3223 = vmatprep.subr.mxu0 0.0
        %3224 = vmatpush2.msra.mxu0 0.0
        %3225 = vmatprep.subr.mxu0 0.0
        %3226 = vmatpush2.msra.mxu0 0.0
        %3227 = vmatprep.subr.mxu0 0.0
        %3228 = vmatpush2.msra.mxu0 0.0
        %3229 = vmatprep.subr.mxu0 0.0
        %3230 = vmatpush2.msra.mxu0 0.0
        %3231 = vmatprep.subr.mxu0 0.0
        %3232 = vmatpush2.msra.mxu0 0.0
        %3233 = vmatprep.subr.mxu0 0.0
        %3234 = vmatpush2.msra.mxu0 0.0
        %3235 = vmatprep.subr.mxu0 0.0
        %3236 = vmatpush2.msra.mxu0 0.0
        %3237 = vmatprep.subr.mxu0 0.0
        %3238 = vmatpush2.msra.mxu0 0.0
        %3239 = vmatprep.mubr.f32.mxu0 0.0
        %3240 = vmatmul.mubr.f32.gmra.mxu0 %v3173
        %v3241 = vpop.f32.mrf.mxu0
        %v3242 = vadd.f32 %v3165, %v3241
        %v3243 = vpop.f32.mrf.mxu0
        %v3244 = vadd.f32 %v3169, %v3243
        %3245 = vdwg.mxu0
        %3247 = vrot.lane.b32.xlu0 %v3242, 112
        %v3248 = vpop.permute.xlu0 %3247
        %3249 = vrot.lane.b32.xlu0 %v3242, 96
        %v3250 = vpop.permute.xlu0 %3249
        %3251 = vrot.lane.b32.xlu0 %v3242, 80
        %v3252 = vpop.permute.xlu0 %3251
        %3254 = vrot.lane.b32.xlu0 %v3244, 112
        %v3255 = vpop.permute.xlu0 %3254
        %3257 = vrot.lane.b32.xlu0 %v3244, 96
        %v3258 = vpop.permute.xlu0 %3257
        %3260 = vrot.lane.b32.xlu0 %v3244, 80
        %v3261 = vpop.permute.xlu0 %3260
        %3263 = vrot.lane.b32.xlu0 %v3242, 64
        %v3264 = vpop.permute.xlu0 %3263
        %v3265 = vsel %vm519, %v3242, 0
        %v3267 = vsel %vm519, %v3264, 0
        %3269 = vmatprep.subr.mxu0 0.0
        %3270 = vmatpush1.xpose.msra.mxu0 0.0
        %3271 = vmatprep.subr.mxu0 0.0
        %3272 = vmatpush1.xpose.msra.mxu0 0.0
        %3273 = vmatprep.subr.mxu0 0.0
        %3274 = vmatpush1.xpose.msra.mxu0 0.0
        %3275 = vmatprep.subr.mxu0 0.0
        %3276 = vmatpush1.xpose.msra.mxu0 0.0
        %3277 = vmatprep.subr.mxu0 0.0
        %3278 = vmatpush1.xpose.msra.mxu0 0.0
        %3279 = vmatprep.subr.mxu0 0.0
        %3280 = vmatpush1.xpose.msra.mxu0 0.0
        %3281 = vmatprep.subr.mxu0 0.0
        %3282 = vmatpush1.xpose.msra.mxu0 0.0
        %3283 = vmatprep.subr.mxu0 0.0
        %3284 = vmatpush1.xpose.msra.mxu0 0.0
        %3285 = vmatprep.subr.mxu0 0.0
        %3286 = vmatpush1.xpose.msra.mxu0 0.0
        %3287 = vmatprep.subr.mxu0 0.0
        %3288 = vmatpush1.xpose.msra.mxu0 0.0
        %3289 = vmatprep.subr.mxu0 0.0
        %3290 = vmatpush1.xpose.msra.mxu0 0.0
        %3291 = vmatprep.subr.mxu0 0.0
        %3292 = vmatpush1.xpose.msra.mxu0 0.0
        %3293 = vmatprep.subr.mxu0 0.0
        %3294 = vmatpush1.xpose.msra.mxu0 0.0
        %3295 = vmatprep.subr.mxu0 0.0
        %3296 = vmatpush1.xpose.msra.mxu0 0.0
        %3297 = vmatprep.subr.mxu0 0.0
        %3298 = vmatpush1.xpose.msra.mxu0 0.0
        %3299 = vmatprep.subr.mxu0 0.0
        %3300 = vmatpush1.xpose.msra.mxu0 %v3267
        %3301 = vmatprep.subr.mxu0 0.0
        %3302 = vmatpush2.xpose.msra.mxu0 0.0
        %3303 = vmatprep.subr.mxu0 0.0
        %3304 = vmatpush2.xpose.msra.mxu0 0.0
        %3305 = vmatprep.subr.mxu0 0.0
        %3306 = vmatpush2.xpose.msra.mxu0 0.0
        %3307 = vmatprep.subr.mxu0 0.0
        %3308 = vmatpush2.xpose.msra.mxu0 0.0
        %3309 = vmatprep.subr.mxu0 0.0
        %3310 = vmatpush2.xpose.msra.mxu0 0.0
        %3311 = vmatprep.subr.mxu0 0.0
        %3312 = vmatpush2.xpose.msra.mxu0 0.0
        %3313 = vmatprep.subr.mxu0 0.0
        %3314 = vmatpush2.xpose.msra.mxu0 0.0
        %3315 = vmatprep.subr.mxu0 0.0
        %3316 = vmatpush2.xpose.msra.mxu0 0.0
        %3317 = vmatprep.subr.mxu0 0.0
        %3318 = vmatpush2.xpose.msra.mxu0 0.0
        %3319 = vmatprep.subr.mxu0 0.0
        %3320 = vmatpush2.xpose.msra.mxu0 0.0
        %3321 = vmatprep.subr.mxu0 0.0
        %3322 = vmatpush2.xpose.msra.mxu0 0.0
        %3323 = vmatprep.subr.mxu0 0.0
        %3324 = vmatpush2.xpose.msra.mxu0 0.0
        %3325 = vmatprep.subr.mxu0 0.0
        %3326 = vmatpush2.xpose.msra.mxu0 0.0
        %3327 = vmatprep.subr.mxu0 0.0
        %3328 = vmatpush2.xpose.msra.mxu0 0.0
        %3329 = vmatprep.subr.mxu0 0.0
        %3330 = vmatpush2.xpose.msra.mxu0 0.0
        %3331 = vmatprep.subr.mxu0 0.0
        %3332 = vmatpush2.xpose.msra.mxu0 0.0
        %3333 = vmatprep.mubr.f32.mxu0 0.0
        %3334 = vmatmul.mubr.f32.gmra.mxu0 %v3265
        %v3335 = vpop.f32.mrf.mxu0
        %v3336 = vadd.f32 0.0, %v3335
        %v3337 = vpop.f32.mrf.mxu0
        %3338 = vdwg.mxu0
        %3339 = vrot.lane.b32.xlu0 %v3248, 64
        %v3340 = vpop.permute.xlu0 %3339
        %v3341 = vsel %vm519, %v3248, 0
        %v3343 = vsel %vm519, %v3340, 0
        %3345 = vmatprep.subr.mxu0 0.0
        %3346 = vmatpush1.xpose.msra.mxu0 0.0
        %3347 = vmatprep.subr.mxu0 0.0
        %3348 = vmatpush1.xpose.msra.mxu0 0.0
        %3349 = vmatprep.subr.mxu0 0.0
        %3350 = vmatpush1.xpose.msra.mxu0 0.0
        %3351 = vmatprep.subr.mxu0 0.0
        %3352 = vmatpush1.xpose.msra.mxu0 0.0
        %3353 = vmatprep.subr.mxu0 0.0
        %3354 = vmatpush1.xpose.msra.mxu0 0.0
        %3355 = vmatprep.subr.mxu0 0.0
        %3356 = vmatpush1.xpose.msra.mxu0 0.0
        %3357 = vmatprep.subr.mxu0 0.0
        %3358 = vmatpush1.xpose.msra.mxu0 0.0
        %3359 = vmatprep.subr.mxu0 0.0
        %3360 = vmatpush1.xpose.msra.mxu0 0.0
        %3361 = vmatprep.subr.mxu0 0.0
        %3362 = vmatpush1.xpose.msra.mxu0 0.0
        %3363 = vmatprep.subr.mxu0 0.0
        %3364 = vmatpush1.xpose.msra.mxu0 0.0
        %3365 = vmatprep.subr.mxu0 0.0
        %3366 = vmatpush1.xpose.msra.mxu0 0.0
        %3367 = vmatprep.subr.mxu0 0.0
        %3368 = vmatpush1.xpose.msra.mxu0 0.0
        %3369 = vmatprep.subr.mxu0 0.0
        %3370 = vmatpush1.xpose.msra.mxu0 0.0
        %3371 = vmatprep.subr.mxu0 0.0
        %3372 = vmatpush1.xpose.msra.mxu0 0.0
        %3373 = vmatprep.subr.mxu0 0.0
        %3374 = vmatpush1.xpose.msra.mxu0 0.0
        %3375 = vmatprep.subr.mxu0 0.0
        %3376 = vmatpush1.xpose.msra.mxu0 %v3343
        %3377 = vmatprep.subr.mxu0 0.0
        %3378 = vmatpush2.xpose.msra.mxu0 0.0
        %3379 = vmatprep.subr.mxu0 0.0
        %3380 = vmatpush2.xpose.msra.mxu0 0.0
        %3381 = vmatprep.subr.mxu0 0.0
        %3382 = vmatpush2.xpose.msra.mxu0 0.0
        %3383 = vmatprep.subr.mxu0 0.0
        %3384 = vmatpush2.xpose.msra.mxu0 0.0
        %3385 = vmatprep.subr.mxu0 0.0
        %3386 = vmatpush2.xpose.msra.mxu0 0.0
        %3387 = vmatprep.subr.mxu0 0.0
        %3388 = vmatpush2.xpose.msra.mxu0 0.0
        %3389 = vmatprep.subr.mxu0 0.0
        %3390 = vmatpush2.xpose.msra.mxu0 0.0
        %3391 = vmatprep.subr.mxu0 0.0
        %3392 = vmatpush2.xpose.msra.mxu0 0.0
        %3393 = vmatprep.subr.mxu0 0.0
        %3394 = vmatpush2.xpose.msra.mxu0 0.0
        %3395 = vmatprep.subr.mxu0 0.0
        %3396 = vmatpush2.xpose.msra.mxu0 0.0
        %3397 = vmatprep.subr.mxu0 0.0
        %3398 = vmatpush2.xpose.msra.mxu0 0.0
        %3399 = vmatprep.subr.mxu0 0.0
        %3400 = vmatpush2.xpose.msra.mxu0 0.0
        %3401 = vmatprep.subr.mxu0 0.0
        %3402 = vmatpush2.xpose.msra.mxu0 0.0
        %3403 = vmatprep.subr.mxu0 0.0
        %3404 = vmatpush2.xpose.msra.mxu0 0.0
        %3405 = vmatprep.subr.mxu0 0.0
        %3406 = vmatpush2.xpose.msra.mxu0 0.0
        %3407 = vmatprep.subr.mxu0 0.0
        %3408 = vmatpush2.xpose.msra.mxu0 0.0
        %3409 = vmatprep.mubr.f32.mxu0 0.0
        %3410 = vmatmul.mubr.f32.gmra.mxu0 %v3341
        %v3411 = vpop.f32.mrf.mxu0
        %v3412 = vadd.f32 0.0, %v3411
        %v3413 = vpop.f32.mrf.mxu0
        %3414 = vdwg.mxu0
        %3415 = vrot.lane.b32.xlu0 %v3250, 64
        %v3416 = vpop.permute.xlu0 %3415
        %v3417 = vsel %vm519, %v3250, 0
        %v3419 = vsel %vm519, %v3416, 0
        %3421 = vmatprep.subr.mxu0 0.0
        %3422 = vmatpush1.xpose.msra.mxu0 0.0
        %3423 = vmatprep.subr.mxu0 0.0
        %3424 = vmatpush1.xpose.msra.mxu0 0.0
        %3425 = vmatprep.subr.mxu0 0.0
        %3426 = vmatpush1.xpose.msra.mxu0 0.0
        %3427 = vmatprep.subr.mxu0 0.0
        %3428 = vmatpush1.xpose.msra.mxu0 0.0
        %3429 = vmatprep.subr.mxu0 0.0
        %3430 = vmatpush1.xpose.msra.mxu0 0.0
        %3431 = vmatprep.subr.mxu0 0.0
        %3432 = vmatpush1.xpose.msra.mxu0 0.0
        %3433 = vmatprep.subr.mxu0 0.0
        %3434 = vmatpush1.xpose.msra.mxu0 0.0
        %3435 = vmatprep.subr.mxu0 0.0
        %3436 = vmatpush1.xpose.msra.mxu0 0.0
        %3437 = vmatprep.subr.mxu0 0.0
        %3438 = vmatpush1.xpose.msra.mxu0 0.0
        %3439 = vmatprep.subr.mxu0 0.0
        %3440 = vmatpush1.xpose.msra.mxu0 0.0
        %3441 = vmatprep.subr.mxu0 0.0
        %3442 = vmatpush1.xpose.msra.mxu0 0.0
        %3443 = vmatprep.subr.mxu0 0.0
        %3444 = vmatpush1.xpose.msra.mxu0 0.0
        %3445 = vmatprep.subr.mxu0 0.0
        %3446 = vmatpush1.xpose.msra.mxu0 0.0
        %3447 = vmatprep.subr.mxu0 0.0
        %3448 = vmatpush1.xpose.msra.mxu0 0.0
        %3449 = vmatprep.subr.mxu0 0.0
        %3450 = vmatpush1.xpose.msra.mxu0 0.0
        %3451 = vmatprep.subr.mxu0 0.0
        %3452 = vmatpush1.xpose.msra.mxu0 %v3419
        %3453 = vmatprep.subr.mxu0 0.0
        %3454 = vmatpush2.xpose.msra.mxu0 0.0
        %3455 = vmatprep.subr.mxu0 0.0
        %3456 = vmatpush2.xpose.msra.mxu0 0.0
        %3457 = vmatprep.subr.mxu0 0.0
        %3458 = vmatpush2.xpose.msra.mxu0 0.0
        %3459 = vmatprep.subr.mxu0 0.0
        %3460 = vmatpush2.xpose.msra.mxu0 0.0
        %3461 = vmatprep.subr.mxu0 0.0
        %3462 = vmatpush2.xpose.msra.mxu0 0.0
        %3463 = vmatprep.subr.mxu0 0.0
        %3464 = vmatpush2.xpose.msra.mxu0 0.0
        %3465 = vmatprep.subr.mxu0 0.0
        %3466 = vmatpush2.xpose.msra.mxu0 0.0
        %3467 = vmatprep.subr.mxu0 0.0
        %3468 = vmatpush2.xpose.msra.mxu0 0.0
        %3469 = vmatprep.subr.mxu0 0.0
        %3470 = vmatpush2.xpose.msra.mxu0 0.0
        %3471 = vmatprep.subr.mxu0 0.0
        %3472 = vmatpush2.xpose.msra.mxu0 0.0
        %3473 = vmatprep.subr.mxu0 0.0
        %3474 = vmatpush2.xpose.msra.mxu0 0.0
        %3475 = vmatprep.subr.mxu0 0.0
        %3476 = vmatpush2.xpose.msra.mxu0 0.0
        %3477 = vmatprep.subr.mxu0 0.0
        %3478 = vmatpush2.xpose.msra.mxu0 0.0
        %3479 = vmatprep.subr.mxu0 0.0
        %3480 = vmatpush2.xpose.msra.mxu0 0.0
        %3481 = vmatprep.subr.mxu0 0.0
        %3482 = vmatpush2.xpose.msra.mxu0 0.0
        %3483 = vmatprep.subr.mxu0 0.0
        %3484 = vmatpush2.xpose.msra.mxu0 0.0
        %3485 = vmatprep.mubr.f32.mxu0 0.0
        %3486 = vmatmul.mubr.f32.gmra.mxu0 %v3417
        %v3487 = vpop.f32.mrf.mxu0
        %v3488 = vadd.f32 0.0, %v3487
        %v3489 = vpop.f32.mrf.mxu0
        %3490 = vdwg.mxu0
        %3491 = vrot.lane.b32.xlu0 %v3252, 64
        %v3492 = vpop.permute.xlu0 %3491
        %v3493 = vsel %vm519, %v3252, 0
        %v3495 = vsel %vm519, %v3492, 0
        %3497 = vmatprep.subr.mxu0 0.0
        %3498 = vmatpush1.xpose.msra.mxu0 0.0
        %3499 = vmatprep.subr.mxu0 0.0
        %3500 = vmatpush1.xpose.msra.mxu0 0.0
        %3501 = vmatprep.subr.mxu0 0.0
        %3502 = vmatpush1.xpose.msra.mxu0 0.0
        %3503 = vmatprep.subr.mxu0 0.0
        %3504 = vmatpush1.xpose.msra.mxu0 0.0
        %3505 = vmatprep.subr.mxu0 0.0
        %3506 = vmatpush1.xpose.msra.mxu0 0.0
        %3507 = vmatprep.subr.mxu0 0.0
        %3508 = vmatpush1.xpose.msra.mxu0 0.0
        %3509 = vmatprep.subr.mxu0 0.0
        %3510 = vmatpush1.xpose.msra.mxu0 0.0
        %3511 = vmatprep.subr.mxu0 0.0
        %3512 = vmatpush1.xpose.msra.mxu0 0.0
        %3513 = vmatprep.subr.mxu0 0.0
        %3514 = vmatpush1.xpose.msra.mxu0 0.0
        %3515 = vmatprep.subr.mxu0 0.0
        %3516 = vmatpush1.xpose.msra.mxu0 0.0
        %3517 = vmatprep.subr.mxu0 0.0
        %3518 = vmatpush1.xpose.msra.mxu0 0.0
        %3519 = vmatprep.subr.mxu0 0.0
        %3520 = vmatpush1.xpose.msra.mxu0 0.0
        %3521 = vmatprep.subr.mxu0 0.0
        %3522 = vmatpush1.xpose.msra.mxu0 0.0
        %3523 = vmatprep.subr.mxu0 0.0
        %3524 = vmatpush1.xpose.msra.mxu0 0.0
        %3525 = vmatprep.subr.mxu0 0.0
        %3526 = vmatpush1.xpose.msra.mxu0 0.0
        %3527 = vmatprep.subr.mxu0 0.0
        %3528 = vmatpush1.xpose.msra.mxu0 %v3495
        %3529 = vmatprep.subr.mxu0 0.0
        %3530 = vmatpush2.xpose.msra.mxu0 0.0
        %3531 = vmatprep.subr.mxu0 0.0
        %3532 = vmatpush2.xpose.msra.mxu0 0.0
        %3533 = vmatprep.subr.mxu0 0.0
        %3534 = vmatpush2.xpose.msra.mxu0 0.0
        %3535 = vmatprep.subr.mxu0 0.0
        %3536 = vmatpush2.xpose.msra.mxu0 0.0
        %3537 = vmatprep.subr.mxu0 0.0
        %3538 = vmatpush2.xpose.msra.mxu0 0.0
        %3539 = vmatprep.subr.mxu0 0.0
        %3540 = vmatpush2.xpose.msra.mxu0 0.0
        %3541 = vmatprep.subr.mxu0 0.0
        %3542 = vmatpush2.xpose.msra.mxu0 0.0
        %3543 = vmatprep.subr.mxu0 0.0
        %3544 = vmatpush2.xpose.msra.mxu0 0.0
        %3545 = vmatprep.subr.mxu0 0.0
        %3546 = vmatpush2.xpose.msra.mxu0 0.0
        %3547 = vmatprep.subr.mxu0 0.0
        %3548 = vmatpush2.xpose.msra.mxu0 0.0
        %3549 = vmatprep.subr.mxu0 0.0
        %3550 = vmatpush2.xpose.msra.mxu0 0.0
        %3551 = vmatprep.subr.mxu0 0.0
        %3552 = vmatpush2.xpose.msra.mxu0 0.0
        %3553 = vmatprep.subr.mxu0 0.0
        %3554 = vmatpush2.xpose.msra.mxu0 0.0
        %3555 = vmatprep.subr.mxu0 0.0
        %3556 = vmatpush2.xpose.msra.mxu0 0.0
        %3557 = vmatprep.subr.mxu0 0.0
        %3558 = vmatpush2.xpose.msra.mxu0 0.0
        %3559 = vmatprep.subr.mxu0 0.0
        %3560 = vmatpush2.xpose.msra.mxu0 0.0
        %3561 = vmatprep.mubr.f32.mxu0 0.0
        %3562 = vmatmul.mubr.f32.gmra.mxu0 %v3493
        %v3563 = vpop.f32.mrf.mxu0
        %v3564 = vadd.f32 0.0, %v3563
        %v3565 = vpop.f32.mrf.mxu0
        %3566 = vdwg.mxu0
        %v3567 = vsel %vm1017, %v3336, -inf
        %3568 = vmax.xlane.f32.xlu0 %v3567
        %v3569 = vpop.xlane.xlu0 %3568
        %v3570 = vsel %vm1017, %v3412, -inf
        %3571 = vmax.xlane.f32.xlu0 %v3570
        %v3572 = vpop.xlane.xlu0 %3571
        %v3573 = vsel %vm1017, %v3488, -inf
        %3574 = vmax.xlane.f32.xlu0 %v3573
        %v3575 = vpop.xlane.xlu0 %3574
        %v3576 = vsel %vm1017, %v3564, -inf
        %3577 = vmax.xlane.f32.xlu0 %v3576
        %v3578 = vpop.xlane.xlu0 %3577
        %v3579 = vsub.f32 %v3336, %v3569
        %v3580 = vsub.f32 %v3412, %v3572
        %v3581 = vsub.f32 %v3488, %v3575
        %v3582 = vsub.f32 %v3564, %v3578
        %v3583 = vmul.f32 %v3579, 1.442695
        %v3584 = vpow.pop %v3583
        %v3585 = vmul.f32 %v3580, 1.442695
        %v3586 = vpow.pop %v3585
        %v3587 = vmul.f32 %v3581, 1.442695
        %v3588 = vpow.pop %v3587
        %v3589 = vmul.f32 %v3582, 1.442695
        %v3590 = vpow.pop %v3589
        %v3591 = vsel %vm1017, %v3584, 0.0
        %3592 = vadd.xlane.f32.xlu0 %v3591
        %v3593 = vpop.xlane.xlu0 %3592
        %v3594 = vsel %vm1017, %v3586, 0.0
        %3595 = vadd.xlane.f32.xlu0 %v3594
        %v3596 = vpop.xlane.xlu0 %3595
        %v3597 = vsel %vm1017, %v3588, 0.0
        %3598 = vadd.xlane.f32.xlu0 %v3597
        %v3599 = vpop.xlane.xlu0 %3598
        %v3600 = vsel %vm1017, %v3590, 0.0
        %3601 = vadd.xlane.f32.xlu0 %v3600
        %v3602 = vpop.xlane.xlu0 %3601
        %v3603 = vrcp.pop %v3593
        %v3604 = vmul.f32 %v3584, %v3603
        %v3605 = vrcp.pop %v3596
        %v3606 = vmul.f32 %v3586, %v3605
        %v3607 = vrcp.pop %v3599
        %v3608 = vmul.f32 %v3588, %v3607
        %v3609 = vrcp.pop %v3602
        %v3610 = vmul.f32 %v3590, %v3609
        %v3612 = vsel %vm1017, %v3604, 0
        %3614 = vmatprep.subr.mxu0 0.0
        %3615 = vmatpush1.msra.mxu0 0.0
        %3616 = vmatprep.subr.mxu0 0.0
        %3617 = vmatpush1.msra.mxu0 0.0
        %3618 = vmatprep.subr.mxu0 0.0
        %3619 = vmatpush1.msra.mxu0 0.0
        %3620 = vmatprep.subr.mxu0 0.0
        %3621 = vmatpush1.msra.mxu0 0.0
        %3622 = vmatprep.subr.mxu0 0.0
        %3623 = vmatpush1.msra.mxu0 0.0
        %3624 = vmatprep.subr.mxu0 0.0
        %3625 = vmatpush1.msra.mxu0 0.0
        %3626 = vmatprep.subr.mxu0 0.0
        %3627 = vmatpush1.msra.mxu0 0.0
        %3628 = vmatprep.subr.mxu0 0.0
        %3629 = vmatpush1.msra.mxu0 0.0
        %3630 = vmatprep.subr.mxu0 0.0
        %3631 = vmatpush1.msra.mxu0 0.0
        %3632 = vmatprep.subr.mxu0 0.0
        %3633 = vmatpush1.msra.mxu0 0.0
        %3634 = vmatprep.subr.mxu0 0.0
        %3635 = vmatpush1.msra.mxu0 0.0
        %3636 = vmatprep.subr.mxu0 0.0
        %3637 = vmatpush1.msra.mxu0 0.0
        %3638 = vmatprep.subr.mxu0 0.0
        %3639 = vmatpush1.msra.mxu0 0.0
        %3640 = vmatprep.subr.mxu0 0.0
        %3641 = vmatpush1.msra.mxu0 0.0
        %3642 = vmatprep.subr.mxu0 0.0
        %3643 = vmatpush1.msra.mxu0 0.0
        %3644 = vmatprep.subr.mxu0 0.0
        %3645 = vmatpush1.msra.mxu0 %v3244
        %3646 = vmatprep.subr.mxu0 0.0
        %3647 = vmatpush2.msra.mxu0 0.0
        %3648 = vmatprep.subr.mxu0 0.0
        %3649 = vmatpush2.msra.mxu0 0.0
        %3650 = vmatprep.subr.mxu0 0.0
        %3651 = vmatpush2.msra.mxu0 0.0
        %3652 = vmatprep.subr.mxu0 0.0
        %3653 = vmatpush2.msra.mxu0 0.0
        %3654 = vmatprep.subr.mxu0 0.0
        %3655 = vmatpush2.msra.mxu0 0.0
        %3656 = vmatprep.subr.mxu0 0.0
        %3657 = vmatpush2.msra.mxu0 0.0
        %3658 = vmatprep.subr.mxu0 0.0
        %3659 = vmatpush2.msra.mxu0 0.0
        %3660 = vmatprep.subr.mxu0 0.0
        %3661 = vmatpush2.msra.mxu0 0.0
        %3662 = vmatprep.subr.mxu0 0.0
        %3663 = vmatpush2.msra.mxu0 0.0
        %3664 = vmatprep.subr.mxu0 0.0
        %3665 = vmatpush2.msra.mxu0 0.0
        %3666 = vmatprep.subr.mxu0 0.0
        %3667 = vmatpush2.msra.mxu0 0.0
        %3668 = vmatprep.subr.mxu0 0.0
        %3669 = vmatpush2.msra.mxu0 0.0
        %3670 = vmatprep.subr.mxu0 0.0
        %3671 = vmatpush2.msra.mxu0 0.0
        %3672 = vmatprep.subr.mxu0 0.0
        %3673 = vmatpush2.msra.mxu0 0.0
        %3674 = vmatprep.subr.mxu0 0.0
        %3675 = vmatpush2.msra.mxu0 0.0
        %3676 = vmatprep.subr.mxu0 0.0
        %3677 = vmatpush2.msra.mxu0 0.0
        %3678 = vmatprep.mubr.f32.mxu0 0.0
        %3679 = vmatmul.mubr.f32.gmra.mxu0 %v3612
        %v3680 = vpop.f32.mrf.mxu0
        %v3681 = vadd.f32 0.0, %v3680
        %v3682 = vpop.f32.mrf.mxu0
        %3683 = vdwg.mxu0
        %v3685 = vsel %vm1017, %v3606, 0
        %3687 = vmatprep.subr.mxu0 0.0
        %3688 = vmatpush1.msra.mxu0 0.0
        %3689 = vmatprep.subr.mxu0 0.0
        %3690 = vmatpush1.msra.mxu0 0.0
        %3691 = vmatprep.subr.mxu0 0.0
        %3692 = vmatpush1.msra.mxu0 0.0
        %3693 = vmatprep.subr.mxu0 0.0
        %3694 = vmatpush1.msra.mxu0 0.0
        %3695 = vmatprep.subr.mxu0 0.0
        %3696 = vmatpush1.msra.mxu0 0.0
        %3697 = vmatprep.subr.mxu0 0.0
        %3698 = vmatpush1.msra.mxu0 0.0
        %3699 = vmatprep.subr.mxu0 0.0
        %3700 = vmatpush1.msra.mxu0 0.0
        %3701 = vmatprep.subr.mxu0 0.0
        %3702 = vmatpush1.msra.mxu0 0.0
        %3703 = vmatprep.subr.mxu0 0.0
        %3704 = vmatpush1.msra.mxu0 0.0
        %3705 = vmatprep.subr.mxu0 0.0
        %3706 = vmatpush1.msra.mxu0 0.0
        %3707 = vmatprep.subr.mxu0 0.0
        %3708 = vmatpush1.msra.mxu0 0.0
        %3709 = vmatprep.subr.mxu0 0.0
        %3710 = vmatpush1.msra.mxu0 0.0
        %3711 = vmatprep.subr.mxu0 0.0
        %3712 = vmatpush1.msra.mxu0 0.0
        %3713 = vmatprep.subr.mxu0 0.0
        %3714 = vmatpush1.msra.mxu0 0.0
        %3715 = vmatprep.subr.mxu0 0.0
        %3716 = vmatpush1.msra.mxu0 0.0
        %3717 = vmatprep.subr.mxu0 0.0
        %3718 = vmatpush1.msra.mxu0 %v3255
        %3719 = vmatprep.subr.mxu0 0.0
        %3720 = vmatpush2.msra.mxu0 0.0
        %3721 = vmatprep.subr.mxu0 0.0
        %3722 = vmatpush2.msra.mxu0 0.0
        %3723 = vmatprep.subr.mxu0 0.0
        %3724 = vmatpush2.msra.mxu0 0.0
        %3725 = vmatprep.subr.mxu0 0.0
        %3726 = vmatpush2.msra.mxu0 0.0
        %3727 = vmatprep.subr.mxu0 0.0
        %3728 = vmatpush2.msra.mxu0 0.0
        %3729 = vmatprep.subr.mxu0 0.0
        %3730 = vmatpush2.msra.mxu0 0.0
        %3731 = vmatprep.subr.mxu0 0.0
        %3732 = vmatpush2.msra.mxu0 0.0
        %3733 = vmatprep.subr.mxu0 0.0
        %3734 = vmatpush2.msra.mxu0 0.0
        %3735 = vmatprep.subr.mxu0 0.0
        %3736 = vmatpush2.msra.mxu0 0.0
        %3737 = vmatprep.subr.mxu0 0.0
        %3738 = vmatpush2.msra.mxu0 0.0
        %3739 = vmatprep.subr.mxu0 0.0
        %3740 = vmatpush2.msra.mxu0 0.0
        %3741 = vmatprep.subr.mxu0 0.0
        %3742 = vmatpush2.msra.mxu0 0.0
        %3743 = vmatprep.subr.mxu0 0.0
        %3744 = vmatpush2.msra.mxu0 0.0
        %3745 = vmatprep.subr.mxu0 0.0
        %3746 = vmatpush2.msra.mxu0 0.0
        %3747 = vmatprep.subr.mxu0 0.0
        %3748 = vmatpush2.msra.mxu0 0.0
        %3749 = vmatprep.subr.mxu0 0.0
        %3750 = vmatpush2.msra.mxu0 0.0
        %3751 = vmatprep.mubr.f32.mxu0 0.0
        %3752 = vmatmul.mubr.f32.gmra.mxu0 %v3685
        %v3753 = vpop.f32.mrf.mxu0
        %v3754 = vadd.f32 0.0, %v3753
        %v3755 = vpop.f32.mrf.mxu0
        %3756 = vdwg.mxu0
        %v3758 = vsel %vm1017, %v3608, 0
        %3760 = vmatprep.subr.mxu0 0.0
        %3761 = vmatpush1.msra.mxu0 0.0
        %3762 = vmatprep.subr.mxu0 0.0
        %3763 = vmatpush1.msra.mxu0 0.0
        %3764 = vmatprep.subr.mxu0 0.0
        %3765 = vmatpush1.msra.mxu0 0.0
        %3766 = vmatprep.subr.mxu0 0.0
        %3767 = vmatpush1.msra.mxu0 0.0
        %3768 = vmatprep.subr.mxu0 0.0
        %3769 = vmatpush1.msra.mxu0 0.0
        %3770 = vmatprep.subr.mxu0 0.0
        %3771 = vmatpush1.msra.mxu0 0.0
        %3772 = vmatprep.subr.mxu0 0.0
        %3773 = vmatpush1.msra.mxu0 0.0
        %3774 = vmatprep.subr.mxu0 0.0
        %3775 = vmatpush1.msra.mxu0 0.0
        %3776 = vmatprep.subr.mxu0 0.0
        %3777 = vmatpush1.msra.mxu0 0.0
        %3778 = vmatprep.subr.mxu0 0.0
        %3779 = vmatpush1.msra.mxu0 0.0
        %3780 = vmatprep.subr.mxu0 0.0
        %3781 = vmatpush1.msra.mxu0 0.0
        %3782 = vmatprep.subr.mxu0 0.0
        %3783 = vmatpush1.msra.mxu0 0.0
        %3784 = vmatprep.subr.mxu0 0.0
        %3785 = vmatpush1.msra.mxu0 0.0
        %3786 = vmatprep.subr.mxu0 0.0
        %3787 = vmatpush1.msra.mxu0 0.0
        %3788 = vmatprep.subr.mxu0 0.0
        %3789 = vmatpush1.msra.mxu0 0.0
        %3790 = vmatprep.subr.mxu0 0.0
        %3791 = vmatpush1.msra.mxu0 %v3258
        %3792 = vmatprep.subr.mxu0 0.0
        %3793 = vmatpush2.msra.mxu0 0.0
        %3794 = vmatprep.subr.mxu0 0.0
        %3795 = vmatpush2.msra.mxu0 0.0
        %3796 = vmatprep.subr.mxu0 0.0
        %3797 = vmatpush2.msra.mxu0 0.0
        %3798 = vmatprep.subr.mxu0 0.0
        %3799 = vmatpush2.msra.mxu0 0.0
        %3800 = vmatprep.subr.mxu0 0.0
        %3801 = vmatpush2.msra.mxu0 0.0
        %3802 = vmatprep.subr.mxu0 0.0
        %3803 = vmatpush2.msra.mxu0 0.0
        %3804 = vmatprep.subr.mxu0 0.0
        %3805 = vmatpush2.msra.mxu0 0.0
        %3806 = vmatprep.subr.mxu0 0.0
        %3807 = vmatpush2.msra.mxu0 0.0
        %3808 = vmatprep.subr.mxu0 0.0
        %3809 = vmatpush2.msra.mxu0 0.0
        %3810 = vmatprep.subr.mxu0 0.0
        %3811 = vmatpush2.msra.mxu0 0.0
        %3812 = vmatprep.subr.mxu0 0.0
        %3813 = vmatpush2.msra.mxu0 0.0
        %3814 = vmatprep.subr.mxu0 0.0
        %3815 = vmatpush2.msra.mxu0 0.0
        %3816 = vmatprep.subr.mxu0 0.0
        %3817 = vmatpush2.msra.mxu0 0.0
        %3818 = vmatprep.subr.mxu0 0.0
        %3819 = vmatpush2.msra.mxu0 0.0
        %3820 = vmatprep.subr.mxu0 0.0
        %3821 = vmatpush2.msra.mxu0 0.0
        %3822 = vmatprep.subr.mxu0 0.0
        %3823 = vmatpush2.msra.mxu0 0.0
        %3824 = vmatprep.mubr.f32.mxu0 0.0
        %3825 = vmatmul.mubr.f32.gmra.mxu0 %v3758
        %v3826 = vpop.f32.mrf.mxu0
        %v3827 = vadd.f32 0.0, %v3826
        %v3828 = vpop.f32.mrf.mxu0
        %3829 = vdwg.mxu0
        %v3831 = vsel %vm1017, %v3610, 0
        %3833 = vmatprep.subr.mxu0 0.0
        %3834 = vmatpush1.msra.mxu0 0.0
        %3835 = vmatprep.subr.mxu0 0.0
        %3836 = vmatpush1.msra.mxu0 0.0
        %3837 = vmatprep.subr.mxu0 0.0
        %3838 = vmatpush1.msra.mxu0 0.0
        %3839 = vmatprep.subr.mxu0 0.0
        %3840 = vmatpush1.msra.mxu0 0.0
        %3841 = vmatprep.subr.mxu0 0.0
        %3842 = vmatpush1.msra.mxu0 0.0
        %3843 = vmatprep.subr.mxu0 0.0
        %3844 = vmatpush1.msra.mxu0 0.0
        %3845 = vmatprep.subr.mxu0 0.0
        %3846 = vmatpush1.msra.mxu0 0.0
        %3847 = vmatprep.subr.mxu0 0.0
        %3848 = vmatpush1.msra.mxu0 0.0
        %3849 = vmatprep.subr.mxu0 0.0
        %3850 = vmatpush1.msra.mxu0 0.0
        %3851 = vmatprep.subr.mxu0 0.0
        %3852 = vmatpush1.msra.mxu0 0.0
        %3853 = vmatprep.subr.mxu0 0.0
        %3854 = vmatpush1.msra.mxu0 0.0
        %3855 = vmatprep.subr.mxu0 0.0
        %3856 = vmatpush1.msra.mxu0 0.0
        %3857 = vmatprep.subr.mxu0 0.0
        %3858 = vmatpush1.msra.mxu0 0.0
        %3859 = vmatprep.subr.mxu0 0.0
        %3860 = vmatpush1.msra.mxu0 0.0
        %3861 = vmatprep.subr.mxu0 0.0
        %3862 = vmatpush1.msra.mxu0 0.0
        %3863 = vmatprep.subr.mxu0 0.0
        %3864 = vmatpush1.msra.mxu0 %v3261
        %3865 = vmatprep.subr.mxu0 0.0
        %3866 = vmatpush2.msra.mxu0 0.0
        %3867 = vmatprep.subr.mxu0 0.0
        %3868 = vmatpush2.msra.mxu0 0.0
        %3869 = vmatprep.subr.mxu0 0.0
        %3870 = vmatpush2.msra.mxu0 0.0
        %3871 = vmatprep.subr.mxu0 0.0
        %3872 = vmatpush2.msra.mxu0 0.0
        %3873 = vmatprep.subr.mxu0 0.0
        %3874 = vmatpush2.msra.mxu0 0.0
        %3875 = vmatprep.subr.mxu0 0.0
        %3876 = vmatpush2.msra.mxu0 0.0
        %3877 = vmatprep.subr.mxu0 0.0
        %3878 = vmatpush2.msra.mxu0 0.0
        %3879 = vmatprep.subr.mxu0 0.0
        %3880 = vmatpush2.msra.mxu0 0.0
        %3881 = vmatprep.subr.mxu0 0.0
        %3882 = vmatpush2.msra.mxu0 0.0
        %3883 = vmatprep.subr.mxu0 0.0
        %3884 = vmatpush2.msra.mxu0 0.0
        %3885 = vmatprep.subr.mxu0 0.0
        %3886 = vmatpush2.msra.mxu0 0.0
        %3887 = vmatprep.subr.mxu0 0.0
        %3888 = vmatpush2.msra.mxu0 0.0
        %3889 = vmatprep.subr.mxu0 0.0
        %3890 = vmatpush2.msra.mxu0 0.0
        %3891 = vmatprep.subr.mxu0 0.0
        %3892 = vmatpush2.msra.mxu0 0.0
        %3893 = vmatprep.subr.mxu0 0.0
        %3894 = vmatpush2.msra.mxu0 0.0
        %3895 = vmatprep.subr.mxu0 0.0
        %3896 = vmatpush2.msra.mxu0 0.0
        %3897 = vmatprep.mubr.f32.mxu0 0.0
        %3898 = vmatmul.mubr.f32.gmra.mxu0 %v3831
        %v3899 = vpop.f32.mrf.mxu0
        %v3900 = vadd.f32 0.0, %v3899
        %v3901 = vpop.f32.mrf.mxu0
        %3902 = vdwg.mxu0
        %3904 = vrot.lane.b32.xlu0 %v3754, 16
        %v3905 = vpop.permute.xlu0 %3904
        %3908 = vrot.lane.b32.xlu0 %v3827, 32
        %v3909 = vpop.permute.xlu0 %3908
        %3912 = vrot.lane.b32.xlu0 %v3900, 48
        %v3913 = vpop.permute.xlu0 %3912
        %v3915 = vsel %vm519, %v3681, %v3905
        %v3916 = vsel %vm1367, %v3915, %v3909
        %v3917 = vsel %vm1369, %v3916, %v3913
        %s3918 = scalar_lea.vmem %s5, 64
        %v3919 = vld [vmem:[%s3918] sm:$0xff]
        %v3920 = vld [vmem:[%s3918 + $0x8] sm:$0xff]
        %v3921 = vld [vmem:[%s3918 + $0x10] sm:$0xff]
        %v3922 = vld [vmem:[%s3918 + $0x18] sm:$0xff]
        %v3923 = vld [vmem:[%s3918 + $0x20] sm:$0xff]
        %v3924 = vld [vmem:[%s3918 + $0x28] sm:$0xff]
        %v3925 = vld [vmem:[%s3918 + $0x30] sm:$0xff]
        %v3926 = vld [vmem:[%s3918 + $0x38] sm:$0xff]
        %s3927 = scalar_lea.vmem %s6, 1
        %v3928 = vld [vmem:[%s3927] sm:$0x1]
        %v3930 = vlaneseq
        %v3931 = vshrl.u32 %v3930, 7
        %v3932 = vsub.s32 0, %v3931
        %v3933 = vrot.slane %v3928, %v3932
        %v3936 = vsel %vm621, %v3917, 0
        %3938 = vmatprep.subr.mxu0 0.0
        %3939 = vmatpush1.msra.mxu0 0.0
        %3940 = vmatprep.subr.mxu0 0.0
        %3941 = vmatpush1.msra.mxu0 0.0
        %3942 = vmatprep.subr.mxu0 0.0
        %3943 = vmatpush1.msra.mxu0 0.0
        %3944 = vmatprep.subr.mxu0 0.0
        %3945 = vmatpush1.msra.mxu0 0.0
        %3946 = vmatprep.subr.mxu0 0.0
        %3947 = vmatpush1.msra.mxu0 0.0
        %3948 = vmatprep.subr.mxu0 0.0
        %3949 = vmatpush1.msra.mxu0 0.0
        %3950 = vmatprep.subr.mxu0 0.0
        %3951 = vmatpush1.msra.mxu0 0.0
        %3952 = vmatprep.subr.mxu0 0.0
        %3953 = vmatpush1.msra.mxu0 0.0
        %3954 = vmatprep.subr.mxu0 0.0
        %3955 = vmatpush1.msra.mxu0 %v3926
        %3956 = vmatprep.subr.mxu0 0.0
        %3957 = vmatpush1.msra.mxu0 %v3925
        %3958 = vmatprep.subr.mxu0 0.0
        %3959 = vmatpush1.msra.mxu0 %v3924
        %3960 = vmatprep.subr.mxu0 0.0
        %3961 = vmatpush1.msra.mxu0 %v3923
        %3962 = vmatprep.subr.mxu0 0.0
        %3963 = vmatpush1.msra.mxu0 %v3922
        %3964 = vmatprep.subr.mxu0 0.0
        %3965 = vmatpush1.msra.mxu0 %v3921
        %3966 = vmatprep.subr.mxu0 0.0
        %3967 = vmatpush1.msra.mxu0 %v3920
        %3968 = vmatprep.subr.mxu0 0.0
        %3969 = vmatpush1.msra.mxu0 %v3919
        %3970 = vmatprep.subr.mxu0 0.0
        %3971 = vmatpush2.msra.mxu0 0.0
        %3972 = vmatprep.subr.mxu0 0.0
        %3973 = vmatpush2.msra.mxu0 0.0
        %3974 = vmatprep.subr.mxu0 0.0
        %3975 = vmatpush2.msra.mxu0 0.0
        %3976 = vmatprep.subr.mxu0 0.0
        %3977 = vmatpush2.msra.mxu0 0.0
        %3978 = vmatprep.subr.mxu0 0.0
        %3979 = vmatpush2.msra.mxu0 0.0
        %3980 = vmatprep.subr.mxu0 0.0
        %3981 = vmatpush2.msra.mxu0 0.0
        %3982 = vmatprep.subr.mxu0 0.0
        %3983 = vmatpush2.msra.mxu0 0.0
        %3984 = vmatprep.subr.mxu0 0.0
        %3985 = vmatpush2.msra.mxu0 0.0
        %3986 = vmatprep.subr.mxu0 0.0
        %3987 = vmatpush2.msra.mxu0 0.0
        %3988 = vmatprep.subr.mxu0 0.0
        %3989 = vmatpush2.msra.mxu0 0.0
        %3990 = vmatprep.subr.mxu0 0.0
        %3991 = vmatpush2.msra.mxu0 0.0
        %3992 = vmatprep.subr.mxu0 0.0
        %3993 = vmatpush2.msra.mxu0 0.0
        %3994 = vmatprep.subr.mxu0 0.0
        %3995 = vmatpush2.msra.mxu0 0.0
        %3996 = vmatprep.subr.mxu0 0.0
        %3997 = vmatpush2.msra.mxu0 0.0
        %3998 = vmatprep.subr.mxu0 0.0
        %3999 = vmatpush2.msra.mxu0 0.0
        %4000 = vmatprep.subr.mxu0 0.0
        %4001 = vmatpush2.msra.mxu0 0.0
        %4002 = vmatprep.mubr.f32.mxu0 0.0
        %4003 = vmatmul.mubr.f32.gmra.mxu0 %v3936
        %v4004 = vpop.f32.mrf.mxu0
        %v4005 = vadd.f32 %v3933, %v4004
        %v4006 = vpop.f32.mrf.mxu0
        %4007 = vdwg.mxu0
        %v4008 = vadd.f32 %v3141, %v4005
        %s4009 = scalar_lea.vmem %s7, 1
        %v4010 = vld [vmem:[%s4009] sm:$0x1]
        %s4011 = scalar_lea.vmem %s8, 1
        %v4012 = vld [vmem:[%s4011] sm:$0x1]
        %v4013 = vsel %vm621, %v4008, 0.0
        %4014 = vadd.xlane.f32.xlu0 %v4013
        %v4015 = vpop.xlane.xlu0 %4014
        %v4016 = vmul.f32 %v4015, %v1465
        %v4017 = vsub.f32 %v4008, %v4016
        %v4018 = vmul.f32 %v4017, %v4017
        %v4019 = vsel %vm621, %v4018, 0.0
        %4020 = vadd.xlane.f32.xlu0 %v4019
        %v4021 = vpop.xlane.xlu0 %4020
        %v4022 = vmul.f32 %v4021, %v1465
        %v4023 = vadd.f32 %v4022, 1e-05
        %v4024 = vrsqrt.pop %v4023
        %v4025 = vmul.f32 %v4017, %v4024
        %v4027 = vlaneseq
        %v4028 = vshrl.u32 %v4027, 7
        %v4029 = vsub.s32 0, %v4028
        %v4030 = vrot.slane %v4010, %v4029
        %v4032 = vmul.f32 %v4025, %v4030
        %v4034 = vlaneseq
        %v4035 = vshrl.u32 %v4034, 7
        %v4036 = vsub.s32 0, %v4035
        %v4037 = vrot.slane %v4012, %v4036
        %v4039 = vadd.f32 %v4032, %v4037
        %s4040 = scalar_lea.vmem %s11, 1024
        %v4041 = vld [vmem:[%s4040] sm:$0xff]
        %v4042 = vld [vmem:[%s4040 + $0x8] sm:$0xff]
        %v4043 = vld [vmem:[%s4040 + $0x10] sm:$0xff]
        %v4044 = vld [vmem:[%s4040 + $0x18] sm:$0xff]
        %v4045 = vld [vmem:[%s4040 + $0x20] sm:$0xff]
        %v4046 = vld [vmem:[%s4040 + $0x28] sm:$0xff]
        %v4047 = vld [vmem:[%s4040 + $0x30] sm:$0xff]
        %v4048 = vld [vmem:[%s4040 + $0x38] sm:$0xff]
        %v4049 = vld [vmem:[%s4040 + $0x40] sm:$0xff]
        %v4050 = vld [vmem:[%s4040 + $0x48] sm:$0xff]
        %v4051 = vld [vmem:[%s4040 + $0x50] sm:$0xff]
        %v4052 = vld [vmem:[%s4040 + $0x58] sm:$0xff]
        %v4053 = vld [vmem:[%s4040 + $0x60] sm:$0xff]
        %v4054 = vld [vmem:[%s4040 + $0x68] sm:$0xff]
        %v4055 = vld [vmem:[%s4040 + $0x70] sm:$0xff]
        %v4056 = vld [vmem:[%s4040 + $0x78] sm:$0xff]
        %v4057 = vld [vmem:[%s4040 + $0x80] sm:$0xff]
        %v4058 = vld [vmem:[%s4040 + $0x88] sm:$0xff]
        %v4059 = vld [vmem:[%s4040 + $0x90] sm:$0xff]
        %v4060 = vld [vmem:[%s4040 + $0x98] sm:$0xff]
        %v4061 = vld [vmem:[%s4040 + $0xa0] sm:$0xff]
        %v4062 = vld [vmem:[%s4040 + $0xa8] sm:$0xff]
        %v4063 = vld [vmem:[%s4040 + $0xb0] sm:$0xff]
        %v4064 = vld [vmem:[%s4040 + $0xb8] sm:$0xff]
        %v4065 = vld [vmem:[%s4040 + $0xc0] sm:$0xff]
        %v4066 = vld [vmem:[%s4040 + $0xc8] sm:$0xff]
        %v4067 = vld [vmem:[%s4040 + $0xd0] sm:$0xff]
        %v4068 = vld [vmem:[%s4040 + $0xd8] sm:$0xff]
        %v4069 = vld [vmem:[%s4040 + $0xe0] sm:$0xff]
        %v4070 = vld [vmem:[%s4040 + $0xe8] sm:$0xff]
        %v4071 = vld [vmem:[%s4040 + $0xf0] sm:$0xff]
        %v4072 = vld [vmem:[%s4040 + $0xf8] sm:$0xff]
        %v4073 = vld [vmem:[%s4040 + $0x100] sm:$0xff]
        %v4074 = vld [vmem:[%s4040 + $0x108] sm:$0xff]
        %v4075 = vld [vmem:[%s4040 + $0x110] sm:$0xff]
        %v4076 = vld [vmem:[%s4040 + $0x118] sm:$0xff]
        %v4077 = vld [vmem:[%s4040 + $0x120] sm:$0xff]
        %v4078 = vld [vmem:[%s4040 + $0x128] sm:$0xff]
        %v4079 = vld [vmem:[%s4040 + $0x130] sm:$0xff]
        %v4080 = vld [vmem:[%s4040 + $0x138] sm:$0xff]
        %v4081 = vld [vmem:[%s4040 + $0x140] sm:$0xff]
        %v4082 = vld [vmem:[%s4040 + $0x148] sm:$0xff]
        %v4083 = vld [vmem:[%s4040 + $0x150] sm:$0xff]
        %v4084 = vld [vmem:[%s4040 + $0x158] sm:$0xff]
        %v4085 = vld [vmem:[%s4040 + $0x160] sm:$0xff]
        %v4086 = vld [vmem:[%s4040 + $0x168] sm:$0xff]
        %v4087 = vld [vmem:[%s4040 + $0x170] sm:$0xff]
        %v4088 = vld [vmem:[%s4040 + $0x178] sm:$0xff]
        %v4089 = vld [vmem:[%s4040 + $0x180] sm:$0xff]
        %v4090 = vld [vmem:[%s4040 + $0x188] sm:$0xff]
        %v4091 = vld [vmem:[%s4040 + $0x190] sm:$0xff]
        %v4092 = vld [vmem:[%s4040 + $0x198] sm:$0xff]
        %v4093 = vld [vmem:[%s4040 + $0x1a0] sm:$0xff]
        %v4094 = vld [vmem:[%s4040 + $0x1a8] sm:$0xff]
        %v4095 = vld [vmem:[%s4040 + $0x1b0] sm:$0xff]
        %v4096 = vld [vmem:[%s4040 + $0x1b8] sm:$0xff]
        %v4097 = vld [vmem:[%s4040 + $0x1c0] sm:$0xff]
        %v4098 = vld [vmem:[%s4040 + $0x1c8] sm:$0xff]
        %v4099 = vld [vmem:[%s4040 + $0x1d0] sm:$0xff]
        %v4100 = vld [vmem:[%s4040 + $0x1d8] sm:$0xff]
        %v4101 = vld [vmem:[%s4040 + $0x1e0] sm:$0xff]
        %v4102 = vld [vmem:[%s4040 + $0x1e8] sm:$0xff]
        %v4103 = vld [vmem:[%s4040 + $0x1f0] sm:$0xff]
        %v4104 = vld [vmem:[%s4040 + $0x1f8] sm:$0xff]
        %v4105 = vld [vmem:[%s4040 + $0x200] sm:$0xff]
        %v4106 = vld [vmem:[%s4040 + $0x208] sm:$0xff]
        %v4107 = vld [vmem:[%s4040 + $0x210] sm:$0xff]
        %v4108 = vld [vmem:[%s4040 + $0x218] sm:$0xff]
        %v4109 = vld [vmem:[%s4040 + $0x220] sm:$0xff]
        %v4110 = vld [vmem:[%s4040 + $0x228] sm:$0xff]
        %v4111 = vld [vmem:[%s4040 + $0x230] sm:$0xff]
        %v4112 = vld [vmem:[%s4040 + $0x238] sm:$0xff]
        %v4113 = vld [vmem:[%s4040 + $0x240] sm:$0xff]
        %v4114 = vld [vmem:[%s4040 + $0x248] sm:$0xff]
        %v4115 = vld [vmem:[%s4040 + $0x250] sm:$0xff]
        %v4116 = vld [vmem:[%s4040 + $0x258] sm:$0xff]
        %v4117 = vld [vmem:[%s4040 + $0x260] sm:$0xff]
        %v4118 = vld [vmem:[%s4040 + $0x268] sm:$0xff]
        %v4119 = vld [vmem:[%s4040 + $0x270] sm:$0xff]
        %v4120 = vld [vmem:[%s4040 + $0x278] sm:$0xff]
        %v4121 = vld [vmem:[%s4040 + $0x280] sm:$0xff]
        %v4122 = vld [vmem:[%s4040 + $0x288] sm:$0xff]
        %v4123 = vld [vmem:[%s4040 + $0x290] sm:$0xff]
        %v4124 = vld [vmem:[%s4040 + $0x298] sm:$0xff]
        %v4125 = vld [vmem:[%s4040 + $0x2a0] sm:$0xff]
        %v4126 = vld [vmem:[%s4040 + $0x2a8] sm:$0xff]
        %v4127 = vld [vmem:[%s4040 + $0x2b0] sm:$0xff]
        %v4128 = vld [vmem:[%s4040 + $0x2b8] sm:$0xff]
        %v4129 = vld [vmem:[%s4040 + $0x2c0] sm:$0xff]
        %v4130 = vld [vmem:[%s4040 + $0x2c8] sm:$0xff]
        %v4131 = vld [vmem:[%s4040 + $0x2d0] sm:$0xff]
        %v4132 = vld [vmem:[%s4040 + $0x2d8] sm:$0xff]
        %v4133 = vld [vmem:[%s4040 + $0x2e0] sm:$0xff]
        %v4134 = vld [vmem:[%s4040 + $0x2e8] sm:$0xff]
        %v4135 = vld [vmem:[%s4040 + $0x2f0] sm:$0xff]
        %v4136 = vld [vmem:[%s4040 + $0x2f8] sm:$0xff]
        %v4137 = vld [vmem:[%s4040 + $0x300] sm:$0xff]
        %v4138 = vld [vmem:[%s4040 + $0x308] sm:$0xff]
        %v4139 = vld [vmem:[%s4040 + $0x310] sm:$0xff]
        %v4140 = vld [vmem:[%s4040 + $0x318] sm:$0xff]
        %v4141 = vld [vmem:[%s4040 + $0x320] sm:$0xff]
        %v4142 = vld [vmem:[%s4040 + $0x328] sm:$0xff]
        %v4143 = vld [vmem:[%s4040 + $0x330] sm:$0xff]
        %v4144 = vld [vmem:[%s4040 + $0x338] sm:$0xff]
        %v4145 = vld [vmem:[%s4040 + $0x340] sm:$0xff]
        %v4146 = vld [vmem:[%s4040 + $0x348] sm:$0xff]
        %v4147 = vld [vmem:[%s4040 + $0x350] sm:$0xff]
        %v4148 = vld [vmem:[%s4040 + $0x358] sm:$0xff]
        %v4149 = vld [vmem:[%s4040 + $0x360] sm:$0xff]
        %v4150 = vld [vmem:[%s4040 + $0x368] sm:$0xff]
        %v4151 = vld [vmem:[%s4040 + $0x370] sm:$0xff]
        %v4152 = vld [vmem:[%s4040 + $0x378] sm:$0xff]
        %v4153 = vld [vmem:[%s4040 + $0x380] sm:$0xff]
        %v4154 = vld [vmem:[%s4040 + $0x388] sm:$0xff]
        %v4155 = vld [vmem:[%s4040 + $0x390] sm:$0xff]
        %v4156 = vld [vmem:[%s4040 + $0x398] sm:$0xff]
        %v4157 = vld [vmem:[%s4040 + $0x3a0] sm:$0xff]
        %v4158 = vld [vmem:[%s4040 + $0x3a8] sm:$0xff]
        %v4159 = vld [vmem:[%s4040 + $0x3b0] sm:$0xff]
        %v4160 = vld [vmem:[%s4040 + $0x3b8] sm:$0xff]
        %v4161 = vld [vmem:[%s4040 + $0x3c0] sm:$0xff]
        %v4162 = vld [vmem:[%s4040 + $0x3c8] sm:$0xff]
        %v4163 = vld [vmem:[%s4040 + $0x3d0] sm:$0xff]
        %v4164 = vld [vmem:[%s4040 + $0x3d8] sm:$0xff]
        %v4165 = vld [vmem:[%s4040 + $0x3e0] sm:$0xff]
        %v4166 = vld [vmem:[%s4040 + $0x3e8] sm:$0xff]
        %v4167 = vld [vmem:[%s4040 + $0x3f0] sm:$0xff]
        %v4168 = vld [vmem:[%s4040 + $0x3f8] sm:$0xff]
        %s4169 = scalar_lea.vmem %s12, 16
        %v4170 = vld [vmem:[%s4169] sm:$0xff]
        %v4171 = vld [vmem:[%s4169 + $0x8] sm:$0xff]
        %v4174 = vlaneseq
        %v4175 = vshrl.u32 %v4174, 7
        %v4176 = vsub.s32 0, %v4175
        %v4177 = vrot.slane %v4170, %v4176
        %v4178 = vlaneseq
        %v4179 = vshrl.u32 %v4178, 7
        %v4180 = vsub.s32 1, %v4179
        %v4181 = vrot.slane %v4170, %v4180
        %v4182 = vlaneseq
        %v4183 = vshrl.u32 %v4182, 7
        %v4184 = vsub.s32 2, %v4183
        %v4185 = vrot.slane %v4170, %v4184
        %v4186 = vlaneseq
        %v4187 = vshrl.u32 %v4186, 7
        %v4188 = vsub.s32 3, %v4187
        %v4189 = vrot.slane %v4170, %v4188
        %v4190 = vlaneseq
        %v4191 = vshrl.u32 %v4190, 7
        %v4192 = vsub.s32 4, %v4191
        %v4193 = vrot.slane %v4170, %v4192
        %v4194 = vlaneseq
        %v4195 = vshrl.u32 %v4194, 7
        %v4196 = vsub.s32 5, %v4195
        %v4197 = vrot.slane %v4170, %v4196
        %v4198 = vlaneseq
        %v4199 = vshrl.u32 %v4198, 7
        %v4200 = vsub.s32 6, %v4199
        %v4201 = vrot.slane %v4170, %v4200
        %v4202 = vlaneseq
        %v4203 = vshrl.u32 %v4202, 7
        %v4204 = vsub.s32 7, %v4203
        %v4205 = vrot.slane %v4170, %v4204
        %v4206 = vlaneseq
        %v4207 = vshrl.u32 %v4206, 7
        %v4208 = vsub.s32 0, %v4207
        %v4209 = vrot.slane %v4171, %v4208
        %v4210 = vlaneseq
        %v4211 = vshrl.u32 %v4210, 7
        %v4212 = vsub.s32 1, %v4211
        %v4213 = vrot.slane %v4171, %v4212
        %v4214 = vlaneseq
        %v4215 = vshrl.u32 %v4214, 7
        %v4216 = vsub.s32 2, %v4215
        %v4217 = vrot.slane %v4171, %v4216
        %v4218 = vlaneseq
        %v4219 = vshrl.u32 %v4218, 7
        %v4220 = vsub.s32 3, %v4219
        %v4221 = vrot.slane %v4171, %v4220
        %v4222 = vlaneseq
        %v4223 = vshrl.u32 %v4222, 7
        %v4224 = vsub.s32 4, %v4223
        %v4225 = vrot.slane %v4171, %v4224
        %v4226 = vlaneseq
        %v4227 = vshrl.u32 %v4226, 7
        %v4228 = vsub.s32 5, %v4227
        %v4229 = vrot.slane %v4171, %v4228
        %v4230 = vlaneseq
        %v4231 = vshrl.u32 %v4230, 7
        %v4232 = vsub.s32 6, %v4231
        %v4233 = vrot.slane %v4171, %v4232
        %v4234 = vlaneseq
        %v4235 = vshrl.u32 %v4234, 7
        %v4236 = vsub.s32 7, %v4235
        %v4237 = vrot.slane %v4171, %v4236
        %v4255 = vsel %vm621, %v4039, 0
        %4257 = vmatprep.subr.mxu0 0.0
        %4258 = vmatpush1.msra.mxu0 0.0
        %4259 = vmatprep.subr.mxu0 0.0
        %4260 = vmatpush1.msra.mxu0 0.0
        %4261 = vmatprep.subr.mxu0 0.0
        %4262 = vmatpush1.msra.mxu0 0.0
        %4263 = vmatprep.subr.mxu0 0.0
        %4264 = vmatpush1.msra.mxu0 0.0
        %4265 = vmatprep.subr.mxu0 0.0
        %4266 = vmatpush1.msra.mxu0 0.0
        %4267 = vmatprep.subr.mxu0 0.0
        %4268 = vmatpush1.msra.mxu0 0.0
        %4269 = vmatprep.subr.mxu0 0.0
        %4270 = vmatpush1.msra.mxu0 0.0
        %4271 = vmatprep.subr.mxu0 0.0
        %4272 = vmatpush1.msra.mxu0 0.0
        %4273 = vmatprep.subr.mxu0 %v4154
        %4274 = vmatpush1.msra.mxu0 %v4153
        %4275 = vmatprep.subr.mxu0 %v4138
        %4276 = vmatpush1.msra.mxu0 %v4137
        %4277 = vmatprep.subr.mxu0 %v4122
        %4278 = vmatpush1.msra.mxu0 %v4121
        %4279 = vmatprep.subr.mxu0 %v4106
        %4280 = vmatpush1.msra.mxu0 %v4105
        %4281 = vmatprep.subr.mxu0 %v4090
        %4282 = vmatpush1.msra.mxu0 %v4089
        %4283 = vmatprep.subr.mxu0 %v4074
        %4284 = vmatpush1.msra.mxu0 %v4073
        %4285 = vmatprep.subr.mxu0 %v4058
        %4286 = vmatpush1.msra.mxu0 %v4057
        %4287 = vmatprep.subr.mxu0 %v4042
        %4288 = vmatpush1.msra.mxu0 %v4041
        %4289 = vmatprep.subr.mxu0 0.0
        %4290 = vmatpush2.msra.mxu0 0.0
        %4291 = vmatprep.subr.mxu0 0.0
        %4292 = vmatpush2.msra.mxu0 0.0
        %4293 = vmatprep.subr.mxu0 0.0
        %4294 = vmatpush2.msra.mxu0 0.0
        %4295 = vmatprep.subr.mxu0 0.0
        %4296 = vmatpush2.msra.mxu0 0.0
        %4297 = vmatprep.subr.mxu0 0.0
        %4298 = vmatpush2.msra.mxu0 0.0
        %4299 = vmatprep.subr.mxu0 0.0
        %4300 = vmatpush2.msra.mxu0 0.0
        %4301 = vmatprep.subr.mxu0 0.0
        %4302 = vmatpush2.msra.mxu0 0.0
        %4303 = vmatprep.subr.mxu0 0.0
        %4304 = vmatpush2.msra.mxu0 0.0
        %4305 = vmatprep.subr.mxu0 0.0
        %4306 = vmatpush2.msra.mxu0 0.0
        %4307 = vmatprep.subr.mxu0 0.0
        %4308 = vmatpush2.msra.mxu0 0.0
        %4309 = vmatprep.subr.mxu0 0.0
        %4310 = vmatpush2.msra.mxu0 0.0
        %4311 = vmatprep.subr.mxu0 0.0
        %4312 = vmatpush2.msra.mxu0 0.0
        %4313 = vmatprep.subr.mxu0 0.0
        %4314 = vmatpush2.msra.mxu0 0.0
        %4315 = vmatprep.subr.mxu0 0.0
        %4316 = vmatpush2.msra.mxu0 0.0
        %4317 = vmatprep.subr.mxu0 0.0
        %4318 = vmatpush2.msra.mxu0 0.0
        %4319 = vmatprep.subr.mxu0 0.0
        %4320 = vmatpush2.msra.mxu0 0.0
        %4321 = vmatprep.mubr.f32.mxu0 0.0
        %4322 = vmatmul.mubr.f32.gmra.mxu0 %v4255
        %v4323 = vpop.f32.mrf.mxu0
        %v4324 = vadd.f32 %v4177, %v4323
        %v4325 = vpop.f32.mrf.mxu0
        %v4326 = vadd.f32 %v4181, %v4325
        %4327 = vdwg.mxu0
        %4328 = vmatprep.subr.mxu0 0.0
        %4329 = vmatpush1.msra.mxu0 0.0
        %4330 = vmatprep.subr.mxu0 0.0
        %4331 = vmatpush1.msra.mxu0 0.0
        %4332 = vmatprep.subr.mxu0 0.0
        %4333 = vmatpush1.msra.mxu0 0.0
        %4334 = vmatprep.subr.mxu0 0.0
        %4335 = vmatpush1.msra.mxu0 0.0
        %4336 = vmatprep.subr.mxu0 0.0
        %4337 = vmatpush1.msra.mxu0 0.0
        %4338 = vmatprep.subr.mxu0 0.0
        %4339 = vmatpush1.msra.mxu0 0.0
        %4340 = vmatprep.subr.mxu0 0.0
        %4341 = vmatpush1.msra.mxu0 0.0
        %4342 = vmatprep.subr.mxu0 0.0
        %4343 = vmatpush1.msra.mxu0 0.0
        %4344 = vmatprep.subr.mxu0 %v4156
        %4345 = vmatpush1.msra.mxu0 %v4155
        %4346 = vmatprep.subr.mxu0 %v4140
        %4347 = vmatpush1.msra.mxu0 %v4139
        %4348 = vmatprep.subr.mxu0 %v4124
        %4349 = vmatpush1.msra.mxu0 %v4123
        %4350 = vmatprep.subr.mxu0 %v4108
        %4351 = vmatpush1.msra.mxu0 %v4107
        %4352 = vmatprep.subr.mxu0 %v4092
        %4353 = vmatpush1.msra.mxu0 %v4091
        %4354 = vmatprep.subr.mxu0 %v4076
        %4355 = vmatpush1.msra.mxu0 %v4075
        %4356 = vmatprep.subr.mxu0 %v4060
        %4357 = vmatpush1.msra.mxu0 %v4059
        %4358 = vmatprep.subr.mxu0 %v4044
        %4359 = vmatpush1.msra.mxu0 %v4043
        %4360 = vmatprep.subr.mxu0 0.0
        %4361 = vmatpush2.msra.mxu0 0.0
        %4362 = vmatprep.subr.mxu0 0.0
        %4363 = vmatpush2.msra.mxu0 0.0
        %4364 = vmatprep.subr.mxu0 0.0
        %4365 = vmatpush2.msra.mxu0 0.0
        %4366 = vmatprep.subr.mxu0 0.0
        %4367 = vmatpush2.msra.mxu0 0.0
        %4368 = vmatprep.subr.mxu0 0.0
        %4369 = vmatpush2.msra.mxu0 0.0
        %4370 = vmatprep.subr.mxu0 0.0
        %4371 = vmatpush2.msra.mxu0 0.0
        %4372 = vmatprep.subr.mxu0 0.0
        %4373 = vmatpush2.msra.mxu0 0.0
        %4374 = vmatprep.subr.mxu0 0.0
        %4375 = vmatpush2.msra.mxu0 0.0
        %4376 = vmatprep.subr.mxu0 0.0
        %4377 = vmatpush2.msra.mxu0 0.0
        %4378 = vmatprep.subr.mxu0 0.0
        %4379 = vmatpush2.msra.mxu0 0.0
        %4380 = vmatprep.subr.mxu0 0.0
        %4381 = vmatpush2.msra.mxu0 0.0
        %4382 = vmatprep.subr.mxu0 0.0
        %4383 = vmatpush2.msra.mxu0 0.0
        %4384 = vmatprep.subr.mxu0 0.0
        %4385 = vmatpush2.msra.mxu0 0.0
        %4386 = vmatprep.subr.mxu0 0.0
        %4387 = vmatpush2.msra.mxu0 0.0
        %4388 = vmatprep.subr.mxu0 0.0
        %4389 = vmatpush2.msra.mxu0 0.0
        %4390 = vmatprep.subr.mxu0 0.0
        %4391 = vmatpush2.msra.mxu0 0.0
        %4392 = vmatprep.mubr.f32.mxu0 0.0
        %4393 = vmatmul.mubr.f32.gmra.mxu0 %v4255
        %v4394 = vpop.f32.mrf.mxu0
        %v4395 = vadd.f32 %v4185, %v4394
        %v4396 = vpop.f32.mrf.mxu0
        %v4397 = vadd.f32 %v4189, %v4396
        %4398 = vdwg.mxu0
        %4399 = vmatprep.subr.mxu0 0.0
        %4400 = vmatpush1.msra.mxu0 0.0
        %4401 = vmatprep.subr.mxu0 0.0
        %4402 = vmatpush1.msra.mxu0 0.0
        %4403 = vmatprep.subr.mxu0 0.0
        %4404 = vmatpush1.msra.mxu0 0.0
        %4405 = vmatprep.subr.mxu0 0.0
        %4406 = vmatpush1.msra.mxu0 0.0
        %4407 = vmatprep.subr.mxu0 0.0
        %4408 = vmatpush1.msra.mxu0 0.0
        %4409 = vmatprep.subr.mxu0 0.0
        %4410 = vmatpush1.msra.mxu0 0.0
        %4411 = vmatprep.subr.mxu0 0.0
        %4412 = vmatpush1.msra.mxu0 0.0
        %4413 = vmatprep.subr.mxu0 0.0
        %4414 = vmatpush1.msra.mxu0 0.0
        %4415 = vmatprep.subr.mxu0 %v4158
        %4416 = vmatpush1.msra.mxu0 %v4157
        %4417 = vmatprep.subr.mxu0 %v4142
        %4418 = vmatpush1.msra.mxu0 %v4141
        %4419 = vmatprep.subr.mxu0 %v4126
        %4420 = vmatpush1.msra.mxu0 %v4125
        %4421 = vmatprep.subr.mxu0 %v4110
        %4422 = vmatpush1.msra.mxu0 %v4109
        %4423 = vmatprep.subr.mxu0 %v4094
        %4424 = vmatpush1.msra.mxu0 %v4093
        %4425 = vmatprep.subr.mxu0 %v4078
        %4426 = vmatpush1.msra.mxu0 %v4077
        %4427 = vmatprep.subr.mxu0 %v4062
        %4428 = vmatpush1.msra.mxu0 %v4061
        %4429 = vmatprep.subr.mxu0 %v4046
        %4430 = vmatpush1.msra.mxu0 %v4045
        %4431 = vmatprep.subr.mxu0 0.0
        %4432 = vmatpush2.msra.mxu0 0.0
        %4433 = vmatprep.subr.mxu0 0.0
        %4434 = vmatpush2.msra.mxu0 0.0
        %4435 = vmatprep.subr.mxu0 0.0
        %4436 = vmatpush2.msra.mxu0 0.0
        %4437 = vmatprep.subr.mxu0 0.0
        %4438 = vmatpush2.msra.mxu0 0.0
        %4439 = vmatprep.subr.mxu0 0.0
        %4440 = vmatpush2.msra.mxu0 0.0
        %4441 = vmatprep.subr.mxu0 0.0
        %4442 = vmatpush2.msra.mxu0 0.0
        %4443 = vmatprep.subr.mxu0 0.0
        %4444 = vmatpush2.msra.mxu0 0.0
        %4445 = vmatprep.subr.mxu0 0.0
        %4446 = vmatpush2.msra.mxu0 0.0
        %4447 = vmatprep.subr.mxu0 0.0
        %4448 = vmatpush2.msra.mxu0 0.0
        %4449 = vmatprep.subr.mxu0 0.0
        %4450 = vmatpush2.msra.mxu0 0.0
        %4451 = vmatprep.subr.mxu0 0.0
        %4452 = vmatpush2.msra.mxu0 0.0
        %4453 = vmatprep.subr.mxu0 0.0
        %4454 = vmatpush2.msra.mxu0 0.0
        %4455 = vmatprep.subr.mxu0 0.0
        %4456 = vmatpush2.msra.mxu0 0.0
        %4457 = vmatprep.subr.mxu0 0.0
        %4458 = vmatpush2.msra.mxu0 0.0
        %4459 = vmatprep.subr.mxu0 0.0
        %4460 = vmatpush2.msra.mxu0 0.0
        %4461 = vmatprep.subr.mxu0 0.0
        %4462 = vmatpush2.msra.mxu0 0.0
        %4463 = vmatprep.mubr.f32.mxu0 0.0
        %4464 = vmatmul.mubr.f32.gmra.mxu0 %v4255
        %v4465 = vpop.f32.mrf.mxu0
        %v4466 = vadd.f32 %v4193, %v4465
        %v4467 = vpop.f32.mrf.mxu0
        %v4468 = vadd.f32 %v4197, %v4467
        %4469 = vdwg.mxu0
        %4470 = vmatprep.subr.mxu0 0.0
        %4471 = vmatpush1.msra.mxu0 0.0
        %4472 = vmatprep.subr.mxu0 0.0
        %4473 = vmatpush1.msra.mxu0 0.0
        %4474 = vmatprep.subr.mxu0 0.0
        %4475 = vmatpush1.msra.mxu0 0.0
        %4476 = vmatprep.subr.mxu0 0.0
        %4477 = vmatpush1.msra.mxu0 0.0
        %4478 = vmatprep.subr.mxu0 0.0
        %4479 = vmatpush1.msra.mxu0 0.0
        %4480 = vmatprep.subr.mxu0 0.0
        %4481 = vmatpush1.msra.mxu0 0.0
        %4482 = vmatprep.subr.mxu0 0.0
        %4483 = vmatpush1.msra.mxu0 0.0
        %4484 = vmatprep.subr.mxu0 0.0
        %4485 = vmatpush1.msra.mxu0 0.0
        %4486 = vmatprep.subr.mxu0 %v4160
        %4487 = vmatpush1.msra.mxu0 %v4159
        %4488 = vmatprep.subr.mxu0 %v4144
        %4489 = vmatpush1.msra.mxu0 %v4143
        %4490 = vmatprep.subr.mxu0 %v4128
        %4491 = vmatpush1.msra.mxu0 %v4127
        %4492 = vmatprep.subr.mxu0 %v4112
        %4493 = vmatpush1.msra.mxu0 %v4111
        %4494 = vmatprep.subr.mxu0 %v4096
        %4495 = vmatpush1.msra.mxu0 %v4095
        %4496 = vmatprep.subr.mxu0 %v4080
        %4497 = vmatpush1.msra.mxu0 %v4079
        %4498 = vmatprep.subr.mxu0 %v4064
        %4499 = vmatpush1.msra.mxu0 %v4063
        %4500 = vmatprep.subr.mxu0 %v4048
        %4501 = vmatpush1.msra.mxu0 %v4047
        %4502 = vmatprep.subr.mxu0 0.0
        %4503 = vmatpush2.msra.mxu0 0.0
        %4504 = vmatprep.subr.mxu0 0.0
        %4505 = vmatpush2.msra.mxu0 0.0
        %4506 = vmatprep.subr.mxu0 0.0
        %4507 = vmatpush2.msra.mxu0 0.0
        %4508 = vmatprep.subr.mxu0 0.0
        %4509 = vmatpush2.msra.mxu0 0.0
        %4510 = vmatprep.subr.mxu0 0.0
        %4511 = vmatpush2.msra.mxu0 0.0
        %4512 = vmatprep.subr.mxu0 0.0
        %4513 = vmatpush2.msra.mxu0 0.0
        %4514 = vmatprep.subr.mxu0 0.0
        %4515 = vmatpush2.msra.mxu0 0.0
        %4516 = vmatprep.subr.mxu0 0.0
        %4517 = vmatpush2.msra.mxu0 0.0
        %4518 = vmatprep.subr.mxu0 0.0
        %4519 = vmatpush2.msra.mxu0 0.0
        %4520 = vmatprep.subr.mxu0 0.0
        %4521 = vmatpush2.msra.mxu0 0.0
        %4522 = vmatprep.subr.mxu0 0.0
        %4523 = vmatpush2.msra.mxu0 0.0
        %4524 = vmatprep.subr.mxu0 0.0
        %4525 = vmatpush2.msra.mxu0 0.0
        %4526 = vmatprep.subr.mxu0 0.0
        %4527 = vmatpush2.msra.mxu0 0.0
        %4528 = vmatprep.subr.mxu0 0.0
        %4529 = vmatpush2.msra.mxu0 0.0
        %4530 = vmatprep.subr.mxu0 0.0
        %4531 = vmatpush2.msra.mxu0 0.0
        %4532 = vmatprep.subr.mxu0 0.0
        %4533 = vmatpush2.msra.mxu0 0.0
        %4534 = vmatprep.mubr.f32.mxu0 0.0
        %4535 = vmatmul.mubr.f32.gmra.mxu0 %v4255
        %v4536 = vpop.f32.mrf.mxu0
        %v4537 = vadd.f32 %v4201, %v4536
        %v4538 = vpop.f32.mrf.mxu0
        %v4539 = vadd.f32 %v4205, %v4538
        %4540 = vdwg.mxu0
        %4541 = vmatprep.subr.mxu0 0.0
        %4542 = vmatpush1.msra.mxu0 0.0
        %4543 = vmatprep.subr.mxu0 0.0
        %4544 = vmatpush1.msra.mxu0 0.0
        %4545 = vmatprep.subr.mxu0 0.0
        %4546 = vmatpush1.msra.mxu0 0.0
        %4547 = vmatprep.subr.mxu0 0.0
        %4548 = vmatpush1.msra.mxu0 0.0
        %4549 = vmatprep.subr.mxu0 0.0
        %4550 = vmatpush1.msra.mxu0 0.0
        %4551 = vmatprep.subr.mxu0 0.0
        %4552 = vmatpush1.msra.mxu0 0.0
        %4553 = vmatprep.subr.mxu0 0.0
        %4554 = vmatpush1.msra.mxu0 0.0
        %4555 = vmatprep.subr.mxu0 0.0
        %4556 = vmatpush1.msra.mxu0 0.0
        %4557 = vmatprep.subr.mxu0 %v4162
        %4558 = vmatpush1.msra.mxu0 %v4161
        %4559 = vmatprep.subr.mxu0 %v4146
        %4560 = vmatpush1.msra.mxu0 %v4145
        %4561 = vmatprep.subr.mxu0 %v4130
        %4562 = vmatpush1.msra.mxu0 %v4129
        %4563 = vmatprep.subr.mxu0 %v4114
        %4564 = vmatpush1.msra.mxu0 %v4113
        %4565 = vmatprep.subr.mxu0 %v4098
        %4566 = vmatpush1.msra.mxu0 %v4097
        %4567 = vmatprep.subr.mxu0 %v4082
        %4568 = vmatpush1.msra.mxu0 %v4081
        %4569 = vmatprep.subr.mxu0 %v4066
        %4570 = vmatpush1.msra.mxu0 %v4065
        %4571 = vmatprep.subr.mxu0 %v4050
        %4572 = vmatpush1.msra.mxu0 %v4049
        %4573 = vmatprep.subr.mxu0 0.0
        %4574 = vmatpush2.msra.mxu0 0.0
        %4575 = vmatprep.subr.mxu0 0.0
        %4576 = vmatpush2.msra.mxu0 0.0
        %4577 = vmatprep.subr.mxu0 0.0
        %4578 = vmatpush2.msra.mxu0 0.0
        %4579 = vmatprep.subr.mxu0 0.0
        %4580 = vmatpush2.msra.mxu0 0.0
        %4581 = vmatprep.subr.mxu0 0.0
        %4582 = vmatpush2.msra.mxu0 0.0
        %4583 = vmatprep.subr.mxu0 0.0
        %4584 = vmatpush2.msra.mxu0 0.0
        %4585 = vmatprep.subr.mxu0 0.0
        %4586 = vmatpush2.msra.mxu0 0.0
        %4587 = vmatprep.subr.mxu0 0.0
        %4588 = vmatpush2.msra.mxu0 0.0
        %4589 = vmatprep.subr.mxu0 0.0
        %4590 = vmatpush2.msra.mxu0 0.0
        %4591 = vmatprep.subr.mxu0 0.0
        %4592 = vmatpush2.msra.mxu0 0.0
        %4593 = vmatprep.subr.mxu0 0.0
        %4594 = vmatpush2.msra.mxu0 0.0
        %4595 = vmatprep.subr.mxu0 0.0
        %4596 = vmatpush2.msra.mxu0 0.0
        %4597 = vmatprep.subr.mxu0 0.0
        %4598 = vmatpush2.msra.mxu0 0.0
        %4599 = vmatprep.subr.mxu0 0.0
        %4600 = vmatpush2.msra.mxu0 0.0
        %4601 = vmatprep.subr.mxu0 0.0
        %4602 = vmatpush2.msra.mxu0 0.0
        %4603 = vmatprep.subr.mxu0 0.0
        %4604 = vmatpush2.msra.mxu0 0.0
        %4605 = vmatprep.mubr.f32.mxu0 0.0
        %4606 = vmatmul.mubr.f32.gmra.mxu0 %v4255
        %v4607 = vpop.f32.mrf.mxu0
        %v4608 = vadd.f32 %v4209, %v4607
        %v4609 = vpop.f32.mrf.mxu0
        %v4610 = vadd.f32 %v4213, %v4609
        %4611 = vdwg.mxu0
        %4612 = vmatprep.subr.mxu0 0.0
        %4613 = vmatpush1.msra.mxu0 0.0
        %4614 = vmatprep.subr.mxu0 0.0
        %4615 = vmatpush1.msra.mxu0 0.0
        %4616 = vmatprep.subr.mxu0 0.0
        %4617 = vmatpush1.msra.mxu0 0.0
        %4618 = vmatprep.subr.mxu0 0.0
        %4619 = vmatpush1.msra.mxu0 0.0
        %4620 = vmatprep.subr.mxu0 0.0
        %4621 = vmatpush1.msra.mxu0 0.0
        %4622 = vmatprep.subr.mxu0 0.0
        %4623 = vmatpush1.msra.mxu0 0.0
        %4624 = vmatprep.subr.mxu0 0.0
        %4625 = vmatpush1.msra.mxu0 0.0
        %4626 = vmatprep.subr.mxu0 0.0
        %4627 = vmatpush1.msra.mxu0 0.0
        %4628 = vmatprep.subr.mxu0 %v4164
        %4629 = vmatpush1.msra.mxu0 %v4163
        %4630 = vmatprep.subr.mxu0 %v4148
        %4631 = vmatpush1.msra.mxu0 %v4147
        %4632 = vmatprep.subr.mxu0 %v4132
        %4633 = vmatpush1.msra.mxu0 %v4131
        %4634 = vmatprep.subr.mxu0 %v4116
        %4635 = vmatpush1.msra.mxu0 %v4115
        %4636 = vmatprep.subr.mxu0 %v4100
        %4637 = vmatpush1.msra.mxu0 %v4099
        %4638 = vmatprep.subr.mxu0 %v4084
        %4639 = vmatpush1.msra.mxu0 %v4083
        %4640 = vmatprep.subr.mxu0 %v4068
        %4641 = vmatpush1.msra.mxu0 %v4067
        %4642 = vmatprep.subr.mxu0 %v4052
        %4643 = vmatpush1.msra.mxu0 %v4051
        %4644 = vmatprep.subr.mxu0 0.0
        %4645 = vmatpush2.msra.mxu0 0.0
        %4646 = vmatprep.subr.mxu0 0.0
        %4647 = vmatpush2.msra.mxu0 0.0
        %4648 = vmatprep.subr.mxu0 0.0
        %4649 = vmatpush2.msra.mxu0 0.0
        %4650 = vmatprep.subr.mxu0 0.0
        %4651 = vmatpush2.msra.mxu0 0.0
        %4652 = vmatprep.subr.mxu0 0.0
        %4653 = vmatpush2.msra.mxu0 0.0
        %4654 = vmatprep.subr.mxu0 0.0
        %4655 = vmatpush2.msra.mxu0 0.0
        %4656 = vmatprep.subr.mxu0 0.0
        %4657 = vmatpush2.msra.mxu0 0.0
        %4658 = vmatprep.subr.mxu0 0.0
        %4659 = vmatpush2.msra.mxu0 0.0
        %4660 = vmatprep.subr.mxu0 0.0
        %4661 = vmatpush2.msra.mxu0 0.0
        %4662 = vmatprep.subr.mxu0 0.0
        %4663 = vmatpush2.msra.mxu0 0.0
        %4664 = vmatprep.subr.mxu0 0.0
        %4665 = vmatpush2.msra.mxu0 0.0
        %4666 = vmatprep.subr.mxu0 0.0
        %4667 = vmatpush2.msra.mxu0 0.0
        %4668 = vmatprep.subr.mxu0 0.0
        %4669 = vmatpush2.msra.mxu0 0.0
        %4670 = vmatprep.subr.mxu0 0.0
        %4671 = vmatpush2.msra.mxu0 0.0
        %4672 = vmatprep.subr.mxu0 0.0
        %4673 = vmatpush2.msra.mxu0 0.0
        %4674 = vmatprep.subr.mxu0 0.0
        %4675 = vmatpush2.msra.mxu0 0.0
        %4676 = vmatprep.mubr.f32.mxu0 0.0
        %4677 = vmatmul.mubr.f32.gmra.mxu0 %v4255
        %v4678 = vpop.f32.mrf.mxu0
        %v4679 = vadd.f32 %v4217, %v4678
        %v4680 = vpop.f32.mrf.mxu0
        %v4681 = vadd.f32 %v4221, %v4680
        %4682 = vdwg.mxu0
        %4683 = vmatprep.subr.mxu0 0.0
        %4684 = vmatpush1.msra.mxu0 0.0
        %4685 = vmatprep.subr.mxu0 0.0
        %4686 = vmatpush1.msra.mxu0 0.0
        %4687 = vmatprep.subr.mxu0 0.0
        %4688 = vmatpush1.msra.mxu0 0.0
        %4689 = vmatprep.subr.mxu0 0.0
        %4690 = vmatpush1.msra.mxu0 0.0
        %4691 = vmatprep.subr.mxu0 0.0
        %4692 = vmatpush1.msra.mxu0 0.0
        %4693 = vmatprep.subr.mxu0 0.0
        %4694 = vmatpush1.msra.mxu0 0.0
        %4695 = vmatprep.subr.mxu0 0.0
        %4696 = vmatpush1.msra.mxu0 0.0
        %4697 = vmatprep.subr.mxu0 0.0
        %4698 = vmatpush1.msra.mxu0 0.0
        %4699 = vmatprep.subr.mxu0 %v4166
        %4700 = vmatpush1.msra.mxu0 %v4165
        %4701 = vmatprep.subr.mxu0 %v4150
        %4702 = vmatpush1.msra.mxu0 %v4149
        %4703 = vmatprep.subr.mxu0 %v4134
        %4704 = vmatpush1.msra.mxu0 %v4133
        %4705 = vmatprep.subr.mxu0 %v4118
        %4706 = vmatpush1.msra.mxu0 %v4117
        %4707 = vmatprep.subr.mxu0 %v4102
        %4708 = vmatpush1.msra.mxu0 %v4101
        %4709 = vmatprep.subr.mxu0 %v4086
        %4710 = vmatpush1.msra.mxu0 %v4085
        %4711 = vmatprep.subr.mxu0 %v4070
        %4712 = vmatpush1.msra.mxu0 %v4069
        %4713 = vmatprep.subr.mxu0 %v4054
        %4714 = vmatpush1.msra.mxu0 %v4053
        %4715 = vmatprep.subr.mxu0 0.0
        %4716 = vmatpush2.msra.mxu0 0.0
        %4717 = vmatprep.subr.mxu0 0.0
        %4718 = vmatpush2.msra.mxu0 0.0
        %4719 = vmatprep.subr.mxu0 0.0
        %4720 = vmatpush2.msra.mxu0 0.0
        %4721 = vmatprep.subr.mxu0 0.0
        %4722 = vmatpush2.msra.mxu0 0.0
        %4723 = vmatprep.subr.mxu0 0.0
        %4724 = vmatpush2.msra.mxu0 0.0
        %4725 = vmatprep.subr.mxu0 0.0
        %4726 = vmatpush2.msra.mxu0 0.0
        %4727 = vmatprep.subr.mxu0 0.0
        %4728 = vmatpush2.msra.mxu0 0.0
        %4729 = vmatprep.subr.mxu0 0.0
        %4730 = vmatpush2.msra.mxu0 0.0
        %4731 = vmatprep.subr.mxu0 0.0
        %4732 = vmatpush2.msra.mxu0 0.0
        %4733 = vmatprep.subr.mxu0 0.0
        %4734 = vmatpush2.msra.mxu0 0.0
        %4735 = vmatprep.subr.mxu0 0.0
        %4736 = vmatpush2.msra.mxu0 0.0
        %4737 = vmatprep.subr.mxu0 0.0
        %4738 = vmatpush2.msra.mxu0 0.0
        %4739 = vmatprep.subr.mxu0 0.0
        %4740 = vmatpush2.msra.mxu0 0.0
        %4741 = vmatprep.subr.mxu0 0.0
        %4742 = vmatpush2.msra.mxu0 0.0
        %4743 = vmatprep.subr.mxu0 0.0
        %4744 = vmatpush2.msra.mxu0 0.0
        %4745 = vmatprep.subr.mxu0 0.0
        %4746 = vmatpush2.msra.mxu0 0.0
        %4747 = vmatprep.mubr.f32.mxu0 0.0
        %4748 = vmatmul.mubr.f32.gmra.mxu0 %v4255
        %v4749 = vpop.f32.mrf.mxu0
        %v4750 = vadd.f32 %v4225, %v4749
        %v4751 = vpop.f32.mrf.mxu0
        %v4752 = vadd.f32 %v4229, %v4751
        %4753 = vdwg.mxu0
        %4754 = vmatprep.subr.mxu0 0.0
        %4755 = vmatpush1.msra.mxu0 0.0
        %4756 = vmatprep.subr.mxu0 0.0
        %4757 = vmatpush1.msra.mxu0 0.0
        %4758 = vmatprep.subr.mxu0 0.0
        %4759 = vmatpush1.msra.mxu0 0.0
        %4760 = vmatprep.subr.mxu0 0.0
        %4761 = vmatpush1.msra.mxu0 0.0
        %4762 = vmatprep.subr.mxu0 0.0
        %4763 = vmatpush1.msra.mxu0 0.0
        %4764 = vmatprep.subr.mxu0 0.0
        %4765 = vmatpush1.msra.mxu0 0.0
        %4766 = vmatprep.subr.mxu0 0.0
        %4767 = vmatpush1.msra.mxu0 0.0
        %4768 = vmatprep.subr.mxu0 0.0
        %4769 = vmatpush1.msra.mxu0 0.0
        %4770 = vmatprep.subr.mxu0 %v4168
        %4771 = vmatpush1.msra.mxu0 %v4167
        %4772 = vmatprep.subr.mxu0 %v4152
        %4773 = vmatpush1.msra.mxu0 %v4151
        %4774 = vmatprep.subr.mxu0 %v4136
        %4775 = vmatpush1.msra.mxu0 %v4135
        %4776 = vmatprep.subr.mxu0 %v4120
        %4777 = vmatpush1.msra.mxu0 %v4119
        %4778 = vmatprep.subr.mxu0 %v4104
        %4779 = vmatpush1.msra.mxu0 %v4103
        %4780 = vmatprep.subr.mxu0 %v4088
        %4781 = vmatpush1.msra.mxu0 %v4087
        %4782 = vmatprep.subr.mxu0 %v4072
        %4783 = vmatpush1.msra.mxu0 %v4071
        %4784 = vmatprep.subr.mxu0 %v4056
        %4785 = vmatpush1.msra.mxu0 %v4055
        %4786 = vmatprep.subr.mxu0 0.0
        %4787 = vmatpush2.msra.mxu0 0.0
        %4788 = vmatprep.subr.mxu0 0.0
        %4789 = vmatpush2.msra.mxu0 0.0
        %4790 = vmatprep.subr.mxu0 0.0
        %4791 = vmatpush2.msra.mxu0 0.0
        %4792 = vmatprep.subr.mxu0 0.0
        %4793 = vmatpush2.msra.mxu0 0.0
        %4794 = vmatprep.subr.mxu0 0.0
        %4795 = vmatpush2.msra.mxu0 0.0
        %4796 = vmatprep.subr.mxu0 0.0
        %4797 = vmatpush2.msra.mxu0 0.0
        %4798 = vmatprep.subr.mxu0 0.0
        %4799 = vmatpush2.msra.mxu0 0.0
        %4800 = vmatprep.subr.mxu0 0.0
        %4801 = vmatpush2.msra.mxu0 0.0
        %4802 = vmatprep.subr.mxu0 0.0
        %4803 = vmatpush2.msra.mxu0 0.0
        %4804 = vmatprep.subr.mxu0 0.0
        %4805 = vmatpush2.msra.mxu0 0.0
        %4806 = vmatprep.subr.mxu0 0.0
        %4807 = vmatpush2.msra.mxu0 0.0
        %4808 = vmatprep.subr.mxu0 0.0
        %4809 = vmatpush2.msra.mxu0 0.0
        %4810 = vmatprep.subr.mxu0 0.0
        %4811 = vmatpush2.msra.mxu0 0.0
        %4812 = vmatprep.subr.mxu0 0.0
        %4813 = vmatpush2.msra.mxu0 0.0
        %4814 = vmatprep.subr.mxu0 0.0
        %4815 = vmatpush2.msra.mxu0 0.0
        %4816 = vmatprep.subr.mxu0 0.0
        %4817 = vmatpush2.msra.mxu0 0.0
        %4818 = vmatprep.mubr.f32.mxu0 0.0
        %4819 = vmatmul.mubr.f32.gmra.mxu0 %v4255
        %v4820 = vpop.f32.mrf.mxu0
        %v4821 = vadd.f32 %v4233, %v4820
        %v4822 = vpop.f32.mrf.mxu0
        %v4823 = vadd.f32 %v4237, %v4822
        %4824 = vdwg.mxu0
        %v4825 = vmax.f32 %v4324, 0.0
        %v4826 = vmax.f32 %v4326, 0.0
        %v4827 = vmax.f32 %v4395, 0.0
        %v4828 = vmax.f32 %v4397, 0.0
        %v4829 = vmax.f32 %v4466, 0.0
        %v4830 = vmax.f32 %v4468, 0.0
        %v4831 = vmax.f32 %v4537, 0.0
        %v4832 = vmax.f32 %v4539, 0.0
        %v4833 = vmax.f32 %v4608, 0.0
        %v4834 = vmax.f32 %v4610, 0.0
        %v4835 = vmax.f32 %v4679, 0.0
        %v4836 = vmax.f32 %v4681, 0.0
        %v4837 = vmax.f32 %v4750, 0.0
        %v4838 = vmax.f32 %v4752, 0.0
        %v4839 = vmax.f32 %v4821, 0.0
        %v4840 = vmax.f32 %v4823, 0.0
        %s4841 = scalar_lea.vmem %s13, 2048
        %v4842 = vld [vmem:[%s4841] sm:$0xff]
        %v4843 = vld [vmem:[%s4841 + $0x8] sm:$0xff]
        %v4844 = vld [vmem:[%s4841 + $0x10] sm:$0xff]
        %v4845 = vld [vmem:[%s4841 + $0x18] sm:$0xff]
        %v4846 = vld [vmem:[%s4841 + $0x20] sm:$0xff]
        %v4847 = vld [vmem:[%s4841 + $0x28] sm:$0xff]
        %v4848 = vld [vmem:[%s4841 + $0x30] sm:$0xff]
        %v4849 = vld [vmem:[%s4841 + $0x38] sm:$0xff]
        %v4850 = vld [vmem:[%s4841 + $0x40] sm:$0xff]
        %v4851 = vld [vmem:[%s4841 + $0x48] sm:$0xff]
        %v4852 = vld [vmem:[%s4841 + $0x50] sm:$0xff]
        %v4853 = vld [vmem:[%s4841 + $0x58] sm:$0xff]
        %v4854 = vld [vmem:[%s4841 + $0x60] sm:$0xff]
        %v4855 = vld [vmem:[%s4841 + $0x68] sm:$0xff]
        %v4856 = vld [vmem:[%s4841 + $0x70] sm:$0xff]
        %v4857 = vld [vmem:[%s4841 + $0x78] sm:$0xff]
        %v4858 = vld [vmem:[%s4841 + $0x80] sm:$0xff]
        %v4859 = vld [vmem:[%s4841 + $0x88] sm:$0xff]
        %v4860 = vld [vmem:[%s4841 + $0x90] sm:$0xff]
        %v4861 = vld [vmem:[%s4841 + $0x98] sm:$0xff]
        %v4862 = vld [vmem:[%s4841 + $0xa0] sm:$0xff]
        %v4863 = vld [vmem:[%s4841 + $0xa8] sm:$0xff]
        %v4864 = vld [vmem:[%s4841 + $0xb0] sm:$0xff]
        %v4865 = vld [vmem:[%s4841 + $0xb8] sm:$0xff]
        %v4866 = vld [vmem:[%s4841 + $0xc0] sm:$0xff]
        %v4867 = vld [vmem:[%s4841 + $0xc8] sm:$0xff]
        %v4868 = vld [vmem:[%s4841 + $0xd0] sm:$0xff]
        %v4869 = vld [vmem:[%s4841 + $0xd8] sm:$0xff]
        %v4870 = vld [vmem:[%s4841 + $0xe0] sm:$0xff]
        %v4871 = vld [vmem:[%s4841 + $0xe8] sm:$0xff]
        %v4872 = vld [vmem:[%s4841 + $0xf0] sm:$0xff]
        %v4873 = vld [vmem:[%s4841 + $0xf8] sm:$0xff]
        %v4874 = vld [vmem:[%s4841 + $0x100] sm:$0xff]
        %v4875 = vld [vmem:[%s4841 + $0x108] sm:$0xff]
        %v4876 = vld [vmem:[%s4841 + $0x110] sm:$0xff]
        %v4877 = vld [vmem:[%s4841 + $0x118] sm:$0xff]
        %v4878 = vld [vmem:[%s4841 + $0x120] sm:$0xff]
        %v4879 = vld [vmem:[%s4841 + $0x128] sm:$0xff]
        %v4880 = vld [vmem:[%s4841 + $0x130] sm:$0xff]
        %v4881 = vld [vmem:[%s4841 + $0x138] sm:$0xff]
        %v4882 = vld [vmem:[%s4841 + $0x140] sm:$0xff]
        %v4883 = vld [vmem:[%s4841 + $0x148] sm:$0xff]
        %v4884 = vld [vmem:[%s4841 + $0x150] sm:$0xff]
        %v4885 = vld [vmem:[%s4841 + $0x158] sm:$0xff]
        %v4886 = vld [vmem:[%s4841 + $0x160] sm:$0xff]
        %v4887 = vld [vmem:[%s4841 + $0x168] sm:$0xff]
        %v4888 = vld [vmem:[%s4841 + $0x170] sm:$0xff]
        %v4889 = vld [vmem:[%s4841 + $0x178] sm:$0xff]
        %v4890 = vld [vmem:[%s4841 + $0x180] sm:$0xff]
        %v4891 = vld [vmem:[%s4841 + $0x188] sm:$0xff]
        %v4892 = vld [vmem:[%s4841 + $0x190] sm:$0xff]
        %v4893 = vld [vmem:[%s4841 + $0x198] sm:$0xff]
        %v4894 = vld [vmem:[%s4841 + $0x1a0] sm:$0xff]
        %v4895 = vld [vmem:[%s4841 + $0x1a8] sm:$0xff]
        %v4896 = vld [vmem:[%s4841 + $0x1b0] sm:$0xff]
        %v4897 = vld [vmem:[%s4841 + $0x1b8] sm:$0xff]
        %v4898 = vld [vmem:[%s4841 + $0x1c0] sm:$0xff]
        %v4899 = vld [vmem:[%s4841 + $0x1c8] sm:$0xff]
        %v4900 = vld [vmem:[%s4841 + $0x1d0] sm:$0xff]
        %v4901 = vld [vmem:[%s4841 + $0x1d8] sm:$0xff]
        %v4902 = vld [vmem:[%s4841 + $0x1e0] sm:$0xff]
        %v4903 = vld [vmem:[%s4841 + $0x1e8] sm:$0xff]
        %v4904 = vld [vmem:[%s4841 + $0x1f0] sm:$0xff]
        %v4905 = vld [vmem:[%s4841 + $0x1f8] sm:$0xff]
        %v4906 = vld [vmem:[%s4841 + $0x200] sm:$0xff]
        %v4907 = vld [vmem:[%s4841 + $0x208] sm:$0xff]
        %v4908 = vld [vmem:[%s4841 + $0x210] sm:$0xff]
        %v4909 = vld [vmem:[%s4841 + $0x218] sm:$0xff]
        %v4910 = vld [vmem:[%s4841 + $0x220] sm:$0xff]
        %v4911 = vld [vmem:[%s4841 + $0x228] sm:$0xff]
        %v4912 = vld [vmem:[%s4841 + $0x230] sm:$0xff]
        %v4913 = vld [vmem:[%s4841 + $0x238] sm:$0xff]
        %v4914 = vld [vmem:[%s4841 + $0x240] sm:$0xff]
        %v4915 = vld [vmem:[%s4841 + $0x248] sm:$0xff]
        %v4916 = vld [vmem:[%s4841 + $0x250] sm:$0xff]
        %v4917 = vld [vmem:[%s4841 + $0x258] sm:$0xff]
        %v4918 = vld [vmem:[%s4841 + $0x260] sm:$0xff]
        %v4919 = vld [vmem:[%s4841 + $0x268] sm:$0xff]
        %v4920 = vld [vmem:[%s4841 + $0x270] sm:$0xff]
        %v4921 = vld [vmem:[%s4841 + $0x278] sm:$0xff]
        %v4922 = vld [vmem:[%s4841 + $0x280] sm:$0xff]
        %v4923 = vld [vmem:[%s4841 + $0x288] sm:$0xff]
        %v4924 = vld [vmem:[%s4841 + $0x290] sm:$0xff]
        %v4925 = vld [vmem:[%s4841 + $0x298] sm:$0xff]
        %v4926 = vld [vmem:[%s4841 + $0x2a0] sm:$0xff]
        %v4927 = vld [vmem:[%s4841 + $0x2a8] sm:$0xff]
        %v4928 = vld [vmem:[%s4841 + $0x2b0] sm:$0xff]
        %v4929 = vld [vmem:[%s4841 + $0x2b8] sm:$0xff]
        %v4930 = vld [vmem:[%s4841 + $0x2c0] sm:$0xff]
        %v4931 = vld [vmem:[%s4841 + $0x2c8] sm:$0xff]
        %v4932 = vld [vmem:[%s4841 + $0x2d0] sm:$0xff]
        %v4933 = vld [vmem:[%s4841 + $0x2d8] sm:$0xff]
        %v4934 = vld [vmem:[%s4841 + $0x2e0] sm:$0xff]
        %v4935 = vld [vmem:[%s4841 + $0x2e8] sm:$0xff]
        %v4936 = vld [vmem:[%s4841 + $0x2f0] sm:$0xff]
        %v4937 = vld [vmem:[%s4841 + $0x2f8] sm:$0xff]
        %v4938 = vld [vmem:[%s4841 + $0x300] sm:$0xff]
        %v4939 = vld [vmem:[%s4841 + $0x308] sm:$0xff]
        %v4940 = vld [vmem:[%s4841 + $0x310] sm:$0xff]
        %v4941 = vld [vmem:[%s4841 + $0x318] sm:$0xff]
        %v4942 = vld [vmem:[%s4841 + $0x320] sm:$0xff]
        %v4943 = vld [vmem:[%s4841 + $0x328] sm:$0xff]
        %v4944 = vld [vmem:[%s4841 + $0x330] sm:$0xff]
        %v4945 = vld [vmem:[%s4841 + $0x338] sm:$0xff]
        %v4946 = vld [vmem:[%s4841 + $0x340] sm:$0xff]
        %v4947 = vld [vmem:[%s4841 + $0x348] sm:$0xff]
        %v4948 = vld [vmem:[%s4841 + $0x350] sm:$0xff]
        %v4949 = vld [vmem:[%s4841 + $0x358] sm:$0xff]
        %v4950 = vld [vmem:[%s4841 + $0x360] sm:$0xff]
        %v4951 = vld [vmem:[%s4841 + $0x368] sm:$0xff]
        %v4952 = vld [vmem:[%s4841 + $0x370] sm:$0xff]
        %v4953 = vld [vmem:[%s4841 + $0x378] sm:$0xff]
        %v4954 = vld [vmem:[%s4841 + $0x380] sm:$0xff]
        %v4955 = vld [vmem:[%s4841 + $0x388] sm:$0xff]
        %v4956 = vld [vmem:[%s4841 + $0x390] sm:$0xff]
        %v4957 = vld [vmem:[%s4841 + $0x398] sm:$0xff]
        %v4958 = vld [vmem:[%s4841 + $0x3a0] sm:$0xff]
        %v4959 = vld [vmem:[%s4841 + $0x3a8] sm:$0xff]
        %v4960 = vld [vmem:[%s4841 + $0x3b0] sm:$0xff]
        %v4961 = vld [vmem:[%s4841 + $0x3b8] sm:$0xff]
        %v4962 = vld [vmem:[%s4841 + $0x3c0] sm:$0xff]
        %v4963 = vld [vmem:[%s4841 + $0x3c8] sm:$0xff]
        %v4964 = vld [vmem:[%s4841 + $0x3d0] sm:$0xff]
        %v4965 = vld [vmem:[%s4841 + $0x3d8] sm:$0xff]
        %v4966 = vld [vmem:[%s4841 + $0x3e0] sm:$0xff]
        %v4967 = vld [vmem:[%s4841 + $0x3e8] sm:$0xff]
        %v4968 = vld [vmem:[%s4841 + $0x3f0] sm:$0xff]
        %v4969 = vld [vmem:[%s4841 + $0x3f8] sm:$0xff]
        %v4970 = vld [vmem:[%s4841 + $0x400] sm:$0xff]
        %v4971 = vld [vmem:[%s4841 + $0x408] sm:$0xff]
        %v4972 = vld [vmem:[%s4841 + $0x410] sm:$0xff]
        %v4973 = vld [vmem:[%s4841 + $0x418] sm:$0xff]
        %v4974 = vld [vmem:[%s4841 + $0x420] sm:$0xff]
        %v4975 = vld [vmem:[%s4841 + $0x428] sm:$0xff]
        %v4976 = vld [vmem:[%s4841 + $0x430] sm:$0xff]
        %v4977 = vld [vmem:[%s4841 + $0x438] sm:$0xff]
        %v4978 = vld [vmem:[%s4841 + $0x440] sm:$0xff]
        %v4979 = vld [vmem:[%s4841 + $0x448] sm:$0xff]
        %v4980 = vld [vmem:[%s4841 + $0x450] sm:$0xff]
        %v4981 = vld [vmem:[%s4841 + $0x458] sm:$0xff]
        %v4982 = vld [vmem:[%s4841 + $0x460] sm:$0xff]
        %v4983 = vld [vmem:[%s4841 + $0x468] sm:$0xff]
        %v4984 = vld [vmem:[%s4841 + $0x470] sm:$0xff]
        %v4985 = vld [vmem:[%s4841 + $0x478] sm:$0xff]
        %v4986 = vld [vmem:[%s4841 + $0x480] sm:$0xff]
        %v4987 = vld [vmem:[%s4841 + $0x488] sm:$0xff]
        %v4988 = vld [vmem:[%s4841 + $0x490] sm:$0xff]
        %v4989 = vld [vmem:[%s4841 + $0x498] sm:$0xff]
        %v4990 = vld [vmem:[%s4841 + $0x4a0] sm:$0xff]
        %v4991 = vld [vmem:[%s4841 + $0x4a8] sm:$0xff]
        %v4992 = vld [vmem:[%s4841 + $0x4b0] sm:$0xff]
        %v4993 = vld [vmem:[%s4841 + $0x4b8] sm:$0xff]
        %v4994 = vld [vmem:[%s4841 + $0x4c0] sm:$0xff]
        %v4995 = vld [vmem:[%s4841 + $0x4c8] sm:$0xff]
        %v4996 = vld [vmem:[%s4841 + $0x4d0] sm:$0xff]
        %v4997 = vld [vmem:[%s4841 + $0x4d8] sm:$0xff]
        %v4998 = vld [vmem:[%s4841 + $0x4e0] sm:$0xff]
        %v4999 = vld [vmem:[%s4841 + $0x4e8] sm:$0xff]
        %v5000 = vld [vmem:[%s4841 + $0x4f0] sm:$0xff]
        %v5001 = vld [vmem:[%s4841 + $0x4f8] sm:$0xff]
        %v5002 = vld [vmem:[%s4841 + $0x500] sm:$0xff]
        %v5003 = vld [vmem:[%s4841 + $0x508] sm:$0xff]
        %v5004 = vld [vmem:[%s4841 + $0x510] sm:$0xff]
        %v5005 = vld [vmem:[%s4841 + $0x518] sm:$0xff]
        %v5006 = vld [vmem:[%s4841 + $0x520] sm:$0xff]
        %v5007 = vld [vmem:[%s4841 + $0x528] sm:$0xff]
        %v5008 = vld [vmem:[%s4841 + $0x530] sm:$0xff]
        %v5009 = vld [vmem:[%s4841 + $0x538] sm:$0xff]
        %v5010 = vld [vmem:[%s4841 + $0x540] sm:$0xff]
        %v5011 = vld [vmem:[%s4841 + $0x548] sm:$0xff]
        %v5012 = vld [vmem:[%s4841 + $0x550] sm:$0xff]
        %v5013 = vld [vmem:[%s4841 + $0x558] sm:$0xff]
        %v5014 = vld [vmem:[%s4841 + $0x560] sm:$0xff]
        %v5015 = vld [vmem:[%s4841 + $0x568] sm:$0xff]
        %v5016 = vld [vmem:[%s4841 + $0x570] sm:$0xff]
        %v5017 = vld [vmem:[%s4841 + $0x578] sm:$0xff]
        %v5018 = vld [vmem:[%s4841 + $0x580] sm:$0xff]
        %v5019 = vld [vmem:[%s4841 + $0x588] sm:$0xff]
        %v5020 = vld [vmem:[%s4841 + $0x590] sm:$0xff]
        %v5021 = vld [vmem:[%s4841 + $0x598] sm:$0xff]
        %v5022 = vld [vmem:[%s4841 + $0x5a0] sm:$0xff]
        %v5023 = vld [vmem:[%s4841 + $0x5a8] sm:$0xff]
        %v5024 = vld [vmem:[%s4841 + $0x5b0] sm:$0xff]
        %v5025 = vld [vmem:[%s4841 + $0x5b8] sm:$0xff]
        %v5026 = vld [vmem:[%s4841 + $0x5c0] sm:$0xff]
        %v5027 = vld [vmem:[%s4841 + $0x5c8] sm:$0xff]
        %v5028 = vld [vmem:[%s4841 + $0x5d0] sm:$0xff]
        %v5029 = vld [vmem:[%s4841 + $0x5d8] sm:$0xff]
        %v5030 = vld [vmem:[%s4841 + $0x5e0] sm:$0xff]
        %v5031 = vld [vmem:[%s4841 + $0x5e8] sm:$0xff]
        %v5032 = vld [vmem:[%s4841 + $0x5f0] sm:$0xff]
        %v5033 = vld [vmem:[%s4841 + $0x5f8] sm:$0xff]
        %v5034 = vld [vmem:[%s4841 + $0x600] sm:$0xff]
        %v5035 = vld [vmem:[%s4841 + $0x608] sm:$0xff]
        %v5036 = vld [vmem:[%s4841 + $0x610] sm:$0xff]
        %v5037 = vld [vmem:[%s4841 + $0x618] sm:$0xff]
        %v5038 = vld [vmem:[%s4841 + $0x620] sm:$0xff]
        %v5039 = vld [vmem:[%s4841 + $0x628] sm:$0xff]
        %v5040 = vld [vmem:[%s4841 + $0x630] sm:$0xff]
        %v5041 = vld [vmem:[%s4841 + $0x638] sm:$0xff]
        %v5042 = vld [vmem:[%s4841 + $0x640] sm:$0xff]
        %v5043 = vld [vmem:[%s4841 + $0x648] sm:$0xff]
        %v5044 = vld [vmem:[%s4841 + $0x650] sm:$0xff]
        %v5045 = vld [vmem:[%s4841 + $0x658] sm:$0xff]
        %v5046 = vld [vmem:[%s4841 + $0x660] sm:$0xff]
        %v5047 = vld [vmem:[%s4841 + $0x668] sm:$0xff]
        %v5048 = vld [vmem:[%s4841 + $0x670] sm:$0xff]
        %v5049 = vld [vmem:[%s4841 + $0x678] sm:$0xff]
        %v5050 = vld [vmem:[%s4841 + $0x680] sm:$0xff]
        %v5051 = vld [vmem:[%s4841 + $0x688] sm:$0xff]
        %v5052 = vld [vmem:[%s4841 + $0x690] sm:$0xff]
        %v5053 = vld [vmem:[%s4841 + $0x698] sm:$0xff]
        %v5054 = vld [vmem:[%s4841 + $0x6a0] sm:$0xff]
        %v5055 = vld [vmem:[%s4841 + $0x6a8] sm:$0xff]
        %v5056 = vld [vmem:[%s4841 + $0x6b0] sm:$0xff]
        %v5057 = vld [vmem:[%s4841 + $0x6b8] sm:$0xff]
        %v5058 = vld [vmem:[%s4841 + $0x6c0] sm:$0xff]
        %v5059 = vld [vmem:[%s4841 + $0x6c8] sm:$0xff]
        %v5060 = vld [vmem:[%s4841 + $0x6d0] sm:$0xff]
        %v5061 = vld [vmem:[%s4841 + $0x6d8] sm:$0xff]
        %v5062 = vld [vmem:[%s4841 + $0x6e0] sm:$0xff]
        %v5063 = vld [vmem:[%s4841 + $0x6e8] sm:$0xff]
        %v5064 = vld [vmem:[%s4841 + $0x6f0] sm:$0xff]
        %v5065 = vld [vmem:[%s4841 + $0x6f8] sm:$0xff]
        %v5066 = vld [vmem:[%s4841 + $0x700] sm:$0xff]
        %v5067 = vld [vmem:[%s4841 + $0x708] sm:$0xff]
        %v5068 = vld [vmem:[%s4841 + $0x710] sm:$0xff]
        %v5069 = vld [vmem:[%s4841 + $0x718] sm:$0xff]
        %v5070 = vld [vmem:[%s4841 + $0x720] sm:$0xff]
        %v5071 = vld [vmem:[%s4841 + $0x728] sm:$0xff]
        %v5072 = vld [vmem:[%s4841 + $0x730] sm:$0xff]
        %v5073 = vld [vmem:[%s4841 + $0x738] sm:$0xff]
        %v5074 = vld [vmem:[%s4841 + $0x740] sm:$0xff]
        %v5075 = vld [vmem:[%s4841 + $0x748] sm:$0xff]
        %v5076 = vld [vmem:[%s4841 + $0x750] sm:$0xff]
        %v5077 = vld [vmem:[%s4841 + $0x758] sm:$0xff]
        %v5078 = vld [vmem:[%s4841 + $0x760] sm:$0xff]
        %v5079 = vld [vmem:[%s4841 + $0x768] sm:$0xff]
        %v5080 = vld [vmem:[%s4841 + $0x770] sm:$0xff]
        %v5081 = vld [vmem:[%s4841 + $0x778] sm:$0xff]
        %v5082 = vld [vmem:[%s4841 + $0x780] sm:$0xff]
        %v5083 = vld [vmem:[%s4841 + $0x788] sm:$0xff]
        %v5084 = vld [vmem:[%s4841 + $0x790] sm:$0xff]
        %v5085 = vld [vmem:[%s4841 + $0x798] sm:$0xff]
        %v5086 = vld [vmem:[%s4841 + $0x7a0] sm:$0xff]
        %v5087 = vld [vmem:[%s4841 + $0x7a8] sm:$0xff]
        %v5088 = vld [vmem:[%s4841 + $0x7b0] sm:$0xff]
        %v5089 = vld [vmem:[%s4841 + $0x7b8] sm:$0xff]
        %v5090 = vld [vmem:[%s4841 + $0x7c0] sm:$0xff]
        %v5091 = vld [vmem:[%s4841 + $0x7c8] sm:$0xff]
        %v5092 = vld [vmem:[%s4841 + $0x7d0] sm:$0xff]
        %v5093 = vld [vmem:[%s4841 + $0x7d8] sm:$0xff]
        %v5094 = vld [vmem:[%s4841 + $0x7e0] sm:$0xff]
        %v5095 = vld [vmem:[%s4841 + $0x7e8] sm:$0xff]
        %v5096 = vld [vmem:[%s4841 + $0x7f0] sm:$0xff]
        %v5097 = vld [vmem:[%s4841 + $0x7f8] sm:$0xff]
        %s5098 = scalar_lea.vmem %s14, 1
        %v5099 = vld [vmem:[%s5098] sm:$0x1]
        %v5101 = vlaneseq
        %v5102 = vshrl.u32 %v5101, 7
        %v5103 = vsub.s32 0, %v5102
        %v5104 = vrot.slane %v5099, %v5103
        %5106 = vmatprep.subr.mxu0 0.0
        %5107 = vmatpush1.msra.mxu0 %v4857
        %5108 = vmatprep.subr.mxu0 0.0
        %5109 = vmatpush1.msra.mxu0 %v4856
        %5110 = vmatprep.subr.mxu0 0.0
        %5111 = vmatpush1.msra.mxu0 %v4855
        %5112 = vmatprep.subr.mxu0 0.0
        %5113 = vmatpush1.msra.mxu0 %v4854
        %5114 = vmatprep.subr.mxu0 0.0
        %5115 = vmatpush1.msra.mxu0 %v4853
        %5116 = vmatprep.subr.mxu0 0.0
        %5117 = vmatpush1.msra.mxu0 %v4852
        %5118 = vmatprep.subr.mxu0 0.0
        %5119 = vmatpush1.msra.mxu0 %v4851
        %5120 = vmatprep.subr.mxu0 0.0
        %5121 = vmatpush1.msra.mxu0 %v4850
        %5122 = vmatprep.subr.mxu0 0.0
        %5123 = vmatpush1.msra.mxu0 %v4849
        %5124 = vmatprep.subr.mxu0 0.0
        %5125 = vmatpush1.msra.mxu0 %v4848
        %5126 = vmatprep.subr.mxu0 0.0
        %5127 = vmatpush1.msra.mxu0 %v4847
        %5128 = vmatprep.subr.mxu0 0.0
        %5129 = vmatpush1.msra.mxu0 %v4846
        %5130 = vmatprep.subr.mxu0 0.0
        %5131 = vmatpush1.msra.mxu0 %v4845
        %5132 = vmatprep.subr.mxu0 0.0
        %5133 = vmatpush1.msra.mxu0 %v4844
        %5134 = vmatprep.subr.mxu0 0.0
        %5135 = vmatpush1.msra.mxu0 %v4843
        %5136 = vmatprep.subr.mxu0 0.0
        %5137 = vmatpush1.msra.mxu0 %v4842
        %5138 = vmatprep.subr.mxu0 0.0
        %5139 = vmatpush2.msra.mxu0 %v4873
        %5140 = vmatprep.subr.mxu0 0.0
        %5141 = vmatpush2.msra.mxu0 %v4872
        %5142 = vmatprep.subr.mxu0 0.0
        %5143 = vmatpush2.msra.mxu0 %v4871
        %5144 = vmatprep.subr.mxu0 0.0
        %5145 = vmatpush2.msra.mxu0 %v4870
        %5146 = vmatprep.subr.mxu0 0.0
        %5147 = vmatpush2.msra.mxu0 %v4869
        %5148 = vmatprep.subr.mxu0 0.0
        %5149 = vmatpush2.msra.mxu0 %v4868
        %5150 = vmatprep.subr.mxu0 0.0
        %5151 = vmatpush2.msra.mxu0 %v4867
        %5152 = vmatprep.subr.mxu0 0.0
        %5153 = vmatpush2.msra.mxu0 %v4866
        %5154 = vmatprep.subr.mxu0 0.0
        %5155 = vmatpush2.msra.mxu0 %v4865
        %5156 = vmatprep.subr.mxu0 0.0
        %5157 = vmatpush2.msra.mxu0 %v4864
        %5158 = vmatprep.subr.mxu0 0.0
        %5159 = vmatpush2.msra.mxu0 %v4863
        %5160 = vmatprep.subr.mxu0 0.0
        %5161 = vmatpush2.msra.mxu0 %v4862
        %5162 = vmatprep.subr.mxu0 0.0
        %5163 = vmatpush2.msra.mxu0 %v4861
        %5164 = vmatprep.subr.mxu0 0.0
        %5165 = vmatpush2.msra.mxu0 %v4860
        %5166 = vmatprep.subr.mxu0 0.0
        %5167 = vmatpush2.msra.mxu0 %v4859
        %5168 = vmatprep.subr.mxu0 0.0
        %5169 = vmatpush2.msra.mxu0 %v4858
        %5170 = vmatprep.mubr.f32.mxu0 %v4826
        %5171 = vmatmul.mubr.f32.gmra.mxu0 %v4825
        %v5172 = vpop.f32.mrf.mxu0
        %v5173 = vadd.f32 %v5104, %v5172
        %v5174 = vpop.f32.mrf.mxu0
        %5175 = vdwg.mxu0
        %5176 = vmatprep.subr.mxu0 0.0
        %5177 = vmatpush1.msra.mxu0 %v4889
        %5178 = vmatprep.subr.mxu0 0.0
        %5179 = vmatpush1.msra.mxu0 %v4888
        %5180 = vmatprep.subr.mxu0 0.0
        %5181 = vmatpush1.msra.mxu0 %v4887
        %5182 = vmatprep.subr.mxu0 0.0
        %5183 = vmatpush1.msra.mxu0 %v4886
        %5184 = vmatprep.subr.mxu0 0.0
        %5185 = vmatpush1.msra.mxu0 %v4885
        %5186 = vmatprep.subr.mxu0 0.0
        %5187 = vmatpush1.msra.mxu0 %v4884
        %5188 = vmatprep.subr.mxu0 0.0
        %5189 = vmatpush1.msra.mxu0 %v4883
        %5190 = vmatprep.subr.mxu0 0.0
        %5191 = vmatpush1.msra.mxu0 %v4882
        %5192 = vmatprep.subr.mxu0 0.0
        %5193 = vmatpush1.msra.mxu0 %v4881
        %5194 = vmatprep.subr.mxu0 0.0
        %5195 = vmatpush1.msra.mxu0 %v4880
        %5196 = vmatprep.subr.mxu0 0.0
        %5197 = vmatpush1.msra.mxu0 %v4879
        %5198 = vmatprep.subr.mxu0 0.0
        %5199 = vmatpush1.msra.mxu0 %v4878
        %5200 = vmatprep.subr.mxu0 0.0
        %5201 = vmatpush1.msra.mxu0 %v4877
        %5202 = vmatprep.subr.mxu0 0.0
        %5203 = vmatpush1.msra.mxu0 %v4876
        %5204 = vmatprep.subr.mxu0 0.0
        %5205 = vmatpush1.msra.mxu0 %v4875
        %5206 = vmatprep.subr.mxu0 0.0
        %5207 = vmatpush1.msra.mxu0 %v4874
        %5208 = vmatprep.subr.mxu0 0.0
        %5209 = vmatpush2.msra.mxu0 %v4905
        %5210 = vmatprep.subr.mxu0 0.0
        %5211 = vmatpush2.msra.mxu0 %v4904
        %5212 = vmatprep.subr.mxu0 0.0
        %5213 = vmatpush2.msra.mxu0 %v4903
        %5214 = vmatprep.subr.mxu0 0.0
        %5215 = vmatpush2.msra.mxu0 %v4902
        %5216 = vmatprep.subr.mxu0 0.0
        %5217 = vmatpush2.msra.mxu0 %v4901
        %5218 = vmatprep.subr.mxu0 0.0
        %5219 = vmatpush2.msra.mxu0 %v4900
        %5220 = vmatprep.subr.mxu0 0.0
        %5221 = vmatpush2.msra.mxu0 %v4899
        %5222 = vmatprep.subr.mxu0 0.0
        %5223 = vmatpush2.msra.mxu0 %v4898
        %5224 = vmatprep.subr.mxu0 0.0
        %5225 = vmatpush2.msra.mxu0 %v4897
        %5226 = vmatprep.subr.mxu0 0.0
        %5227 = vmatpush2.msra.mxu0 %v4896
        %5228 = vmatprep.subr.mxu0 0.0
        %5229 = vmatpush2.msra.mxu0 %v4895
        %5230 = vmatprep.subr.mxu0 0.0
        %5231 = vmatpush2.msra.mxu0 %v4894
        %5232 = vmatprep.subr.mxu0 0.0
        %5233 = vmatpush2.msra.mxu0 %v4893
        %5234 = vmatprep.subr.mxu0 0.0
        %5235 = vmatpush2.msra.mxu0 %v4892
        %5236 = vmatprep.subr.mxu0 0.0
        %5237 = vmatpush2.msra.mxu0 %v4891
        %5238 = vmatprep.subr.mxu0 0.0
        %5239 = vmatpush2.msra.mxu0 %v4890
        %5240 = vmatprep.mubr.f32.mxu0 %v4828
        %5241 = vmatmul.mubr.f32.gmra.mxu0 %v4827
        %v5242 = vpop.f32.mrf.mxu0
        %v5243 = vadd.f32 %v5173, %v5242
        %v5244 = vpop.f32.mrf.mxu0
        %5245 = vdwg.mxu0
        %5246 = vmatprep.subr.mxu0 0.0
        %5247 = vmatpush1.msra.mxu0 %v4921
        %5248 = vmatprep.subr.mxu0 0.0
        %5249 = vmatpush1.msra.mxu0 %v4920
        %5250 = vmatprep.subr.mxu0 0.0
        %5251 = vmatpush1.msra.mxu0 %v4919
        %5252 = vmatprep.subr.mxu0 0.0
        %5253 = vmatpush1.msra.mxu0 %v4918
        %5254 = vmatprep.subr.mxu0 0.0
        %5255 = vmatpush1.msra.mxu0 %v4917
        %5256 = vmatprep.subr.mxu0 0.0
        %5257 = vmatpush1.msra.mxu0 %v4916
        %5258 = vmatprep.subr.mxu0 0.0
        %5259 = vmatpush1.msra.mxu0 %v4915
        %5260 = vmatprep.subr.mxu0 0.0
        %5261 = vmatpush1.msra.mxu0 %v4914
        %5262 = vmatprep.subr.mxu0 0.0
        %5263 = vmatpush1.msra.mxu0 %v4913
        %5264 = vmatprep.subr.mxu0 0.0
        %5265 = vmatpush1.msra.mxu0 %v4912
        %5266 = vmatprep.subr.mxu0 0.0
        %5267 = vmatpush1.msra.mxu0 %v4911
        %5268 = vmatprep.subr.mxu0 0.0
        %5269 = vmatpush1.msra.mxu0 %v4910
        %5270 = vmatprep.subr.mxu0 0.0
        %5271 = vmatpush1.msra.mxu0 %v4909
        %5272 = vmatprep.subr.mxu0 0.0
        %5273 = vmatpush1.msra.mxu0 %v4908
        %5274 = vmatprep.subr.mxu0 0.0
        %5275 = vmatpush1.msra.mxu0 %v4907
        %5276 = vmatprep.subr.mxu0 0.0
        %5277 = vmatpush1.msra.mxu0 %v4906
        %5278 = vmatprep.subr.mxu0 0.0
        %5279 = vmatpush2.msra.mxu0 %v4937
        %5280 = vmatprep.subr.mxu0 0.0
        %5281 = vmatpush2.msra.mxu0 %v4936
        %5282 = vmatprep.subr.mxu0 0.0
        %5283 = vmatpush2.msra.mxu0 %v4935
        %5284 = vmatprep.subr.mxu0 0.0
        %5285 = vmatpush2.msra.mxu0 %v4934
        %5286 = vmatprep.subr.mxu0 0.0
        %5287 = vmatpush2.msra.mxu0 %v4933
        %5288 = vmatprep.subr.mxu0 0.0
        %5289 = vmatpush2.msra.mxu0 %v4932
        %5290 = vmatprep.subr.mxu0 0.0
        %5291 = vmatpush2.msra.mxu0 %v4931
        %5292 = vmatprep.subr.mxu0 0.0
        %5293 = vmatpush2.msra.mxu0 %v4930
        %5294 = vmatprep.subr.mxu0 0.0
        %5295 = vmatpush2.msra.mxu0 %v4929
        %5296 = vmatprep.subr.mxu0 0.0
        %5297 = vmatpush2.msra.mxu0 %v4928
        %5298 = vmatprep.subr.mxu0 0.0
        %5299 = vmatpush2.msra.mxu0 %v4927
        %5300 = vmatprep.subr.mxu0 0.0
        %5301 = vmatpush2.msra.mxu0 %v4926
        %5302 = vmatprep.subr.mxu0 0.0
        %5303 = vmatpush2.msra.mxu0 %v4925
        %5304 = vmatprep.subr.mxu0 0.0
        %5305 = vmatpush2.msra.mxu0 %v4924
        %5306 = vmatprep.subr.mxu0 0.0
        %5307 = vmatpush2.msra.mxu0 %v4923
        %5308 = vmatprep.subr.mxu0 0.0
        %5309 = vmatpush2.msra.mxu0 %v4922
        %5310 = vmatprep.mubr.f32.mxu0 %v4830
        %5311 = vmatmul.mubr.f32.gmra.mxu0 %v4829
        %v5312 = vpop.f32.mrf.mxu0
        %v5313 = vadd.f32 %v5243, %v5312
        %v5314 = vpop.f32.mrf.mxu0
        %5315 = vdwg.mxu0
        %5316 = vmatprep.subr.mxu0 0.0
        %5317 = vmatpush1.msra.mxu0 %v4953
        %5318 = vmatprep.subr.mxu0 0.0
        %5319 = vmatpush1.msra.mxu0 %v4952
        %5320 = vmatprep.subr.mxu0 0.0
        %5321 = vmatpush1.msra.mxu0 %v4951
        %5322 = vmatprep.subr.mxu0 0.0
        %5323 = vmatpush1.msra.mxu0 %v4950
        %5324 = vmatprep.subr.mxu0 0.0
        %5325 = vmatpush1.msra.mxu0 %v4949
        %5326 = vmatprep.subr.mxu0 0.0
        %5327 = vmatpush1.msra.mxu0 %v4948
        %5328 = vmatprep.subr.mxu0 0.0
        %5329 = vmatpush1.msra.mxu0 %v4947
        %5330 = vmatprep.subr.mxu0 0.0
        %5331 = vmatpush1.msra.mxu0 %v4946
        %5332 = vmatprep.subr.mxu0 0.0
        %5333 = vmatpush1.msra.mxu0 %v4945
        %5334 = vmatprep.subr.mxu0 0.0
        %5335 = vmatpush1.msra.mxu0 %v4944
        %5336 = vmatprep.subr.mxu0 0.0
        %5337 = vmatpush1.msra.mxu0 %v4943
        %5338 = vmatprep.subr.mxu0 0.0
        %5339 = vmatpush1.msra.mxu0 %v4942
        %5340 = vmatprep.subr.mxu0 0.0
        %5341 = vmatpush1.msra.mxu0 %v4941
        %5342 = vmatprep.subr.mxu0 0.0
        %5343 = vmatpush1.msra.mxu0 %v4940
        %5344 = vmatprep.subr.mxu0 0.0
        %5345 = vmatpush1.msra.mxu0 %v4939
        %5346 = vmatprep.subr.mxu0 0.0
        %5347 = vmatpush1.msra.mxu0 %v4938
        %5348 = vmatprep.subr.mxu0 0.0
        %5349 = vmatpush2.msra.mxu0 %v4969
        %5350 = vmatprep.subr.mxu0 0.0
        %5351 = vmatpush2.msra.mxu0 %v4968
        %5352 = vmatprep.subr.mxu0 0.0
        %5353 = vmatpush2.msra.mxu0 %v4967
        %5354 = vmatprep.subr.mxu0 0.0
        %5355 = vmatpush2.msra.mxu0 %v4966
        %5356 = vmatprep.subr.mxu0 0.0
        %5357 = vmatpush2.msra.mxu0 %v4965
        %5358 = vmatprep.subr.mxu0 0.0
        %5359 = vmatpush2.msra.mxu0 %v4964
        %5360 = vmatprep.subr.mxu0 0.0
        %5361 = vmatpush2.msra.mxu0 %v4963
        %5362 = vmatprep.subr.mxu0 0.0
        %5363 = vmatpush2.msra.mxu0 %v4962
        %5364 = vmatprep.subr.mxu0 0.0
        %5365 = vmatpush2.msra.mxu0 %v4961
        %5366 = vmatprep.subr.mxu0 0.0
        %5367 = vmatpush2.msra.mxu0 %v4960
        %5368 = vmatprep.subr.mxu0 0.0
        %5369 = vmatpush2.msra.mxu0 %v4959
        %5370 = vmatprep.subr.mxu0 0.0
        %5371 = vmatpush2.msra.mxu0 %v4958
        %5372 = vmatprep.subr.mxu0 0.0
        %5373 = vmatpush2.msra.mxu0 %v4957
        %5374 = vmatprep.subr.mxu0 0.0
        %5375 = vmatpush2.msra.mxu0 %v4956
        %5376 = vmatprep.subr.mxu0 0.0
        %5377 = vmatpush2.msra.mxu0 %v4955
        %5378 = vmatprep.subr.mxu0 0.0
        %5379 = vmatpush2.msra.mxu0 %v4954
        %5380 = vmatprep.mubr.f32.mxu0 %v4832
        %5381 = vmatmul.mubr.f32.gmra.mxu0 %v4831
        %v5382 = vpop.f32.mrf.mxu0
        %v5383 = vadd.f32 %v5313, %v5382
        %v5384 = vpop.f32.mrf.mxu0
        %5385 = vdwg.mxu0
        %5386 = vmatprep.subr.mxu0 0.0
        %5387 = vmatpush1.msra.mxu0 %v4985
        %5388 = vmatprep.subr.mxu0 0.0
        %5389 = vmatpush1.msra.mxu0 %v4984
        %5390 = vmatprep.subr.mxu0 0.0
        %5391 = vmatpush1.msra.mxu0 %v4983
        %5392 = vmatprep.subr.mxu0 0.0
        %5393 = vmatpush1.msra.mxu0 %v4982
        %5394 = vmatprep.subr.mxu0 0.0
        %5395 = vmatpush1.msra.mxu0 %v4981
        %5396 = vmatprep.subr.mxu0 0.0
        %5397 = vmatpush1.msra.mxu0 %v4980
        %5398 = vmatprep.subr.mxu0 0.0
        %5399 = vmatpush1.msra.mxu0 %v4979
        %5400 = vmatprep.subr.mxu0 0.0
        %5401 = vmatpush1.msra.mxu0 %v4978
        %5402 = vmatprep.subr.mxu0 0.0
        %5403 = vmatpush1.msra.mxu0 %v4977
        %5404 = vmatprep.subr.mxu0 0.0
        %5405 = vmatpush1.msra.mxu0 %v4976
        %5406 = vmatprep.subr.mxu0 0.0
        %5407 = vmatpush1.msra.mxu0 %v4975
        %5408 = vmatprep.subr.mxu0 0.0
        %5409 = vmatpush1.msra.mxu0 %v4974
        %5410 = vmatprep.subr.mxu0 0.0
        %5411 = vmatpush1.msra.mxu0 %v4973
        %5412 = vmatprep.subr.mxu0 0.0
        %5413 = vmatpush1.msra.mxu0 %v4972
        %5414 = vmatprep.subr.mxu0 0.0
        %5415 = vmatpush1.msra.mxu0 %v4971
        %5416 = vmatprep.subr.mxu0 0.0
        %5417 = vmatpush1.msra.mxu0 %v4970
        %5418 = vmatprep.subr.mxu0 0.0
        %5419 = vmatpush2.msra.mxu0 %v5001
        %5420 = vmatprep.subr.mxu0 0.0
        %5421 = vmatpush2.msra.mxu0 %v5000
        %5422 = vmatprep.subr.mxu0 0.0
        %5423 = vmatpush2.msra.mxu0 %v4999
        %5424 = vmatprep.subr.mxu0 0.0
        %5425 = vmatpush2.msra.mxu0 %v4998
        %5426 = vmatprep.subr.mxu0 0.0
        %5427 = vmatpush2.msra.mxu0 %v4997
        %5428 = vmatprep.subr.mxu0 0.0
        %5429 = vmatpush2.msra.mxu0 %v4996
        %5430 = vmatprep.subr.mxu0 0.0
        %5431 = vmatpush2.msra.mxu0 %v4995
        %5432 = vmatprep.subr.mxu0 0.0
        %5433 = vmatpush2.msra.mxu0 %v4994
        %5434 = vmatprep.subr.mxu0 0.0
        %5435 = vmatpush2.msra.mxu0 %v4993
        %5436 = vmatprep.subr.mxu0 0.0
        %5437 = vmatpush2.msra.mxu0 %v4992
        %5438 = vmatprep.subr.mxu0 0.0
        %5439 = vmatpush2.msra.mxu0 %v4991
        %5440 = vmatprep.subr.mxu0 0.0
        %5441 = vmatpush2.msra.mxu0 %v4990
        %5442 = vmatprep.subr.mxu0 0.0
        %5443 = vmatpush2.msra.mxu0 %v4989
        %5444 = vmatprep.subr.mxu0 0.0
        %5445 = vmatpush2.msra.mxu0 %v4988
        %5446 = vmatprep.subr.mxu0 0.0
        %5447 = vmatpush2.msra.mxu0 %v4987
        %5448 = vmatprep.subr.mxu0 0.0
        %5449 = vmatpush2.msra.mxu0 %v4986
        %5450 = vmatprep.mubr.f32.mxu0 %v4834
        %5451 = vmatmul.mubr.f32.gmra.mxu0 %v4833
        %v5452 = vpop.f32.mrf.mxu0
        %v5453 = vadd.f32 %v5383, %v5452
        %v5454 = vpop.f32.mrf.mxu0
        %5455 = vdwg.mxu0
        %5456 = vmatprep.subr.mxu0 0.0
        %5457 = vmatpush1.msra.mxu0 %v5017
        %5458 = vmatprep.subr.mxu0 0.0
        %5459 = vmatpush1.msra.mxu0 %v5016
        %5460 = vmatprep.subr.mxu0 0.0
        %5461 = vmatpush1.msra.mxu0 %v5015
        %5462 = vmatprep.subr.mxu0 0.0
        %5463 = vmatpush1.msra.mxu0 %v5014
        %5464 = vmatprep.subr.mxu0 0.0
        %5465 = vmatpush1.msra.mxu0 %v5013
        %5466 = vmatprep.subr.mxu0 0.0
        %5467 = vmatpush1.msra.mxu0 %v5012
        %5468 = vmatprep.subr.mxu0 0.0
        %5469 = vmatpush1.msra.mxu0 %v5011
        %5470 = vmatprep.subr.mxu0 0.0
        %5471 = vmatpush1.msra.mxu0 %v5010
        %5472 = vmatprep.subr.mxu0 0.0
        %5473 = vmatpush1.msra.mxu0 %v5009
        %5474 = vmatprep.subr.mxu0 0.0
        %5475 = vmatpush1.msra.mxu0 %v5008
        %5476 = vmatprep.subr.mxu0 0.0
        %5477 = vmatpush1.msra.mxu0 %v5007
        %5478 = vmatprep.subr.mxu0 0.0
        %5479 = vmatpush1.msra.mxu0 %v5006
        %5480 = vmatprep.subr.mxu0 0.0
        %5481 = vmatpush1.msra.mxu0 %v5005
        %5482 = vmatprep.subr.mxu0 0.0
        %5483 = vmatpush1.msra.mxu0 %v5004
        %5484 = vmatprep.subr.mxu0 0.0
        %5485 = vmatpush1.msra.mxu0 %v5003
        %5486 = vmatprep.subr.mxu0 0.0
        %5487 = vmatpush1.msra.mxu0 %v5002
        %5488 = vmatprep.subr.mxu0 0.0
        %5489 = vmatpush2.msra.mxu0 %v5033
        %5490 = vmatprep.subr.mxu0 0.0
        %5491 = vmatpush2.msra.mxu0 %v5032
        %5492 = vmatprep.subr.mxu0 0.0
        %5493 = vmatpush2.msra.mxu0 %v5031
        %5494 = vmatprep.subr.mxu0 0.0
        %5495 = vmatpush2.msra.mxu0 %v5030
        %5496 = vmatprep.subr.mxu0 0.0
        %5497 = vmatpush2.msra.mxu0 %v5029
        %5498 = vmatprep.subr.mxu0 0.0
        %5499 = vmatpush2.msra.mxu0 %v5028
        %5500 = vmatprep.subr.mxu0 0.0
        %5501 = vmatpush2.msra.mxu0 %v5027
        %5502 = vmatprep.subr.mxu0 0.0
        %5503 = vmatpush2.msra.mxu0 %v5026
        %5504 = vmatprep.subr.mxu0 0.0
        %5505 = vmatpush2.msra.mxu0 %v5025
        %5506 = vmatprep.subr.mxu0 0.0
        %5507 = vmatpush2.msra.mxu0 %v5024
        %5508 = vmatprep.subr.mxu0 0.0
        %5509 = vmatpush2.msra.mxu0 %v5023
        %5510 = vmatprep.subr.mxu0 0.0
        %5511 = vmatpush2.msra.mxu0 %v5022
        %5512 = vmatprep.subr.mxu0 0.0
        %5513 = vmatpush2.msra.mxu0 %v5021
        %5514 = vmatprep.subr.mxu0 0.0
        %5515 = vmatpush2.msra.mxu0 %v5020
        %5516 = vmatprep.subr.mxu0 0.0
        %5517 = vmatpush2.msra.mxu0 %v5019
        %5518 = vmatprep.subr.mxu0 0.0
        %5519 = vmatpush2.msra.mxu0 %v5018
        %5520 = vmatprep.mubr.f32.mxu0 %v4836
        %5521 = vmatmul.mubr.f32.gmra.mxu0 %v4835
        %v5522 = vpop.f32.mrf.mxu0
        %v5523 = vadd.f32 %v5453, %v5522
        %v5524 = vpop.f32.mrf.mxu0
        %5525 = vdwg.mxu0
        %5526 = vmatprep.subr.mxu0 0.0
        %5527 = vmatpush1.msra.mxu0 %v5049
        %5528 = vmatprep.subr.mxu0 0.0
        %5529 = vmatpush1.msra.mxu0 %v5048
        %5530 = vmatprep.subr.mxu0 0.0
        %5531 = vmatpush1.msra.mxu0 %v5047
        %5532 = vmatprep.subr.mxu0 0.0
        %5533 = vmatpush1.msra.mxu0 %v5046
        %5534 = vmatprep.subr.mxu0 0.0
        %5535 = vmatpush1.msra.mxu0 %v5045
        %5536 = vmatprep.subr.mxu0 0.0
        %5537 = vmatpush1.msra.mxu0 %v5044
        %5538 = vmatprep.subr.mxu0 0.0
        %5539 = vmatpush1.msra.mxu0 %v5043
        %5540 = vmatprep.subr.mxu0 0.0
        %5541 = vmatpush1.msra.mxu0 %v5042
        %5542 = vmatprep.subr.mxu0 0.0
        %5543 = vmatpush1.msra.mxu0 %v5041
        %5544 = vmatprep.subr.mxu0 0.0
        %5545 = vmatpush1.msra.mxu0 %v5040
        %5546 = vmatprep.subr.mxu0 0.0
        %5547 = vmatpush1.msra.mxu0 %v5039
        %5548 = vmatprep.subr.mxu0 0.0
        %5549 = vmatpush1.msra.mxu0 %v5038
        %5550 = vmatprep.subr.mxu0 0.0
        %5551 = vmatpush1.msra.mxu0 %v5037
        %5552 = vmatprep.subr.mxu0 0.0
        %5553 = vmatpush1.msra.mxu0 %v5036
        %5554 = vmatprep.subr.mxu0 0.0
        %5555 = vmatpush1.msra.mxu0 %v5035
        %5556 = vmatprep.subr.mxu0 0.0
        %5557 = vmatpush1.msra.mxu0 %v5034
        %5558 = vmatprep.subr.mxu0 0.0
        %5559 = vmatpush2.msra.mxu0 %v5065
        %5560 = vmatprep.subr.mxu0 0.0
        %5561 = vmatpush2.msra.mxu0 %v5064
        %5562 = vmatprep.subr.mxu0 0.0
        %5563 = vmatpush2.msra.mxu0 %v5063
        %5564 = vmatprep.subr.mxu0 0.0
        %5565 = vmatpush2.msra.mxu0 %v5062
        %5566 = vmatprep.subr.mxu0 0.0
        %5567 = vmatpush2.msra.mxu0 %v5061
        %5568 = vmatprep.subr.mxu0 0.0
        %5569 = vmatpush2.msra.mxu0 %v5060
        %5570 = vmatprep.subr.mxu0 0.0
        %5571 = vmatpush2.msra.mxu0 %v5059
        %5572 = vmatprep.subr.mxu0 0.0
        %5573 = vmatpush2.msra.mxu0 %v5058
        %5574 = vmatprep.subr.mxu0 0.0
        %5575 = vmatpush2.msra.mxu0 %v5057
        %5576 = vmatprep.subr.mxu0 0.0
        %5577 = vmatpush2.msra.mxu0 %v5056
        %5578 = vmatprep.subr.mxu0 0.0
        %5579 = vmatpush2.msra.mxu0 %v5055
        %5580 = vmatprep.subr.mxu0 0.0
        %5581 = vmatpush2.msra.mxu0 %v5054
        %5582 = vmatprep.subr.mxu0 0.0
        %5583 = vmatpush2.msra.mxu0 %v5053
        %5584 = vmatprep.subr.mxu0 0.0
        %5585 = vmatpush2.msra.mxu0 %v5052
        %5586 = vmatprep.subr.mxu0 0.0
        %5587 = vmatpush2.msra.mxu0 %v5051
        %5588 = vmatprep.subr.mxu0 0.0
        %5589 = vmatpush2.msra.mxu0 %v5050
        %5590 = vmatprep.mubr.f32.mxu0 %v4838
        %5591 = vmatmul.mubr.f32.gmra.mxu0 %v4837
        %v5592 = vpop.f32.mrf.mxu0
        %v5593 = vadd.f32 %v5523, %v5592
        %v5594 = vpop.f32.mrf.mxu0
        %5595 = vdwg.mxu0
        %5596 = vmatprep.subr.mxu0 0.0
        %5597 = vmatpush1.msra.mxu0 %v5081
        %5598 = vmatprep.subr.mxu0 0.0
        %5599 = vmatpush1.msra.mxu0 %v5080
        %5600 = vmatprep.subr.mxu0 0.0
        %5601 = vmatpush1.msra.mxu0 %v5079
        %5602 = vmatprep.subr.mxu0 0.0
        %5603 = vmatpush1.msra.mxu0 %v5078
        %5604 = vmatprep.subr.mxu0 0.0
        %5605 = vmatpush1.msra.mxu0 %v5077
        %5606 = vmatprep.subr.mxu0 0.0
        %5607 = vmatpush1.msra.mxu0 %v5076
        %5608 = vmatprep.subr.mxu0 0.0
        %5609 = vmatpush1.msra.mxu0 %v5075
        %5610 = vmatprep.subr.mxu0 0.0
        %5611 = vmatpush1.msra.mxu0 %v5074
        %5612 = vmatprep.subr.mxu0 0.0
        %5613 = vmatpush1.msra.mxu0 %v5073
        %5614 = vmatprep.subr.mxu0 0.0
        %5615 = vmatpush1.msra.mxu0 %v5072
        %5616 = vmatprep.subr.mxu0 0.0
        %5617 = vmatpush1.msra.mxu0 %v5071
        %5618 = vmatprep.subr.mxu0 0.0
        %5619 = vmatpush1.msra.mxu0 %v5070
        %5620 = vmatprep.subr.mxu0 0.0
        %5621 = vmatpush1.msra.mxu0 %v5069
        %5622 = vmatprep.subr.mxu0 0.0
        %5623 = vmatpush1.msra.mxu0 %v5068
        %5624 = vmatprep.subr.mxu0 0.0
        %5625 = vmatpush1.msra.mxu0 %v5067
        %5626 = vmatprep.subr.mxu0 0.0
        %5627 = vmatpush1.msra.mxu0 %v5066
        %5628 = vmatprep.subr.mxu0 0.0
        %5629 = vmatpush2.msra.mxu0 %v5097
        %5630 = vmatprep.subr.mxu0 0.0
        %5631 = vmatpush2.msra.mxu0 %v5096
        %5632 = vmatprep.subr.mxu0 0.0
        %5633 = vmatpush2.msra.mxu0 %v5095
        %5634 = vmatprep.subr.mxu0 0.0
        %5635 = vmatpush2.msra.mxu0 %v5094
        %5636 = vmatprep.subr.mxu0 0.0
        %5637 = vmatpush2.msra.mxu0 %v5093
        %5638 = vmatprep.subr.mxu0 0.0
        %5639 = vmatpush2.msra.mxu0 %v5092
        %5640 = vmatprep.subr.mxu0 0.0
        %5641 = vmatpush2.msra.mxu0 %v5091
        %5642 = vmatprep.subr.mxu0 0.0
        %5643 = vmatpush2.msra.mxu0 %v5090
        %5644 = vmatprep.subr.mxu0 0.0
        %5645 = vmatpush2.msra.mxu0 %v5089
        %5646 = vmatprep.subr.mxu0 0.0
        %5647 = vmatpush2.msra.mxu0 %v5088
        %5648 = vmatprep.subr.mxu0 0.0
        %5649 = vmatpush2.msra.mxu0 %v5087
        %5650 = vmatprep.subr.mxu0 0.0
        %5651 = vmatpush2.msra.mxu0 %v5086
        %5652 = vmatprep.subr.mxu0 0.0
        %5653 = vmatpush2.msra.mxu0 %v5085
        %5654 = vmatprep.subr.mxu0 0.0
        %5655 = vmatpush2.msra.mxu0 %v5084
        %5656 = vmatprep.subr.mxu0 0.0
        %5657 = vmatpush2.msra.mxu0 %v5083
        %5658 = vmatprep.subr.mxu0 0.0
        %5659 = vmatpush2.msra.mxu0 %v5082
        %5660 = vmatprep.mubr.f32.mxu0 %v4840
        %5661 = vmatmul.mubr.f32.gmra.mxu0 %v4839
        %v5662 = vpop.f32.mrf.mxu0
        %v5663 = vadd.f32 %v5593, %v5662
        %v5664 = vpop.f32.mrf.mxu0
        %5665 = vdwg.mxu0
        %v5666 = vadd.f32 %v4039, %v5663
        %s5667 = scalar_lea.vmem %s9, 1
        %v5668 = vld [vmem:[%s5667] sm:$0x1]
        %s5669 = scalar_lea.vmem %s10, 1
        %v5670 = vld [vmem:[%s5669] sm:$0x1]
        %v5671 = vsel %vm621, %v5666, 0.0
        %5672 = vadd.xlane.f32.xlu0 %v5671
        %v5673 = vpop.xlane.xlu0 %5672
        %v5674 = vmul.f32 %v5673, %v1465
        %v5675 = vsub.f32 %v5666, %v5674
        %v5676 = vmul.f32 %v5675, %v5675
        %v5677 = vsel %vm621, %v5676, 0.0
        %5678 = vadd.xlane.f32.xlu0 %v5677
        %v5679 = vpop.xlane.xlu0 %5678
        %v5680 = vmul.f32 %v5679, %v1465
        %v5681 = vadd.f32 %v5680, 1e-05
        %v5682 = vrsqrt.pop %v5681
        %v5683 = vmul.f32 %v5675, %v5682
        %v5685 = vlaneseq
        %v5686 = vshrl.u32 %v5685, 7
        %v5687 = vsub.s32 0, %v5686
        %v5688 = vrot.slane %v5668, %v5687
        %v5690 = vmul.f32 %v5683, %v5688
        %v5692 = vlaneseq
        %v5693 = vshrl.u32 %v5692, 7
        %v5694 = vsub.s32 0, %v5693
        %v5695 = vrot.slane %v5670, %v5694
        %v5697 = vadd.f32 %v5690, %v5695
        %v5698 = vadd.f32 %v5697, 0.0
        %p5699 = scmp.eq.s32.totalorder %s34, 0
        // Predicated region
        $region81: #{tpu_custom_call.1} parent=79 // pred_check
          %p5700 = pneg %p5699
        $region82: #{tpu_custom_call.1} parent=79 // pred_check_branch
          %5702 = sbr.rel (%p5700) target = $region84
        $region83: #{tpu_custom_call.1} parent=79 // pred_region
          %5703 = vst.msk [vmem:[%s502] sm:$0xff] %vm621, 0.0
        $region84: #{tpu_custom_call.1} parent=79 // pred_fallthru
          _
        %v5704 = vld [vmem:[%s502] sm:$0xff]
        %v5705 = vadd.f32 %v5704, %v5698
        %5706 = vst.msk [vmem:[%s502] sm:$0xff] %vm621, %v5705
        %s5707 = sand.u32 %s371, 1
        %s5708 = scalar_lea.sflag [#allocation3], %s5707
        %s5709 = sand.u32 %s371, 1
        %s5710 = smul.addr %s5709, 8
        %s5711 = scalar_lea.vmem [#allocation2], %s5710
        // Predicated region
        $region85: #{tpu_custom_call.1} parent=79 // pred_check
          %p5712 = pneg %p381
        $region86: #{tpu_custom_call.1} parent=79 // pred_check_branch
          %5714 = sbr.rel (%p5712) target = $region88
        $region87: #{tpu_custom_call.1} parent=79 // pred_region
          %s5716 = ssub.s32 128, 128
          %5717 = vsyncadd %s5708, %s5716
          %s5718 = smul.addr %s33, 128
          %s5719 = scalar_lea.hbm %s15, %s5718
          %s5721 = sshll.u32 %s5711, 4
          %s5722 = int_to_ptr.vmem [resolvable:$true] %s5721
          %5724 = dma.vmem_to_hbm [thread:$0]  %s5722, 128, %s5719, %s5708
        $region88: #{tpu_custom_call.1} parent=79 // pred_fallthru
          _
      $region80: #{tpu_custom_call.1} parent=5 // pred_fallthru
        _
      %p5725 = scmp.le.s32.totalorder 2, %s24
      // Predicated region
      $region89: #{tpu_custom_call.1} parent=5 // pred_check
        %p5726 = pneg %p5725
      $region90: #{tpu_custom_call.1} parent=5 // pred_check_branch
        %5728 = sbr.rel (%p5726) target = $region92
      $region91: #{tpu_custom_call.1} parent=5 // pred_region
        %s5729 = ssub.s32 %s24, 2
        // Predicated region
        $region93: #{tpu_custom_call.1} parent=91 // pred_check
          %p5730 = pneg %p387
        $region94: #{tpu_custom_call.1} parent=91 // pred_check_branch
          %5732 = sbr.rel (%p5730) target = $region96
        $region95: #{tpu_custom_call.1} parent=91 // pred_region
          %s5733 = sand.u32 %s372, 1
          %s5734 = scalar_lea.sflag [#allocation3], %s5733
          %s5735 = sand.u32 %s372, 1
          %s5736 = smul.addr %s5735, 8
          %s5737 = scalar_lea.vmem [#allocation2], %s5736
          %5738 = dma.done %s5734, 128
        $region96: #{tpu_custom_call.1} parent=91 // pred_fallthru
          _
      $region92: #{tpu_custom_call.1} parent=5 // pred_fallthru
        _
    $region6: #{tpu_custom_call.1} parent=1 // loop_footer
      %s28 = sadd.s32 1, %s24
    $region7: #{tpu_custom_call.1} parent=1 // loop_footer_branch
      %23 = sbr.rel target = $region3
    $region8: #{tpu_custom_call.1} parent=1 // loop_exit
      _
    %5739 = vsyncpa [#allocation3], 1
    %s5740 = scalar_lea.sflag [#allocation3], 1
    %5741 = vsyncpa %s5740, 1

</llo_original>
